<compile_context>
chip_gen: v7x
topology: tpu7x:2x2x1
jax: 0.10.0
libtpu: 0.0.40
codegen_flags: <defaults>
</compile_context>

<pallas_src>
import jax
import jax.numpy as jnp
from jax.experimental import pallas as pl
from jax.experimental.pallas import tpu as pltpu

EPS = 1e-5
VMEM_LIMIT = 32 * 1024 * 1024  # safe on all generations for these tiny blocks


# --------------------------------------------------------------------------
# Shared conv body: 3x3, stride 1, pad 1 on one [H, W, Cp] bf16 image.
# Halo is built in VMEM; per-kw im2col (K = 3*Cp) accumulated in f32.
# --------------------------------------------------------------------------
def _conv3x3_body(x, w, H, W, Cp):
    # x: [H, W, Cp] bf16, w: [3, 3*Cp, Cp] bf16  ->  [H*W, Cp] f32
    zrow = jnp.zeros((1, W, Cp), x.dtype)
    xh = jnp.concatenate([zrow, x, zrow], axis=0)        # [H+2, W,   Cp]
    zcol = jnp.zeros((H + 2, 1, Cp), x.dtype)
    xp = jnp.concatenate([zcol, xh, zcol], axis=1)       # [H+2, W+2, Cp]

    acc = jnp.zeros((H * W, Cp), jnp.float32)
    for kw in range(3):
        xw = xp[:, kw:kw + W, :]                         # [H+2, W, Cp]
        col = jnp.concatenate([xw[kh:kh + H] for kh in range(3)], axis=-1)
        acc = acc + jnp.dot(col.reshape(H * W, 3 * Cp), w[kw],
                            preferred_element_type=jnp.float32)
    return acc


def _pack_stats(s, q, Cp):
    # Pack per-step partial sums into an (8, Cp) lane/sublane-aligned row slab:
    # row 0 = sum, row 1 = sum of squares, rows 2..7 = 0.
    return jnp.concatenate([s, q, jnp.zeros((6, Cp), jnp.float32)], axis=0)


# --------------------------------------------------------------------------
# Kernel 1: conv1 + per-step BN partial statistics.
# --------------------------------------------------------------------------
def conv3x3_stats_kernel(x_ref, w_ref, raw_ref, stats_ref):
    bt, H, W, Cp = x_ref.shape
    w = w_ref[...]
    s = jnp.zeros((1, Cp), jnp.float32)
    q = jnp.zeros((1, Cp), jnp.float32)
    for b in range(bt):                                   # static unroll
        acc = _conv3x3_body(x_ref[b], w, H, W, Cp)
        raw_ref[b] = acc.reshape(H, W, Cp).astype(raw_ref.dtype)
        s = s + jnp.sum(acc, axis=0, keepdims=True)
        q = q + jnp.sum(acc * acc, axis=0, keepdims=True)
    stats_ref[0] = _pack_stats(s, q, Cp)


# --------------------------------------------------------------------------
# Kernel 2: fused bn1-apply + ReLU prologue, then conv2 + BN partial stats.
# --------------------------------------------------------------------------
def bn_relu_conv3x3_stats_kernel(raw1_ref, scale_ref, shift_ref, w_ref,
                                 raw2_ref, stats_ref):
    bt, H, W, Cp = raw1_ref.shape
    w = w_ref[...]
    scale = scale_ref[0]
    shift = shift_ref[0]
    s = jnp.zeros((1, Cp), jnp.float32)
    q = jnp.zeros((1, Cp), jnp.float32)
    for b in range(bt):
        y = raw1_ref[b].astype(jnp.float32) * scale + shift
        y = jnp.maximum(y, 0.0).astype(jnp.bfloat16)
        acc = _conv3x3_body(y, w, H, W, Cp)
        raw2_ref[b] = acc.reshape(H, W, Cp).astype(raw2_ref.dtype)
        s = s + jnp.sum(acc, axis=0, keepdims=True)
        q = q + jnp.sum(acc * acc, axis=0, keepdims=True)
    stats_ref[0] = _pack_stats(s, q, Cp)


# --------------------------------------------------------------------------
# Kernel 3: bn2-apply + residual add + ReLU.
# --------------------------------------------------------------------------
def bn_add_relu_kernel(raw_ref, scale_ref, shift_ref, idn_ref, o_ref):
    y = (raw_ref[...].astype(jnp.float32) * scale_ref[0] + shift_ref[0]
         + idn_ref[...])
    o_ref[...] = jnp.maximum(y, 0.0).astype(o_ref.dtype)


# --------------------------------------------------------------------------
# pallas_call wrappers
# --------------------------------------------------------------------------
def _batch_tile(N, H, W, Cp, target_bytes=1 << 20):
    # Fold batch elements so each grid step moves a decent amount of data.
    per_image = H * W * Cp * 2                        # bf16 activation bytes
    bt = max(1, min(N, target_bytes // per_image))
    while N % bt:
        bt -= 1
    return bt


def _conv_specs(N, H, W, Cp, bt):
    nt = N // bt
    blk_act = pl.BlockSpec((bt, H, W, Cp), lambda n: (n, 0, 0, 0))
    blk_w = pl.BlockSpec((3, 3 * Cp, Cp), lambda n: (0, 0, 0))
    blk_stats = pl.BlockSpec((1, 8, Cp), lambda n: (n, 0, 0))
    blk_vec = pl.BlockSpec((1, Cp), lambda n: (0, 0))
    return nt, blk_act, blk_w, blk_stats, blk_vec


def _conv3x3_stats(x, w_slabs, bt):
    N, H, W, Cp = x.shape
    nt, blk_act, blk_w, blk_stats, _ = _conv_specs(N, H, W, Cp, bt)
    flops = 2 * N * H * W * 9 * Cp * Cp
    bytes_acc = (x.size + w_slabs.size + N * H * W * Cp) * 2 + nt * 8 * Cp * 4
    return pl.pallas_call(
        conv3x3_stats_kernel,
        out_shape=(jax.ShapeDtypeStruct((N, H, W, Cp), jnp.bfloat16),
                   jax.ShapeDtypeStruct((nt, 8, Cp), jnp.float32)),
        grid=(nt,),
        in_specs=[blk_act, blk_w],
        out_specs=(blk_act, blk_stats),
        compiler_params=pltpu.CompilerParams(
            dimension_semantics=("parallel",),
            vmem_limit_bytes=VMEM_LIMIT),
        cost_estimate=pl.CostEstimate(flops=flops, transcendentals=0,
                                      bytes_accessed=bytes_acc),
    )(x, w_slabs)


def _bn_relu_conv3x3_stats(raw1, scale, shift, w_slabs, bt):
    N, H, W, Cp = raw1.shape
    nt, blk_act, blk_w, blk_stats, blk_vec = _conv_specs(N, H, W, Cp, bt)
    flops = 2 * N * H * W * 9 * Cp * Cp
    bytes_acc = (raw1.size + w_slabs.size + N * H * W * Cp) * 2 + nt * 8 * Cp * 4
    return pl.pallas_call(
        bn_relu_conv3x3_stats_kernel,
        out_shape=(jax.ShapeDtypeStruct((N, H, W, Cp), jnp.bfloat16),
                   jax.ShapeDtypeStruct((nt, 8, Cp), jnp.float32)),
        grid=(nt,),
        in_specs=[blk_act, blk_vec, blk_vec, blk_w],
        out_specs=(blk_act, blk_stats),
        compiler_params=pltpu.CompilerParams(
            dimension_semantics=("parallel",),
            vmem_limit_bytes=VMEM_LIMIT),
        cost_estimate=pl.CostEstimate(flops=flops, transcendentals=0,
                                      bytes_accessed=bytes_acc),
    )(raw1, scale, shift, w_slabs)


def _bn_add_relu(raw, scale, shift, identity, bt):
    N, H, W, Cp = raw.shape
    nt, blk_act, _, _, blk_vec = _conv_specs(N, H, W, Cp, bt)
    return pl.pallas_call(
        bn_add_relu_kernel,
        out_shape=jax.ShapeDtypeStruct((N, H, W, Cp), jnp.float32),
        grid=(nt,),
        in_specs=[blk_act, blk_vec, blk_vec, blk_act],
        out_specs=blk_act,
        compiler_params=pltpu.CompilerParams(
            dimension_semantics=("parallel",),
            vmem_limit_bytes=VMEM_LIMIT),
    )(raw, scale, shift, identity)


# --------------------------------------------------------------------------
# Wrapper: PyTorch-equivalent forward (NCHW in / NCHW out).
# --------------------------------------------------------------------------
def _w_slabs(w, C, Cp):
    # HWIO [3,3,C,C] -> channel-pad -> per-kw slab [3 (kw), 3*Cp (kh,cin), Cp]
    wp = jnp.pad(w, ((0, 0), (0, 0), (0, Cp - C), (0, Cp - C)))
    return jnp.stack([wp[:, kw].reshape(3 * Cp, Cp) for kw in range(3)], axis=0)


def _bn_coeffs(stats, count, gamma, beta):
    # Reduce per-grid-step partials; fold batch stats into scale/shift.
    s = jnp.sum(stats[:, 0, :], axis=0)
    q = jnp.sum(stats[:, 1, :], axis=0)
    mean = s / count
    var = q / count - mean * mean            # one-pass (biased) variance
    scale = gamma * jax.lax.rsqrt(var + EPS)
    shift = beta - mean * scale
    return scale.reshape(1, -1), shift.reshape(1, -1)


def basic_block_forward(x_nchw, params):
    w1, g1, b1, w2, g2, b2 = params
    N, C, H, W = x_nchw.shape
    Cp = ((C + 127) // 128) * 128            # lane-dense channel axis

    x = jnp.transpose(x_nchw, (0, 2, 3, 1))                    # NCHW -> NHWC
    xcp = jnp.pad(x, ((0, 0), (0, 0), (0, 0), (0, Cp - C)))    # f32 identity
    x_bf = xcp.astype(jnp.bfloat16)                            # bf16 conv input

    pad_c = lambda v: jnp.pad(v, (0, Cp - C))
    w1s = _w_slabs(w1, C, Cp).astype(jnp.bfloat16)
    w2s = _w_slabs(w2, C, Cp).astype(jnp.bfloat16)

    bt = _batch_tile(N, H, W, Cp)
    count = N * H * W

    # conv1 + stats  (bn1 is applied inside the next kernel's prologue)
    raw1, st1 = _conv3x3_stats(x_bf, w1s, bt)
    sc1, sh1 = _bn_coeffs(st1, count, pad_c(g1), pad_c(b1))

    # bn1 + relu + conv2 + stats (fused; y1 never hits HBM)
    raw2, st2 = _bn_relu_conv3x3_stats(raw1, sc1, sh1, w2s, bt)
    sc2, sh2 = _bn_coeffs(st2, count, pad_c(g2), pad_c(b2))

    # bn2 + residual + relu
    out = _bn_add_relu(raw2, sc2, sh2, xcp, bt)

    return jnp.transpose(out[..., :C], (0, 3, 1, 2))           # NHWC -> NCHW


# --------------------------------------------------------------------------
# Pure-JAX f32 reference (XLA conv), same semantics, for validation.
# --------------------------------------------------------------------------
def reference_forward(x_nchw, params):
    w1, g1, b1, w2, g2, b2 = params

    def conv(x, w):
        return jax.lax.conv_general_dilated(
            x, w, window_strides=(1, 1), padding=((1, 1), (1, 1)),
            dimension_numbers=("NCHW", "HWIO", "NCHW"))

    def bn(x, g, b):
        m = jnp.mean(x, axis=(0, 2, 3), keepdims=True)
        v = jnp.mean((x - m) ** 2, axis=(0, 2, 3), keepdims=True)
        return ((x - m) * jax.lax.rsqrt(v + EPS) * g.reshape(1, -1, 1, 1)
                + b.reshape(1, -1, 1, 1))

    out = jax.nn.relu(bn(conv(x_nchw, w1), g1, b1))
    out = bn(conv(out, w2), g2, b2)
    return jax.nn.relu(out + x_nchw)


def init_params(key, channels):
    k1, k2, k3, k4, k5, k6 = jax.random.split(key, 6)
    std = (2.0 / (9.0 * channels)) ** 0.5
    w1 = std * jax.random.normal(k1, (3, 3, channels, channels), jnp.float32)
    w2 = std * jax.random.normal(k2, (3, 3, channels, channels), jnp.float32)
    g1 = 1.0 + 0.1 * jax.random.normal(k3, (channels,), jnp.float32)
    b1 = 0.1 * jax.random.normal(k4, (channels,), jnp.float32)
    g2 = 1.0 + 0.1 * jax.random.normal(k5, (channels,), jnp.float32)
    b2 = 0.1 * jax.random.normal(k6, (channels,), jnp.float32)
    return (w1, g1, b1, w2, g2, b2)


if __name__ == "__main__":
    key = jax.random.PRNGKey(0)
    kx, kp = jax.random.split(key)

    N, C, H, W = 2, 4, 16, 16          # in_channels == out_channels, stride=1
    x = jax.random.normal(kx, (N, C, H, W), jnp.float32)
    params = init_params(kp, C)

    fwd = jax.jit(basic_block_forward)
    out = jax.block_until_ready(fwd(x, params))
    ref = jax.block_until_ready(reference_forward(x, params))

    assert out.shape == (N, C, H, W), out.shape
    # bf16 MXU operands + bf16 raw intermediates => looser max-abs tolerance
    # than a pure-f32 path; the mean-abs check keeps the test meaningful.
    max_err = float(jnp.max(jnp.abs(out - ref)))
    mean_err = float(jnp.mean(jnp.abs(out - ref)))
    assert max_err < 1e-1, max_err
    assert mean_err < 1e-2, mean_err
    print("KERNEL_OK")
</pallas_src>

<mosaic_0001>
module attributes {stable_mosaic.version = 11 : i64} {
  func.func @conv3x3_stats_kernel(%arg0: i32, %arg1: memref<2x16x16x128xbf16, #tpu.memory_space<vmem>>, %arg2: memref<3x384x128xbf16, #tpu.memory_space<vmem>>, %arg3: memref<2x16x16x128xbf16, #tpu.memory_space<vmem>>, %arg4: memref<1x8x128xf32, #tpu.memory_space<vmem>>) attributes {dimension_semantics = [#tpu.dimension_semantics<parallel>], iteration_bounds = array<i64: 1>, scalar_prefetch = 0 : i64, scratch_operands = 0 : i64, tpu.core_type = #tpu.core_type<tc>, window_params = [{transform_indices = @transform_0, window_bounds = array<i64: 2, 16, 16, 128>}, {pipeline_mode = #tpu.pipeline_mode<synchronous>, transform_indices = @transform_1, window_bounds = array<i64: 3, 384, 128>}, {transform_indices = @transform_2, window_bounds = array<i64: 2, 16, 16, 128>}, {transform_indices = @transform_3, window_bounds = array<i64: 1, 8, 128>}]} {
    %c0 = arith.constant 0 : index
    %c0_0 = arith.constant 0 : index
    %c0_1 = arith.constant 0 : index
    %0 = vector.load %arg2[%c0, %c0_0, %c0_1] : memref<3x384x128xbf16, #tpu.memory_space<vmem>>, vector<3x384x128xbf16>
    %cst = arith.constant 0.000000e+00 : f32
    %1 = vector.broadcast %cst : f32 to vector<1x128xf32>
    %cst_2 = arith.constant 0.000000e+00 : f32
    %2 = vector.broadcast %cst_2 : f32 to vector<1x128xf32>
    %c0_3 = arith.constant 0 : index
    %c0_4 = arith.constant 0 : index
    %c0_5 = arith.constant 0 : index
    %c0_6 = arith.constant 0 : index
    %3 = vector.load %arg1[%c0_3, %c0_4, %c0_5, %c0_6] : memref<2x16x16x128xbf16, #tpu.memory_space<vmem>>, vector<1x16x16x128xbf16>
    %4 = vector.shape_cast %3 : vector<1x16x16x128xbf16> to vector<16x16x128xbf16>
    %cst_7 = arith.constant 0.000000e+00 : bf16
    %5 = vector.broadcast %cst_7 : bf16 to vector<1x16x128xbf16>
    %6 = tpu.concatenate %5, %4, %5 in 0 : vector<1x16x128xbf16>, vector<16x16x128xbf16>, vector<1x16x128xbf16> -> vector<18x16x128xbf16>
    %cst_8 = arith.constant 0.000000e+00 : bf16
    %7 = vector.broadcast %cst_8 : bf16 to vector<18x1x128xbf16>
    %8 = tpu.concatenate %7, %6, %7 in 1 : vector<18x1x128xbf16>, vector<18x16x128xbf16>, vector<18x1x128xbf16> -> vector<18x18x128xbf16>
    %cst_9 = arith.constant 0.000000e+00 : f32
    %9 = vector.broadcast %cst_9 : f32 to vector<256x128xf32>
    %10 = vector.extract_strided_slice %8 {offsets = [0, 0, 0], sizes = [18, 16, 128], strides = [1, 1, 1]} : vector<18x18x128xbf16> to vector<18x16x128xbf16>
    %11 = vector.extract_strided_slice %10 {offsets = [0, 0, 0], sizes = [16, 16, 128], strides = [1, 1, 1]} : vector<18x16x128xbf16> to vector<16x16x128xbf16>
    %12 = vector.extract_strided_slice %10 {offsets = [1, 0, 0], sizes = [16, 16, 128], strides = [1, 1, 1]} : vector<18x16x128xbf16> to vector<16x16x128xbf16>
    %13 = vector.extract_strided_slice %10 {offsets = [2, 0, 0], sizes = [16, 16, 128], strides = [1, 1, 1]} : vector<18x16x128xbf16> to vector<16x16x128xbf16>
    %14 = tpu.concatenate %11, %12, %13 in 2 : vector<16x16x128xbf16>, vector<16x16x128xbf16>, vector<16x16x128xbf16> -> vector<16x16x384xbf16>
    %15 = vector.shape_cast %14 : vector<16x16x384xbf16> to vector<256x384xbf16>
    %16 = vector.extract_strided_slice %0 {offsets = [0, 0, 0], sizes = [1, 384, 128], strides = [1, 1, 1]} : vector<3x384x128xbf16> to vector<1x384x128xbf16>
    %17 = vector.shape_cast %16 : vector<1x384x128xbf16> to vector<384x128xbf16>
    %cst_10 = arith.constant dense<0.000000e+00> : vector<256x128xf32>
    %18 = tpu.matmul %15, %17, %cst_10 {dimension_numbers = #tpu.dot_dimension_numbers<[1], [0], [0], [1], [0, 0, 1, 1], [], []>} : vector<256x384xbf16>, vector<384x128xbf16>, vector<256x128xf32> -> vector<256x128xf32>
    %19 = arith.addf %9, %18 : vector<256x128xf32>
    %20 = vector.extract_strided_slice %8 {offsets = [0, 1, 0], sizes = [18, 16, 128], strides = [1, 1, 1]} : vector<18x18x128xbf16> to vector<18x16x128xbf16>
    %21 = vector.extract_strided_slice %20 {offsets = [0, 0, 0], sizes = [16, 16, 128], strides = [1, 1, 1]} : vector<18x16x128xbf16> to vector<16x16x128xbf16>
    %22 = vector.extract_strided_slice %20 {offsets = [1, 0, 0], sizes = [16, 16, 128], strides = [1, 1, 1]} : vector<18x16x128xbf16> to vector<16x16x128xbf16>
    %23 = vector.extract_strided_slice %20 {offsets = [2, 0, 0], sizes = [16, 16, 128], strides = [1, 1, 1]} : vector<18x16x128xbf16> to vector<16x16x128xbf16>
    %24 = tpu.concatenate %21, %22, %23 in 2 : vector<16x16x128xbf16>, vector<16x16x128xbf16>, vector<16x16x128xbf16> -> vector<16x16x384xbf16>
    %25 = vector.shape_cast %24 : vector<16x16x384xbf16> to vector<256x384xbf16>
    %26 = vector.extract_strided_slice %0 {offsets = [1, 0, 0], sizes = [1, 384, 128], strides = [1, 1, 1]} : vector<3x384x128xbf16> to vector<1x384x128xbf16>
    %27 = vector.shape_cast %26 : vector<1x384x128xbf16> to vector<384x128xbf16>
    %cst_11 = arith.constant dense<0.000000e+00> : vector<256x128xf32>
    %28 = tpu.matmul %25, %27, %cst_11 {dimension_numbers = #tpu.dot_dimension_numbers<[1], [0], [0], [1], [0, 0, 1, 1], [], []>} : vector<256x384xbf16>, vector<384x128xbf16>, vector<256x128xf32> -> vector<256x128xf32>
    %29 = arith.addf %19, %28 : vector<256x128xf32>
    %30 = vector.extract_strided_slice %8 {offsets = [0, 2, 0], sizes = [18, 16, 128], strides = [1, 1, 1]} : vector<18x18x128xbf16> to vector<18x16x128xbf16>
    %31 = vector.extract_strided_slice %30 {offsets = [0, 0, 0], sizes = [16, 16, 128], strides = [1, 1, 1]} : vector<18x16x128xbf16> to vector<16x16x128xbf16>
    %32 = vector.extract_strided_slice %30 {offsets = [1, 0, 0], sizes = [16, 16, 128], strides = [1, 1, 1]} : vector<18x16x128xbf16> to vector<16x16x128xbf16>
    %33 = vector.extract_strided_slice %30 {offsets = [2, 0, 0], sizes = [16, 16, 128], strides = [1, 1, 1]} : vector<18x16x128xbf16> to vector<16x16x128xbf16>
    %34 = tpu.concatenate %31, %32, %33 in 2 : vector<16x16x128xbf16>, vector<16x16x128xbf16>, vector<16x16x128xbf16> -> vector<16x16x384xbf16>
    %35 = vector.shape_cast %34 : vector<16x16x384xbf16> to vector<256x384xbf16>
    %36 = vector.extract_strided_slice %0 {offsets = [2, 0, 0], sizes = [1, 384, 128], strides = [1, 1, 1]} : vector<3x384x128xbf16> to vector<1x384x128xbf16>
    %37 = vector.shape_cast %36 : vector<1x384x128xbf16> to vector<384x128xbf16>
    %cst_12 = arith.constant dense<0.000000e+00> : vector<256x128xf32>
    %38 = tpu.matmul %35, %37, %cst_12 {dimension_numbers = #tpu.dot_dimension_numbers<[1], [0], [0], [1], [0, 0, 1, 1], [], []>} : vector<256x384xbf16>, vector<384x128xbf16>, vector<256x128xf32> -> vector<256x128xf32>
    %39 = arith.addf %29, %38 : vector<256x128xf32>
    %40 = vector.shape_cast %39 : vector<256x128xf32> to vector<16x16x128xf32>
    %41 = arith.truncf %40 : vector<16x16x128xf32> to vector<16x16x128xbf16>
    %c0_13 = arith.constant 0 : index
    %c0_14 = arith.constant 0 : index
    %c0_15 = arith.constant 0 : index
    %c0_16 = arith.constant 0 : index
    %42 = vector.load %arg3[%c0_13, %c0_14, %c0_15, %c0_16] : memref<2x16x16x128xbf16, #tpu.memory_space<vmem>>, vector<1x16x16x128xbf16>
    %43 = vector.shape_cast %42 : vector<1x16x16x128xbf16> to vector<16x16x128xbf16>
    %44 = vector.shape_cast %41 : vector<16x16x128xbf16> to vector<1x16x16x128xbf16>
    tpu.vector_store %arg3[%c0_13, %c0_14, %c0_15, %c0_16], %44 {strides = array<i32>} : memref<2x16x16x128xbf16, #tpu.memory_space<vmem>>, vector<1x16x16x128xbf16>,
    %cst_17 = arith.constant dense<0.000000e+00> : vector<128xf32>
    %45 = vector.multi_reduction <add>, %39, %cst_17 [0] : vector<256x128xf32> to vector<128xf32>
    %46 = vector.shape_cast %45 : vector<128xf32> to vector<1x128xf32>
    %47 = arith.addf %1, %46 : vector<1x128xf32>
    %48 = arith.mulf %39, %39 : vector<256x128xf32>
    %cst_18 = arith.constant dense<0.000000e+00> : vector<128xf32>
    %49 = vector.multi_reduction <add>, %48, %cst_18 [0] : vector<256x128xf32> to vector<128xf32>
    %50 = vector.shape_cast %49 : vector<128xf32> to vector<1x128xf32>
    %51 = arith.addf %2, %50 : vector<1x128xf32>
    %c1 = arith.constant 1 : index
    %c0_19 = arith.constant 0 : index
    %c0_20 = arith.constant 0 : index
    %c0_21 = arith.constant 0 : index
    %52 = vector.load %arg1[%c1, %c0_19, %c0_20, %c0_21] : memref<2x16x16x128xbf16, #tpu.memory_space<vmem>>, vector<1x16x16x128xbf16>
    %53 = vector.shape_cast %52 : vector<1x16x16x128xbf16> to vector<16x16x128xbf16>
    %cst_22 = arith.constant 0.000000e+00 : bf16
    %54 = vector.broadcast %cst_22 : bf16 to vector<1x16x128xbf16>
    %55 = tpu.concatenate %54, %53, %54 in 0 : vector<1x16x128xbf16>, vector<16x16x128xbf16>, vector<1x16x128xbf16> -> vector<18x16x128xbf16>
    %cst_23 = arith.constant 0.000000e+00 : bf16
    %56 = vector.broadcast %cst_23 : bf16 to vector<18x1x128xbf16>
    %57 = tpu.concatenate %56, %55, %56 in 1 : vector<18x1x128xbf16>, vector<18x16x128xbf16>, vector<18x1x128xbf16> -> vector<18x18x128xbf16>
    %cst_24 = arith.constant 0.000000e+00 : f32
    %58 = vector.broadcast %cst_24 : f32 to vector<256x128xf32>
    %59 = vector.extract_strided_slice %57 {offsets = [0, 0, 0], sizes = [18, 16, 128], strides = [1, 1, 1]} : vector<18x18x128xbf16> to vector<18x16x128xbf16>
    %60 = vector.extract_strided_slice %59 {offsets = [0, 0, 0], sizes = [16, 16, 128], strides = [1, 1, 1]} : vector<18x16x128xbf16> to vector<16x16x128xbf16>
    %61 = vector.extract_strided_slice %59 {offsets = [1, 0, 0], sizes = [16, 16, 128], strides = [1, 1, 1]} : vector<18x16x128xbf16> to vector<16x16x128xbf16>
    %62 = vector.extract_strided_slice %59 {offsets = [2, 0, 0], sizes = [16, 16, 128], strides = [1, 1, 1]} : vector<18x16x128xbf16> to vector<16x16x128xbf16>
    %63 = tpu.concatenate %60, %61, %62 in 2 : vector<16x16x128xbf16>, vector<16x16x128xbf16>, vector<16x16x128xbf16> -> vector<16x16x384xbf16>
    %64 = vector.shape_cast %63 : vector<16x16x384xbf16> to vector<256x384xbf16>
    %65 = vector.extract_strided_slice %0 {offsets = [0, 0, 0], sizes = [1, 384, 128], strides = [1, 1, 1]} : vector<3x384x128xbf16> to vector<1x384x128xbf16>
    %66 = vector.shape_cast %65 : vector<1x384x128xbf16> to vector<384x128xbf16>
    %cst_25 = arith.constant dense<0.000000e+00> : vector<256x128xf32>
    %67 = tpu.matmul %64, %66, %cst_25 {dimension_numbers = #tpu.dot_dimension_numbers<[1], [0], [0], [1], [0, 0, 1, 1], [], []>} : vector<256x384xbf16>, vector<384x128xbf16>, vector<256x128xf32> -> vector<256x128xf32>
    %68 = arith.addf %58, %67 : vector<256x128xf32>
    %69 = vector.extract_strided_slice %57 {offsets = [0, 1, 0], sizes = [18, 16, 128], strides = [1, 1, 1]} : vector<18x18x128xbf16> to vector<18x16x128xbf16>
    %70 = vector.extract_strided_slice %69 {offsets = [0, 0, 0], sizes = [16, 16, 128], strides = [1, 1, 1]} : vector<18x16x128xbf16> to vector<16x16x128xbf16>
    %71 = vector.extract_strided_slice %69 {offsets = [1, 0, 0], sizes = [16, 16, 128], strides = [1, 1, 1]} : vector<18x16x128xbf16> to vector<16x16x128xbf16>
    %72 = vector.extract_strided_slice %69 {offsets = [2, 0, 0], sizes = [16, 16, 128], strides = [1, 1, 1]} : vector<18x16x128xbf16> to vector<16x16x128xbf16>
    %73 = tpu.concatenate %70, %71, %72 in 2 : vector<16x16x128xbf16>, vector<16x16x128xbf16>, vector<16x16x128xbf16> -> vector<16x16x384xbf16>
    %74 = vector.shape_cast %73 : vector<16x16x384xbf16> to vector<256x384xbf16>
    %75 = vector.extract_strided_slice %0 {offsets = [1, 0, 0], sizes = [1, 384, 128], strides = [1, 1, 1]} : vector<3x384x128xbf16> to vector<1x384x128xbf16>
    %76 = vector.shape_cast %75 : vector<1x384x128xbf16> to vector<384x128xbf16>
    %cst_26 = arith.constant dense<0.000000e+00> : vector<256x128xf32>
    %77 = tpu.matmul %74, %76, %cst_26 {dimension_numbers = #tpu.dot_dimension_numbers<[1], [0], [0], [1], [0, 0, 1, 1], [], []>} : vector<256x384xbf16>, vector<384x128xbf16>, vector<256x128xf32> -> vector<256x128xf32>
    %78 = arith.addf %68, %77 : vector<256x128xf32>
    %79 = vector.extract_strided_slice %57 {offsets = [0, 2, 0], sizes = [18, 16, 128], strides = [1, 1, 1]} : vector<18x18x128xbf16> to vector<18x16x128xbf16>
    %80 = vector.extract_strided_slice %79 {offsets = [0, 0, 0], sizes = [16, 16, 128], strides = [1, 1, 1]} : vector<18x16x128xbf16> to vector<16x16x128xbf16>
    %81 = vector.extract_strided_slice %79 {offsets = [1, 0, 0], sizes = [16, 16, 128], strides = [1, 1, 1]} : vector<18x16x128xbf16> to vector<16x16x128xbf16>
    %82 = vector.extract_strided_slice %79 {offsets = [2, 0, 0], sizes = [16, 16, 128], strides = [1, 1, 1]} : vector<18x16x128xbf16> to vector<16x16x128xbf16>
    %83 = tpu.concatenate %80, %81, %82 in 2 : vector<16x16x128xbf16>, vector<16x16x128xbf16>, vector<16x16x128xbf16> -> vector<16x16x384xbf16>
    %84 = vector.shape_cast %83 : vector<16x16x384xbf16> to vector<256x384xbf16>
    %85 = vector.extract_strided_slice %0 {offsets = [2, 0, 0], sizes = [1, 384, 128], strides = [1, 1, 1]} : vector<3x384x128xbf16> to vector<1x384x128xbf16>
    %86 = vector.shape_cast %85 : vector<1x384x128xbf16> to vector<384x128xbf16>
    %cst_27 = arith.constant dense<0.000000e+00> : vector<256x128xf32>
    %87 = tpu.matmul %84, %86, %cst_27 {dimension_numbers = #tpu.dot_dimension_numbers<[1], [0], [0], [1], [0, 0, 1, 1], [], []>} : vector<256x384xbf16>, vector<384x128xbf16>, vector<256x128xf32> -> vector<256x128xf32>
    %88 = arith.addf %78, %87 : vector<256x128xf32>
    %89 = vector.shape_cast %88 : vector<256x128xf32> to vector<16x16x128xf32>
    %90 = arith.truncf %89 : vector<16x16x128xf32> to vector<16x16x128xbf16>
    %c1_28 = arith.constant 1 : index
    %c0_29 = arith.constant 0 : index
    %c0_30 = arith.constant 0 : index
    %c0_31 = arith.constant 0 : index
    %91 = vector.load %arg3[%c1_28, %c0_29, %c0_30, %c0_31] : memref<2x16x16x128xbf16, #tpu.memory_space<vmem>>, vector<1x16x16x128xbf16>
    %92 = vector.shape_cast %91 : vector<1x16x16x128xbf16> to vector<16x16x128xbf16>
    %93 = vector.shape_cast %90 : vector<16x16x128xbf16> to vector<1x16x16x128xbf16>
    tpu.vector_store %arg3[%c1_28, %c0_29, %c0_30, %c0_31], %93 {strides = array<i32>} : memref<2x16x16x128xbf16, #tpu.memory_space<vmem>>, vector<1x16x16x128xbf16>,
    %cst_32 = arith.constant dense<0.000000e+00> : vector<128xf32>
    %94 = vector.multi_reduction <add>, %88, %cst_32 [0] : vector<256x128xf32> to vector<128xf32>
    %95 = vector.shape_cast %94 : vector<128xf32> to vector<1x128xf32>
    %96 = arith.addf %47, %95 : vector<1x128xf32>
    %97 = arith.mulf %88, %88 : vector<256x128xf32>
    %cst_33 = arith.constant dense<0.000000e+00> : vector<128xf32>
    %98 = vector.multi_reduction <add>, %97, %cst_33 [0] : vector<256x128xf32> to vector<128xf32>
    %99 = vector.shape_cast %98 : vector<128xf32> to vector<1x128xf32>
    %100 = arith.addf %51, %99 : vector<1x128xf32>
    %cst_34 = arith.constant 0.000000e+00 : f32
    %101 = vector.broadcast %cst_34 : f32 to vector<6x128xf32>
    %102 = tpu.concatenate %96, %100, %101 in 0 : vector<1x128xf32>, vector<1x128xf32>, vector<6x128xf32> -> vector<8x128xf32>
    %c0_35 = arith.constant 0 : index
    %c0_36 = arith.constant 0 : index
    %c0_37 = arith.constant 0 : index
    %103 = vector.load %arg4[%c0_35, %c0_36, %c0_37] : memref<1x8x128xf32, #tpu.memory_space<vmem>>, vector<1x8x128xf32>
    %104 = vector.shape_cast %103 : vector<1x8x128xf32> to vector<8x128xf32>
    %105 = vector.shape_cast %102 : vector<8x128xf32> to vector<1x8x128xf32>
    tpu.vector_store %arg4[%c0_35, %c0_36, %c0_37], %105 {strides = array<i32>} : memref<1x8x128xf32, #tpu.memory_space<vmem>>, vector<1x8x128xf32>,
    return
  }
  func.func @transform_0(%arg0: i32) -> (i32, i32, i32, i32) {
    %c0_i32 = arith.constant 0 : i32
    %c0_i32_0 = arith.constant 0 : i32
    %c0_i32_1 = arith.constant 0 : i32
    %c0_i32_2 = arith.constant 0 : i32
    return %arg0, %c0_i32, %c0_i32_0, %c0_i32_1 : i32, i32, i32, i32
  }
  func.func @transform_1(%arg0: i32) -> (i32, i32, i32) {
    %c0_i32 = arith.constant 0 : i32
    %c0_i32_0 = arith.constant 0 : i32
    %c0_i32_1 = arith.constant 0 : i32
    %c0_i32_2 = arith.constant 0 : i32
    return %c0_i32, %c0_i32_0, %c0_i32_1 : i32, i32, i32
  }
  func.func @transform_2(%arg0: i32) -> (i32, i32, i32, i32) {
    %c0_i32 = arith.constant 0 : i32
    %c0_i32_0 = arith.constant 0 : i32
    %c0_i32_1 = arith.constant 0 : i32
    %c0_i32_2 = arith.constant 0 : i32
    return %arg0, %c0_i32, %c0_i32_0, %c0_i32_1 : i32, i32, i32, i32
  }
  func.func @transform_3(%arg0: i32) -> (i32, i32, i32) {
    %c0_i32 = arith.constant 0 : i32
    %c0_i32_0 = arith.constant 0 : i32
    %c0_i32_1 = arith.constant 0 : i32
    return %arg0, %c0_i32, %c0_i32_0 : i32, i32, i32
  }
}

module attributes {stable_mosaic.version = 11 : i64} {
  func.func @bn_relu_conv3x3_stats_kernel(%arg0: i32, %arg1: memref<2x16x16x128xbf16, #tpu.memory_space<vmem>>, %arg2: memref<1x128xf32, #tpu.memory_space<vmem>>, %arg3: memref<1x128xf32, #tpu.memory_space<vmem>>, %arg4: memref<3x384x128xbf16, #tpu.memory_space<vmem>>, %arg5: memref<2x16x16x128xbf16, #tpu.memory_space<vmem>>, %arg6: memref<1x8x128xf32, #tpu.memory_space<vmem>>) attributes {dimension_semantics = [#tpu.dimension_semantics<parallel>], iteration_bounds = array<i64: 1>, scalar_prefetch = 0 : i64, scratch_operands = 0 : i64, tpu.core_type = #tpu.core_type<tc>, window_params = [{transform_indices = @transform_0, window_bounds = array<i64: 2, 16, 16, 128>}, {pipeline_mode = #tpu.pipeline_mode<synchronous>, transform_indices = @transform_1, window_bounds = array<i64: 1, 128>}, {pipeline_mode = #tpu.pipeline_mode<synchronous>, transform_indices = @transform_2, window_bounds = array<i64: 1, 128>}, {pipeline_mode = #tpu.pipeline_mode<synchronous>, transform_indices = @transform_3, window_bounds = array<i64: 3, 384, 128>}, {transform_indices = @transform_4, window_bounds = array<i64: 2, 16, 16, 128>}, {transform_indices = @transform_5, window_bounds = array<i64: 1, 8, 128>}]} {
    %c0 = arith.constant 0 : index
    %c0_0 = arith.constant 0 : index
    %c0_1 = arith.constant 0 : index
    %0 = vector.load %arg4[%c0, %c0_0, %c0_1] : memref<3x384x128xbf16, #tpu.memory_space<vmem>>, vector<3x384x128xbf16>
    %c0_2 = arith.constant 0 : index
    %c0_3 = arith.constant 0 : index
    %1 = vector.load %arg2[%c0_2, %c0_3] : memref<1x128xf32, #tpu.memory_space<vmem>>, vector<1x128xf32>
    %2 = vector.shape_cast %1 : vector<1x128xf32> to vector<128xf32>
    %c0_4 = arith.constant 0 : index
    %c0_5 = arith.constant 0 : index
    %3 = vector.load %arg3[%c0_4, %c0_5] : memref<1x128xf32, #tpu.memory_space<vmem>>, vector<1x128xf32>
    %4 = vector.shape_cast %3 : vector<1x128xf32> to vector<128xf32>
    %cst = arith.constant 0.000000e+00 : f32
    %5 = vector.broadcast %cst : f32 to vector<1x128xf32>
    %cst_6 = arith.constant 0.000000e+00 : f32
    %6 = vector.broadcast %cst_6 : f32 to vector<1x128xf32>
    %c0_7 = arith.constant 0 : index
    %c0_8 = arith.constant 0 : index
    %c0_9 = arith.constant 0 : index
    %c0_10 = arith.constant 0 : index
    %7 = vector.load %arg1[%c0_7, %c0_8, %c0_9, %c0_10] : memref<2x16x16x128xbf16, #tpu.memory_space<vmem>>, vector<1x16x16x128xbf16>
    %8 = vector.shape_cast %7 : vector<1x16x16x128xbf16> to vector<16x16x128xbf16>
    %9 = arith.extf %8 : vector<16x16x128xbf16> to vector<16x16x128xf32>
    %10 = vector.shape_cast %2 : vector<128xf32> to vector<1x1x128xf32>
    %11 = vector.broadcast %10 : vector<1x1x128xf32> to vector<16x16x128xf32>
    %12 = arith.mulf %9, %11 : vector<16x16x128xf32>
    %13 = vector.shape_cast %4 : vector<128xf32> to vector<1x1x128xf32>
    %14 = vector.broadcast %13 : vector<1x1x128xf32> to vector<16x16x128xf32>
    %15 = arith.addf %12, %14 : vector<16x16x128xf32>
    %cst_11 = arith.constant 0.000000e+00 : f32
    %16 = vector.broadcast %cst_11 : f32 to vector<16x16x128xf32>
    %17 = arith.maximumf %15, %16 : vector<16x16x128xf32>
    %18 = arith.truncf %17 : vector<16x16x128xf32> to vector<16x16x128xbf16>
    %cst_12 = arith.constant 0.000000e+00 : bf16
    %19 = vector.broadcast %cst_12 : bf16 to vector<1x16x128xbf16>
    %20 = tpu.concatenate %19, %18, %19 in 0 : vector<1x16x128xbf16>, vector<16x16x128xbf16>, vector<1x16x128xbf16> -> vector<18x16x128xbf16>
    %cst_13 = arith.constant 0.000000e+00 : bf16
    %21 = vector.broadcast %cst_13 : bf16 to vector<18x1x128xbf16>
    %22 = tpu.concatenate %21, %20, %21 in 1 : vector<18x1x128xbf16>, vector<18x16x128xbf16>, vector<18x1x128xbf16> -> vector<18x18x128xbf16>
    %cst_14 = arith.constant 0.000000e+00 : f32
    %23 = vector.broadcast %cst_14 : f32 to vector<256x128xf32>
    %24 = vector.extract_strided_slice %22 {offsets = [0, 0, 0], sizes = [18, 16, 128], strides = [1, 1, 1]} : vector<18x18x128xbf16> to vector<18x16x128xbf16>
    %25 = vector.extract_strided_slice %24 {offsets = [0, 0, 0], sizes = [16, 16, 128], strides = [1, 1, 1]} : vector<18x16x128xbf16> to vector<16x16x128xbf16>
    %26 = vector.extract_strided_slice %24 {offsets = [1, 0, 0], sizes = [16, 16, 128], strides = [1, 1, 1]} : vector<18x16x128xbf16> to vector<16x16x128xbf16>
    %27 = vector.extract_strided_slice %24 {offsets = [2, 0, 0], sizes = [16, 16, 128], strides = [1, 1, 1]} : vector<18x16x128xbf16> to vector<16x16x128xbf16>
    %28 = tpu.concatenate %25, %26, %27 in 2 : vector<16x16x128xbf16>, vector<16x16x128xbf16>, vector<16x16x128xbf16> -> vector<16x16x384xbf16>
    %29 = vector.shape_cast %28 : vector<16x16x384xbf16> to vector<256x384xbf16>
    %30 = vector.extract_strided_slice %0 {offsets = [0, 0, 0], sizes = [1, 384, 128], strides = [1, 1, 1]} : vector<3x384x128xbf16> to vector<1x384x128xbf16>
    %31 = vector.shape_cast %30 : vector<1x384x128xbf16> to vector<384x128xbf16>
    %cst_15 = arith.constant dense<0.000000e+00> : vector<256x128xf32>
    %32 = tpu.matmul %29, %31, %cst_15 {dimension_numbers = #tpu.dot_dimension_numbers<[1], [0], [0], [1], [0, 0, 1, 1], [], []>} : vector<256x384xbf16>, vector<384x128xbf16>, vector<256x128xf32> -> vector<256x128xf32>
    %33 = arith.addf %23, %32 : vector<256x128xf32>
    %34 = vector.extract_strided_slice %22 {offsets = [0, 1, 0], sizes = [18, 16, 128], strides = [1, 1, 1]} : vector<18x18x128xbf16> to vector<18x16x128xbf16>
    %35 = vector.extract_strided_slice %34 {offsets = [0, 0, 0], sizes = [16, 16, 128], strides = [1, 1, 1]} : vector<18x16x128xbf16> to vector<16x16x128xbf16>
    %36 = vector.extract_strided_slice %34 {offsets = [1, 0, 0], sizes = [16, 16, 128], strides = [1, 1, 1]} : vector<18x16x128xbf16> to vector<16x16x128xbf16>
    %37 = vector.extract_strided_slice %34 {offsets = [2, 0, 0], sizes = [16, 16, 128], strides = [1, 1, 1]} : vector<18x16x128xbf16> to vector<16x16x128xbf16>
    %38 = tpu.concatenate %35, %36, %37 in 2 : vector<16x16x128xbf16>, vector<16x16x128xbf16>, vector<16x16x128xbf16> -> vector<16x16x384xbf16>
    %39 = vector.shape_cast %38 : vector<16x16x384xbf16> to vector<256x384xbf16>
    %40 = vector.extract_strided_slice %0 {offsets = [1, 0, 0], sizes = [1, 384, 128], strides = [1, 1, 1]} : vector<3x384x128xbf16> to vector<1x384x128xbf16>
    %41 = vector.shape_cast %40 : vector<1x384x128xbf16> to vector<384x128xbf16>
    %cst_16 = arith.constant dense<0.000000e+00> : vector<256x128xf32>
    %42 = tpu.matmul %39, %41, %cst_16 {dimension_numbers = #tpu.dot_dimension_numbers<[1], [0], [0], [1], [0, 0, 1, 1], [], []>} : vector<256x384xbf16>, vector<384x128xbf16>, vector<256x128xf32> -> vector<256x128xf32>
    %43 = arith.addf %33, %42 : vector<256x128xf32>
    %44 = vector.extract_strided_slice %22 {offsets = [0, 2, 0], sizes = [18, 16, 128], strides = [1, 1, 1]} : vector<18x18x128xbf16> to vector<18x16x128xbf16>
    %45 = vector.extract_strided_slice %44 {offsets = [0, 0, 0], sizes = [16, 16, 128], strides = [1, 1, 1]} : vector<18x16x128xbf16> to vector<16x16x128xbf16>
    %46 = vector.extract_strided_slice %44 {offsets = [1, 0, 0], sizes = [16, 16, 128], strides = [1, 1, 1]} : vector<18x16x128xbf16> to vector<16x16x128xbf16>
    %47 = vector.extract_strided_slice %44 {offsets = [2, 0, 0], sizes = [16, 16, 128], strides = [1, 1, 1]} : vector<18x16x128xbf16> to vector<16x16x128xbf16>
    %48 = tpu.concatenate %45, %46, %47 in 2 : vector<16x16x128xbf16>, vector<16x16x128xbf16>, vector<16x16x128xbf16> -> vector<16x16x384xbf16>
    %49 = vector.shape_cast %48 : vector<16x16x384xbf16> to vector<256x384xbf16>
    %50 = vector.extract_strided_slice %0 {offsets = [2, 0, 0], sizes = [1, 384, 128], strides = [1, 1, 1]} : vector<3x384x128xbf16> to vector<1x384x128xbf16>
    %51 = vector.shape_cast %50 : vector<1x384x128xbf16> to vector<384x128xbf16>
    %cst_17 = arith.constant dense<0.000000e+00> : vector<256x128xf32>
    %52 = tpu.matmul %49, %51, %cst_17 {dimension_numbers = #tpu.dot_dimension_numbers<[1], [0], [0], [1], [0, 0, 1, 1], [], []>} : vector<256x384xbf16>, vector<384x128xbf16>, vector<256x128xf32> -> vector<256x128xf32>
    %53 = arith.addf %43, %52 : vector<256x128xf32>
    %54 = vector.shape_cast %53 : vector<256x128xf32> to vector<16x16x128xf32>
    %55 = arith.truncf %54 : vector<16x16x128xf32> to vector<16x16x128xbf16>
    %c0_18 = arith.constant 0 : index
    %c0_19 = arith.constant 0 : index
    %c0_20 = arith.constant 0 : index
    %c0_21 = arith.constant 0 : index
    %56 = vector.load %arg5[%c0_18, %c0_19, %c0_20, %c0_21] : memref<2x16x16x128xbf16, #tpu.memory_space<vmem>>, vector<1x16x16x128xbf16>
    %57 = vector.shape_cast %56 : vector<1x16x16x128xbf16> to vector<16x16x128xbf16>
    %58 = vector.shape_cast %55 : vector<16x16x128xbf16> to vector<1x16x16x128xbf16>
    tpu.vector_store %arg5[%c0_18, %c0_19, %c0_20, %c0_21], %58 {strides = array<i32>} : memref<2x16x16x128xbf16, #tpu.memory_space<vmem>>, vector<1x16x16x128xbf16>,
    %cst_22 = arith.constant dense<0.000000e+00> : vector<128xf32>
    %59 = vector.multi_reduction <add>, %53, %cst_22 [0] : vector<256x128xf32> to vector<128xf32>
    %60 = vector.shape_cast %59 : vector<128xf32> to vector<1x128xf32>
    %61 = arith.addf %5, %60 : vector<1x128xf32>
    %62 = arith.mulf %53, %53 : vector<256x128xf32>
    %cst_23 = arith.constant dense<0.000000e+00> : vector<128xf32>
    %63 = vector.multi_reduction <add>, %62, %cst_23 [0] : vector<256x128xf32> to vector<128xf32>
    %64 = vector.shape_cast %63 : vector<128xf32> to vector<1x128xf32>
    %65 = arith.addf %6, %64 : vector<1x128xf32>
    %c1 = arith.constant 1 : index
    %c0_24 = arith.constant 0 : index
    %c0_25 = arith.constant 0 : index
    %c0_26 = arith.constant 0 : index
    %66 = vector.load %arg1[%c1, %c0_24, %c0_25, %c0_26] : memref<2x16x16x128xbf16, #tpu.memory_space<vmem>>, vector<1x16x16x128xbf16>
    %67 = vector.shape_cast %66 : vector<1x16x16x128xbf16> to vector<16x16x128xbf16>
    %68 = arith.extf %67 : vector<16x16x128xbf16> to vector<16x16x128xf32>
    %69 = vector.shape_cast %2 : vector<128xf32> to vector<1x1x128xf32>
    %70 = vector.broadcast %69 : vector<1x1x128xf32> to vector<16x16x128xf32>
    %71 = arith.mulf %68, %70 : vector<16x16x128xf32>
    %72 = vector.shape_cast %4 : vector<128xf32> to vector<1x1x128xf32>
    %73 = vector.broadcast %72 : vector<1x1x128xf32> to vector<16x16x128xf32>
    %74 = arith.addf %71, %73 : vector<16x16x128xf32>
    %cst_27 = arith.constant 0.000000e+00 : f32
    %75 = vector.broadcast %cst_27 : f32 to vector<16x16x128xf32>
    %76 = arith.maximumf %74, %75 : vector<16x16x128xf32>
    %77 = arith.truncf %76 : vector<16x16x128xf32> to vector<16x16x128xbf16>
    %cst_28 = arith.constant 0.000000e+00 : bf16
    %78 = vector.broadcast %cst_28 : bf16 to vector<1x16x128xbf16>
    %79 = tpu.concatenate %78, %77, %78 in 0 : vector<1x16x128xbf16>, vector<16x16x128xbf16>, vector<1x16x128xbf16> -> vector<18x16x128xbf16>
    %cst_29 = arith.constant 0.000000e+00 : bf16
    %80 = vector.broadcast %cst_29 : bf16 to vector<18x1x128xbf16>
    %81 = tpu.concatenate %80, %79, %80 in 1 : vector<18x1x128xbf16>, vector<18x16x128xbf16>, vector<18x1x128xbf16> -> vector<18x18x128xbf16>
    %cst_30 = arith.constant 0.000000e+00 : f32
    %82 = vector.broadcast %cst_30 : f32 to vector<256x128xf32>
    %83 = vector.extract_strided_slice %81 {offsets = [0, 0, 0], sizes = [18, 16, 128], strides = [1, 1, 1]} : vector<18x18x128xbf16> to vector<18x16x128xbf16>
    %84 = vector.extract_strided_slice %83 {offsets = [0, 0, 0], sizes = [16, 16, 128], strides = [1, 1, 1]} : vector<18x16x128xbf16> to vector<16x16x128xbf16>
    %85 = vector.extract_strided_slice %83 {offsets = [1, 0, 0], sizes = [16, 16, 128], strides = [1, 1, 1]} : vector<18x16x128xbf16> to vector<16x16x128xbf16>
    %86 = vector.extract_strided_slice %83 {offsets = [2, 0, 0], sizes = [16, 16, 128], strides = [1, 1, 1]} : vector<18x16x128xbf16> to vector<16x16x128xbf16>
    %87 = tpu.concatenate %84, %85, %86 in 2 : vector<16x16x128xbf16>, vector<16x16x128xbf16>, vector<16x16x128xbf16> -> vector<16x16x384xbf16>
    %88 = vector.shape_cast %87 : vector<16x16x384xbf16> to vector<256x384xbf16>
    %89 = vector.extract_strided_slice %0 {offsets = [0, 0, 0], sizes = [1, 384, 128], strides = [1, 1, 1]} : vector<3x384x128xbf16> to vector<1x384x128xbf16>
    %90 = vector.shape_cast %89 : vector<1x384x128xbf16> to vector<384x128xbf16>
    %cst_31 = arith.constant dense<0.000000e+00> : vector<256x128xf32>
    %91 = tpu.matmul %88, %90, %cst_31 {dimension_numbers = #tpu.dot_dimension_numbers<[1], [0], [0], [1], [0, 0, 1, 1], [], []>} : vector<256x384xbf16>, vector<384x128xbf16>, vector<256x128xf32> -> vector<256x128xf32>
    %92 = arith.addf %82, %91 : vector<256x128xf32>
    %93 = vector.extract_strided_slice %81 {offsets = [0, 1, 0], sizes = [18, 16, 128], strides = [1, 1, 1]} : vector<18x18x128xbf16> to vector<18x16x128xbf16>
    %94 = vector.extract_strided_slice %93 {offsets = [0, 0, 0], sizes = [16, 16, 128], strides = [1, 1, 1]} : vector<18x16x128xbf16> to vector<16x16x128xbf16>
    %95 = vector.extract_strided_slice %93 {offsets = [1, 0, 0], sizes = [16, 16, 128], strides = [1, 1, 1]} : vector<18x16x128xbf16> to vector<16x16x128xbf16>
    %96 = vector.extract_strided_slice %93 {offsets = [2, 0, 0], sizes = [16, 16, 128], strides = [1, 1, 1]} : vector<18x16x128xbf16> to vector<16x16x128xbf16>
    %97 = tpu.concatenate %94, %95, %96 in 2 : vector<16x16x128xbf16>, vector<16x16x128xbf16>, vector<16x16x128xbf16> -> vector<16x16x384xbf16>
    %98 = vector.shape_cast %97 : vector<16x16x384xbf16> to vector<256x384xbf16>
    %99 = vector.extract_strided_slice %0 {offsets = [1, 0, 0], sizes = [1, 384, 128], strides = [1, 1, 1]} : vector<3x384x128xbf16> to vector<1x384x128xbf16>
    %100 = vector.shape_cast %99 : vector<1x384x128xbf16> to vector<384x128xbf16>
    %cst_32 = arith.constant dense<0.000000e+00> : vector<256x128xf32>
    %101 = tpu.matmul %98, %100, %cst_32 {dimension_numbers = #tpu.dot_dimension_numbers<[1], [0], [0], [1], [0, 0, 1, 1], [], []>} : vector<256x384xbf16>, vector<384x128xbf16>, vector<256x128xf32> -> vector<256x128xf32>
    %102 = arith.addf %92, %101 : vector<256x128xf32>
    %103 = vector.extract_strided_slice %81 {offsets = [0, 2, 0], sizes = [18, 16, 128], strides = [1, 1, 1]} : vector<18x18x128xbf16> to vector<18x16x128xbf16>
    %104 = vector.extract_strided_slice %103 {offsets = [0, 0, 0], sizes = [16, 16, 128], strides = [1, 1, 1]} : vector<18x16x128xbf16> to vector<16x16x128xbf16>
    %105 = vector.extract_strided_slice %103 {offsets = [1, 0, 0], sizes = [16, 16, 128], strides = [1, 1, 1]} : vector<18x16x128xbf16> to vector<16x16x128xbf16>
    %106 = vector.extract_strided_slice %103 {offsets = [2, 0, 0], sizes = [16, 16, 128], strides = [1, 1, 1]} : vector<18x16x128xbf16> to vector<16x16x128xbf16>
    %107 = tpu.concatenate %104, %105, %106 in 2 : vector<16x16x128xbf16>, vector<16x16x128xbf16>, vector<16x16x128xbf16> -> vector<16x16x384xbf16>
    %108 = vector.shape_cast %107 : vector<16x16x384xbf16> to vector<256x384xbf16>
    %109 = vector.extract_strided_slice %0 {offsets = [2, 0, 0], sizes = [1, 384, 128], strides = [1, 1, 1]} : vector<3x384x128xbf16> to vector<1x384x128xbf16>
    %110 = vector.shape_cast %109 : vector<1x384x128xbf16> to vector<384x128xbf16>
    %cst_33 = arith.constant dense<0.000000e+00> : vector<256x128xf32>
    %111 = tpu.matmul %108, %110, %cst_33 {dimension_numbers = #tpu.dot_dimension_numbers<[1], [0], [0], [1], [0, 0, 1, 1], [], []>} : vector<256x384xbf16>, vector<384x128xbf16>, vector<256x128xf32> -> vector<256x128xf32>
    %112 = arith.addf %102, %111 : vector<256x128xf32>
    %113 = vector.shape_cast %112 : vector<256x128xf32> to vector<16x16x128xf32>
    %114 = arith.truncf %113 : vector<16x16x128xf32> to vector<16x16x128xbf16>
    %c1_34 = arith.constant 1 : index
    %c0_35 = arith.constant 0 : index
    %c0_36 = arith.constant 0 : index
    %c0_37 = arith.constant 0 : index
    %115 = vector.load %arg5[%c1_34, %c0_35, %c0_36, %c0_37] : memref<2x16x16x128xbf16, #tpu.memory_space<vmem>>, vector<1x16x16x128xbf16>
    %116 = vector.shape_cast %115 : vector<1x16x16x128xbf16> to vector<16x16x128xbf16>
    %117 = vector.shape_cast %114 : vector<16x16x128xbf16> to vector<1x16x16x128xbf16>
    tpu.vector_store %arg5[%c1_34, %c0_35, %c0_36, %c0_37], %117 {strides = array<i32>} : memref<2x16x16x128xbf16, #tpu.memory_space<vmem>>, vector<1x16x16x128xbf16>,
    %cst_38 = arith.constant dense<0.000000e+00> : vector<128xf32>
    %118 = vector.multi_reduction <add>, %112, %cst_38 [0] : vector<256x128xf32> to vector<128xf32>
    %119 = vector.shape_cast %118 : vector<128xf32> to vector<1x128xf32>
    %120 = arith.addf %61, %119 : vector<1x128xf32>
    %121 = arith.mulf %112, %112 : vector<256x128xf32>
    %cst_39 = arith.constant dense<0.000000e+00> : vector<128xf32>
    %122 = vector.multi_reduction <add>, %121, %cst_39 [0] : vector<256x128xf32> to vector<128xf32>
    %123 = vector.shape_cast %122 : vector<128xf32> to vector<1x128xf32>
    %124 = arith.addf %65, %123 : vector<1x128xf32>
    %cst_40 = arith.constant 0.000000e+00 : f32
    %125 = vector.broadcast %cst_40 : f32 to vector<6x128xf32>
    %126 = tpu.concatenate %120, %124, %125 in 0 : vector<1x128xf32>, vector<1x128xf32>, vector<6x128xf32> -> vector<8x128xf32>
    %c0_41 = arith.constant 0 : index
    %c0_42 = arith.constant 0 : index
    %c0_43 = arith.constant 0 : index
    %127 = vector.load %arg6[%c0_41, %c0_42, %c0_43] : memref<1x8x128xf32, #tpu.memory_space<vmem>>, vector<1x8x128xf32>
    %128 = vector.shape_cast %127 : vector<1x8x128xf32> to vector<8x128xf32>
    %129 = vector.shape_cast %126 : vector<8x128xf32> to vector<1x8x128xf32>
    tpu.vector_store %arg6[%c0_41, %c0_42, %c0_43], %129 {strides = array<i32>} : memref<1x8x128xf32, #tpu.memory_space<vmem>>, vector<1x8x128xf32>,
    return
  }
  func.func @transform_0(%arg0: i32) -> (i32, i32, i32, i32) {
    %c0_i32 = arith.constant 0 : i32
    %c0_i32_0 = arith.constant 0 : i32
    %c0_i32_1 = arith.constant 0 : i32
    %c0_i32_2 = arith.constant 0 : i32
    return %arg0, %c0_i32, %c0_i32_0, %c0_i32_1 : i32, i32, i32, i32
  }
  func.func @transform_1(%arg0: i32) -> (i32, i32) {
    %c0_i32 = arith.constant 0 : i32
    %c0_i32_0 = arith.constant 0 : i32
    %c0_i32_1 = arith.constant 0 : i32
    return %c0_i32, %c0_i32_0 : i32, i32
  }
  func.func @transform_2(%arg0: i32) -> (i32, i32) {
    %c0_i32 = arith.constant 0 : i32
    %c0_i32_0 = arith.constant 0 : i32
    %c0_i32_1 = arith.constant 0 : i32
    return %c0_i32, %c0_i32_0 : i32, i32
  }
  func.func @transform_3(%arg0: i32) -> (i32, i32, i32) {
    %c0_i32 = arith.constant 0 : i32
    %c0_i32_0 = arith.constant 0 : i32
    %c0_i32_1 = arith.constant 0 : i32
    %c0_i32_2 = arith.constant 0 : i32
    return %c0_i32, %c0_i32_0, %c0_i32_1 : i32, i32, i32
  }
  func.func @transform_4(%arg0: i32) -> (i32, i32, i32, i32) {
    %c0_i32 = arith.constant 0 : i32
    %c0_i32_0 = arith.constant 0 : i32
    %c0_i32_1 = arith.constant 0 : i32
    %c0_i32_2 = arith.constant 0 : i32
    return %arg0, %c0_i32, %c0_i32_0, %c0_i32_1 : i32, i32, i32, i32
  }
  func.func @transform_5(%arg0: i32) -> (i32, i32, i32) {
    %c0_i32 = arith.constant 0 : i32
    %c0_i32_0 = arith.constant 0 : i32
    %c0_i32_1 = arith.constant 0 : i32
    return %arg0, %c0_i32, %c0_i32_0 : i32, i32, i32
  }
}

module attributes {stable_mosaic.version = 11 : i64} {
  func.func @bn_add_relu_kernel(%arg0: i32, %arg1: memref<2x16x16x128xbf16, #tpu.memory_space<vmem>>, %arg2: memref<1x128xf32, #tpu.memory_space<vmem>>, %arg3: memref<1x128xf32, #tpu.memory_space<vmem>>, %arg4: memref<2x16x16x128xf32, #tpu.memory_space<vmem>>, %arg5: memref<2x16x16x128xf32, #tpu.memory_space<vmem>>) attributes {dimension_semantics = [#tpu.dimension_semantics<parallel>], iteration_bounds = array<i64: 1>, scalar_prefetch = 0 : i64, scratch_operands = 0 : i64, tpu.core_type = #tpu.core_type<tc>, window_params = [{transform_indices = @transform_0, window_bounds = array<i64: 2, 16, 16, 128>}, {pipeline_mode = #tpu.pipeline_mode<synchronous>, transform_indices = @transform_1, window_bounds = array<i64: 1, 128>}, {pipeline_mode = #tpu.pipeline_mode<synchronous>, transform_indices = @transform_2, window_bounds = array<i64: 1, 128>}, {transform_indices = @transform_3, window_bounds = array<i64: 2, 16, 16, 128>}, {transform_indices = @transform_4, window_bounds = array<i64: 2, 16, 16, 128>}]} {
    %c0 = arith.constant 0 : index
    %c0_0 = arith.constant 0 : index
    %c0_1 = arith.constant 0 : index
    %c0_2 = arith.constant 0 : index
    %0 = vector.load %arg1[%c0, %c0_0, %c0_1, %c0_2] : memref<2x16x16x128xbf16, #tpu.memory_space<vmem>>, vector<2x16x16x128xbf16>
    %1 = arith.extf %0 : vector<2x16x16x128xbf16> to vector<2x16x16x128xf32>
    %c0_3 = arith.constant 0 : index
    %c0_4 = arith.constant 0 : index
    %2 = vector.load %arg2[%c0_3, %c0_4] : memref<1x128xf32, #tpu.memory_space<vmem>>, vector<1x128xf32>
    %3 = vector.shape_cast %2 : vector<1x128xf32> to vector<128xf32>
    %4 = vector.shape_cast %3 : vector<128xf32> to vector<1x1x1x128xf32>
    %5 = vector.broadcast %4 : vector<1x1x1x128xf32> to vector<2x16x16x128xf32>
    %6 = arith.mulf %1, %5 : vector<2x16x16x128xf32>
    %c0_5 = arith.constant 0 : index
    %c0_6 = arith.constant 0 : index
    %7 = vector.load %arg3[%c0_5, %c0_6] : memref<1x128xf32, #tpu.memory_space<vmem>>, vector<1x128xf32>
    %8 = vector.shape_cast %7 : vector<1x128xf32> to vector<128xf32>
    %9 = vector.shape_cast %8 : vector<128xf32> to vector<1x1x1x128xf32>
    %10 = vector.broadcast %9 : vector<1x1x1x128xf32> to vector<2x16x16x128xf32>
    %11 = arith.addf %6, %10 : vector<2x16x16x128xf32>
    %c0_7 = arith.constant 0 : index
    %c0_8 = arith.constant 0 : index
    %c0_9 = arith.constant 0 : index
    %c0_10 = arith.constant 0 : index
    %12 = vector.load %arg4[%c0_7, %c0_8, %c0_9, %c0_10] : memref<2x16x16x128xf32, #tpu.memory_space<vmem>>, vector<2x16x16x128xf32>
    %13 = arith.addf %11, %12 : vector<2x16x16x128xf32>
    %cst = arith.constant 0.000000e+00 : f32
    %14 = vector.broadcast %cst : f32 to vector<2x16x16x128xf32>
    %15 = arith.maximumf %13, %14 : vector<2x16x16x128xf32>
    %c0_11 = arith.constant 0 : index
    %c0_12 = arith.constant 0 : index
    %c0_13 = arith.constant 0 : index
    %c0_14 = arith.constant 0 : index
    %16 = vector.load %arg5[%c0_11, %c0_12, %c0_13, %c0_14] : memref<2x16x16x128xf32, #tpu.memory_space<vmem>>, vector<2x16x16x128xf32>
    tpu.vector_store %arg5[%c0_11, %c0_12, %c0_13, %c0_14], %15 {strides = array<i32>} : memref<2x16x16x128xf32, #tpu.memory_space<vmem>>, vector<2x16x16x128xf32>,
    return
  }
  func.func @transform_0(%arg0: i32) -> (i32, i32, i32, i32) {
    %c0_i32 = arith.constant 0 : i32
    %c0_i32_0 = arith.constant 0 : i32
    %c0_i32_1 = arith.constant 0 : i32
    %c0_i32_2 = arith.constant 0 : i32
    return %arg0, %c0_i32, %c0_i32_0, %c0_i32_1 : i32, i32, i32, i32
  }
  func.func @transform_1(%arg0: i32) -> (i32, i32) {
    %c0_i32 = arith.constant 0 : i32
    %c0_i32_0 = arith.constant 0 : i32
    %c0_i32_1 = arith.constant 0 : i32
    return %c0_i32, %c0_i32_0 : i32, i32
  }
  func.func @transform_2(%arg0: i32) -> (i32, i32) {
    %c0_i32 = arith.constant 0 : i32
    %c0_i32_0 = arith.constant 0 : i32
    %c0_i32_1 = arith.constant 0 : i32
    return %c0_i32, %c0_i32_0 : i32, i32
  }
  func.func @transform_3(%arg0: i32) -> (i32, i32, i32, i32) {
    %c0_i32 = arith.constant 0 : i32
    %c0_i32_0 = arith.constant 0 : i32
    %c0_i32_1 = arith.constant 0 : i32
    %c0_i32_2 = arith.constant 0 : i32
    return %arg0, %c0_i32, %c0_i32_0, %c0_i32_1 : i32, i32, i32, i32
  }
  func.func @transform_4(%arg0: i32) -> (i32, i32, i32, i32) {
    %c0_i32 = arith.constant 0 : i32
    %c0_i32_0 = arith.constant 0 : i32
    %c0_i32_1 = arith.constant 0 : i32
    %c0_i32_2 = arith.constant 0 : i32
    return %arg0, %c0_i32, %c0_i32_0, %c0_i32_1 : i32, i32, i32, i32
  }
}

</mosaic_0001>

<llo_original>
// kernel: basic_block_forward.5
$region0: #{basic_block_forward.5}
  #allocation0 [shape = 'u32[]', space=smem, size = 0x4, offset = 0x4, fixed_abs, tag = 'smem constant byte address 0x4 - core index']
  #allocation1 [shape = 'u32[144,128]{1,0:T(1,128)}', space=vmem, size = 0x12000, scoped, tag = 'internal scratch']
  %s0 = inlined_call_operand.vmem [shape: bf16[2,16,16,128], index: 0, kind: input, shape index: {}]
  %s1 = inlined_call_operand.vmem [shape: f32[1,128], index: 1, kind: input, shape index: {}]
  %s2 = inlined_call_operand.vmem [shape: f32[1,128], index: 2, kind: input, shape index: {}]
  %s3 = inlined_call_operand.vmem [shape: f32[2,16,16,128], index: 3, kind: input, shape index: {}]
  %s4 = inlined_call_operand.vmem [shape: f32[2,16,16,128], index: 4, kind: output, shape index: {}]
  %s5 = sld [smem:[#allocation0]]
  $region26: #{basic_block_forward.5} parent=0
    _
  %s7 = ssub.s32 1, %s5
  %s8 = scalar_select 0, %s7, %s5
  // Predicated region
  $region2: #{basic_block_forward.5} parent=0 // pred_check
    _
  $region3: #{basic_block_forward.5} parent=0 // pred_check_branch
    %10 = sbr.rel (0) target = $region5
  $region4: #{basic_block_forward.5} parent=0 // pred_region
    _
  $region5: #{basic_block_forward.5} parent=0 // pred_fallthru
    _
  // Predicated region
  $region6: #{basic_block_forward.5} parent=0 // pred_check
    _
  $region7: #{basic_block_forward.5} parent=0 // pred_check_branch
    %12 = sbr.rel (0) target = $region9
  $region8: #{basic_block_forward.5} parent=0 // pred_region
    _
  $region9: #{basic_block_forward.5} parent=0 // pred_fallthru
    _
  // Predicated region
  $region10: #{basic_block_forward.5} parent=0 // pred_check
    _
  $region11: #{basic_block_forward.5} parent=0 // pred_check_branch
    %14 = sbr.rel (0) target = $region13
  $region12: #{basic_block_forward.5} parent=0 // pred_region
    _
  $region13: #{basic_block_forward.5} parent=0 // pred_fallthru
    _
  // Predicated region
  $region14: #{basic_block_forward.5} parent=0 // pred_check
    _
  $region15: #{basic_block_forward.5} parent=0 // pred_check_branch
    %16 = sbr.rel (0) target = $region17
  $region16: #{basic_block_forward.5} parent=0 // pred_region
    _
  $region17: #{basic_block_forward.5} parent=0 // pred_fallthru
    _
  %v17 = vld [vmem:[%s0] sm:$0xf]
  %v18 = vld [vmem:[%s0 + $0x4] sm:$0xf]
  %v19 = vld [vmem:[%s0 + $0x8] sm:$0xf]
  %v20 = vld [vmem:[%s0 + $0xc] sm:$0xf]
  %v21 = vld [vmem:[%s0 + $0x10] sm:$0xf]
  %v22 = vld [vmem:[%s0 + $0x14] sm:$0xf]
  %v23 = vld [vmem:[%s0 + $0x18] sm:$0xf]
  %v24 = vld [vmem:[%s0 + $0x1c] sm:$0xf]
  %v25 = vld [vmem:[%s0 + $0x20] sm:$0xf]
  %v26 = vld [vmem:[%s0 + $0x24] sm:$0xf]
  %v27 = vld [vmem:[%s0 + $0x28] sm:$0xf]
  %v28 = vld [vmem:[%s0 + $0x2c] sm:$0xf]
  %v29 = vld [vmem:[%s0 + $0x30] sm:$0xf]
  %v30 = vld [vmem:[%s0 + $0x34] sm:$0xf]
  %v31 = vld [vmem:[%s0 + $0x38] sm:$0xf]
  %v32 = vld [vmem:[%s0 + $0x3c] sm:$0xf]
  %v33 = vld [vmem:[%s0 + $0x40] sm:$0xf]
  %v34 = vld [vmem:[%s0 + $0x44] sm:$0xf]
  %v35 = vld [vmem:[%s0 + $0x48] sm:$0xf]
  %v36 = vld [vmem:[%s0 + $0x4c] sm:$0xf]
  %v37 = vld [vmem:[%s0 + $0x50] sm:$0xf]
  %v38 = vld [vmem:[%s0 + $0x54] sm:$0xf]
  %v39 = vld [vmem:[%s0 + $0x58] sm:$0xf]
  %v40 = vld [vmem:[%s0 + $0x5c] sm:$0xf]
  %v41 = vld [vmem:[%s0 + $0x60] sm:$0xf]
  %v42 = vld [vmem:[%s0 + $0x64] sm:$0xf]
  %v43 = vld [vmem:[%s0 + $0x68] sm:$0xf]
  %v44 = vld [vmem:[%s0 + $0x6c] sm:$0xf]
  %v45 = vld [vmem:[%s0 + $0x70] sm:$0xf]
  %v46 = vld [vmem:[%s0 + $0x74] sm:$0xf]
  %v47 = vld [vmem:[%s0 + $0x78] sm:$0xf]
  %v48 = vld [vmem:[%s0 + $0x7c] sm:$0xf]
  %v49 = vld [vmem:[%s0 + $0x80] sm:$0xf]
  %v50 = vld [vmem:[%s0 + $0x84] sm:$0xf]
  %v51 = vld [vmem:[%s0 + $0x88] sm:$0xf]
  %v52 = vld [vmem:[%s0 + $0x8c] sm:$0xf]
  %v53 = vld [vmem:[%s0 + $0x90] sm:$0xf]
  %v54 = vld [vmem:[%s0 + $0x94] sm:$0xf]
  %v55 = vld [vmem:[%s0 + $0x98] sm:$0xf]
  %v56 = vld [vmem:[%s0 + $0x9c] sm:$0xf]
  %v57 = vld [vmem:[%s0 + $0xa0] sm:$0xf]
  %v58 = vld [vmem:[%s0 + $0xa4] sm:$0xf]
  %v59 = vld [vmem:[%s0 + $0xa8] sm:$0xf]
  %v60 = vld [vmem:[%s0 + $0xac] sm:$0xf]
  %v61 = vld [vmem:[%s0 + $0xb0] sm:$0xf]
  %v62 = vld [vmem:[%s0 + $0xb4] sm:$0xf]
  %v63 = vld [vmem:[%s0 + $0xb8] sm:$0xf]
  %v64 = vld [vmem:[%s0 + $0xbc] sm:$0xf]
  %v65 = vld [vmem:[%s0 + $0xc0] sm:$0xf]
  %v66 = vld [vmem:[%s0 + $0xc4] sm:$0xf]
  %v67 = vld [vmem:[%s0 + $0xc8] sm:$0xf]
  %v68 = vld [vmem:[%s0 + $0xcc] sm:$0xf]
  %v69 = vld [vmem:[%s0 + $0xd0] sm:$0xf]
  %v70 = vld [vmem:[%s0 + $0xd4] sm:$0xf]
  %v71 = vld [vmem:[%s0 + $0xd8] sm:$0xf]
  %v72 = vld [vmem:[%s0 + $0xdc] sm:$0xf]
  %v73 = vld [vmem:[%s0 + $0xe0] sm:$0xf]
  %v74 = vld [vmem:[%s0 + $0xe4] sm:$0xf]
  %v75 = vld [vmem:[%s0 + $0xe8] sm:$0xf]
  %v76 = vld [vmem:[%s0 + $0xec] sm:$0xf]
  %v77 = vld [vmem:[%s0 + $0xf0] sm:$0xf]
  %v78 = vld [vmem:[%s0 + $0xf4] sm:$0xf]
  %v79 = vld [vmem:[%s0 + $0xf8] sm:$0xf]
  %v80 = vld [vmem:[%s0 + $0xfc] sm:$0xf]
  %v81 = vunpack.c.l.bf16 %v17
  %v82 = vunpack.c.l.bf16 %v18
  %v83 = vunpack.c.l.bf16 %v19
  %v84 = vunpack.c.l.bf16 %v20
  %v85 = vunpack.c.l.bf16 %v21
  %v86 = vunpack.c.l.bf16 %v22
  %v87 = vunpack.c.l.bf16 %v23
  %v88 = vunpack.c.l.bf16 %v24
  %v89 = vunpack.c.l.bf16 %v25
  %v90 = vunpack.c.l.bf16 %v26
  %v91 = vunpack.c.l.bf16 %v27
  %v92 = vunpack.c.l.bf16 %v28
  %v93 = vunpack.c.l.bf16 %v29
  %v94 = vunpack.c.l.bf16 %v30
  %v95 = vunpack.c.l.bf16 %v31
  %v96 = vunpack.c.l.bf16 %v32
  %v97 = vunpack.c.l.bf16 %v33
  %v98 = vunpack.c.l.bf16 %v34
  %v99 = vunpack.c.l.bf16 %v35
  %v100 = vunpack.c.l.bf16 %v36
  %v101 = vunpack.c.l.bf16 %v37
  %v102 = vunpack.c.l.bf16 %v38
  %v103 = vunpack.c.l.bf16 %v39
  %v104 = vunpack.c.l.bf16 %v40
  %v105 = vunpack.c.l.bf16 %v41
  %v106 = vunpack.c.l.bf16 %v42
  %v107 = vunpack.c.l.bf16 %v43
  %v108 = vunpack.c.l.bf16 %v44
  %v109 = vunpack.c.l.bf16 %v45
  %v110 = vunpack.c.l.bf16 %v46
  %v111 = vunpack.c.l.bf16 %v47
  %v112 = vunpack.c.l.bf16 %v48
  %v113 = vunpack.c.l.bf16 %v49
  %v114 = vunpack.c.l.bf16 %v50
  %v115 = vunpack.c.l.bf16 %v51
  %v116 = vunpack.c.l.bf16 %v52
  %v117 = vunpack.c.l.bf16 %v53
  %v118 = vunpack.c.l.bf16 %v54
  %v119 = vunpack.c.l.bf16 %v55
  %v120 = vunpack.c.l.bf16 %v56
  %v121 = vunpack.c.l.bf16 %v57
  %v122 = vunpack.c.l.bf16 %v58
  %v123 = vunpack.c.l.bf16 %v59
  %v124 = vunpack.c.l.bf16 %v60
  %v125 = vunpack.c.l.bf16 %v61
  %v126 = vunpack.c.l.bf16 %v62
  %v127 = vunpack.c.l.bf16 %v63
  %v128 = vunpack.c.l.bf16 %v64
  %v129 = vunpack.c.l.bf16 %v65
  %v130 = vunpack.c.l.bf16 %v66
  %v131 = vunpack.c.l.bf16 %v67
  %v132 = vunpack.c.l.bf16 %v68
  %v133 = vunpack.c.l.bf16 %v69
  %v134 = vunpack.c.l.bf16 %v70
  %v135 = vunpack.c.l.bf16 %v71
  %v136 = vunpack.c.l.bf16 %v72
  %v137 = vunpack.c.l.bf16 %v73
  %v138 = vunpack.c.l.bf16 %v74
  %v139 = vunpack.c.l.bf16 %v75
  %v140 = vunpack.c.l.bf16 %v76
  %v141 = vunpack.c.l.bf16 %v77
  %v142 = vunpack.c.l.bf16 %v78
  %v143 = vunpack.c.l.bf16 %v79
  %v144 = vunpack.c.l.bf16 %v80
  %v145 = vld [vmem:[%s1] sm:$0x1]
  %v147 = vlaneseq
  %v148 = vshrl.u32 %v147, 7
  %v149 = vsub.s32 0, %v148
  %v150 = vrot.slane %v145, %v149
  %v152 = vmul.f32 %v81, %v150
  %v153 = vmul.f32 %v82, %v150
  %v154 = vmul.f32 %v83, %v150
  %v155 = vmul.f32 %v84, %v150
  %v156 = vmul.f32 %v85, %v150
  %v157 = vmul.f32 %v86, %v150
  %v158 = vmul.f32 %v87, %v150
  %v159 = vmul.f32 %v88, %v150
  %v160 = vmul.f32 %v89, %v150
  %v161 = vmul.f32 %v90, %v150
  %v162 = vmul.f32 %v91, %v150
  %v163 = vmul.f32 %v92, %v150
  %v164 = vmul.f32 %v93, %v150
  %v165 = vmul.f32 %v94, %v150
  %v166 = vmul.f32 %v95, %v150
  %v167 = vmul.f32 %v96, %v150
  %v168 = vmul.f32 %v97, %v150
  %v169 = vmul.f32 %v98, %v150
  %v170 = vmul.f32 %v99, %v150
  %v171 = vmul.f32 %v100, %v150
  %v172 = vmul.f32 %v101, %v150
  %v173 = vmul.f32 %v102, %v150
  %v174 = vmul.f32 %v103, %v150
  %v175 = vmul.f32 %v104, %v150
  %v176 = vmul.f32 %v105, %v150
  %v177 = vmul.f32 %v106, %v150
  %v178 = vmul.f32 %v107, %v150
  %v179 = vmul.f32 %v108, %v150
  %v180 = vmul.f32 %v109, %v150
  %v181 = vmul.f32 %v110, %v150
  %v182 = vmul.f32 %v111, %v150
  %v183 = vmul.f32 %v112, %v150
  %v184 = vmul.f32 %v113, %v150
  %v185 = vmul.f32 %v114, %v150
  %v186 = vmul.f32 %v115, %v150
  %v187 = vmul.f32 %v116, %v150
  %v188 = vmul.f32 %v117, %v150
  %v189 = vmul.f32 %v118, %v150
  %v190 = vmul.f32 %v119, %v150
  %v191 = vmul.f32 %v120, %v150
  %v192 = vmul.f32 %v121, %v150
  %v193 = vmul.f32 %v122, %v150
  %v194 = vmul.f32 %v123, %v150
  %v195 = vmul.f32 %v124, %v150
  %v196 = vmul.f32 %v125, %v150
  %v197 = vmul.f32 %v126, %v150
  %v198 = vmul.f32 %v127, %v150
  %v199 = vmul.f32 %v128, %v150
  %v200 = vmul.f32 %v129, %v150
  %v201 = vmul.f32 %v130, %v150
  %v202 = vmul.f32 %v131, %v150
  %v203 = vmul.f32 %v132, %v150
  %v204 = vmul.f32 %v133, %v150
  %v205 = vmul.f32 %v134, %v150
  %v206 = vmul.f32 %v135, %v150
  %v207 = vmul.f32 %v136, %v150
  %v208 = vmul.f32 %v137, %v150
  %v209 = vmul.f32 %v138, %v150
  %v210 = vmul.f32 %v139, %v150
  %v211 = vmul.f32 %v140, %v150
  %v212 = vmul.f32 %v141, %v150
  %v213 = vmul.f32 %v142, %v150
  %v214 = vmul.f32 %v143, %v150
  %v215 = vmul.f32 %v144, %v150
  %v216 = vld [vmem:[%s2] sm:$0x1]
  %v218 = vlaneseq
  %v219 = vshrl.u32 %v218, 7
  %v220 = vsub.s32 0, %v219
  %v221 = vrot.slane %v216, %v220
  %v223 = vadd.f32 %v152, %v221
  %v224 = vadd.f32 %v153, %v221
  %v225 = vadd.f32 %v154, %v221
  %v226 = vadd.f32 %v155, %v221
  %v227 = vadd.f32 %v156, %v221
  %v228 = vadd.f32 %v157, %v221
  %v229 = vadd.f32 %v158, %v221
  %v230 = vadd.f32 %v159, %v221
  %v231 = vadd.f32 %v160, %v221
  %v232 = vadd.f32 %v161, %v221
  %v233 = vadd.f32 %v162, %v221
  %v234 = vadd.f32 %v163, %v221
  %v235 = vadd.f32 %v164, %v221
  %v236 = vadd.f32 %v165, %v221
  %v237 = vadd.f32 %v166, %v221
  %v238 = vadd.f32 %v167, %v221
  %v239 = vadd.f32 %v168, %v221
  %v240 = vadd.f32 %v169, %v221
  %v241 = vadd.f32 %v170, %v221
  %v242 = vadd.f32 %v171, %v221
  %v243 = vadd.f32 %v172, %v221
  %v244 = vadd.f32 %v173, %v221
  %v245 = vadd.f32 %v174, %v221
  %v246 = vadd.f32 %v175, %v221
  %v247 = vadd.f32 %v176, %v221
  %v248 = vadd.f32 %v177, %v221
  %v249 = vadd.f32 %v178, %v221
  %v250 = vadd.f32 %v179, %v221
  %v251 = vadd.f32 %v180, %v221
  %v252 = vadd.f32 %v181, %v221
  %v253 = vadd.f32 %v182, %v221
  %v254 = vadd.f32 %v183, %v221
  %v255 = vadd.f32 %v184, %v221
  %v256 = vadd.f32 %v185, %v221
  %v257 = vadd.f32 %v186, %v221
  %v258 = vadd.f32 %v187, %v221
  %v259 = vadd.f32 %v188, %v221
  %v260 = vadd.f32 %v189, %v221
  %v261 = vadd.f32 %v190, %v221
  %v262 = vadd.f32 %v191, %v221
  %v263 = vadd.f32 %v192, %v221
  %v264 = vadd.f32 %v193, %v221
  %v265 = vadd.f32 %v194, %v221
  %v266 = vadd.f32 %v195, %v221
  %v267 = vadd.f32 %v196, %v221
  %v268 = vadd.f32 %v197, %v221
  %v269 = vadd.f32 %v198, %v221
  %v270 = vadd.f32 %v199, %v221
  %v271 = vadd.f32 %v200, %v221
  %v272 = vadd.f32 %v201, %v221
  %v273 = vadd.f32 %v202, %v221
  %v274 = vadd.f32 %v203, %v221
  %v275 = vadd.f32 %v204, %v221
  %v276 = vadd.f32 %v205, %v221
  %v277 = vadd.f32 %v206, %v221
  %v278 = vadd.f32 %v207, %v221
  %v279 = vadd.f32 %v208, %v221
  %v280 = vadd.f32 %v209, %v221
  %v281 = vadd.f32 %v210, %v221
  %v282 = vadd.f32 %v211, %v221
  %v283 = vadd.f32 %v212, %v221
  %v284 = vadd.f32 %v213, %v221
  %v285 = vadd.f32 %v214, %v221
  %v286 = vadd.f32 %v215, %v221
  %v287 = vld [vmem:[%s3] sm:$0xff]
  %v288 = vld [vmem:[%s3 + $0x8] sm:$0xff]
  %v289 = vld [vmem:[%s3 + $0x10] sm:$0xff]
  %v290 = vld [vmem:[%s3 + $0x18] sm:$0xff]
  %v291 = vld [vmem:[%s3 + $0x20] sm:$0xff]
  %v292 = vld [vmem:[%s3 + $0x28] sm:$0xff]
  %v293 = vld [vmem:[%s3 + $0x30] sm:$0xff]
  %v294 = vld [vmem:[%s3 + $0x38] sm:$0xff]
  %v295 = vld [vmem:[%s3 + $0x40] sm:$0xff]
  %v296 = vld [vmem:[%s3 + $0x48] sm:$0xff]
  %v297 = vld [vmem:[%s3 + $0x50] sm:$0xff]
  %v298 = vld [vmem:[%s3 + $0x58] sm:$0xff]
  %v299 = vld [vmem:[%s3 + $0x60] sm:$0xff]
  %v300 = vld [vmem:[%s3 + $0x68] sm:$0xff]
  %v301 = vld [vmem:[%s3 + $0x70] sm:$0xff]
  %v302 = vld [vmem:[%s3 + $0x78] sm:$0xff]
  %v303 = vld [vmem:[%s3 + $0x80] sm:$0xff]
  %v304 = vld [vmem:[%s3 + $0x88] sm:$0xff]
  %v305 = vld [vmem:[%s3 + $0x90] sm:$0xff]
  %v306 = vld [vmem:[%s3 + $0x98] sm:$0xff]
  %v307 = vld [vmem:[%s3 + $0xa0] sm:$0xff]
  %v308 = vld [vmem:[%s3 + $0xa8] sm:$0xff]
  %v309 = vld [vmem:[%s3 + $0xb0] sm:$0xff]
  %v310 = vld [vmem:[%s3 + $0xb8] sm:$0xff]
  %v311 = vld [vmem:[%s3 + $0xc0] sm:$0xff]
  %v312 = vld [vmem:[%s3 + $0xc8] sm:$0xff]
  %v313 = vld [vmem:[%s3 + $0xd0] sm:$0xff]
  %v314 = vld [vmem:[%s3 + $0xd8] sm:$0xff]
  %v315 = vld [vmem:[%s3 + $0xe0] sm:$0xff]
  %v316 = vld [vmem:[%s3 + $0xe8] sm:$0xff]
  %v317 = vld [vmem:[%s3 + $0xf0] sm:$0xff]
  %v318 = vld [vmem:[%s3 + $0xf8] sm:$0xff]
  %v319 = vld [vmem:[%s3 + $0x100] sm:$0xff]
  %v320 = vld [vmem:[%s3 + $0x108] sm:$0xff]
  %v321 = vld [vmem:[%s3 + $0x110] sm:$0xff]
  %v322 = vld [vmem:[%s3 + $0x118] sm:$0xff]
  %v323 = vld [vmem:[%s3 + $0x120] sm:$0xff]
  %v324 = vld [vmem:[%s3 + $0x128] sm:$0xff]
  %v325 = vld [vmem:[%s3 + $0x130] sm:$0xff]
  %v326 = vld [vmem:[%s3 + $0x138] sm:$0xff]
  %v327 = vld [vmem:[%s3 + $0x140] sm:$0xff]
  %v328 = vld [vmem:[%s3 + $0x148] sm:$0xff]
  %v329 = vld [vmem:[%s3 + $0x150] sm:$0xff]
  %v330 = vld [vmem:[%s3 + $0x158] sm:$0xff]
  %v331 = vld [vmem:[%s3 + $0x160] sm:$0xff]
  %v332 = vld [vmem:[%s3 + $0x168] sm:$0xff]
  %v333 = vld [vmem:[%s3 + $0x170] sm:$0xff]
  %v334 = vld [vmem:[%s3 + $0x178] sm:$0xff]
  %v335 = vld [vmem:[%s3 + $0x180] sm:$0xff]
  %v336 = vld [vmem:[%s3 + $0x188] sm:$0xff]
  %v337 = vld [vmem:[%s3 + $0x190] sm:$0xff]
  %v338 = vld [vmem:[%s3 + $0x198] sm:$0xff]
  %v339 = vld [vmem:[%s3 + $0x1a0] sm:$0xff]
  %v340 = vld [vmem:[%s3 + $0x1a8] sm:$0xff]
  %v341 = vld [vmem:[%s3 + $0x1b0] sm:$0xff]
  %v342 = vld [vmem:[%s3 + $0x1b8] sm:$0xff]
  %v343 = vld [vmem:[%s3 + $0x1c0] sm:$0xff]
  %v344 = vld [vmem:[%s3 + $0x1c8] sm:$0xff]
  %v345 = vld [vmem:[%s3 + $0x1d0] sm:$0xff]
  %v346 = vld [vmem:[%s3 + $0x1d8] sm:$0xff]
  %v347 = vld [vmem:[%s3 + $0x1e0] sm:$0xff]
  %v348 = vld [vmem:[%s3 + $0x1e8] sm:$0xff]
  %v349 = vld [vmem:[%s3 + $0x1f0] sm:$0xff]
  %v350 = vld [vmem:[%s3 + $0x1f8] sm:$0xff]
  %v351 = vadd.f32 %v223, %v287
  %v352 = vadd.f32 %v224, %v288
  %v353 = vadd.f32 %v225, %v289
  %v354 = vadd.f32 %v226, %v290
  %v355 = vadd.f32 %v227, %v291
  %v356 = vadd.f32 %v228, %v292
  %v357 = vadd.f32 %v229, %v293
  %v358 = vadd.f32 %v230, %v294
  %v359 = vadd.f32 %v231, %v295
  %v360 = vadd.f32 %v232, %v296
  %v361 = vadd.f32 %v233, %v297
  %v362 = vadd.f32 %v234, %v298
  %v363 = vadd.f32 %v235, %v299
  %v364 = vadd.f32 %v236, %v300
  %v365 = vadd.f32 %v237, %v301
  %v366 = vadd.f32 %v238, %v302
  %v367 = vadd.f32 %v239, %v303
  %v368 = vadd.f32 %v240, %v304
  %v369 = vadd.f32 %v241, %v305
  %v370 = vadd.f32 %v242, %v306
  %v371 = vadd.f32 %v243, %v307
  %v372 = vadd.f32 %v244, %v308
  %v373 = vadd.f32 %v245, %v309
  %v374 = vadd.f32 %v246, %v310
  %v375 = vadd.f32 %v247, %v311
  %v376 = vadd.f32 %v248, %v312
  %v377 = vadd.f32 %v249, %v313
  %v378 = vadd.f32 %v250, %v314
  %v379 = vadd.f32 %v251, %v315
  %v380 = vadd.f32 %v252, %v316
  %v381 = vadd.f32 %v253, %v317
  %v382 = vadd.f32 %v254, %v318
  %v383 = vadd.f32 %v255, %v319
  %v384 = vadd.f32 %v256, %v320
  %v385 = vadd.f32 %v257, %v321
  %v386 = vadd.f32 %v258, %v322
  %v387 = vadd.f32 %v259, %v323
  %v388 = vadd.f32 %v260, %v324
  %v389 = vadd.f32 %v261, %v325
  %v390 = vadd.f32 %v262, %v326
  %v391 = vadd.f32 %v263, %v327
  %v392 = vadd.f32 %v264, %v328
  %v393 = vadd.f32 %v265, %v329
  %v394 = vadd.f32 %v266, %v330
  %v395 = vadd.f32 %v267, %v331
  %v396 = vadd.f32 %v268, %v332
  %v397 = vadd.f32 %v269, %v333
  %v398 = vadd.f32 %v270, %v334
  %v399 = vadd.f32 %v271, %v335
  %v400 = vadd.f32 %v272, %v336
  %v401 = vadd.f32 %v273, %v337
  %v402 = vadd.f32 %v274, %v338
  %v403 = vadd.f32 %v275, %v339
  %v404 = vadd.f32 %v276, %v340
  %v405 = vadd.f32 %v277, %v341
  %v406 = vadd.f32 %v278, %v342
  %v407 = vadd.f32 %v279, %v343
  %v408 = vadd.f32 %v280, %v344
  %v409 = vadd.f32 %v281, %v345
  %v410 = vadd.f32 %v282, %v346
  %v411 = vadd.f32 %v283, %v347
  %v412 = vadd.f32 %v284, %v348
  %v413 = vadd.f32 %v285, %v349
  %v414 = vadd.f32 %v286, %v350
  %v415 = vmax.f32 %v351, 0.0
  %v416 = vmax.f32 %v352, 0.0
  %v417 = vmax.f32 %v353, 0.0
  %v418 = vmax.f32 %v354, 0.0
  %v419 = vmax.f32 %v355, 0.0
  %v420 = vmax.f32 %v356, 0.0
  %v421 = vmax.f32 %v357, 0.0
  %v422 = vmax.f32 %v358, 0.0
  %v423 = vmax.f32 %v359, 0.0
  %v424 = vmax.f32 %v360, 0.0
  %v425 = vmax.f32 %v361, 0.0
  %v426 = vmax.f32 %v362, 0.0
  %v427 = vmax.f32 %v363, 0.0
  %v428 = vmax.f32 %v364, 0.0
  %v429 = vmax.f32 %v365, 0.0
  %v430 = vmax.f32 %v366, 0.0
  %v431 = vmax.f32 %v367, 0.0
  %v432 = vmax.f32 %v368, 0.0
  %v433 = vmax.f32 %v369, 0.0
  %v434 = vmax.f32 %v370, 0.0
  %v435 = vmax.f32 %v371, 0.0
  %v436 = vmax.f32 %v372, 0.0
  %v437 = vmax.f32 %v373, 0.0
  %v438 = vmax.f32 %v374, 0.0
  %v439 = vmax.f32 %v375, 0.0
  %v440 = vmax.f32 %v376, 0.0
  %v441 = vmax.f32 %v377, 0.0
  %v442 = vmax.f32 %v378, 0.0
  %v443 = vmax.f32 %v379, 0.0
  %v444 = vmax.f32 %v380, 0.0
  %v445 = vmax.f32 %v381, 0.0
  %v446 = vmax.f32 %v382, 0.0
  %v447 = vmax.f32 %v383, 0.0
  %v448 = vmax.f32 %v384, 0.0
  %v449 = vmax.f32 %v385, 0.0
  %v450 = vmax.f32 %v386, 0.0
  %v451 = vmax.f32 %v387, 0.0
  %v452 = vmax.f32 %v388, 0.0
  %v453 = vmax.f32 %v389, 0.0
  %v454 = vmax.f32 %v390, 0.0
  %v455 = vmax.f32 %v391, 0.0
  %v456 = vmax.f32 %v392, 0.0
  %v457 = vmax.f32 %v393, 0.0
  %v458 = vmax.f32 %v394, 0.0
  %v459 = vmax.f32 %v395, 0.0
  %v460 = vmax.f32 %v396, 0.0
  %v461 = vmax.f32 %v397, 0.0
  %v462 = vmax.f32 %v398, 0.0
  %v463 = vmax.f32 %v399, 0.0
  %v464 = vmax.f32 %v400, 0.0
  %v465 = vmax.f32 %v401, 0.0
  %v466 = vmax.f32 %v402, 0.0
  %v467 = vmax.f32 %v403, 0.0
  %v468 = vmax.f32 %v404, 0.0
  %v469 = vmax.f32 %v405, 0.0
  %v470 = vmax.f32 %v406, 0.0
  %v471 = vmax.f32 %v407, 0.0
  %v472 = vmax.f32 %v408, 0.0
  %v473 = vmax.f32 %v409, 0.0
  %v474 = vmax.f32 %v410, 0.0
  %v475 = vmax.f32 %v411, 0.0
  %v476 = vmax.f32 %v412, 0.0
  %v477 = vmax.f32 %v413, 0.0
  %v478 = vmax.f32 %v414, 0.0
  %479 = vst [vmem:[%s4] sm:$0xff] %v415
  %480 = vst [vmem:[%s4 + $0x8] sm:$0xff] %v416
  %481 = vst [vmem:[%s4 + $0x10] sm:$0xff] %v417
  %482 = vst [vmem:[%s4 + $0x18] sm:$0xff] %v418
  %483 = vst [vmem:[%s4 + $0x20] sm:$0xff] %v419
  %484 = vst [vmem:[%s4 + $0x28] sm:$0xff] %v420
  %485 = vst [vmem:[%s4 + $0x30] sm:$0xff] %v421
  %486 = vst [vmem:[%s4 + $0x38] sm:$0xff] %v422
  %487 = vst [vmem:[%s4 + $0x40] sm:$0xff] %v423
  %488 = vst [vmem:[%s4 + $0x48] sm:$0xff] %v424
  %489 = vst [vmem:[%s4 + $0x50] sm:$0xff] %v425
  %490 = vst [vmem:[%s4 + $0x58] sm:$0xff] %v426
  %491 = vst [vmem:[%s4 + $0x60] sm:$0xff] %v427
  %492 = vst [vmem:[%s4 + $0x68] sm:$0xff] %v428
  %493 = vst [vmem:[%s4 + $0x70] sm:$0xff] %v429
  %494 = vst [vmem:[%s4 + $0x78] sm:$0xff] %v430
  %495 = vst [vmem:[%s4 + $0x80] sm:$0xff] %v431
  %496 = vst [vmem:[%s4 + $0x88] sm:$0xff] %v432
  %497 = vst [vmem:[%s4 + $0x90] sm:$0xff] %v433
  %498 = vst [vmem:[%s4 + $0x98] sm:$0xff] %v434
  %499 = vst [vmem:[%s4 + $0xa0] sm:$0xff] %v435
  %500 = vst [vmem:[%s4 + $0xa8] sm:$0xff] %v436
  %501 = vst [vmem:[%s4 + $0xb0] sm:$0xff] %v437
  %502 = vst [vmem:[%s4 + $0xb8] sm:$0xff] %v438
  %503 = vst [vmem:[%s4 + $0xc0] sm:$0xff] %v439
  %504 = vst [vmem:[%s4 + $0xc8] sm:$0xff] %v440
  %505 = vst [vmem:[%s4 + $0xd0] sm:$0xff] %v441
  %506 = vst [vmem:[%s4 + $0xd8] sm:$0xff] %v442
  %507 = vst [vmem:[%s4 + $0xe0] sm:$0xff] %v443
  %508 = vst [vmem:[%s4 + $0xe8] sm:$0xff] %v444
  %509 = vst [vmem:[%s4 + $0xf0] sm:$0xff] %v445
  %510 = vst [vmem:[%s4 + $0xf8] sm:$0xff] %v446
  %511 = vst [vmem:[%s4 + $0x100] sm:$0xff] %v447
  %512 = vst [vmem:[%s4 + $0x108] sm:$0xff] %v448
  %513 = vst [vmem:[%s4 + $0x110] sm:$0xff] %v449
  %514 = vst [vmem:[%s4 + $0x118] sm:$0xff] %v450
  %515 = vst [vmem:[%s4 + $0x120] sm:$0xff] %v451
  %516 = vst [vmem:[%s4 + $0x128] sm:$0xff] %v452
  %517 = vst [vmem:[%s4 + $0x130] sm:$0xff] %v453
  %518 = vst [vmem:[%s4 + $0x138] sm:$0xff] %v454
  %519 = vst [vmem:[%s4 + $0x140] sm:$0xff] %v455
  %520 = vst [vmem:[%s4 + $0x148] sm:$0xff] %v456
  %521 = vst [vmem:[%s4 + $0x150] sm:$0xff] %v457
  %522 = vst [vmem:[%s4 + $0x158] sm:$0xff] %v458
  %523 = vst [vmem:[%s4 + $0x160] sm:$0xff] %v459
  %524 = vst [vmem:[%s4 + $0x168] sm:$0xff] %v460
  %525 = vst [vmem:[%s4 + $0x170] sm:$0xff] %v461
  %526 = vst [vmem:[%s4 + $0x178] sm:$0xff] %v462
  %527 = vst [vmem:[%s4 + $0x180] sm:$0xff] %v463
  %528 = vst [vmem:[%s4 + $0x188] sm:$0xff] %v464
  %529 = vst [vmem:[%s4 + $0x190] sm:$0xff] %v465
  %530 = vst [vmem:[%s4 + $0x198] sm:$0xff] %v466
  %531 = vst [vmem:[%s4 + $0x1a0] sm:$0xff] %v467
  %532 = vst [vmem:[%s4 + $0x1a8] sm:$0xff] %v468
  %533 = vst [vmem:[%s4 + $0x1b0] sm:$0xff] %v469
  %534 = vst [vmem:[%s4 + $0x1b8] sm:$0xff] %v470
  %535 = vst [vmem:[%s4 + $0x1c0] sm:$0xff] %v471
  %536 = vst [vmem:[%s4 + $0x1c8] sm:$0xff] %v472
  %537 = vst [vmem:[%s4 + $0x1d0] sm:$0xff] %v473
  %538 = vst [vmem:[%s4 + $0x1d8] sm:$0xff] %v474
  %539 = vst [vmem:[%s4 + $0x1e0] sm:$0xff] %v475
  %540 = vst [vmem:[%s4 + $0x1e8] sm:$0xff] %v476
  %541 = vst [vmem:[%s4 + $0x1f0] sm:$0xff] %v477
  %542 = vst [vmem:[%s4 + $0x1f8] sm:$0xff] %v478
  // Predicated region
  $region18: #{basic_block_forward.5} parent=0 // pred_check
    _
  $region19: #{basic_block_forward.5} parent=0 // pred_check_branch
    %544 = sbr.rel (0) target = $region21
  $region20: #{basic_block_forward.5} parent=0 // pred_region
    _
  $region21: #{basic_block_forward.5} parent=0 // pred_fallthru
    _
  // Predicated region
  $region22: #{basic_block_forward.5} parent=0 // pred_check
    _
  $region23: #{basic_block_forward.5} parent=0 // pred_check_branch
    %546 = sbr.rel (0) target = $region25
  $region24: #{basic_block_forward.5} parent=0 // pred_region
    _
  $region25: #{basic_block_forward.5} parent=0 // pred_fallthru
    _

// kernel: basic_block_forward.3
$region0: #{basic_block_forward.3}
  #allocation0 [shape = 'u32[]', space=smem, size = 0x4, offset = 0x4, fixed_abs, tag = 'smem constant byte address 0x4 - core index']
  #allocation1 [shape = 'u32[144,128]{1,0:T(1,128)}', space=vmem, size = 0x12000, scoped, tag = 'internal scratch']
  %s0 = inlined_call_operand.vmem [shape: bf16[2,16,16,128], index: 0, kind: input, shape index: {}]
  %s1 = inlined_call_operand.vmem [shape: bf16[3,384,128], index: 1, kind: input, shape index: {}]
  %s2 = inlined_call_operand.vmem [shape: bf16[2,16,16,128], index: 2, kind: output, shape index: {0}]
  %s3 = inlined_call_operand.vmem [shape: f32[1,8,128], index: 3, kind: output, shape index: {1}]
  %4 = xla_tuple %s2, %s3
  %s5 = sld [smem:[#allocation0]]
  $region26: #{basic_block_forward.3} parent=0
    _
  %s7 = ssub.s32 1, %s5
  %s8 = scalar_select 0, %s7, %s5
  // Predicated region
  $region2: #{basic_block_forward.3} parent=0 // pred_check
    _
  $region3: #{basic_block_forward.3} parent=0 // pred_check_branch
    %10 = sbr.rel (0) target = $region5
  $region4: #{basic_block_forward.3} parent=0 // pred_region
    _
  $region5: #{basic_block_forward.3} parent=0 // pred_fallthru
    _
  // Predicated region
  $region6: #{basic_block_forward.3} parent=0 // pred_check
    _
  $region7: #{basic_block_forward.3} parent=0 // pred_check_branch
    %12 = sbr.rel (0) target = $region9
  $region8: #{basic_block_forward.3} parent=0 // pred_region
    _
  $region9: #{basic_block_forward.3} parent=0 // pred_fallthru
    _
  %v14 = vld [vmem:[%s1] sm:$0xf]
  %v15 = vld [vmem:[%s1 + $0x4] sm:$0xf]
  %v16 = vld [vmem:[%s1 + $0x8] sm:$0xf]
  %v17 = vld [vmem:[%s1 + $0xc] sm:$0xf]
  %v18 = vld [vmem:[%s1 + $0x10] sm:$0xf]
  %v19 = vld [vmem:[%s1 + $0x14] sm:$0xf]
  %v20 = vld [vmem:[%s1 + $0x18] sm:$0xf]
  %v21 = vld [vmem:[%s1 + $0x1c] sm:$0xf]
  %v22 = vld [vmem:[%s1 + $0x20] sm:$0xf]
  %v23 = vld [vmem:[%s1 + $0x24] sm:$0xf]
  %v24 = vld [vmem:[%s1 + $0x28] sm:$0xf]
  %v25 = vld [vmem:[%s1 + $0x2c] sm:$0xf]
  %v26 = vld [vmem:[%s1 + $0x30] sm:$0xf]
  %v27 = vld [vmem:[%s1 + $0x34] sm:$0xf]
  %v28 = vld [vmem:[%s1 + $0x38] sm:$0xf]
  %v29 = vld [vmem:[%s1 + $0x3c] sm:$0xf]
  %v30 = vld [vmem:[%s1 + $0x40] sm:$0xf]
  %v31 = vld [vmem:[%s1 + $0x44] sm:$0xf]
  %v32 = vld [vmem:[%s1 + $0x48] sm:$0xf]
  %v33 = vld [vmem:[%s1 + $0x4c] sm:$0xf]
  %v34 = vld [vmem:[%s1 + $0x50] sm:$0xf]
  %v35 = vld [vmem:[%s1 + $0x54] sm:$0xf]
  %v36 = vld [vmem:[%s1 + $0x58] sm:$0xf]
  %v37 = vld [vmem:[%s1 + $0x5c] sm:$0xf]
  %v38 = vld [vmem:[%s1 + $0x60] sm:$0xf]
  %v39 = vld [vmem:[%s1 + $0x64] sm:$0xf]
  %v40 = vld [vmem:[%s1 + $0x68] sm:$0xf]
  %v41 = vld [vmem:[%s1 + $0x6c] sm:$0xf]
  %v42 = vld [vmem:[%s1 + $0x70] sm:$0xf]
  %v43 = vld [vmem:[%s1 + $0x74] sm:$0xf]
  %v44 = vld [vmem:[%s1 + $0x78] sm:$0xf]
  %v45 = vld [vmem:[%s1 + $0x7c] sm:$0xf]
  %v46 = vld [vmem:[%s1 + $0x80] sm:$0xf]
  %v47 = vld [vmem:[%s1 + $0x84] sm:$0xf]
  %v48 = vld [vmem:[%s1 + $0x88] sm:$0xf]
  %v49 = vld [vmem:[%s1 + $0x8c] sm:$0xf]
  %v50 = vld [vmem:[%s1 + $0x90] sm:$0xf]
  %v51 = vld [vmem:[%s1 + $0x94] sm:$0xf]
  %v52 = vld [vmem:[%s1 + $0x98] sm:$0xf]
  %v53 = vld [vmem:[%s1 + $0x9c] sm:$0xf]
  %v54 = vld [vmem:[%s1 + $0xa0] sm:$0xf]
  %v55 = vld [vmem:[%s1 + $0xa4] sm:$0xf]
  %v56 = vld [vmem:[%s1 + $0xa8] sm:$0xf]
  %v57 = vld [vmem:[%s1 + $0xac] sm:$0xf]
  %v58 = vld [vmem:[%s1 + $0xb0] sm:$0xf]
  %v59 = vld [vmem:[%s1 + $0xb4] sm:$0xf]
  %v60 = vld [vmem:[%s1 + $0xb8] sm:$0xf]
  %v61 = vld [vmem:[%s1 + $0xbc] sm:$0xf]
  %v62 = vld [vmem:[%s1 + $0xc0] sm:$0xf]
  %v63 = vld [vmem:[%s1 + $0xc4] sm:$0xf]
  %v64 = vld [vmem:[%s1 + $0xc8] sm:$0xf]
  %v65 = vld [vmem:[%s1 + $0xcc] sm:$0xf]
  %v66 = vld [vmem:[%s1 + $0xd0] sm:$0xf]
  %v67 = vld [vmem:[%s1 + $0xd4] sm:$0xf]
  %v68 = vld [vmem:[%s1 + $0xd8] sm:$0xf]
  %v69 = vld [vmem:[%s1 + $0xdc] sm:$0xf]
  %v70 = vld [vmem:[%s1 + $0xe0] sm:$0xf]
  %v71 = vld [vmem:[%s1 + $0xe4] sm:$0xf]
  %v72 = vld [vmem:[%s1 + $0xe8] sm:$0xf]
  %v73 = vld [vmem:[%s1 + $0xec] sm:$0xf]
  %v74 = vld [vmem:[%s1 + $0xf0] sm:$0xf]
  %v75 = vld [vmem:[%s1 + $0xf4] sm:$0xf]
  %v76 = vld [vmem:[%s1 + $0xf8] sm:$0xf]
  %v77 = vld [vmem:[%s1 + $0xfc] sm:$0xf]
  %v78 = vld [vmem:[%s1 + $0x100] sm:$0xf]
  %v79 = vld [vmem:[%s1 + $0x104] sm:$0xf]
  %v80 = vld [vmem:[%s1 + $0x108] sm:$0xf]
  %v81 = vld [vmem:[%s1 + $0x10c] sm:$0xf]
  %v82 = vld [vmem:[%s1 + $0x110] sm:$0xf]
  %v83 = vld [vmem:[%s1 + $0x114] sm:$0xf]
  %v84 = vld [vmem:[%s1 + $0x118] sm:$0xf]
  %v85 = vld [vmem:[%s1 + $0x11c] sm:$0xf]
  %v86 = vld [vmem:[%s1 + $0x120] sm:$0xf]
  %v87 = vld [vmem:[%s1 + $0x124] sm:$0xf]
  %v88 = vld [vmem:[%s1 + $0x128] sm:$0xf]
  %v89 = vld [vmem:[%s1 + $0x12c] sm:$0xf]
  %v90 = vld [vmem:[%s1 + $0x130] sm:$0xf]
  %v91 = vld [vmem:[%s1 + $0x134] sm:$0xf]
  %v92 = vld [vmem:[%s1 + $0x138] sm:$0xf]
  %v93 = vld [vmem:[%s1 + $0x13c] sm:$0xf]
  %v94 = vld [vmem:[%s1 + $0x140] sm:$0xf]
  %v95 = vld [vmem:[%s1 + $0x144] sm:$0xf]
  %v96 = vld [vmem:[%s1 + $0x148] sm:$0xf]
  %v97 = vld [vmem:[%s1 + $0x14c] sm:$0xf]
  %v98 = vld [vmem:[%s1 + $0x150] sm:$0xf]
  %v99 = vld [vmem:[%s1 + $0x154] sm:$0xf]
  %v100 = vld [vmem:[%s1 + $0x158] sm:$0xf]
  %v101 = vld [vmem:[%s1 + $0x15c] sm:$0xf]
  %v102 = vld [vmem:[%s1 + $0x160] sm:$0xf]
  %v103 = vld [vmem:[%s1 + $0x164] sm:$0xf]
  %v104 = vld [vmem:[%s1 + $0x168] sm:$0xf]
  %v105 = vld [vmem:[%s1 + $0x16c] sm:$0xf]
  %v106 = vld [vmem:[%s1 + $0x170] sm:$0xf]
  %v107 = vld [vmem:[%s1 + $0x174] sm:$0xf]
  %v108 = vld [vmem:[%s1 + $0x178] sm:$0xf]
  %v109 = vld [vmem:[%s1 + $0x17c] sm:$0xf]
  %v110 = vld [vmem:[%s1 + $0x180] sm:$0xf]
  %v111 = vld [vmem:[%s1 + $0x184] sm:$0xf]
  %v112 = vld [vmem:[%s1 + $0x188] sm:$0xf]
  %v113 = vld [vmem:[%s1 + $0x18c] sm:$0xf]
  %v114 = vld [vmem:[%s1 + $0x190] sm:$0xf]
  %v115 = vld [vmem:[%s1 + $0x194] sm:$0xf]
  %v116 = vld [vmem:[%s1 + $0x198] sm:$0xf]
  %v117 = vld [vmem:[%s1 + $0x19c] sm:$0xf]
  %v118 = vld [vmem:[%s1 + $0x1a0] sm:$0xf]
  %v119 = vld [vmem:[%s1 + $0x1a4] sm:$0xf]
  %v120 = vld [vmem:[%s1 + $0x1a8] sm:$0xf]
  %v121 = vld [vmem:[%s1 + $0x1ac] sm:$0xf]
  %v122 = vld [vmem:[%s1 + $0x1b0] sm:$0xf]
  %v123 = vld [vmem:[%s1 + $0x1b4] sm:$0xf]
  %v124 = vld [vmem:[%s1 + $0x1b8] sm:$0xf]
  %v125 = vld [vmem:[%s1 + $0x1bc] sm:$0xf]
  %v126 = vld [vmem:[%s1 + $0x1c0] sm:$0xf]
  %v127 = vld [vmem:[%s1 + $0x1c4] sm:$0xf]
  %v128 = vld [vmem:[%s1 + $0x1c8] sm:$0xf]
  %v129 = vld [vmem:[%s1 + $0x1cc] sm:$0xf]
  %v130 = vld [vmem:[%s1 + $0x1d0] sm:$0xf]
  %v131 = vld [vmem:[%s1 + $0x1d4] sm:$0xf]
  %v132 = vld [vmem:[%s1 + $0x1d8] sm:$0xf]
  %v133 = vld [vmem:[%s1 + $0x1dc] sm:$0xf]
  %v134 = vld [vmem:[%s1 + $0x1e0] sm:$0xf]
  %v135 = vld [vmem:[%s1 + $0x1e4] sm:$0xf]
  %v136 = vld [vmem:[%s1 + $0x1e8] sm:$0xf]
  %v137 = vld [vmem:[%s1 + $0x1ec] sm:$0xf]
  %v138 = vld [vmem:[%s1 + $0x1f0] sm:$0xf]
  %v139 = vld [vmem:[%s1 + $0x1f4] sm:$0xf]
  %v140 = vld [vmem:[%s1 + $0x1f8] sm:$0xf]
  %v141 = vld [vmem:[%s1 + $0x1fc] sm:$0xf]
  %v142 = vld [vmem:[%s1 + $0x200] sm:$0xf]
  %v143 = vld [vmem:[%s1 + $0x204] sm:$0xf]
  %v144 = vld [vmem:[%s1 + $0x208] sm:$0xf]
  %v145 = vld [vmem:[%s1 + $0x20c] sm:$0xf]
  %v146 = vld [vmem:[%s1 + $0x210] sm:$0xf]
  %v147 = vld [vmem:[%s1 + $0x214] sm:$0xf]
  %v148 = vld [vmem:[%s1 + $0x218] sm:$0xf]
  %v149 = vld [vmem:[%s1 + $0x21c] sm:$0xf]
  %v150 = vld [vmem:[%s1 + $0x220] sm:$0xf]
  %v151 = vld [vmem:[%s1 + $0x224] sm:$0xf]
  %v152 = vld [vmem:[%s1 + $0x228] sm:$0xf]
  %v153 = vld [vmem:[%s1 + $0x22c] sm:$0xf]
  %v154 = vld [vmem:[%s1 + $0x230] sm:$0xf]
  %v155 = vld [vmem:[%s1 + $0x234] sm:$0xf]
  %v156 = vld [vmem:[%s1 + $0x238] sm:$0xf]
  %v157 = vld [vmem:[%s1 + $0x23c] sm:$0xf]
  %v158 = vld [vmem:[%s0] sm:$0xf]
  %v159 = vld [vmem:[%s0 + $0x4] sm:$0xf]
  %v160 = vld [vmem:[%s0 + $0x8] sm:$0xf]
  %v161 = vld [vmem:[%s0 + $0xc] sm:$0xf]
  %v162 = vld [vmem:[%s0 + $0x10] sm:$0xf]
  %v163 = vld [vmem:[%s0 + $0x14] sm:$0xf]
  %v164 = vld [vmem:[%s0 + $0x18] sm:$0xf]
  %v165 = vld [vmem:[%s0 + $0x1c] sm:$0xf]
  %v166 = vld [vmem:[%s0 + $0x20] sm:$0xf]
  %v167 = vld [vmem:[%s0 + $0x24] sm:$0xf]
  %v168 = vld [vmem:[%s0 + $0x28] sm:$0xf]
  %v169 = vld [vmem:[%s0 + $0x2c] sm:$0xf]
  %v170 = vld [vmem:[%s0 + $0x30] sm:$0xf]
  %v171 = vld [vmem:[%s0 + $0x34] sm:$0xf]
  %v172 = vld [vmem:[%s0 + $0x38] sm:$0xf]
  %v173 = vld [vmem:[%s0 + $0x3c] sm:$0xf]
  %v174 = vld [vmem:[%s0 + $0x40] sm:$0xf]
  %v175 = vld [vmem:[%s0 + $0x44] sm:$0xf]
  %v176 = vld [vmem:[%s0 + $0x48] sm:$0xf]
  %v177 = vld [vmem:[%s0 + $0x4c] sm:$0xf]
  %v178 = vld [vmem:[%s0 + $0x50] sm:$0xf]
  %v179 = vld [vmem:[%s0 + $0x54] sm:$0xf]
  %v180 = vld [vmem:[%s0 + $0x58] sm:$0xf]
  %v181 = vld [vmem:[%s0 + $0x5c] sm:$0xf]
  %v182 = vld [vmem:[%s0 + $0x60] sm:$0xf]
  %v183 = vld [vmem:[%s0 + $0x64] sm:$0xf]
  %v184 = vld [vmem:[%s0 + $0x68] sm:$0xf]
  %v185 = vld [vmem:[%s0 + $0x6c] sm:$0xf]
  %v186 = vld [vmem:[%s0 + $0x70] sm:$0xf]
  %v187 = vld [vmem:[%s0 + $0x74] sm:$0xf]
  %v188 = vld [vmem:[%s0 + $0x78] sm:$0xf]
  %v189 = vld [vmem:[%s0 + $0x7c] sm:$0xf]
  %v222 = vunpack.c.l.b16 %v158
  %v223 = vunpack.c.l.b16 %v159
  %v224 = vunpack.c.l.b16 %v160
  %v225 = vunpack.c.l.b16 %v161
  %v226 = vunpack.c.l.b16 %v162
  %v227 = vunpack.c.l.b16 %v163
  %v228 = vunpack.c.l.b16 %v164
  %v229 = vunpack.c.l.b16 %v165
  %v230 = vunpack.c.l.b16 %v166
  %v231 = vunpack.c.l.b16 %v167
  %v232 = vunpack.c.l.b16 %v168
  %v233 = vunpack.c.l.b16 %v169
  %v234 = vunpack.c.l.b16 %v170
  %v235 = vunpack.c.l.b16 %v171
  %v236 = vunpack.c.l.b16 %v172
  %v237 = vunpack.c.l.b16 %v173
  %v238 = vunpack.c.l.b16 %v174
  %v239 = vunpack.c.l.b16 %v175
  %v240 = vunpack.c.l.b16 %v176
  %v241 = vunpack.c.l.b16 %v177
  %v242 = vunpack.c.l.b16 %v178
  %v243 = vunpack.c.l.b16 %v179
  %v244 = vunpack.c.l.b16 %v180
  %v245 = vunpack.c.l.b16 %v181
  %v246 = vunpack.c.l.b16 %v182
  %v247 = vunpack.c.l.b16 %v183
  %v248 = vunpack.c.l.b16 %v184
  %v249 = vunpack.c.l.b16 %v185
  %v250 = vunpack.c.l.b16 %v186
  %v251 = vunpack.c.l.b16 %v187
  %v252 = vunpack.c.l.b16 %v188
  %v253 = vunpack.c.l.b16 %v189
  %v254 = vpack.c.b16 %v223, %v222
  %v255 = vpack.c.b16 %v225, %v224
  %v256 = vpack.c.b16 %v227, %v226
  %v257 = vpack.c.b16 %v229, %v228
  %v258 = vpack.c.b16 %v231, %v230
  %v259 = vpack.c.b16 %v233, %v232
  %v260 = vpack.c.b16 %v235, %v234
  %v261 = vpack.c.b16 %v237, %v236
  %v262 = vpack.c.b16 %v239, %v238
  %v263 = vpack.c.b16 %v241, %v240
  %v264 = vpack.c.b16 %v243, %v242
  %v265 = vpack.c.b16 %v245, %v244
  %v266 = vpack.c.b16 %v247, %v246
  %v267 = vpack.c.b16 %v249, %v248
  %v268 = vpack.c.b16 %v251, %v250
  %v269 = vpack.c.b16 %v253, %v252
  %v271 = vshrl.u32 0, 16
  %v273 = vrot.slane %v271, 7
  %v274 = vshll.u32 0, 16
  %v276 = vor.u32 %v273, %v274
  %v278 = vshrl.u32 %v254, 16
  %v280 = vrot.slane %v278, 7
  %v281 = vshll.u32 %v254, 16
  %v283 = vor.u32 %v280, %v281
  %v285 = vshrl.u32 %v255, 16
  %v287 = vrot.slane %v285, 7
  %v288 = vshll.u32 %v255, 16
  %v290 = vor.u32 %v287, %v288
  %v292 = vshrl.u32 %v256, 16
  %v294 = vrot.slane %v292, 7
  %v295 = vshll.u32 %v256, 16
  %v297 = vor.u32 %v294, %v295
  %v299 = vshrl.u32 %v257, 16
  %v301 = vrot.slane %v299, 7
  %v302 = vshll.u32 %v257, 16
  %v304 = vor.u32 %v301, %v302
  %v306 = vshrl.u32 %v258, 16
  %v308 = vrot.slane %v306, 7
  %v309 = vshll.u32 %v258, 16
  %v311 = vor.u32 %v308, %v309
  %v313 = vshrl.u32 %v259, 16
  %v315 = vrot.slane %v313, 7
  %v316 = vshll.u32 %v259, 16
  %v318 = vor.u32 %v315, %v316
  %v320 = vshrl.u32 %v260, 16
  %v322 = vrot.slane %v320, 7
  %v323 = vshll.u32 %v260, 16
  %v325 = vor.u32 %v322, %v323
  %v327 = vshrl.u32 %v261, 16
  %v329 = vrot.slane %v327, 7
  %v330 = vshll.u32 %v261, 16
  %v332 = vor.u32 %v329, %v330
  %v334 = vshrl.u32 %v262, 16
  %v336 = vrot.slane %v334, 7
  %v337 = vshll.u32 %v262, 16
  %v339 = vor.u32 %v336, %v337
  %v341 = vshrl.u32 %v263, 16
  %v343 = vrot.slane %v341, 7
  %v344 = vshll.u32 %v263, 16
  %v346 = vor.u32 %v343, %v344
  %v348 = vshrl.u32 %v264, 16
  %v350 = vrot.slane %v348, 7
  %v351 = vshll.u32 %v264, 16
  %v353 = vor.u32 %v350, %v351
  %v355 = vshrl.u32 %v265, 16
  %v357 = vrot.slane %v355, 7
  %v358 = vshll.u32 %v265, 16
  %v360 = vor.u32 %v357, %v358
  %v362 = vshrl.u32 %v266, 16
  %v364 = vrot.slane %v362, 7
  %v365 = vshll.u32 %v266, 16
  %v367 = vor.u32 %v364, %v365
  %v369 = vshrl.u32 %v267, 16
  %v371 = vrot.slane %v369, 7
  %v372 = vshll.u32 %v267, 16
  %v374 = vor.u32 %v371, %v372
  %v376 = vshrl.u32 %v268, 16
  %v378 = vrot.slane %v376, 7
  %v379 = vshll.u32 %v268, 16
  %v381 = vor.u32 %v378, %v379
  %v383 = vshrl.u32 %v269, 16
  %v385 = vrot.slane %v383, 7
  %v386 = vshll.u32 %v269, 16
  %v388 = vor.u32 %v385, %v386
  %vm423 = vcmask 1040384
  %vm424 = vsmask.f32 256
  %vm425 = vmand %vm423, %vm424
  %v426 = vsel %vm425, 0, %v276
  %v427 = vsel %vm425, 0, %v283
  %v428 = vsel %vm425, 0, %v290
  %v429 = vsel %vm425, 0, %v297
  %v430 = vsel %vm425, 0, %v304
  %v431 = vsel %vm425, 0, %v311
  %v432 = vsel %vm425, 0, %v318
  %v433 = vsel %vm425, 0, %v325
  %v434 = vsel %vm425, 0, %v332
  %v435 = vsel %vm425, 0, %v339
  %v436 = vsel %vm425, 0, %v346
  %v437 = vsel %vm425, 0, %v353
  %v438 = vsel %vm425, 0, %v360
  %v439 = vsel %vm425, 0, %v367
  %v440 = vsel %vm425, 0, %v374
  %v441 = vsel %vm425, 0, %v381
  %v442 = vsel %vm425, 0, %v388
  %v443 = vsel %vm425, %v273, 0
  %v444 = vsel %vm425, %v280, 0
  %v445 = vsel %vm425, %v287, 0
  %v446 = vsel %vm425, %v294, 0
  %v447 = vsel %vm425, %v301, 0
  %v448 = vsel %vm425, %v308, 0
  %v449 = vsel %vm425, %v315, 0
  %v450 = vsel %vm425, %v322, 0
  %v451 = vsel %vm425, %v329, 0
  %v452 = vsel %vm425, %v336, 0
  %v453 = vsel %vm425, %v343, 0
  %v454 = vsel %vm425, %v350, 0
  %v455 = vsel %vm425, %v357, 0
  %v456 = vsel %vm425, %v364, 0
  %v457 = vsel %vm425, %v371, 0
  %v458 = vsel %vm425, %v378, 0
  %v459 = vsel %vm425, %v385, 0
  %vm460 = vsmask.f32 7424
  %v462 = vshrl.u32 %v426, 16
  %v464 = vshll.u32 %v426, 16
  %v466 = vrot.slane %v464, 1
  %v467 = vor.u32 %v462, %v466
  %v469 = vshll.u32 %v443, 16
  %v471 = vrot.slane %v469, 1
  %v472 = vsel %vm460, %v467, %v471
  %v474 = vshrl.u32 %v427, 16
  %v476 = vshll.u32 %v427, 16
  %v478 = vrot.slane %v476, 1
  %v479 = vor.u32 %v474, %v478
  %v481 = vshll.u32 %v444, 16
  %v483 = vrot.slane %v481, 1
  %v484 = vsel %vm460, %v479, %v483
  %v486 = vshrl.u32 %v428, 16
  %v488 = vshll.u32 %v428, 16
  %v490 = vrot.slane %v488, 1
  %v491 = vor.u32 %v486, %v490
  %v493 = vshll.u32 %v445, 16
  %v495 = vrot.slane %v493, 1
  %v496 = vsel %vm460, %v491, %v495
  %v498 = vshrl.u32 %v429, 16
  %v500 = vshll.u32 %v429, 16
  %v502 = vrot.slane %v500, 1
  %v503 = vor.u32 %v498, %v502
  %v505 = vshll.u32 %v446, 16
  %v507 = vrot.slane %v505, 1
  %v508 = vsel %vm460, %v503, %v507
  %v510 = vshrl.u32 %v430, 16
  %v512 = vshll.u32 %v430, 16
  %v514 = vrot.slane %v512, 1
  %v515 = vor.u32 %v510, %v514
  %v517 = vshll.u32 %v447, 16
  %v519 = vrot.slane %v517, 1
  %v520 = vsel %vm460, %v515, %v519
  %v522 = vshrl.u32 %v431, 16
  %v524 = vshll.u32 %v431, 16
  %v526 = vrot.slane %v524, 1
  %v527 = vor.u32 %v522, %v526
  %v529 = vshll.u32 %v448, 16
  %v531 = vrot.slane %v529, 1
  %v532 = vsel %vm460, %v527, %v531
  %v534 = vshrl.u32 %v432, 16
  %v536 = vshll.u32 %v432, 16
  %v538 = vrot.slane %v536, 1
  %v539 = vor.u32 %v534, %v538
  %v541 = vshll.u32 %v449, 16
  %v543 = vrot.slane %v541, 1
  %v544 = vsel %vm460, %v539, %v543
  %v546 = vshrl.u32 %v433, 16
  %v548 = vshll.u32 %v433, 16
  %v550 = vrot.slane %v548, 1
  %v551 = vor.u32 %v546, %v550
  %v553 = vshll.u32 %v450, 16
  %v555 = vrot.slane %v553, 1
  %v556 = vsel %vm460, %v551, %v555
  %v558 = vshrl.u32 %v434, 16
  %v560 = vshll.u32 %v434, 16
  %v562 = vrot.slane %v560, 1
  %v563 = vor.u32 %v558, %v562
  %v565 = vshll.u32 %v451, 16
  %v567 = vrot.slane %v565, 1
  %v568 = vsel %vm460, %v563, %v567
  %v570 = vshrl.u32 %v435, 16
  %v572 = vshll.u32 %v435, 16
  %v574 = vrot.slane %v572, 1
  %v575 = vor.u32 %v570, %v574
  %v577 = vshll.u32 %v452, 16
  %v579 = vrot.slane %v577, 1
  %v580 = vsel %vm460, %v575, %v579
  %v582 = vshrl.u32 %v436, 16
  %v584 = vshll.u32 %v436, 16
  %v586 = vrot.slane %v584, 1
  %v587 = vor.u32 %v582, %v586
  %v589 = vshll.u32 %v453, 16
  %v591 = vrot.slane %v589, 1
  %v592 = vsel %vm460, %v587, %v591
  %v594 = vshrl.u32 %v437, 16
  %v596 = vshll.u32 %v437, 16
  %v598 = vrot.slane %v596, 1
  %v599 = vor.u32 %v594, %v598
  %v601 = vshll.u32 %v454, 16
  %v603 = vrot.slane %v601, 1
  %v604 = vsel %vm460, %v599, %v603
  %v606 = vshrl.u32 %v438, 16
  %v608 = vshll.u32 %v438, 16
  %v610 = vrot.slane %v608, 1
  %v611 = vor.u32 %v606, %v610
  %v613 = vshll.u32 %v455, 16
  %v615 = vrot.slane %v613, 1
  %v616 = vsel %vm460, %v611, %v615
  %v618 = vshrl.u32 %v439, 16
  %v620 = vshll.u32 %v439, 16
  %v622 = vrot.slane %v620, 1
  %v623 = vor.u32 %v618, %v622
  %v625 = vshll.u32 %v456, 16
  %v627 = vrot.slane %v625, 1
  %v628 = vsel %vm460, %v623, %v627
  %v630 = vshrl.u32 %v440, 16
  %v632 = vshll.u32 %v440, 16
  %v634 = vrot.slane %v632, 1
  %v635 = vor.u32 %v630, %v634
  %v637 = vshll.u32 %v457, 16
  %v639 = vrot.slane %v637, 1
  %v640 = vsel %vm460, %v635, %v639
  %v642 = vshrl.u32 %v441, 16
  %v644 = vshll.u32 %v441, 16
  %v646 = vrot.slane %v644, 1
  %v647 = vor.u32 %v642, %v646
  %v649 = vshll.u32 %v458, 16
  %v651 = vrot.slane %v649, 1
  %v652 = vsel %vm460, %v647, %v651
  %v654 = vshrl.u32 %v442, 16
  %v656 = vshll.u32 %v442, 16
  %v658 = vrot.slane %v656, 1
  %v659 = vor.u32 %v654, %v658
  %v661 = vshll.u32 %v459, 16
  %v663 = vrot.slane %v661, 1
  %v664 = vsel %vm460, %v659, %v663
  %v730 = vunpack.c.l.b16 %v62
  %v731 = vunpack.c.l.b16 %v63
  %v732 = vunpack.c.l.b16 %v64
  %v733 = vunpack.c.l.b16 %v65
  %v734 = vunpack.c.l.b16 %v66
  %v735 = vunpack.c.l.b16 %v67
  %v736 = vunpack.c.l.b16 %v68
  %v737 = vunpack.c.l.b16 %v69
  %v738 = vunpack.c.l.b16 %v70
  %v739 = vunpack.c.l.b16 %v71
  %v740 = vunpack.c.l.b16 %v72
  %v741 = vunpack.c.l.b16 %v73
  %v742 = vunpack.c.l.b16 %v74
  %v743 = vunpack.c.l.b16 %v75
  %v744 = vunpack.c.l.b16 %v76
  %v745 = vunpack.c.l.b16 %v77
  %v746 = vunpack.c.l.b16 %v78
  %v747 = vunpack.c.l.b16 %v79
  %v748 = vunpack.c.l.b16 %v80
  %v749 = vunpack.c.l.b16 %v81
  %v750 = vunpack.c.l.b16 %v82
  %v751 = vunpack.c.l.b16 %v83
  %v752 = vunpack.c.l.b16 %v84
  %v753 = vunpack.c.l.b16 %v85
  %v754 = vunpack.c.l.b16 %v86
  %v755 = vunpack.c.l.b16 %v87
  %v756 = vunpack.c.l.b16 %v88
  %v757 = vunpack.c.l.b16 %v89
  %v758 = vunpack.c.l.b16 %v90
  %v759 = vunpack.c.l.b16 %v91
  %v760 = vunpack.c.l.b16 %v92
  %v761 = vunpack.c.l.b16 %v93
  %v762 = vunpack.c.l.b16 %v94
  %v763 = vunpack.c.l.b16 %v95
  %v764 = vunpack.c.l.b16 %v96
  %v765 = vunpack.c.l.b16 %v97
  %v766 = vunpack.c.l.b16 %v98
  %v767 = vunpack.c.l.b16 %v99
  %v768 = vunpack.c.l.b16 %v100
  %v769 = vunpack.c.l.b16 %v101
  %v770 = vunpack.c.l.b16 %v102
  %v771 = vunpack.c.l.b16 %v103
  %v772 = vunpack.c.l.b16 %v104
  %v773 = vunpack.c.l.b16 %v105
  %v774 = vunpack.c.l.b16 %v106
  %v775 = vunpack.c.l.b16 %v107
  %v776 = vunpack.c.l.b16 %v108
  %v777 = vunpack.c.l.b16 %v109
  %v778 = vpack.c.b16 %v731, %v730
  %v779 = vpack.c.b16 %v733, %v732
  %v780 = vpack.c.b16 %v735, %v734
  %v781 = vpack.c.b16 %v737, %v736
  %v782 = vpack.c.b16 %v739, %v738
  %v783 = vpack.c.b16 %v741, %v740
  %v784 = vpack.c.b16 %v743, %v742
  %v785 = vpack.c.b16 %v745, %v744
  %v786 = vpack.c.b16 %v747, %v746
  %v787 = vpack.c.b16 %v749, %v748
  %v788 = vpack.c.b16 %v751, %v750
  %v789 = vpack.c.b16 %v753, %v752
  %v790 = vpack.c.b16 %v755, %v754
  %v791 = vpack.c.b16 %v757, %v756
  %v792 = vpack.c.b16 %v759, %v758
  %v793 = vpack.c.b16 %v761, %v760
  %v794 = vpack.c.b16 %v763, %v762
  %v795 = vpack.c.b16 %v765, %v764
  %v796 = vpack.c.b16 %v767, %v766
  %v797 = vpack.c.b16 %v769, %v768
  %v798 = vpack.c.b16 %v771, %v770
  %v799 = vpack.c.b16 %v773, %v772
  %v800 = vpack.c.b16 %v775, %v774
  %v801 = vpack.c.b16 %v777, %v776
  %826 = vmatprep.subr.bf16.mxu0 0
  %827 = vmatpush1.bf16.msra.mxu0 %v778
  %828 = vmatprep.subr.bf16.mxu0 0
  %829 = vmatpush1.bf16.msra.mxu0 %v779
  %830 = vmatprep.subr.bf16.mxu0 0
  %831 = vmatpush1.bf16.msra.mxu0 %v780
  %832 = vmatprep.subr.bf16.mxu0 0
  %833 = vmatpush1.bf16.msra.mxu0 %v781
  %834 = vmatprep.subr.bf16.mxu0 0
  %835 = vmatpush1.bf16.msra.mxu0 %v782
  %836 = vmatprep.subr.bf16.mxu0 0
  %837 = vmatpush1.bf16.msra.mxu0 %v783
  %838 = vmatprep.subr.bf16.mxu0 0
  %839 = vmatpush1.bf16.msra.mxu0 %v784
  %840 = vmatprep.subr.bf16.mxu0 0
  %841 = vmatpush1.bf16.msra.mxu0 %v785
  %842 = vmatprep.subr.bf16.mxu0 0
  %843 = vmatpush1.bf16.msra.mxu0 %v786
  %844 = vmatprep.subr.bf16.mxu0 0
  %845 = vmatpush1.bf16.msra.mxu0 %v787
  %846 = vmatprep.subr.bf16.mxu0 0
  %847 = vmatpush1.bf16.msra.mxu0 %v788
  %848 = vmatprep.subr.bf16.mxu0 0
  %849 = vmatpush1.bf16.msra.mxu0 %v789
  %850 = vmatprep.subr.bf16.mxu0 0
  %851 = vmatpush1.bf16.msra.mxu0 %v790
  %852 = vmatprep.subr.bf16.mxu0 0
  %853 = vmatpush1.bf16.msra.mxu0 %v791
  %854 = vmatprep.subr.bf16.mxu0 0
  %855 = vmatpush1.bf16.msra.mxu0 %v792
  %856 = vmatprep.subr.bf16.mxu0 0
  %857 = vmatpush1.bf16.msra.mxu0 %v793
  %858 = vmatprep.mubr.bf16.mxu0 %v484
  %859 = vmatmul.mubr.bf16.gmra.mrb[0].mxu0 %v472
  %v860 = vpop.f32.mrb[0].mxu0
  %v861 = vadd.f32 0.0, %v860
  %v862 = vpop.f32.mrb[0].mxu0
  %v863 = vpop.f32.mrb[0].mxu0
  %v864 = vadd.f32 0.0, %v863
  %v865 = vpop.f32.mrb[0].mxu0
  %866 = vmatprep.mubr.bf16.mxu0 %v496
  %867 = vmatmul.mubr.bf16.gmra.mrb[0].mxu0 %v484
  %v868 = vpop.f32.mrb[0].mxu0
  %v869 = vadd.f32 0.0, %v868
  %v870 = vpop.f32.mrb[0].mxu0
  %v871 = vpop.f32.mrb[0].mxu0
  %v872 = vadd.f32 0.0, %v871
  %v873 = vpop.f32.mrb[0].mxu0
  %874 = vmatprep.mubr.bf16.mxu0 %v508
  %875 = vmatmul.mubr.bf16.gmra.mrb[0].mxu0 %v496
  %v876 = vpop.f32.mrb[0].mxu0
  %v877 = vadd.f32 0.0, %v876
  %v878 = vpop.f32.mrb[0].mxu0
  %v879 = vpop.f32.mrb[0].mxu0
  %v880 = vadd.f32 0.0, %v879
  %v881 = vpop.f32.mrb[0].mxu0
  %882 = vmatprep.mubr.bf16.mxu0 %v520
  %883 = vmatmul.mubr.bf16.gmra.mrb[0].mxu0 %v508
  %v884 = vpop.f32.mrb[0].mxu0
  %v885 = vadd.f32 0.0, %v884
  %v886 = vpop.f32.mrb[0].mxu0
  %v887 = vpop.f32.mrb[0].mxu0
  %v888 = vadd.f32 0.0, %v887
  %v889 = vpop.f32.mrb[0].mxu0
  %890 = vmatprep.mubr.bf16.mxu0 %v532
  %891 = vmatmul.mubr.bf16.gmra.mrb[0].mxu0 %v520
  %v892 = vpop.f32.mrb[0].mxu0
  %v893 = vadd.f32 0.0, %v892
  %v894 = vpop.f32.mrb[0].mxu0
  %v895 = vpop.f32.mrb[0].mxu0
  %v896 = vadd.f32 0.0, %v895
  %v897 = vpop.f32.mrb[0].mxu0
  %898 = vmatprep.mubr.bf16.mxu0 %v544
  %899 = vmatmul.mubr.bf16.gmra.mrb[0].mxu0 %v532
  %v900 = vpop.f32.mrb[0].mxu0
  %v901 = vadd.f32 0.0, %v900
  %v902 = vpop.f32.mrb[0].mxu0
  %v903 = vpop.f32.mrb[0].mxu0
  %v904 = vadd.f32 0.0, %v903
  %v905 = vpop.f32.mrb[0].mxu0
  %906 = vmatprep.mubr.bf16.mxu0 %v556
  %907 = vmatmul.mubr.bf16.gmra.mrb[0].mxu0 %v544
  %v908 = vpop.f32.mrb[0].mxu0
  %v909 = vadd.f32 0.0, %v908
  %v910 = vpop.f32.mrb[0].mxu0
  %v911 = vpop.f32.mrb[0].mxu0
  %v912 = vadd.f32 0.0, %v911
  %v913 = vpop.f32.mrb[0].mxu0
  %914 = vmatprep.mubr.bf16.mxu0 %v568
  %915 = vmatmul.mubr.bf16.gmra.mrb[0].mxu0 %v556
  %v916 = vpop.f32.mrb[0].mxu0
  %v917 = vadd.f32 0.0, %v916
  %v918 = vpop.f32.mrb[0].mxu0
  %v919 = vpop.f32.mrb[0].mxu0
  %v920 = vadd.f32 0.0, %v919
  %v921 = vpop.f32.mrb[0].mxu0
  %922 = vmatprep.mubr.bf16.mxu0 %v580
  %923 = vmatmul.mubr.bf16.gmra.mrb[0].mxu0 %v568
  %v924 = vpop.f32.mrb[0].mxu0
  %v925 = vadd.f32 0.0, %v924
  %v926 = vpop.f32.mrb[0].mxu0
  %v927 = vpop.f32.mrb[0].mxu0
  %v928 = vadd.f32 0.0, %v927
  %v929 = vpop.f32.mrb[0].mxu0
  %930 = vmatprep.mubr.bf16.mxu0 %v592
  %931 = vmatmul.mubr.bf16.gmra.mrb[0].mxu0 %v580
  %v932 = vpop.f32.mrb[0].mxu0
  %v933 = vadd.f32 0.0, %v932
  %v934 = vpop.f32.mrb[0].mxu0
  %v935 = vpop.f32.mrb[0].mxu0
  %v936 = vadd.f32 0.0, %v935
  %v937 = vpop.f32.mrb[0].mxu0
  %938 = vmatprep.mubr.bf16.mxu0 %v604
  %939 = vmatmul.mubr.bf16.gmra.mrb[0].mxu0 %v592
  %v940 = vpop.f32.mrb[0].mxu0
  %v941 = vadd.f32 0.0, %v940
  %v942 = vpop.f32.mrb[0].mxu0
  %v943 = vpop.f32.mrb[0].mxu0
  %v944 = vadd.f32 0.0, %v943
  %v945 = vpop.f32.mrb[0].mxu0
  %946 = vmatprep.mubr.bf16.mxu0 %v616
  %947 = vmatmul.mubr.bf16.gmra.mrb[0].mxu0 %v604
  %v948 = vpop.f32.mrb[0].mxu0
  %v949 = vadd.f32 0.0, %v948
  %v950 = vpop.f32.mrb[0].mxu0
  %v951 = vpop.f32.mrb[0].mxu0
  %v952 = vadd.f32 0.0, %v951
  %v953 = vpop.f32.mrb[0].mxu0
  %954 = vmatprep.mubr.bf16.mxu0 %v628
  %955 = vmatmul.mubr.bf16.gmra.mrb[0].mxu0 %v616
  %v956 = vpop.f32.mrb[0].mxu0
  %v957 = vadd.f32 0.0, %v956
  %v958 = vpop.f32.mrb[0].mxu0
  %v959 = vpop.f32.mrb[0].mxu0
  %v960 = vadd.f32 0.0, %v959
  %v961 = vpop.f32.mrb[0].mxu0
  %962 = vmatprep.mubr.bf16.mxu0 %v640
  %963 = vmatmul.mubr.bf16.gmra.mrb[0].mxu0 %v628
  %v964 = vpop.f32.mrb[0].mxu0
  %v965 = vadd.f32 0.0, %v964
  %v966 = vpop.f32.mrb[0].mxu0
  %v967 = vpop.f32.mrb[0].mxu0
  %v968 = vadd.f32 0.0, %v967
  %v969 = vpop.f32.mrb[0].mxu0
  %970 = vmatprep.mubr.bf16.mxu0 %v652
  %971 = vmatmul.mubr.bf16.gmra.mrb[0].mxu0 %v640
  %v972 = vpop.f32.mrb[0].mxu0
  %v973 = vadd.f32 0.0, %v972
  %v974 = vpop.f32.mrb[0].mxu0
  %v975 = vpop.f32.mrb[0].mxu0
  %v976 = vadd.f32 0.0, %v975
  %v977 = vpop.f32.mrb[0].mxu0
  %978 = vmatprep.mubr.bf16.mxu0 %v664
  %979 = vmatmul.mubr.bf16.gmra.mrb[0].mxu0 %v652
  %v980 = vpop.f32.mrb[0].mxu0
  %v981 = vadd.f32 0.0, %v980
  %v982 = vpop.f32.mrb[0].mxu0
  %v983 = vpop.f32.mrb[0].mxu0
  %v984 = vadd.f32 0.0, %v983
  %v985 = vpop.f32.mrb[0].mxu0
  %986 = vdwg.mxu0
  %987 = vmatprep.subr.bf16.mxu0 0
  %988 = vmatpush1.bf16.msra.mxu0 %v794
  %989 = vmatprep.subr.bf16.mxu0 0
  %990 = vmatpush1.bf16.msra.mxu0 %v795
  %991 = vmatprep.subr.bf16.mxu0 0
  %992 = vmatpush1.bf16.msra.mxu0 %v796
  %993 = vmatprep.subr.bf16.mxu0 0
  %994 = vmatpush1.bf16.msra.mxu0 %v797
  %995 = vmatprep.subr.bf16.mxu0 0
  %996 = vmatpush1.bf16.msra.mxu0 %v798
  %997 = vmatprep.subr.bf16.mxu0 0
  %998 = vmatpush1.bf16.msra.mxu0 %v799
  %999 = vmatprep.subr.bf16.mxu0 0
  %1000 = vmatpush1.bf16.msra.mxu0 %v800
  %1001 = vmatprep.subr.bf16.mxu0 0
  %1002 = vmatpush1.bf16.msra.mxu0 %v801
  %1003 = vmatprep.subr.bf16.mxu0 0
  %1004 = vmatpush1.bf16.msra.mxu0 0
  %1005 = vmatprep.subr.bf16.mxu0 0
  %1006 = vmatpush1.bf16.msra.mxu0 0
  %1007 = vmatprep.subr.bf16.mxu0 0
  %1008 = vmatpush1.bf16.msra.mxu0 0
  %1009 = vmatprep.subr.bf16.mxu0 0
  %1010 = vmatpush1.bf16.msra.mxu0 0
  %1011 = vmatprep.subr.bf16.mxu0 0
  %1012 = vmatpush1.bf16.msra.mxu0 0
  %1013 = vmatprep.subr.bf16.mxu0 0
  %1014 = vmatpush1.bf16.msra.mxu0 0
  %1015 = vmatprep.subr.bf16.mxu0 0
  %1016 = vmatpush1.bf16.msra.mxu0 0
  %1017 = vmatprep.subr.bf16.mxu0 0
  %1018 = vmatpush1.bf16.msra.mxu0 0
  %1019 = vmatprep.mubr.bf16.mxu0 0
  %1020 = vmatmul.mubr.bf16.gmra.mrb[0].mxu0 %v496
  %v1021 = vpop.f32.mrb[0].mxu0
  %v1022 = vadd.f32 %v861, %v1021
  %v1023 = vpop.f32.mrb[0].mxu0
  %v1024 = vpop.f32.mrb[0].mxu0
  %v1025 = vadd.f32 %v864, %v1024
  %v1026 = vpop.f32.mrb[0].mxu0
  %1027 = vmatprep.mubr.bf16.mxu0 0
  %1028 = vmatmul.mubr.bf16.gmra.mrb[0].mxu0 %v508
  %v1029 = vpop.f32.mrb[0].mxu0
  %v1030 = vadd.f32 %v869, %v1029
  %v1031 = vpop.f32.mrb[0].mxu0
  %v1032 = vpop.f32.mrb[0].mxu0
  %v1033 = vadd.f32 %v872, %v1032
  %v1034 = vpop.f32.mrb[0].mxu0
  %1035 = vmatprep.mubr.bf16.mxu0 0
  %1036 = vmatmul.mubr.bf16.gmra.mrb[0].mxu0 %v520
  %v1037 = vpop.f32.mrb[0].mxu0
  %v1038 = vadd.f32 %v877, %v1037
  %v1039 = vpop.f32.mrb[0].mxu0
  %v1040 = vpop.f32.mrb[0].mxu0
  %v1041 = vadd.f32 %v880, %v1040
  %v1042 = vpop.f32.mrb[0].mxu0
  %1043 = vmatprep.mubr.bf16.mxu0 0
  %1044 = vmatmul.mubr.bf16.gmra.mrb[0].mxu0 %v532
  %v1045 = vpop.f32.mrb[0].mxu0
  %v1046 = vadd.f32 %v885, %v1045
  %v1047 = vpop.f32.mrb[0].mxu0
  %v1048 = vpop.f32.mrb[0].mxu0
  %v1049 = vadd.f32 %v888, %v1048
  %v1050 = vpop.f32.mrb[0].mxu0
  %1051 = vmatprep.mubr.bf16.mxu0 0
  %1052 = vmatmul.mubr.bf16.gmra.mrb[0].mxu0 %v544
  %v1053 = vpop.f32.mrb[0].mxu0
  %v1054 = vadd.f32 %v893, %v1053
  %v1055 = vpop.f32.mrb[0].mxu0
  %v1056 = vpop.f32.mrb[0].mxu0
  %v1057 = vadd.f32 %v896, %v1056
  %v1058 = vpop.f32.mrb[0].mxu0
  %1059 = vmatprep.mubr.bf16.mxu0 0
  %1060 = vmatmul.mubr.bf16.gmra.mrb[0].mxu0 %v556
  %v1061 = vpop.f32.mrb[0].mxu0
  %v1062 = vadd.f32 %v901, %v1061
  %v1063 = vpop.f32.mrb[0].mxu0
  %v1064 = vpop.f32.mrb[0].mxu0
  %v1065 = vadd.f32 %v904, %v1064
  %v1066 = vpop.f32.mrb[0].mxu0
  %1067 = vmatprep.mubr.bf16.mxu0 0
  %1068 = vmatmul.mubr.bf16.gmra.mrb[0].mxu0 %v568
  %v1069 = vpop.f32.mrb[0].mxu0
  %v1070 = vadd.f32 %v909, %v1069
  %v1071 = vpop.f32.mrb[0].mxu0
  %v1072 = vpop.f32.mrb[0].mxu0
  %v1073 = vadd.f32 %v912, %v1072
  %v1074 = vpop.f32.mrb[0].mxu0
  %1075 = vmatprep.mubr.bf16.mxu0 0
  %1076 = vmatmul.mubr.bf16.gmra.mrb[0].mxu0 %v580
  %v1077 = vpop.f32.mrb[0].mxu0
  %v1078 = vadd.f32 %v917, %v1077
  %v1079 = vpop.f32.mrb[0].mxu0
  %v1080 = vpop.f32.mrb[0].mxu0
  %v1081 = vadd.f32 %v920, %v1080
  %v1082 = vpop.f32.mrb[0].mxu0
  %1083 = vmatprep.mubr.bf16.mxu0 0
  %1084 = vmatmul.mubr.bf16.gmra.mrb[0].mxu0 %v592
  %v1085 = vpop.f32.mrb[0].mxu0
  %v1086 = vadd.f32 %v925, %v1085
  %v1087 = vpop.f32.mrb[0].mxu0
  %v1088 = vpop.f32.mrb[0].mxu0
  %v1089 = vadd.f32 %v928, %v1088
  %v1090 = vpop.f32.mrb[0].mxu0
  %1091 = vmatprep.mubr.bf16.mxu0 0
  %1092 = vmatmul.mubr.bf16.gmra.mrb[0].mxu0 %v604
  %v1093 = vpop.f32.mrb[0].mxu0
  %v1094 = vadd.f32 %v933, %v1093
  %v1095 = vpop.f32.mrb[0].mxu0
  %v1096 = vpop.f32.mrb[0].mxu0
  %v1097 = vadd.f32 %v936, %v1096
  %v1098 = vpop.f32.mrb[0].mxu0
  %1099 = vmatprep.mubr.bf16.mxu0 0
  %1100 = vmatmul.mubr.bf16.gmra.mrb[0].mxu0 %v616
  %v1101 = vpop.f32.mrb[0].mxu0
  %v1102 = vadd.f32 %v941, %v1101
  %v1103 = vpop.f32.mrb[0].mxu0
  %v1104 = vpop.f32.mrb[0].mxu0
  %v1105 = vadd.f32 %v944, %v1104
  %v1106 = vpop.f32.mrb[0].mxu0
  %1107 = vmatprep.mubr.bf16.mxu0 0
  %1108 = vmatmul.mubr.bf16.gmra.mrb[0].mxu0 %v628
  %v1109 = vpop.f32.mrb[0].mxu0
  %v1110 = vadd.f32 %v949, %v1109
  %v1111 = vpop.f32.mrb[0].mxu0
  %v1112 = vpop.f32.mrb[0].mxu0
  %v1113 = vadd.f32 %v952, %v1112
  %v1114 = vpop.f32.mrb[0].mxu0
  %1115 = vmatprep.mubr.bf16.mxu0 0
  %1116 = vmatmul.mubr.bf16.gmra.mrb[0].mxu0 %v640
  %v1117 = vpop.f32.mrb[0].mxu0
  %v1118 = vadd.f32 %v957, %v1117
  %v1119 = vpop.f32.mrb[0].mxu0
  %v1120 = vpop.f32.mrb[0].mxu0
  %v1121 = vadd.f32 %v960, %v1120
  %v1122 = vpop.f32.mrb[0].mxu0
  %1123 = vmatprep.mubr.bf16.mxu0 0
  %1124 = vmatmul.mubr.bf16.gmra.mrb[0].mxu0 %v652
  %v1125 = vpop.f32.mrb[0].mxu0
  %v1126 = vadd.f32 %v965, %v1125
  %v1127 = vpop.f32.mrb[0].mxu0
  %v1128 = vpop.f32.mrb[0].mxu0
  %v1129 = vadd.f32 %v968, %v1128
  %v1130 = vpop.f32.mrb[0].mxu0
  %1131 = vmatprep.mubr.bf16.mxu0 0
  %1132 = vmatmul.mubr.bf16.gmra.mrb[0].mxu0 %v664
  %v1133 = vpop.f32.mrb[0].mxu0
  %v1134 = vadd.f32 %v973, %v1133
  %v1135 = vpop.f32.mrb[0].mxu0
  %v1136 = vpop.f32.mrb[0].mxu0
  %v1137 = vadd.f32 %v976, %v1136
  %v1138 = vpop.f32.mrb[0].mxu0
  %1139 = vmatprep.mubr.bf16.mxu0 0
  %1140 = vmatmul.mubr.bf16.gmra.mrb[0].mxu0 %v472
  %v1141 = vpop.f32.mrb[0].mxu0
  %v1142 = vadd.f32 %v981, %v1141
  %v1143 = vpop.f32.mrb[0].mxu0
  %v1144 = vpop.f32.mrb[0].mxu0
  %v1145 = vadd.f32 %v984, %v1144
  %v1146 = vpop.f32.mrb[0].mxu0
  %1147 = vdwg.mxu0
  %v1196 = vunpack.c.l.b16 %v14
  %v1197 = vunpack.c.l.b16 %v15
  %v1198 = vunpack.c.l.b16 %v16
  %v1199 = vunpack.c.l.b16 %v17
  %v1200 = vunpack.c.l.b16 %v18
  %v1201 = vunpack.c.l.b16 %v19
  %v1202 = vunpack.c.l.b16 %v20
  %v1203 = vunpack.c.l.b16 %v21
  %v1204 = vunpack.c.l.b16 %v22
  %v1205 = vunpack.c.l.b16 %v23
  %v1206 = vunpack.c.l.b16 %v24
  %v1207 = vunpack.c.l.b16 %v25
  %v1208 = vunpack.c.l.b16 %v26
  %v1209 = vunpack.c.l.b16 %v27
  %v1210 = vunpack.c.l.b16 %v28
  %v1211 = vunpack.c.l.b16 %v29
  %v1212 = vunpack.c.l.b16 %v30
  %v1213 = vunpack.c.l.b16 %v31
  %v1214 = vunpack.c.l.b16 %v32
  %v1215 = vunpack.c.l.b16 %v33
  %v1216 = vunpack.c.l.b16 %v34
  %v1217 = vunpack.c.l.b16 %v35
  %v1218 = vunpack.c.l.b16 %v36
  %v1219 = vunpack.c.l.b16 %v37
  %v1220 = vunpack.c.l.b16 %v38
  %v1221 = vunpack.c.l.b16 %v39
  %v1222 = vunpack.c.l.b16 %v40
  %v1223 = vunpack.c.l.b16 %v41
  %v1224 = vunpack.c.l.b16 %v42
  %v1225 = vunpack.c.l.b16 %v43
  %v1226 = vunpack.c.l.b16 %v44
  %v1227 = vunpack.c.l.b16 %v45
  %v1228 = vunpack.c.l.b16 %v46
  %v1229 = vunpack.c.l.b16 %v47
  %v1230 = vunpack.c.l.b16 %v48
  %v1231 = vunpack.c.l.b16 %v49
  %v1232 = vunpack.c.l.b16 %v50
  %v1233 = vunpack.c.l.b16 %v51
  %v1234 = vunpack.c.l.b16 %v52
  %v1235 = vunpack.c.l.b16 %v53
  %v1236 = vunpack.c.l.b16 %v54
  %v1237 = vunpack.c.l.b16 %v55
  %v1238 = vunpack.c.l.b16 %v56
  %v1239 = vunpack.c.l.b16 %v57
  %v1240 = vunpack.c.l.b16 %v58
  %v1241 = vunpack.c.l.b16 %v59
  %v1242 = vunpack.c.l.b16 %v60
  %v1243 = vunpack.c.l.b16 %v61
  %v1244 = vpack.c.b16 %v1197, %v1196
  %v1245 = vpack.c.b16 %v1199, %v1198
  %v1246 = vpack.c.b16 %v1201, %v1200
  %v1247 = vpack.c.b16 %v1203, %v1202
  %v1248 = vpack.c.b16 %v1205, %v1204
  %v1249 = vpack.c.b16 %v1207, %v1206
  %v1250 = vpack.c.b16 %v1209, %v1208
  %v1251 = vpack.c.b16 %v1211, %v1210
  %v1252 = vpack.c.b16 %v1213, %v1212
  %v1253 = vpack.c.b16 %v1215, %v1214
  %v1254 = vpack.c.b16 %v1217, %v1216
  %v1255 = vpack.c.b16 %v1219, %v1218
  %v1256 = vpack.c.b16 %v1221, %v1220
  %v1257 = vpack.c.b16 %v1223, %v1222
  %v1258 = vpack.c.b16 %v1225, %v1224
  %v1259 = vpack.c.b16 %v1227, %v1226
  %v1260 = vpack.c.b16 %v1229, %v1228
  %v1261 = vpack.c.b16 %v1231, %v1230
  %v1262 = vpack.c.b16 %v1233, %v1232
  %v1263 = vpack.c.b16 %v1235, %v1234
  %v1264 = vpack.c.b16 %v1237, %v1236
  %v1265 = vpack.c.b16 %v1239, %v1238
  %v1266 = vpack.c.b16 %v1241, %v1240
  %v1267 = vpack.c.b16 %v1243, %v1242
  %1292 = vmatprep.subr.bf16.mxu0 0
  %1293 = vmatpush1.bf16.msra.mxu0 %v1244
  %1294 = vmatprep.subr.bf16.mxu0 0
  %1295 = vmatpush1.bf16.msra.mxu0 %v1245
  %1296 = vmatprep.subr.bf16.mxu0 0
  %1297 = vmatpush1.bf16.msra.mxu0 %v1246
  %1298 = vmatprep.subr.bf16.mxu0 0
  %1299 = vmatpush1.bf16.msra.mxu0 %v1247
  %1300 = vmatprep.subr.bf16.mxu0 0
  %1301 = vmatpush1.bf16.msra.mxu0 %v1248
  %1302 = vmatprep.subr.bf16.mxu0 0
  %1303 = vmatpush1.bf16.msra.mxu0 %v1249
  %1304 = vmatprep.subr.bf16.mxu0 0
  %1305 = vmatpush1.bf16.msra.mxu0 %v1250
  %1306 = vmatprep.subr.bf16.mxu0 0
  %1307 = vmatpush1.bf16.msra.mxu0 %v1251
  %1308 = vmatprep.subr.bf16.mxu0 0
  %1309 = vmatpush1.bf16.msra.mxu0 %v1252
  %1310 = vmatprep.subr.bf16.mxu0 0
  %1311 = vmatpush1.bf16.msra.mxu0 %v1253
  %1312 = vmatprep.subr.bf16.mxu0 0
  %1313 = vmatpush1.bf16.msra.mxu0 %v1254
  %1314 = vmatprep.subr.bf16.mxu0 0
  %1315 = vmatpush1.bf16.msra.mxu0 %v1255
  %1316 = vmatprep.subr.bf16.mxu0 0
  %1317 = vmatpush1.bf16.msra.mxu0 %v1256
  %1318 = vmatprep.subr.bf16.mxu0 0
  %1319 = vmatpush1.bf16.msra.mxu0 %v1257
  %1320 = vmatprep.subr.bf16.mxu0 0
  %1321 = vmatpush1.bf16.msra.mxu0 %v1258
  %1322 = vmatprep.subr.bf16.mxu0 0
  %1323 = vmatpush1.bf16.msra.mxu0 %v1259
  %1324 = vmatprep.mubr.bf16.mxu0 %v427
  %1325 = vmatmul.mubr.bf16.gmra.mrb[0].mxu0 %v426
  %v1326 = vpop.f32.mrb[0].mxu0
  %v1327 = vadd.f32 %v1022, %v1326
  %v1328 = vpop.f32.mrb[0].mxu0
  %v1329 = vpop.f32.mrb[0].mxu0
  %v1330 = vadd.f32 %v1025, %v1329
  %v1331 = vpop.f32.mrb[0].mxu0
  %1332 = vmatprep.mubr.bf16.mxu0 %v428
  %1333 = vmatmul.mubr.bf16.gmra.mrb[0].mxu0 %v427
  %v1334 = vpop.f32.mrb[0].mxu0
  %v1335 = vadd.f32 %v1030, %v1334
  %v1336 = vpop.f32.mrb[0].mxu0
  %v1337 = vpop.f32.mrb[0].mxu0
  %v1338 = vadd.f32 %v1033, %v1337
  %v1339 = vpop.f32.mrb[0].mxu0
  %1340 = vmatprep.mubr.bf16.mxu0 %v429
  %1341 = vmatmul.mubr.bf16.gmra.mrb[0].mxu0 %v428
  %v1342 = vpop.f32.mrb[0].mxu0
  %v1343 = vadd.f32 %v1038, %v1342
  %v1344 = vpop.f32.mrb[0].mxu0
  %v1345 = vpop.f32.mrb[0].mxu0
  %v1346 = vadd.f32 %v1041, %v1345
  %v1347 = vpop.f32.mrb[0].mxu0
  %1348 = vmatprep.mubr.bf16.mxu0 %v430
  %1349 = vmatmul.mubr.bf16.gmra.mrb[0].mxu0 %v429
  %v1350 = vpop.f32.mrb[0].mxu0
  %v1351 = vadd.f32 %v1046, %v1350
  %v1352 = vpop.f32.mrb[0].mxu0
  %v1353 = vpop.f32.mrb[0].mxu0
  %v1354 = vadd.f32 %v1049, %v1353
  %v1355 = vpop.f32.mrb[0].mxu0
  %1356 = vmatprep.mubr.bf16.mxu0 %v431
  %1357 = vmatmul.mubr.bf16.gmra.mrb[0].mxu0 %v430
  %v1358 = vpop.f32.mrb[0].mxu0
  %v1359 = vadd.f32 %v1054, %v1358
  %v1360 = vpop.f32.mrb[0].mxu0
  %v1361 = vpop.f32.mrb[0].mxu0
  %v1362 = vadd.f32 %v1057, %v1361
  %v1363 = vpop.f32.mrb[0].mxu0
  %1364 = vmatprep.mubr.bf16.mxu0 %v432
  %1365 = vmatmul.mubr.bf16.gmra.mrb[0].mxu0 %v431
  %v1366 = vpop.f32.mrb[0].mxu0
  %v1367 = vadd.f32 %v1062, %v1366
  %v1368 = vpop.f32.mrb[0].mxu0
  %v1369 = vpop.f32.mrb[0].mxu0
  %v1370 = vadd.f32 %v1065, %v1369
  %v1371 = vpop.f32.mrb[0].mxu0
  %1372 = vmatprep.mubr.bf16.mxu0 %v433
  %1373 = vmatmul.mubr.bf16.gmra.mrb[0].mxu0 %v432
  %v1374 = vpop.f32.mrb[0].mxu0
  %v1375 = vadd.f32 %v1070, %v1374
  %v1376 = vpop.f32.mrb[0].mxu0
  %v1377 = vpop.f32.mrb[0].mxu0
  %v1378 = vadd.f32 %v1073, %v1377
  %v1379 = vpop.f32.mrb[0].mxu0
  %1380 = vmatprep.mubr.bf16.mxu0 %v434
  %1381 = vmatmul.mubr.bf16.gmra.mrb[0].mxu0 %v433
  %v1382 = vpop.f32.mrb[0].mxu0
  %v1383 = vadd.f32 %v1078, %v1382
  %v1384 = vpop.f32.mrb[0].mxu0
  %v1385 = vpop.f32.mrb[0].mxu0
  %v1386 = vadd.f32 %v1081, %v1385
  %v1387 = vpop.f32.mrb[0].mxu0
  %1388 = vmatprep.mubr.bf16.mxu0 %v435
  %1389 = vmatmul.mubr.bf16.gmra.mrb[0].mxu0 %v434
  %v1390 = vpop.f32.mrb[0].mxu0
  %v1391 = vadd.f32 %v1086, %v1390
  %v1392 = vpop.f32.mrb[0].mxu0
  %v1393 = vpop.f32.mrb[0].mxu0
  %v1394 = vadd.f32 %v1089, %v1393
  %v1395 = vpop.f32.mrb[0].mxu0
  %1396 = vmatprep.mubr.bf16.mxu0 %v436
  %1397 = vmatmul.mubr.bf16.gmra.mrb[0].mxu0 %v435
  %v1398 = vpop.f32.mrb[0].mxu0
  %v1399 = vadd.f32 %v1094, %v1398
  %v1400 = vpop.f32.mrb[0].mxu0
  %v1401 = vpop.f32.mrb[0].mxu0
  %v1402 = vadd.f32 %v1097, %v1401
  %v1403 = vpop.f32.mrb[0].mxu0
  %1404 = vmatprep.mubr.bf16.mxu0 %v437
  %1405 = vmatmul.mubr.bf16.gmra.mrb[0].mxu0 %v436
  %v1406 = vpop.f32.mrb[0].mxu0
  %v1407 = vadd.f32 %v1102, %v1406
  %v1408 = vpop.f32.mrb[0].mxu0
  %v1409 = vpop.f32.mrb[0].mxu0
  %v1410 = vadd.f32 %v1105, %v1409
  %v1411 = vpop.f32.mrb[0].mxu0
  %1412 = vmatprep.mubr.bf16.mxu0 %v438
  %1413 = vmatmul.mubr.bf16.gmra.mrb[0].mxu0 %v437
  %v1414 = vpop.f32.mrb[0].mxu0
  %v1415 = vadd.f32 %v1110, %v1414
  %v1416 = vpop.f32.mrb[0].mxu0
  %v1417 = vpop.f32.mrb[0].mxu0
  %v1418 = vadd.f32 %v1113, %v1417
  %v1419 = vpop.f32.mrb[0].mxu0
  %1420 = vmatprep.mubr.bf16.mxu0 %v439
  %1421 = vmatmul.mubr.bf16.gmra.mrb[0].mxu0 %v438
  %v1422 = vpop.f32.mrb[0].mxu0
  %v1423 = vadd.f32 %v1118, %v1422
  %v1424 = vpop.f32.mrb[0].mxu0
  %v1425 = vpop.f32.mrb[0].mxu0
  %v1426 = vadd.f32 %v1121, %v1425
  %v1427 = vpop.f32.mrb[0].mxu0
  %1428 = vmatprep.mubr.bf16.mxu0 %v440
  %1429 = vmatmul.mubr.bf16.gmra.mrb[0].mxu0 %v439
  %v1430 = vpop.f32.mrb[0].mxu0
  %v1431 = vadd.f32 %v1126, %v1430
  %v1432 = vpop.f32.mrb[0].mxu0
  %v1433 = vpop.f32.mrb[0].mxu0
  %v1434 = vadd.f32 %v1129, %v1433
  %v1435 = vpop.f32.mrb[0].mxu0
  %1436 = vmatprep.mubr.bf16.mxu0 %v441
  %1437 = vmatmul.mubr.bf16.gmra.mrb[0].mxu0 %v440
  %v1438 = vpop.f32.mrb[0].mxu0
  %v1439 = vadd.f32 %v1134, %v1438
  %v1440 = vpop.f32.mrb[0].mxu0
  %v1441 = vpop.f32.mrb[0].mxu0
  %v1442 = vadd.f32 %v1137, %v1441
  %v1443 = vpop.f32.mrb[0].mxu0
  %1444 = vmatprep.mubr.bf16.mxu0 %v442
  %1445 = vmatmul.mubr.bf16.gmra.mrb[0].mxu0 %v441
  %v1446 = vpop.f32.mrb[0].mxu0
  %v1447 = vadd.f32 %v1142, %v1446
  %v1448 = vpop.f32.mrb[0].mxu0
  %v1449 = vpop.f32.mrb[0].mxu0
  %v1450 = vadd.f32 %v1145, %v1449
  %v1451 = vpop.f32.mrb[0].mxu0
  %1452 = vdwg.mxu0
  %1453 = vmatprep.subr.bf16.mxu0 0
  %1454 = vmatpush1.bf16.msra.mxu0 %v1260
  %1455 = vmatprep.subr.bf16.mxu0 0
  %1456 = vmatpush1.bf16.msra.mxu0 %v1261
  %1457 = vmatprep.subr.bf16.mxu0 0
  %1458 = vmatpush1.bf16.msra.mxu0 %v1262
  %1459 = vmatprep.subr.bf16.mxu0 0
  %1460 = vmatpush1.bf16.msra.mxu0 %v1263
  %1461 = vmatprep.subr.bf16.mxu0 0
  %1462 = vmatpush1.bf16.msra.mxu0 %v1264
  %1463 = vmatprep.subr.bf16.mxu0 0
  %1464 = vmatpush1.bf16.msra.mxu0 %v1265
  %1465 = vmatprep.subr.bf16.mxu0 0
  %1466 = vmatpush1.bf16.msra.mxu0 %v1266
  %1467 = vmatprep.subr.bf16.mxu0 0
  %1468 = vmatpush1.bf16.msra.mxu0 %v1267
  %1469 = vmatprep.subr.bf16.mxu0 0
  %1470 = vmatpush1.bf16.msra.mxu0 0
  %1471 = vmatprep.subr.bf16.mxu0 0
  %1472 = vmatpush1.bf16.msra.mxu0 0
  %1473 = vmatprep.subr.bf16.mxu0 0
  %1474 = vmatpush1.bf16.msra.mxu0 0
  %1475 = vmatprep.subr.bf16.mxu0 0
  %1476 = vmatpush1.bf16.msra.mxu0 0
  %1477 = vmatprep.subr.bf16.mxu0 0
  %1478 = vmatpush1.bf16.msra.mxu0 0
  %1479 = vmatprep.subr.bf16.mxu0 0
  %1480 = vmatpush1.bf16.msra.mxu0 0
  %1481 = vmatprep.subr.bf16.mxu0 0
  %1482 = vmatpush1.bf16.msra.mxu0 0
  %1483 = vmatprep.subr.bf16.mxu0 0
  %1484 = vmatpush1.bf16.msra.mxu0 0
  %1485 = vmatprep.mubr.bf16.mxu0 0
  %1486 = vmatmul.mubr.bf16.gmra.mrb[0].mxu0 %v428
  %v1487 = vpop.f32.mrb[0].mxu0
  %v1488 = vadd.f32 %v1327, %v1487
  %v1489 = vpop.f32.mrb[0].mxu0
  %v1490 = vpop.f32.mrb[0].mxu0
  %v1491 = vadd.f32 %v1330, %v1490
  %v1492 = vpop.f32.mrb[0].mxu0
  %1493 = vmatprep.mubr.bf16.mxu0 0
  %1494 = vmatmul.mubr.bf16.gmra.mrb[0].mxu0 %v429
  %v1495 = vpop.f32.mrb[0].mxu0
  %v1496 = vadd.f32 %v1335, %v1495
  %v1497 = vpop.f32.mrb[0].mxu0
  %v1498 = vpop.f32.mrb[0].mxu0
  %v1499 = vadd.f32 %v1338, %v1498
  %v1500 = vpop.f32.mrb[0].mxu0
  %1501 = vmatprep.mubr.bf16.mxu0 0
  %1502 = vmatmul.mubr.bf16.gmra.mrb[0].mxu0 %v430
  %v1503 = vpop.f32.mrb[0].mxu0
  %v1504 = vadd.f32 %v1343, %v1503
  %v1505 = vpop.f32.mrb[0].mxu0
  %v1506 = vpop.f32.mrb[0].mxu0
  %v1507 = vadd.f32 %v1346, %v1506
  %v1508 = vpop.f32.mrb[0].mxu0
  %1509 = vmatprep.mubr.bf16.mxu0 0
  %1510 = vmatmul.mubr.bf16.gmra.mrb[0].mxu0 %v431
  %v1511 = vpop.f32.mrb[0].mxu0
  %v1512 = vadd.f32 %v1351, %v1511
  %v1513 = vpop.f32.mrb[0].mxu0
  %v1514 = vpop.f32.mrb[0].mxu0
  %v1515 = vadd.f32 %v1354, %v1514
  %v1516 = vpop.f32.mrb[0].mxu0
  %1517 = vmatprep.mubr.bf16.mxu0 0
  %1518 = vmatmul.mubr.bf16.gmra.mrb[0].mxu0 %v432
  %v1519 = vpop.f32.mrb[0].mxu0
  %v1520 = vadd.f32 %v1359, %v1519
  %v1521 = vpop.f32.mrb[0].mxu0
  %v1522 = vpop.f32.mrb[0].mxu0
  %v1523 = vadd.f32 %v1362, %v1522
  %v1524 = vpop.f32.mrb[0].mxu0
  %1525 = vmatprep.mubr.bf16.mxu0 0
  %1526 = vmatmul.mubr.bf16.gmra.mrb[0].mxu0 %v433
  %v1527 = vpop.f32.mrb[0].mxu0
  %v1528 = vadd.f32 %v1367, %v1527
  %v1529 = vpop.f32.mrb[0].mxu0
  %v1530 = vpop.f32.mrb[0].mxu0
  %v1531 = vadd.f32 %v1370, %v1530
  %v1532 = vpop.f32.mrb[0].mxu0
  %1533 = vmatprep.mubr.bf16.mxu0 0
  %1534 = vmatmul.mubr.bf16.gmra.mrb[0].mxu0 %v434
  %v1535 = vpop.f32.mrb[0].mxu0
  %v1536 = vadd.f32 %v1375, %v1535
  %v1537 = vpop.f32.mrb[0].mxu0
  %v1538 = vpop.f32.mrb[0].mxu0
  %v1539 = vadd.f32 %v1378, %v1538
  %v1540 = vpop.f32.mrb[0].mxu0
  %1541 = vmatprep.mubr.bf16.mxu0 0
  %1542 = vmatmul.mubr.bf16.gmra.mrb[0].mxu0 %v435
  %v1543 = vpop.f32.mrb[0].mxu0
  %v1544 = vadd.f32 %v1383, %v1543
  %v1545 = vpop.f32.mrb[0].mxu0
  %v1546 = vpop.f32.mrb[0].mxu0
  %v1547 = vadd.f32 %v1386, %v1546
  %v1548 = vpop.f32.mrb[0].mxu0
  %1549 = vmatprep.mubr.bf16.mxu0 0
  %1550 = vmatmul.mubr.bf16.gmra.mrb[0].mxu0 %v436
  %v1551 = vpop.f32.mrb[0].mxu0
  %v1552 = vadd.f32 %v1391, %v1551
  %v1553 = vpop.f32.mrb[0].mxu0
  %v1554 = vpop.f32.mrb[0].mxu0
  %v1555 = vadd.f32 %v1394, %v1554
  %v1556 = vpop.f32.mrb[0].mxu0
  %1557 = vmatprep.mubr.bf16.mxu0 0
  %1558 = vmatmul.mubr.bf16.gmra.mrb[0].mxu0 %v437
  %v1559 = vpop.f32.mrb[0].mxu0
  %v1560 = vadd.f32 %v1399, %v1559
  %v1561 = vpop.f32.mrb[0].mxu0
  %v1562 = vpop.f32.mrb[0].mxu0
  %v1563 = vadd.f32 %v1402, %v1562
  %v1564 = vpop.f32.mrb[0].mxu0
  %1565 = vmatprep.mubr.bf16.mxu0 0
  %1566 = vmatmul.mubr.bf16.gmra.mrb[0].mxu0 %v438
  %v1567 = vpop.f32.mrb[0].mxu0
  %v1568 = vadd.f32 %v1407, %v1567
  %v1569 = vpop.f32.mrb[0].mxu0
  %v1570 = vpop.f32.mrb[0].mxu0
  %v1571 = vadd.f32 %v1410, %v1570
  %v1572 = vpop.f32.mrb[0].mxu0
  %1573 = vmatprep.mubr.bf16.mxu0 0
  %1574 = vmatmul.mubr.bf16.gmra.mrb[0].mxu0 %v439
  %v1575 = vpop.f32.mrb[0].mxu0
  %v1576 = vadd.f32 %v1415, %v1575
  %v1577 = vpop.f32.mrb[0].mxu0
  %v1578 = vpop.f32.mrb[0].mxu0
  %v1579 = vadd.f32 %v1418, %v1578
  %v1580 = vpop.f32.mrb[0].mxu0
  %1581 = vmatprep.mubr.bf16.mxu0 0
  %1582 = vmatmul.mubr.bf16.gmra.mrb[0].mxu0 %v440
  %v1583 = vpop.f32.mrb[0].mxu0
  %v1584 = vadd.f32 %v1423, %v1583
  %v1585 = vpop.f32.mrb[0].mxu0
  %v1586 = vpop.f32.mrb[0].mxu0
  %v1587 = vadd.f32 %v1426, %v1586
  %v1588 = vpop.f32.mrb[0].mxu0
  %1589 = vmatprep.mubr.bf16.mxu0 0
  %1590 = vmatmul.mubr.bf16.gmra.mrb[0].mxu0 %v441
  %v1591 = vpop.f32.mrb[0].mxu0
  %v1592 = vadd.f32 %v1431, %v1591
  %v1593 = vpop.f32.mrb[0].mxu0
  %v1594 = vpop.f32.mrb[0].mxu0
  %v1595 = vadd.f32 %v1434, %v1594
  %v1596 = vpop.f32.mrb[0].mxu0
  %1597 = vmatprep.mubr.bf16.mxu0 0
  %1598 = vmatmul.mubr.bf16.gmra.mrb[0].mxu0 %v442
  %v1599 = vpop.f32.mrb[0].mxu0
  %v1600 = vadd.f32 %v1439, %v1599
  %v1601 = vpop.f32.mrb[0].mxu0
  %v1602 = vpop.f32.mrb[0].mxu0
  %v1603 = vadd.f32 %v1442, %v1602
  %v1604 = vpop.f32.mrb[0].mxu0
  %1605 = vmatprep.mubr.bf16.mxu0 0
  %1606 = vmatmul.mubr.bf16.gmra.mrb[0].mxu0 %v426
  %v1607 = vpop.f32.mrb[0].mxu0
  %v1608 = vadd.f32 %v1447, %v1607
  %v1609 = vpop.f32.mrb[0].mxu0
  %v1610 = vpop.f32.mrb[0].mxu0
  %v1611 = vadd.f32 %v1450, %v1610
  %v1612 = vpop.f32.mrb[0].mxu0
  %1613 = vdwg.mxu0
  %vm1648 = vcmask 1046528
  %v1649 = vrot.slane %v426, 1
  %v1650 = vrot.slane %v443, 1
  %v1651 = vsel %vm1648, %v1649, %v1650
  %v1652 = vrot.slane %v427, 1
  %v1653 = vrot.slane %v444, 1
  %v1654 = vsel %vm1648, %v1652, %v1653
  %v1655 = vrot.slane %v428, 1
  %v1656 = vrot.slane %v445, 1
  %v1657 = vsel %vm1648, %v1655, %v1656
  %v1658 = vrot.slane %v429, 1
  %v1659 = vrot.slane %v446, 1
  %v1660 = vsel %vm1648, %v1658, %v1659
  %v1661 = vrot.slane %v430, 1
  %v1662 = vrot.slane %v447, 1
  %v1663 = vsel %vm1648, %v1661, %v1662
  %v1664 = vrot.slane %v431, 1
  %v1665 = vrot.slane %v448, 1
  %v1666 = vsel %vm1648, %v1664, %v1665
  %v1667 = vrot.slane %v432, 1
  %v1668 = vrot.slane %v449, 1
  %v1669 = vsel %vm1648, %v1667, %v1668
  %v1670 = vrot.slane %v433, 1
  %v1671 = vrot.slane %v450, 1
  %v1672 = vsel %vm1648, %v1670, %v1671
  %v1673 = vrot.slane %v434, 1
  %v1674 = vrot.slane %v451, 1
  %v1675 = vsel %vm1648, %v1673, %v1674
  %v1676 = vrot.slane %v435, 1
  %v1677 = vrot.slane %v452, 1
  %v1678 = vsel %vm1648, %v1676, %v1677
  %v1679 = vrot.slane %v436, 1
  %v1680 = vrot.slane %v453, 1
  %v1681 = vsel %vm1648, %v1679, %v1680
  %v1682 = vrot.slane %v437, 1
  %v1683 = vrot.slane %v454, 1
  %v1684 = vsel %vm1648, %v1682, %v1683
  %v1685 = vrot.slane %v438, 1
  %v1686 = vrot.slane %v455, 1
  %v1687 = vsel %vm1648, %v1685, %v1686
  %v1688 = vrot.slane %v439, 1
  %v1689 = vrot.slane %v456, 1
  %v1690 = vsel %vm1648, %v1688, %v1689
  %v1691 = vrot.slane %v440, 1
  %v1692 = vrot.slane %v457, 1
  %v1693 = vsel %vm1648, %v1691, %v1692
  %v1694 = vrot.slane %v441, 1
  %v1695 = vrot.slane %v458, 1
  %v1696 = vsel %vm1648, %v1694, %v1695
  %v1697 = vrot.slane %v442, 1
  %v1698 = vrot.slane %v459, 1
  %v1699 = vsel %vm1648, %v1697, %v1698
  %v1765 = vunpack.c.l.b16 %v110
  %v1766 = vunpack.c.l.b16 %v111
  %v1767 = vunpack.c.l.b16 %v112
  %v1768 = vunpack.c.l.b16 %v113
  %v1769 = vunpack.c.l.b16 %v114
  %v1770 = vunpack.c.l.b16 %v115
  %v1771 = vunpack.c.l.b16 %v116
  %v1772 = vunpack.c.l.b16 %v117
  %v1773 = vunpack.c.l.b16 %v118
  %v1774 = vunpack.c.l.b16 %v119
  %v1775 = vunpack.c.l.b16 %v120
  %v1776 = vunpack.c.l.b16 %v121
  %v1777 = vunpack.c.l.b16 %v122
  %v1778 = vunpack.c.l.b16 %v123
  %v1779 = vunpack.c.l.b16 %v124
  %v1780 = vunpack.c.l.b16 %v125
  %v1781 = vunpack.c.l.b16 %v126
  %v1782 = vunpack.c.l.b16 %v127
  %v1783 = vunpack.c.l.b16 %v128
  %v1784 = vunpack.c.l.b16 %v129
  %v1785 = vunpack.c.l.b16 %v130
  %v1786 = vunpack.c.l.b16 %v131
  %v1787 = vunpack.c.l.b16 %v132
  %v1788 = vunpack.c.l.b16 %v133
  %v1789 = vunpack.c.l.b16 %v134
  %v1790 = vunpack.c.l.b16 %v135
  %v1791 = vunpack.c.l.b16 %v136
  %v1792 = vunpack.c.l.b16 %v137
  %v1793 = vunpack.c.l.b16 %v138
  %v1794 = vunpack.c.l.b16 %v139
  %v1795 = vunpack.c.l.b16 %v140
  %v1796 = vunpack.c.l.b16 %v141
  %v1797 = vunpack.c.l.b16 %v142
  %v1798 = vunpack.c.l.b16 %v143
  %v1799 = vunpack.c.l.b16 %v144
  %v1800 = vunpack.c.l.b16 %v145
  %v1801 = vunpack.c.l.b16 %v146
  %v1802 = vunpack.c.l.b16 %v147
  %v1803 = vunpack.c.l.b16 %v148
  %v1804 = vunpack.c.l.b16 %v149
  %v1805 = vunpack.c.l.b16 %v150
  %v1806 = vunpack.c.l.b16 %v151
  %v1807 = vunpack.c.l.b16 %v152
  %v1808 = vunpack.c.l.b16 %v153
  %v1809 = vunpack.c.l.b16 %v154
  %v1810 = vunpack.c.l.b16 %v155
  %v1811 = vunpack.c.l.b16 %v156
  %v1812 = vunpack.c.l.b16 %v157
  %v1813 = vpack.c.b16 %v1766, %v1765
  %v1814 = vpack.c.b16 %v1768, %v1767
  %v1815 = vpack.c.b16 %v1770, %v1769
  %v1816 = vpack.c.b16 %v1772, %v1771
  %v1817 = vpack.c.b16 %v1774, %v1773
  %v1818 = vpack.c.b16 %v1776, %v1775
  %v1819 = vpack.c.b16 %v1778, %v1777
  %v1820 = vpack.c.b16 %v1780, %v1779
  %v1821 = vpack.c.b16 %v1782, %v1781
  %v1822 = vpack.c.b16 %v1784, %v1783
  %v1823 = vpack.c.b16 %v1786, %v1785
  %v1824 = vpack.c.b16 %v1788, %v1787
  %v1825 = vpack.c.b16 %v1790, %v1789
  %v1826 = vpack.c.b16 %v1792, %v1791
  %v1827 = vpack.c.b16 %v1794, %v1793
  %v1828 = vpack.c.b16 %v1796, %v1795
  %v1829 = vpack.c.b16 %v1798, %v1797
  %v1830 = vpack.c.b16 %v1800, %v1799
  %v1831 = vpack.c.b16 %v1802, %v1801
  %v1832 = vpack.c.b16 %v1804, %v1803
  %v1833 = vpack.c.b16 %v1806, %v1805
  %v1834 = vpack.c.b16 %v1808, %v1807
  %v1835 = vpack.c.b16 %v1810, %v1809
  %v1836 = vpack.c.b16 %v1812, %v1811
  %1861 = vmatprep.subr.bf16.mxu0 0
  %1862 = vmatpush1.bf16.msra.mxu0 %v1813
  %1863 = vmatprep.subr.bf16.mxu0 0
  %1864 = vmatpush1.bf16.msra.mxu0 %v1814
  %1865 = vmatprep.subr.bf16.mxu0 0
  %1866 = vmatpush1.bf16.msra.mxu0 %v1815
  %1867 = vmatprep.subr.bf16.mxu0 0
  %1868 = vmatpush1.bf16.msra.mxu0 %v1816
  %1869 = vmatprep.subr.bf16.mxu0 0
  %1870 = vmatpush1.bf16.msra.mxu0 %v1817
  %1871 = vmatprep.subr.bf16.mxu0 0
  %1872 = vmatpush1.bf16.msra.mxu0 %v1818
  %1873 = vmatprep.subr.bf16.mxu0 0
  %1874 = vmatpush1.bf16.msra.mxu0 %v1819
  %1875 = vmatprep.subr.bf16.mxu0 0
  %1876 = vmatpush1.bf16.msra.mxu0 %v1820
  %1877 = vmatprep.subr.bf16.mxu0 0
  %1878 = vmatpush1.bf16.msra.mxu0 %v1821
  %1879 = vmatprep.subr.bf16.mxu0 0
  %1880 = vmatpush1.bf16.msra.mxu0 %v1822
  %1881 = vmatprep.subr.bf16.mxu0 0
  %1882 = vmatpush1.bf16.msra.mxu0 %v1823
  %1883 = vmatprep.subr.bf16.mxu0 0
  %1884 = vmatpush1.bf16.msra.mxu0 %v1824
  %1885 = vmatprep.subr.bf16.mxu0 0
  %1886 = vmatpush1.bf16.msra.mxu0 %v1825
  %1887 = vmatprep.subr.bf16.mxu0 0
  %1888 = vmatpush1.bf16.msra.mxu0 %v1826
  %1889 = vmatprep.subr.bf16.mxu0 0
  %1890 = vmatpush1.bf16.msra.mxu0 %v1827
  %1891 = vmatprep.subr.bf16.mxu0 0
  %1892 = vmatpush1.bf16.msra.mxu0 %v1828
  %1893 = vmatprep.mubr.bf16.mxu0 %v1654
  %1894 = vmatmul.mubr.bf16.gmra.mrb[0].mxu0 %v1651
  %v1895 = vpop.f32.mrb[0].mxu0
  %v1896 = vadd.f32 0.0, %v1895
  %v1897 = vpop.f32.mrb[0].mxu0
  %v1898 = vpop.f32.mrb[0].mxu0
  %v1899 = vadd.f32 0.0, %v1898
  %v1900 = vpop.f32.mrb[0].mxu0
  %1901 = vmatprep.mubr.bf16.mxu0 %v1657
  %1902 = vmatmul.mubr.bf16.gmra.mrb[0].mxu0 %v1654
  %v1903 = vpop.f32.mrb[0].mxu0
  %v1904 = vadd.f32 0.0, %v1903
  %v1905 = vpop.f32.mrb[0].mxu0
  %v1906 = vpop.f32.mrb[0].mxu0
  %v1907 = vadd.f32 0.0, %v1906
  %v1908 = vpop.f32.mrb[0].mxu0
  %1909 = vmatprep.mubr.bf16.mxu0 %v1660
  %1910 = vmatmul.mubr.bf16.gmra.mrb[0].mxu0 %v1657
  %v1911 = vpop.f32.mrb[0].mxu0
  %v1912 = vadd.f32 0.0, %v1911
  %v1913 = vpop.f32.mrb[0].mxu0
  %v1914 = vpop.f32.mrb[0].mxu0
  %v1915 = vadd.f32 0.0, %v1914
  %v1916 = vpop.f32.mrb[0].mxu0
  %1917 = vmatprep.mubr.bf16.mxu0 %v1663
  %1918 = vmatmul.mubr.bf16.gmra.mrb[0].mxu0 %v1660
  %v1919 = vpop.f32.mrb[0].mxu0
  %v1920 = vadd.f32 0.0, %v1919
  %v1921 = vpop.f32.mrb[0].mxu0
  %v1922 = vpop.f32.mrb[0].mxu0
  %v1923 = vadd.f32 0.0, %v1922
  %v1924 = vpop.f32.mrb[0].mxu0
  %1925 = vmatprep.mubr.bf16.mxu0 %v1666
  %1926 = vmatmul.mubr.bf16.gmra.mrb[0].mxu0 %v1663
  %v1927 = vpop.f32.mrb[0].mxu0
  %v1928 = vadd.f32 0.0, %v1927
  %v1929 = vpop.f32.mrb[0].mxu0
  %v1930 = vpop.f32.mrb[0].mxu0
  %v1931 = vadd.f32 0.0, %v1930
  %v1932 = vpop.f32.mrb[0].mxu0
  %1933 = vmatprep.mubr.bf16.mxu0 %v1669
  %1934 = vmatmul.mubr.bf16.gmra.mrb[0].mxu0 %v1666
  %v1935 = vpop.f32.mrb[0].mxu0
  %v1936 = vadd.f32 0.0, %v1935
  %v1937 = vpop.f32.mrb[0].mxu0
  %v1938 = vpop.f32.mrb[0].mxu0
  %v1939 = vadd.f32 0.0, %v1938
  %v1940 = vpop.f32.mrb[0].mxu0
  %1941 = vmatprep.mubr.bf16.mxu0 %v1672
  %1942 = vmatmul.mubr.bf16.gmra.mrb[0].mxu0 %v1669
  %v1943 = vpop.f32.mrb[0].mxu0
  %v1944 = vadd.f32 0.0, %v1943
  %v1945 = vpop.f32.mrb[0].mxu0
  %v1946 = vpop.f32.mrb[0].mxu0
  %v1947 = vadd.f32 0.0, %v1946
  %v1948 = vpop.f32.mrb[0].mxu0
  %1949 = vmatprep.mubr.bf16.mxu0 %v1675
  %1950 = vmatmul.mubr.bf16.gmra.mrb[0].mxu0 %v1672
  %v1951 = vpop.f32.mrb[0].mxu0
  %v1952 = vadd.f32 0.0, %v1951
  %v1953 = vpop.f32.mrb[0].mxu0
  %v1954 = vpop.f32.mrb[0].mxu0
  %v1955 = vadd.f32 0.0, %v1954
  %v1956 = vpop.f32.mrb[0].mxu0
  %1957 = vmatprep.mubr.bf16.mxu0 %v1678
  %1958 = vmatmul.mubr.bf16.gmra.mrb[0].mxu0 %v1675
  %v1959 = vpop.f32.mrb[0].mxu0
  %v1960 = vadd.f32 0.0, %v1959
  %v1961 = vpop.f32.mrb[0].mxu0
  %v1962 = vpop.f32.mrb[0].mxu0
  %v1963 = vadd.f32 0.0, %v1962
  %v1964 = vpop.f32.mrb[0].mxu0
  %1965 = vmatprep.mubr.bf16.mxu0 %v1681
  %1966 = vmatmul.mubr.bf16.gmra.mrb[0].mxu0 %v1678
  %v1967 = vpop.f32.mrb[0].mxu0
  %v1968 = vadd.f32 0.0, %v1967
  %v1969 = vpop.f32.mrb[0].mxu0
  %v1970 = vpop.f32.mrb[0].mxu0
  %v1971 = vadd.f32 0.0, %v1970
  %v1972 = vpop.f32.mrb[0].mxu0
  %1973 = vmatprep.mubr.bf16.mxu0 %v1684
  %1974 = vmatmul.mubr.bf16.gmra.mrb[0].mxu0 %v1681
  %v1975 = vpop.f32.mrb[0].mxu0
  %v1976 = vadd.f32 0.0, %v1975
  %v1977 = vpop.f32.mrb[0].mxu0
  %v1978 = vpop.f32.mrb[0].mxu0
  %v1979 = vadd.f32 0.0, %v1978
  %v1980 = vpop.f32.mrb[0].mxu0
  %1981 = vmatprep.mubr.bf16.mxu0 %v1687
  %1982 = vmatmul.mubr.bf16.gmra.mrb[0].mxu0 %v1684
  %v1983 = vpop.f32.mrb[0].mxu0
  %v1984 = vadd.f32 0.0, %v1983
  %v1985 = vpop.f32.mrb[0].mxu0
  %v1986 = vpop.f32.mrb[0].mxu0
  %v1987 = vadd.f32 0.0, %v1986
  %v1988 = vpop.f32.mrb[0].mxu0
  %1989 = vmatprep.mubr.bf16.mxu0 %v1690
  %1990 = vmatmul.mubr.bf16.gmra.mrb[0].mxu0 %v1687
  %v1991 = vpop.f32.mrb[0].mxu0
  %v1992 = vadd.f32 0.0, %v1991
  %v1993 = vpop.f32.mrb[0].mxu0
  %v1994 = vpop.f32.mrb[0].mxu0
  %v1995 = vadd.f32 0.0, %v1994
  %v1996 = vpop.f32.mrb[0].mxu0
  %1997 = vmatprep.mubr.bf16.mxu0 %v1693
  %1998 = vmatmul.mubr.bf16.gmra.mrb[0].mxu0 %v1690
  %v1999 = vpop.f32.mrb[0].mxu0
  %v2000 = vadd.f32 0.0, %v1999
  %v2001 = vpop.f32.mrb[0].mxu0
  %v2002 = vpop.f32.mrb[0].mxu0
  %v2003 = vadd.f32 0.0, %v2002
  %v2004 = vpop.f32.mrb[0].mxu0
  %2005 = vmatprep.mubr.bf16.mxu0 %v1696
  %2006 = vmatmul.mubr.bf16.gmra.mrb[0].mxu0 %v1693
  %v2007 = vpop.f32.mrb[0].mxu0
  %v2008 = vadd.f32 0.0, %v2007
  %v2009 = vpop.f32.mrb[0].mxu0
  %v2010 = vpop.f32.mrb[0].mxu0
  %v2011 = vadd.f32 0.0, %v2010
  %v2012 = vpop.f32.mrb[0].mxu0
  %2013 = vmatprep.mubr.bf16.mxu0 %v1699
  %2014 = vmatmul.mubr.bf16.gmra.mrb[0].mxu0 %v1696
  %v2015 = vpop.f32.mrb[0].mxu0
  %v2016 = vadd.f32 0.0, %v2015
  %v2017 = vpop.f32.mrb[0].mxu0
  %v2018 = vpop.f32.mrb[0].mxu0
  %v2019 = vadd.f32 0.0, %v2018
  %v2020 = vpop.f32.mrb[0].mxu0
  %2021 = vdwg.mxu0
  %2022 = vmatprep.subr.bf16.mxu0 0
  %2023 = vmatpush1.bf16.msra.mxu0 %v1829
  %2024 = vmatprep.subr.bf16.mxu0 0
  %2025 = vmatpush1.bf16.msra.mxu0 %v1830
  %2026 = vmatprep.subr.bf16.mxu0 0
  %2027 = vmatpush1.bf16.msra.mxu0 %v1831
  %2028 = vmatprep.subr.bf16.mxu0 0
  %2029 = vmatpush1.bf16.msra.mxu0 %v1832
  %2030 = vmatprep.subr.bf16.mxu0 0
  %2031 = vmatpush1.bf16.msra.mxu0 %v1833
  %2032 = vmatprep.subr.bf16.mxu0 0
  %2033 = vmatpush1.bf16.msra.mxu0 %v1834
  %2034 = vmatprep.subr.bf16.mxu0 0
  %2035 = vmatpush1.bf16.msra.mxu0 %v1835
  %2036 = vmatprep.subr.bf16.mxu0 0
  %2037 = vmatpush1.bf16.msra.mxu0 %v1836
  %2038 = vmatprep.subr.bf16.mxu0 0
  %2039 = vmatpush1.bf16.msra.mxu0 0
  %2040 = vmatprep.subr.bf16.mxu0 0
  %2041 = vmatpush1.bf16.msra.mxu0 0
  %2042 = vmatprep.subr.bf16.mxu0 0
  %2043 = vmatpush1.bf16.msra.mxu0 0
  %2044 = vmatprep.subr.bf16.mxu0 0
  %2045 = vmatpush1.bf16.msra.mxu0 0
  %2046 = vmatprep.subr.bf16.mxu0 0
  %2047 = vmatpush1.bf16.msra.mxu0 0
  %2048 = vmatprep.subr.bf16.mxu0 0
  %2049 = vmatpush1.bf16.msra.mxu0 0
  %2050 = vmatprep.subr.bf16.mxu0 0
  %2051 = vmatpush1.bf16.msra.mxu0 0
  %2052 = vmatprep.subr.bf16.mxu0 0
  %2053 = vmatpush1.bf16.msra.mxu0 0
  %2054 = vmatprep.mubr.bf16.mxu0 0
  %2055 = vmatmul.mubr.bf16.gmra.mrb[0].mxu0 %v1657
  %v2056 = vpop.f32.mrb[0].mxu0
  %v2057 = vadd.f32 %v1896, %v2056
  %v2058 = vpop.f32.mrb[0].mxu0
  %v2059 = vpop.f32.mrb[0].mxu0
  %v2060 = vadd.f32 %v1899, %v2059
  %v2061 = vpop.f32.mrb[0].mxu0
  %2062 = vmatprep.mubr.bf16.mxu0 0
  %2063 = vmatmul.mubr.bf16.gmra.mrb[0].mxu0 %v1660
  %v2064 = vpop.f32.mrb[0].mxu0
  %v2065 = vadd.f32 %v1904, %v2064
  %v2066 = vpop.f32.mrb[0].mxu0
  %v2067 = vpop.f32.mrb[0].mxu0
  %v2068 = vadd.f32 %v1907, %v2067
  %v2069 = vpop.f32.mrb[0].mxu0
  %2070 = vmatprep.mubr.bf16.mxu0 0
  %2071 = vmatmul.mubr.bf16.gmra.mrb[0].mxu0 %v1663
  %v2072 = vpop.f32.mrb[0].mxu0
  %v2073 = vadd.f32 %v1912, %v2072
  %v2074 = vpop.f32.mrb[0].mxu0
  %v2075 = vpop.f32.mrb[0].mxu0
  %v2076 = vadd.f32 %v1915, %v2075
  %v2077 = vpop.f32.mrb[0].mxu0
  %2078 = vmatprep.mubr.bf16.mxu0 0
  %2079 = vmatmul.mubr.bf16.gmra.mrb[0].mxu0 %v1666
  %v2080 = vpop.f32.mrb[0].mxu0
  %v2081 = vadd.f32 %v1920, %v2080
  %v2082 = vpop.f32.mrb[0].mxu0
  %v2083 = vpop.f32.mrb[0].mxu0
  %v2084 = vadd.f32 %v1923, %v2083
  %v2085 = vpop.f32.mrb[0].mxu0
  %2086 = vmatprep.mubr.bf16.mxu0 0
  %2087 = vmatmul.mubr.bf16.gmra.mrb[0].mxu0 %v1669
  %v2088 = vpop.f32.mrb[0].mxu0
  %v2089 = vadd.f32 %v1928, %v2088
  %v2090 = vpop.f32.mrb[0].mxu0
  %v2091 = vpop.f32.mrb[0].mxu0
  %v2092 = vadd.f32 %v1931, %v2091
  %v2093 = vpop.f32.mrb[0].mxu0
  %2094 = vmatprep.mubr.bf16.mxu0 0
  %2095 = vmatmul.mubr.bf16.gmra.mrb[0].mxu0 %v1672
  %v2096 = vpop.f32.mrb[0].mxu0
  %v2097 = vadd.f32 %v1936, %v2096
  %v2098 = vpop.f32.mrb[0].mxu0
  %v2099 = vpop.f32.mrb[0].mxu0
  %v2100 = vadd.f32 %v1939, %v2099
  %v2101 = vpop.f32.mrb[0].mxu0
  %2102 = vmatprep.mubr.bf16.mxu0 0
  %2103 = vmatmul.mubr.bf16.gmra.mrb[0].mxu0 %v1675
  %v2104 = vpop.f32.mrb[0].mxu0
  %v2105 = vadd.f32 %v1944, %v2104
  %v2106 = vpop.f32.mrb[0].mxu0
  %v2107 = vpop.f32.mrb[0].mxu0
  %v2108 = vadd.f32 %v1947, %v2107
  %v2109 = vpop.f32.mrb[0].mxu0
  %2110 = vmatprep.mubr.bf16.mxu0 0
  %2111 = vmatmul.mubr.bf16.gmra.mrb[0].mxu0 %v1678
  %v2112 = vpop.f32.mrb[0].mxu0
  %v2113 = vadd.f32 %v1952, %v2112
  %v2114 = vpop.f32.mrb[0].mxu0
  %v2115 = vpop.f32.mrb[0].mxu0
  %v2116 = vadd.f32 %v1955, %v2115
  %v2117 = vpop.f32.mrb[0].mxu0
  %2118 = vmatprep.mubr.bf16.mxu0 0
  %2119 = vmatmul.mubr.bf16.gmra.mrb[0].mxu0 %v1681
  %v2120 = vpop.f32.mrb[0].mxu0
  %v2121 = vadd.f32 %v1960, %v2120
  %v2122 = vpop.f32.mrb[0].mxu0
  %v2123 = vpop.f32.mrb[0].mxu0
  %v2124 = vadd.f32 %v1963, %v2123
  %v2125 = vpop.f32.mrb[0].mxu0
  %2126 = vmatprep.mubr.bf16.mxu0 0
  %2127 = vmatmul.mubr.bf16.gmra.mrb[0].mxu0 %v1684
  %v2128 = vpop.f32.mrb[0].mxu0
  %v2129 = vadd.f32 %v1968, %v2128
  %v2130 = vpop.f32.mrb[0].mxu0
  %v2131 = vpop.f32.mrb[0].mxu0
  %v2132 = vadd.f32 %v1971, %v2131
  %v2133 = vpop.f32.mrb[0].mxu0
  %2134 = vmatprep.mubr.bf16.mxu0 0
  %2135 = vmatmul.mubr.bf16.gmra.mrb[0].mxu0 %v1687
  %v2136 = vpop.f32.mrb[0].mxu0
  %v2137 = vadd.f32 %v1976, %v2136
  %v2138 = vpop.f32.mrb[0].mxu0
  %v2139 = vpop.f32.mrb[0].mxu0
  %v2140 = vadd.f32 %v1979, %v2139
  %v2141 = vpop.f32.mrb[0].mxu0
  %2142 = vmatprep.mubr.bf16.mxu0 0
  %2143 = vmatmul.mubr.bf16.gmra.mrb[0].mxu0 %v1690
  %v2144 = vpop.f32.mrb[0].mxu0
  %v2145 = vadd.f32 %v1984, %v2144
  %v2146 = vpop.f32.mrb[0].mxu0
  %v2147 = vpop.f32.mrb[0].mxu0
  %v2148 = vadd.f32 %v1987, %v2147
  %v2149 = vpop.f32.mrb[0].mxu0
  %2150 = vmatprep.mubr.bf16.mxu0 0
  %2151 = vmatmul.mubr.bf16.gmra.mrb[0].mxu0 %v1693
  %v2152 = vpop.f32.mrb[0].mxu0
  %v2153 = vadd.f32 %v1992, %v2152
  %v2154 = vpop.f32.mrb[0].mxu0
  %v2155 = vpop.f32.mrb[0].mxu0
  %v2156 = vadd.f32 %v1995, %v2155
  %v2157 = vpop.f32.mrb[0].mxu0
  %2158 = vmatprep.mubr.bf16.mxu0 0
  %2159 = vmatmul.mubr.bf16.gmra.mrb[0].mxu0 %v1696
  %v2160 = vpop.f32.mrb[0].mxu0
  %v2161 = vadd.f32 %v2000, %v2160
  %v2162 = vpop.f32.mrb[0].mxu0
  %v2163 = vpop.f32.mrb[0].mxu0
  %v2164 = vadd.f32 %v2003, %v2163
  %v2165 = vpop.f32.mrb[0].mxu0
  %2166 = vmatprep.mubr.bf16.mxu0 0
  %2167 = vmatmul.mubr.bf16.gmra.mrb[0].mxu0 %v1699
  %v2168 = vpop.f32.mrb[0].mxu0
  %v2169 = vadd.f32 %v2008, %v2168
  %v2170 = vpop.f32.mrb[0].mxu0
  %v2171 = vpop.f32.mrb[0].mxu0
  %v2172 = vadd.f32 %v2011, %v2171
  %v2173 = vpop.f32.mrb[0].mxu0
  %2174 = vmatprep.mubr.bf16.mxu0 0
  %2175 = vmatmul.mubr.bf16.gmra.mrb[0].mxu0 %v1651
  %v2176 = vpop.f32.mrb[0].mxu0
  %v2177 = vadd.f32 %v2016, %v2176
  %v2178 = vpop.f32.mrb[0].mxu0
  %v2179 = vpop.f32.mrb[0].mxu0
  %v2180 = vadd.f32 %v2019, %v2179
  %v2181 = vpop.f32.mrb[0].mxu0
  %2182 = vdwg.mxu0
  %v2183 = vadd.f32 %v1488, %v2057
  %v2184 = vadd.f32 %v1491, %v2060
  %v2185 = vadd.f32 %v1496, %v2065
  %v2186 = vadd.f32 %v1499, %v2068
  %v2187 = vadd.f32 %v1504, %v2073
  %v2188 = vadd.f32 %v1507, %v2076
  %v2189 = vadd.f32 %v1512, %v2081
  %v2190 = vadd.f32 %v1515, %v2084
  %v2191 = vadd.f32 %v1520, %v2089
  %v2192 = vadd.f32 %v1523, %v2092
  %v2193 = vadd.f32 %v1528, %v2097
  %v2194 = vadd.f32 %v1531, %v2100
  %v2195 = vadd.f32 %v1536, %v2105
  %v2196 = vadd.f32 %v1539, %v2108
  %v2197 = vadd.f32 %v1544, %v2113
  %v2198 = vadd.f32 %v1547, %v2116
  %v2199 = vadd.f32 %v1552, %v2121
  %v2200 = vadd.f32 %v1555, %v2124
  %v2201 = vadd.f32 %v1560, %v2129
  %v2202 = vadd.f32 %v1563, %v2132
  %v2203 = vadd.f32 %v1568, %v2137
  %v2204 = vadd.f32 %v1571, %v2140
  %v2205 = vadd.f32 %v1576, %v2145
  %v2206 = vadd.f32 %v1579, %v2148
  %v2207 = vadd.f32 %v1584, %v2153
  %v2208 = vadd.f32 %v1587, %v2156
  %v2209 = vadd.f32 %v1592, %v2161
  %v2210 = vadd.f32 %v1595, %v2164
  %v2211 = vadd.f32 %v1600, %v2169
  %v2212 = vadd.f32 %v1603, %v2172
  %v2213 = vadd.f32 %v1608, %v2177
  %v2214 = vadd.f32 %v1611, %v2180
  %v2215 = vpack.c.bf16 %v2184, %v2183
  %v2216 = vpack.c.bf16 %v2186, %v2185
  %v2217 = vpack.c.bf16 %v2188, %v2187
  %v2218 = vpack.c.bf16 %v2190, %v2189
  %v2219 = vpack.c.bf16 %v2192, %v2191
  %v2220 = vpack.c.bf16 %v2194, %v2193
  %v2221 = vpack.c.bf16 %v2196, %v2195
  %v2222 = vpack.c.bf16 %v2198, %v2197
  %v2223 = vpack.c.bf16 %v2200, %v2199
  %v2224 = vpack.c.bf16 %v2202, %v2201
  %v2225 = vpack.c.bf16 %v2204, %v2203
  %v2226 = vpack.c.bf16 %v2206, %v2205
  %v2227 = vpack.c.bf16 %v2208, %v2207
  %v2228 = vpack.c.bf16 %v2210, %v2209
  %v2229 = vpack.c.bf16 %v2212, %v2211
  %v2230 = vpack.c.bf16 %v2214, %v2213
  %v2247 = vunpack.c.l.b16 %v2215
  %v2248 = vunpack.c.h.b16 %v2215
  %v2249 = vunpack.c.l.b16 %v2216
  %v2250 = vunpack.c.h.b16 %v2216
  %v2251 = vunpack.c.l.b16 %v2217
  %v2252 = vunpack.c.h.b16 %v2217
  %v2253 = vunpack.c.l.b16 %v2218
  %v2254 = vunpack.c.h.b16 %v2218
  %v2255 = vunpack.c.l.b16 %v2219
  %v2256 = vunpack.c.h.b16 %v2219
  %v2257 = vunpack.c.l.b16 %v2220
  %v2258 = vunpack.c.h.b16 %v2220
  %v2259 = vunpack.c.l.b16 %v2221
  %v2260 = vunpack.c.h.b16 %v2221
  %v2261 = vunpack.c.l.b16 %v2222
  %v2262 = vunpack.c.h.b16 %v2222
  %v2263 = vunpack.c.l.b16 %v2223
  %v2264 = vunpack.c.h.b16 %v2223
  %v2265 = vunpack.c.l.b16 %v2224
  %v2266 = vunpack.c.h.b16 %v2224
  %v2267 = vunpack.c.l.b16 %v2225
  %v2268 = vunpack.c.h.b16 %v2225
  %v2269 = vunpack.c.l.b16 %v2226
  %v2270 = vunpack.c.h.b16 %v2226
  %v2271 = vunpack.c.l.b16 %v2227
  %v2272 = vunpack.c.h.b16 %v2227
  %v2273 = vunpack.c.l.b16 %v2228
  %v2274 = vunpack.c.h.b16 %v2228
  %v2275 = vunpack.c.l.b16 %v2229
  %v2276 = vunpack.c.h.b16 %v2229
  %v2277 = vunpack.c.l.b16 %v2230
  %v2278 = vunpack.c.h.b16 %v2230
  %v2279 = vpack.c.b16 %v2247, %v2247
  %v2280 = vpack.c.b16 %v2248, %v2248
  %v2281 = vpack.c.b16 %v2249, %v2249
  %v2282 = vpack.c.b16 %v2250, %v2250
  %v2283 = vpack.c.b16 %v2251, %v2251
  %v2284 = vpack.c.b16 %v2252, %v2252
  %v2285 = vpack.c.b16 %v2253, %v2253
  %v2286 = vpack.c.b16 %v2254, %v2254
  %v2287 = vpack.c.b16 %v2255, %v2255
  %v2288 = vpack.c.b16 %v2256, %v2256
  %v2289 = vpack.c.b16 %v2257, %v2257
  %v2290 = vpack.c.b16 %v2258, %v2258
  %v2291 = vpack.c.b16 %v2259, %v2259
  %v2292 = vpack.c.b16 %v2260, %v2260
  %v2293 = vpack.c.b16 %v2261, %v2261
  %v2294 = vpack.c.b16 %v2262, %v2262
  %v2295 = vpack.c.b16 %v2263, %v2263
  %v2296 = vpack.c.b16 %v2264, %v2264
  %v2297 = vpack.c.b16 %v2265, %v2265
  %v2298 = vpack.c.b16 %v2266, %v2266
  %v2299 = vpack.c.b16 %v2267, %v2267
  %v2300 = vpack.c.b16 %v2268, %v2268
  %v2301 = vpack.c.b16 %v2269, %v2269
  %v2302 = vpack.c.b16 %v2270, %v2270
  %v2303 = vpack.c.b16 %v2271, %v2271
  %v2304 = vpack.c.b16 %v2272, %v2272
  %v2305 = vpack.c.b16 %v2273, %v2273
  %v2306 = vpack.c.b16 %v2274, %v2274
  %v2307 = vpack.c.b16 %v2275, %v2275
  %v2308 = vpack.c.b16 %v2276, %v2276
  %v2309 = vpack.c.b16 %v2277, %v2277
  %v2310 = vpack.c.b16 %v2278, %v2278
  %2343 = vst [vmem:[%s2] sm:$0xf] %v2279
  %2344 = vst [vmem:[%s2 + $0x4] sm:$0xf] %v2280
  %2345 = vst [vmem:[%s2 + $0x8] sm:$0xf] %v2281
  %2346 = vst [vmem:[%s2 + $0xc] sm:$0xf] %v2282
  %2347 = vst [vmem:[%s2 + $0x10] sm:$0xf] %v2283
  %2348 = vst [vmem:[%s2 + $0x14] sm:$0xf] %v2284
  %2349 = vst [vmem:[%s2 + $0x18] sm:$0xf] %v2285
  %2350 = vst [vmem:[%s2 + $0x1c] sm:$0xf] %v2286
  %2351 = vst [vmem:[%s2 + $0x20] sm:$0xf] %v2287
  %2352 = vst [vmem:[%s2 + $0x24] sm:$0xf] %v2288
  %2353 = vst [vmem:[%s2 + $0x28] sm:$0xf] %v2289
  %2354 = vst [vmem:[%s2 + $0x2c] sm:$0xf] %v2290
  %2355 = vst [vmem:[%s2 + $0x30] sm:$0xf] %v2291
  %2356 = vst [vmem:[%s2 + $0x34] sm:$0xf] %v2292
  %2357 = vst [vmem:[%s2 + $0x38] sm:$0xf] %v2293
  %2358 = vst [vmem:[%s2 + $0x3c] sm:$0xf] %v2294
  %2359 = vst [vmem:[%s2 + $0x40] sm:$0xf] %v2295
  %2360 = vst [vmem:[%s2 + $0x44] sm:$0xf] %v2296
  %2361 = vst [vmem:[%s2 + $0x48] sm:$0xf] %v2297
  %2362 = vst [vmem:[%s2 + $0x4c] sm:$0xf] %v2298
  %2363 = vst [vmem:[%s2 + $0x50] sm:$0xf] %v2299
  %2364 = vst [vmem:[%s2 + $0x54] sm:$0xf] %v2300
  %2365 = vst [vmem:[%s2 + $0x58] sm:$0xf] %v2301
  %2366 = vst [vmem:[%s2 + $0x5c] sm:$0xf] %v2302
  %2367 = vst [vmem:[%s2 + $0x60] sm:$0xf] %v2303
  %2368 = vst [vmem:[%s2 + $0x64] sm:$0xf] %v2304
  %2369 = vst [vmem:[%s2 + $0x68] sm:$0xf] %v2305
  %2370 = vst [vmem:[%s2 + $0x6c] sm:$0xf] %v2306
  %2371 = vst [vmem:[%s2 + $0x70] sm:$0xf] %v2307
  %2372 = vst [vmem:[%s2 + $0x74] sm:$0xf] %v2308
  %2373 = vst [vmem:[%s2 + $0x78] sm:$0xf] %v2309
  %2374 = vst [vmem:[%s2 + $0x7c] sm:$0xf] %v2310
  %v2375 = vadd.f32 %v2183, %v2184
  %v2376 = vadd.f32 %v2375, %v2185
  %v2377 = vadd.f32 %v2376, %v2186
  %v2378 = vadd.f32 %v2377, %v2187
  %v2379 = vadd.f32 %v2378, %v2188
  %v2380 = vadd.f32 %v2379, %v2189
  %v2381 = vadd.f32 %v2380, %v2190
  %v2382 = vadd.f32 %v2381, %v2191
  %v2383 = vadd.f32 %v2382, %v2192
  %v2384 = vadd.f32 %v2383, %v2193
  %v2385 = vadd.f32 %v2384, %v2194
  %v2386 = vadd.f32 %v2385, %v2195
  %v2387 = vadd.f32 %v2386, %v2196
  %v2388 = vadd.f32 %v2387, %v2197
  %v2389 = vadd.f32 %v2388, %v2198
  %v2390 = vadd.f32 %v2389, %v2199
  %v2391 = vadd.f32 %v2390, %v2200
  %v2392 = vadd.f32 %v2391, %v2201
  %v2393 = vadd.f32 %v2392, %v2202
  %v2394 = vadd.f32 %v2393, %v2203
  %v2395 = vadd.f32 %v2394, %v2204
  %v2396 = vadd.f32 %v2395, %v2205
  %v2397 = vadd.f32 %v2396, %v2206
  %v2398 = vadd.f32 %v2397, %v2207
  %v2399 = vadd.f32 %v2398, %v2208
  %v2400 = vadd.f32 %v2399, %v2209
  %v2401 = vadd.f32 %v2400, %v2210
  %v2402 = vadd.f32 %v2401, %v2211
  %v2403 = vadd.f32 %v2402, %v2212
  %v2404 = vadd.f32 %v2403, %v2213
  %v2405 = vadd.f32 %v2404, %v2214
  %v2406 = vrot.slane %v2405, 4
  %v2407 = vadd.f32 %v2405, %v2406
  %v2408 = vrot.slane %v2407, 2
  %v2409 = vadd.f32 %v2407, %v2408
  %v2410 = vrot.slane %v2409, 1
  %v2411 = vadd.f32 %v2409, %v2410
  %v2412 = vadd.f32 %v2411, 0.0
  %v2413 = vmul.f32 %v2183, %v2183
  %v2414 = vmul.f32 %v2184, %v2184
  %v2415 = vmul.f32 %v2185, %v2185
  %v2416 = vmul.f32 %v2186, %v2186
  %v2417 = vmul.f32 %v2187, %v2187
  %v2418 = vmul.f32 %v2188, %v2188
  %v2419 = vmul.f32 %v2189, %v2189
  %v2420 = vmul.f32 %v2190, %v2190
  %v2421 = vmul.f32 %v2191, %v2191
  %v2422 = vmul.f32 %v2192, %v2192
  %v2423 = vmul.f32 %v2193, %v2193
  %v2424 = vmul.f32 %v2194, %v2194
  %v2425 = vmul.f32 %v2195, %v2195
  %v2426 = vmul.f32 %v2196, %v2196
  %v2427 = vmul.f32 %v2197, %v2197
  %v2428 = vmul.f32 %v2198, %v2198
  %v2429 = vmul.f32 %v2199, %v2199
  %v2430 = vmul.f32 %v2200, %v2200
  %v2431 = vmul.f32 %v2201, %v2201
  %v2432 = vmul.f32 %v2202, %v2202
  %v2433 = vmul.f32 %v2203, %v2203
  %v2434 = vmul.f32 %v2204, %v2204
  %v2435 = vmul.f32 %v2205, %v2205
  %v2436 = vmul.f32 %v2206, %v2206
  %v2437 = vmul.f32 %v2207, %v2207
  %v2438 = vmul.f32 %v2208, %v2208
  %v2439 = vmul.f32 %v2209, %v2209
  %v2440 = vmul.f32 %v2210, %v2210
  %v2441 = vmul.f32 %v2211, %v2211
  %v2442 = vmul.f32 %v2212, %v2212
  %v2443 = vmul.f32 %v2213, %v2213
  %v2444 = vmul.f32 %v2214, %v2214
  %v2445 = vadd.f32 %v2413, %v2414
  %v2446 = vadd.f32 %v2445, %v2415
  %v2447 = vadd.f32 %v2446, %v2416
  %v2448 = vadd.f32 %v2447, %v2417
  %v2449 = vadd.f32 %v2448, %v2418
  %v2450 = vadd.f32 %v2449, %v2419
  %v2451 = vadd.f32 %v2450, %v2420
  %v2452 = vadd.f32 %v2451, %v2421
  %v2453 = vadd.f32 %v2452, %v2422
  %v2454 = vadd.f32 %v2453, %v2423
  %v2455 = vadd.f32 %v2454, %v2424
  %v2456 = vadd.f32 %v2455, %v2425
  %v2457 = vadd.f32 %v2456, %v2426
  %v2458 = vadd.f32 %v2457, %v2427
  %v2459 = vadd.f32 %v2458, %v2428
  %v2460 = vadd.f32 %v2459, %v2429
  %v2461 = vadd.f32 %v2460, %v2430
  %v2462 = vadd.f32 %v2461, %v2431
  %v2463 = vadd.f32 %v2462, %v2432
  %v2464 = vadd.f32 %v2463, %v2433
  %v2465 = vadd.f32 %v2464, %v2434
  %v2466 = vadd.f32 %v2465, %v2435
  %v2467 = vadd.f32 %v2466, %v2436
  %v2468 = vadd.f32 %v2467, %v2437
  %v2469 = vadd.f32 %v2468, %v2438
  %v2470 = vadd.f32 %v2469, %v2439
  %v2471 = vadd.f32 %v2470, %v2440
  %v2472 = vadd.f32 %v2471, %v2441
  %v2473 = vadd.f32 %v2472, %v2442
  %v2474 = vadd.f32 %v2473, %v2443
  %v2475 = vadd.f32 %v2474, %v2444
  %v2476 = vrot.slane %v2475, 4
  %v2477 = vadd.f32 %v2475, %v2476
  %v2478 = vrot.slane %v2477, 2
  %v2479 = vadd.f32 %v2477, %v2478
  %v2480 = vrot.slane %v2479, 1
  %v2481 = vadd.f32 %v2479, %v2480
  %v2482 = vadd.f32 %v2481, 0.0
  %s2483 = scalar_lea.vmem %s0, 128
  %v2484 = vld [vmem:[%s2483] sm:$0xf]
  %v2485 = vld [vmem:[%s2483 + $0x4] sm:$0xf]
  %v2486 = vld [vmem:[%s2483 + $0x8] sm:$0xf]
  %v2487 = vld [vmem:[%s2483 + $0xc] sm:$0xf]
  %v2488 = vld [vmem:[%s2483 + $0x10] sm:$0xf]
  %v2489 = vld [vmem:[%s2483 + $0x14] sm:$0xf]
  %v2490 = vld [vmem:[%s2483 + $0x18] sm:$0xf]
  %v2491 = vld [vmem:[%s2483 + $0x1c] sm:$0xf]
  %v2492 = vld [vmem:[%s2483 + $0x20] sm:$0xf]
  %v2493 = vld [vmem:[%s2483 + $0x24] sm:$0xf]
  %v2494 = vld [vmem:[%s2483 + $0x28] sm:$0xf]
  %v2495 = vld [vmem:[%s2483 + $0x2c] sm:$0xf]
  %v2496 = vld [vmem:[%s2483 + $0x30] sm:$0xf]
  %v2497 = vld [vmem:[%s2483 + $0x34] sm:$0xf]
  %v2498 = vld [vmem:[%s2483 + $0x38] sm:$0xf]
  %v2499 = vld [vmem:[%s2483 + $0x3c] sm:$0xf]
  %v2500 = vld [vmem:[%s2483 + $0x40] sm:$0xf]
  %v2501 = vld [vmem:[%s2483 + $0x44] sm:$0xf]
  %v2502 = vld [vmem:[%s2483 + $0x48] sm:$0xf]
  %v2503 = vld [vmem:[%s2483 + $0x4c] sm:$0xf]
  %v2504 = vld [vmem:[%s2483 + $0x50] sm:$0xf]
  %v2505 = vld [vmem:[%s2483 + $0x54] sm:$0xf]
  %v2506 = vld [vmem:[%s2483 + $0x58] sm:$0xf]
  %v2507 = vld [vmem:[%s2483 + $0x5c] sm:$0xf]
  %v2508 = vld [vmem:[%s2483 + $0x60] sm:$0xf]
  %v2509 = vld [vmem:[%s2483 + $0x64] sm:$0xf]
  %v2510 = vld [vmem:[%s2483 + $0x68] sm:$0xf]
  %v2511 = vld [vmem:[%s2483 + $0x6c] sm:$0xf]
  %v2512 = vld [vmem:[%s2483 + $0x70] sm:$0xf]
  %v2513 = vld [vmem:[%s2483 + $0x74] sm:$0xf]
  %v2514 = vld [vmem:[%s2483 + $0x78] sm:$0xf]
  %v2515 = vld [vmem:[%s2483 + $0x7c] sm:$0xf]
  %v2548 = vunpack.c.l.b16 %v2484
  %v2549 = vunpack.c.l.b16 %v2485
  %v2550 = vunpack.c.l.b16 %v2486
  %v2551 = vunpack.c.l.b16 %v2487
  %v2552 = vunpack.c.l.b16 %v2488
  %v2553 = vunpack.c.l.b16 %v2489
  %v2554 = vunpack.c.l.b16 %v2490
  %v2555 = vunpack.c.l.b16 %v2491
  %v2556 = vunpack.c.l.b16 %v2492
  %v2557 = vunpack.c.l.b16 %v2493
  %v2558 = vunpack.c.l.b16 %v2494
  %v2559 = vunpack.c.l.b16 %v2495
  %v2560 = vunpack.c.l.b16 %v2496
  %v2561 = vunpack.c.l.b16 %v2497
  %v2562 = vunpack.c.l.b16 %v2498
  %v2563 = vunpack.c.l.b16 %v2499
  %v2564 = vunpack.c.l.b16 %v2500
  %v2565 = vunpack.c.l.b16 %v2501
  %v2566 = vunpack.c.l.b16 %v2502
  %v2567 = vunpack.c.l.b16 %v2503
  %v2568 = vunpack.c.l.b16 %v2504
  %v2569 = vunpack.c.l.b16 %v2505
  %v2570 = vunpack.c.l.b16 %v2506
  %v2571 = vunpack.c.l.b16 %v2507
  %v2572 = vunpack.c.l.b16 %v2508
  %v2573 = vunpack.c.l.b16 %v2509
  %v2574 = vunpack.c.l.b16 %v2510
  %v2575 = vunpack.c.l.b16 %v2511
  %v2576 = vunpack.c.l.b16 %v2512
  %v2577 = vunpack.c.l.b16 %v2513
  %v2578 = vunpack.c.l.b16 %v2514
  %v2579 = vunpack.c.l.b16 %v2515
  %v2580 = vpack.c.b16 %v2549, %v2548
  %v2581 = vpack.c.b16 %v2551, %v2550
  %v2582 = vpack.c.b16 %v2553, %v2552
  %v2583 = vpack.c.b16 %v2555, %v2554
  %v2584 = vpack.c.b16 %v2557, %v2556
  %v2585 = vpack.c.b16 %v2559, %v2558
  %v2586 = vpack.c.b16 %v2561, %v2560
  %v2587 = vpack.c.b16 %v2563, %v2562
  %v2588 = vpack.c.b16 %v2565, %v2564
  %v2589 = vpack.c.b16 %v2567, %v2566
  %v2590 = vpack.c.b16 %v2569, %v2568
  %v2591 = vpack.c.b16 %v2571, %v2570
  %v2592 = vpack.c.b16 %v2573, %v2572
  %v2593 = vpack.c.b16 %v2575, %v2574
  %v2594 = vpack.c.b16 %v2577, %v2576
  %v2595 = vpack.c.b16 %v2579, %v2578
  %v2597 = vshrl.u32 %v2580, 16
  %v2599 = vrot.slane %v2597, 7
  %v2600 = vshll.u32 %v2580, 16
  %v2602 = vor.u32 %v2599, %v2600
  %v2604 = vshrl.u32 %v2581, 16
  %v2606 = vrot.slane %v2604, 7
  %v2607 = vshll.u32 %v2581, 16
  %v2609 = vor.u32 %v2606, %v2607
  %v2611 = vshrl.u32 %v2582, 16
  %v2613 = vrot.slane %v2611, 7
  %v2614 = vshll.u32 %v2582, 16
  %v2616 = vor.u32 %v2613, %v2614
  %v2618 = vshrl.u32 %v2583, 16
  %v2620 = vrot.slane %v2618, 7
  %v2621 = vshll.u32 %v2583, 16
  %v2623 = vor.u32 %v2620, %v2621
  %v2625 = vshrl.u32 %v2584, 16
  %v2627 = vrot.slane %v2625, 7
  %v2628 = vshll.u32 %v2584, 16
  %v2630 = vor.u32 %v2627, %v2628
  %v2632 = vshrl.u32 %v2585, 16
  %v2634 = vrot.slane %v2632, 7
  %v2635 = vshll.u32 %v2585, 16
  %v2637 = vor.u32 %v2634, %v2635
  %v2639 = vshrl.u32 %v2586, 16
  %v2641 = vrot.slane %v2639, 7
  %v2642 = vshll.u32 %v2586, 16
  %v2644 = vor.u32 %v2641, %v2642
  %v2646 = vshrl.u32 %v2587, 16
  %v2648 = vrot.slane %v2646, 7
  %v2649 = vshll.u32 %v2587, 16
  %v2651 = vor.u32 %v2648, %v2649
  %v2653 = vshrl.u32 %v2588, 16
  %v2655 = vrot.slane %v2653, 7
  %v2656 = vshll.u32 %v2588, 16
  %v2658 = vor.u32 %v2655, %v2656
  %v2660 = vshrl.u32 %v2589, 16
  %v2662 = vrot.slane %v2660, 7
  %v2663 = vshll.u32 %v2589, 16
  %v2665 = vor.u32 %v2662, %v2663
  %v2667 = vshrl.u32 %v2590, 16
  %v2669 = vrot.slane %v2667, 7
  %v2670 = vshll.u32 %v2590, 16
  %v2672 = vor.u32 %v2669, %v2670
  %v2674 = vshrl.u32 %v2591, 16
  %v2676 = vrot.slane %v2674, 7
  %v2677 = vshll.u32 %v2591, 16
  %v2679 = vor.u32 %v2676, %v2677
  %v2681 = vshrl.u32 %v2592, 16
  %v2683 = vrot.slane %v2681, 7
  %v2684 = vshll.u32 %v2592, 16
  %v2686 = vor.u32 %v2683, %v2684
  %v2688 = vshrl.u32 %v2593, 16
  %v2690 = vrot.slane %v2688, 7
  %v2691 = vshll.u32 %v2593, 16
  %v2693 = vor.u32 %v2690, %v2691
  %v2695 = vshrl.u32 %v2594, 16
  %v2697 = vrot.slane %v2695, 7
  %v2698 = vshll.u32 %v2594, 16
  %v2700 = vor.u32 %v2697, %v2698
  %v2702 = vshrl.u32 %v2595, 16
  %v2704 = vrot.slane %v2702, 7
  %v2705 = vshll.u32 %v2595, 16
  %v2707 = vor.u32 %v2704, %v2705
  %v2740 = vsel %vm425, 0, %v2602
  %v2741 = vsel %vm425, 0, %v2609
  %v2742 = vsel %vm425, 0, %v2616
  %v2743 = vsel %vm425, 0, %v2623
  %v2744 = vsel %vm425, 0, %v2630
  %v2745 = vsel %vm425, 0, %v2637
  %v2746 = vsel %vm425, 0, %v2644
  %v2747 = vsel %vm425, 0, %v2651
  %v2748 = vsel %vm425, 0, %v2658
  %v2749 = vsel %vm425, 0, %v2665
  %v2750 = vsel %vm425, 0, %v2672
  %v2751 = vsel %vm425, 0, %v2679
  %v2752 = vsel %vm425, 0, %v2686
  %v2753 = vsel %vm425, 0, %v2693
  %v2754 = vsel %vm425, 0, %v2700
  %v2755 = vsel %vm425, 0, %v2707
  %v2756 = vsel %vm425, %v2599, 0
  %v2757 = vsel %vm425, %v2606, 0
  %v2758 = vsel %vm425, %v2613, 0
  %v2759 = vsel %vm425, %v2620, 0
  %v2760 = vsel %vm425, %v2627, 0
  %v2761 = vsel %vm425, %v2634, 0
  %v2762 = vsel %vm425, %v2641, 0
  %v2763 = vsel %vm425, %v2648, 0
  %v2764 = vsel %vm425, %v2655, 0
  %v2765 = vsel %vm425, %v2662, 0
  %v2766 = vsel %vm425, %v2669, 0
  %v2767 = vsel %vm425, %v2676, 0
  %v2768 = vsel %vm425, %v2683, 0
  %v2769 = vsel %vm425, %v2690, 0
  %v2770 = vsel %vm425, %v2697, 0
  %v2771 = vsel %vm425, %v2704, 0
  %v2773 = vshrl.u32 %v2740, 16
  %v2775 = vshll.u32 %v2740, 16
  %v2777 = vrot.slane %v2775, 1
  %v2778 = vor.u32 %v2773, %v2777
  %v2780 = vshll.u32 %v2756, 16
  %v2782 = vrot.slane %v2780, 1
  %v2783 = vsel %vm460, %v2778, %v2782
  %v2785 = vshrl.u32 %v2741, 16
  %v2787 = vshll.u32 %v2741, 16
  %v2789 = vrot.slane %v2787, 1
  %v2790 = vor.u32 %v2785, %v2789
  %v2792 = vshll.u32 %v2757, 16
  %v2794 = vrot.slane %v2792, 1
  %v2795 = vsel %vm460, %v2790, %v2794
  %v2797 = vshrl.u32 %v2742, 16
  %v2799 = vshll.u32 %v2742, 16
  %v2801 = vrot.slane %v2799, 1
  %v2802 = vor.u32 %v2797, %v2801
  %v2804 = vshll.u32 %v2758, 16
  %v2806 = vrot.slane %v2804, 1
  %v2807 = vsel %vm460, %v2802, %v2806
  %v2809 = vshrl.u32 %v2743, 16
  %v2811 = vshll.u32 %v2743, 16
  %v2813 = vrot.slane %v2811, 1
  %v2814 = vor.u32 %v2809, %v2813
  %v2816 = vshll.u32 %v2759, 16
  %v2818 = vrot.slane %v2816, 1
  %v2819 = vsel %vm460, %v2814, %v2818
  %v2821 = vshrl.u32 %v2744, 16
  %v2823 = vshll.u32 %v2744, 16
  %v2825 = vrot.slane %v2823, 1
  %v2826 = vor.u32 %v2821, %v2825
  %v2828 = vshll.u32 %v2760, 16
  %v2830 = vrot.slane %v2828, 1
  %v2831 = vsel %vm460, %v2826, %v2830
  %v2833 = vshrl.u32 %v2745, 16
  %v2835 = vshll.u32 %v2745, 16
  %v2837 = vrot.slane %v2835, 1
  %v2838 = vor.u32 %v2833, %v2837
  %v2840 = vshll.u32 %v2761, 16
  %v2842 = vrot.slane %v2840, 1
  %v2843 = vsel %vm460, %v2838, %v2842
  %v2845 = vshrl.u32 %v2746, 16
  %v2847 = vshll.u32 %v2746, 16
  %v2849 = vrot.slane %v2847, 1
  %v2850 = vor.u32 %v2845, %v2849
  %v2852 = vshll.u32 %v2762, 16
  %v2854 = vrot.slane %v2852, 1
  %v2855 = vsel %vm460, %v2850, %v2854
  %v2857 = vshrl.u32 %v2747, 16
  %v2859 = vshll.u32 %v2747, 16
  %v2861 = vrot.slane %v2859, 1
  %v2862 = vor.u32 %v2857, %v2861
  %v2864 = vshll.u32 %v2763, 16
  %v2866 = vrot.slane %v2864, 1
  %v2867 = vsel %vm460, %v2862, %v2866
  %v2869 = vshrl.u32 %v2748, 16
  %v2871 = vshll.u32 %v2748, 16
  %v2873 = vrot.slane %v2871, 1
  %v2874 = vor.u32 %v2869, %v2873
  %v2876 = vshll.u32 %v2764, 16
  %v2878 = vrot.slane %v2876, 1
  %v2879 = vsel %vm460, %v2874, %v2878
  %v2881 = vshrl.u32 %v2749, 16
  %v2883 = vshll.u32 %v2749, 16
  %v2885 = vrot.slane %v2883, 1
  %v2886 = vor.u32 %v2881, %v2885
  %v2888 = vshll.u32 %v2765, 16
  %v2890 = vrot.slane %v2888, 1
  %v2891 = vsel %vm460, %v2886, %v2890
  %v2893 = vshrl.u32 %v2750, 16
  %v2895 = vshll.u32 %v2750, 16
  %v2897 = vrot.slane %v2895, 1
  %v2898 = vor.u32 %v2893, %v2897
  %v2900 = vshll.u32 %v2766, 16
  %v2902 = vrot.slane %v2900, 1
  %v2903 = vsel %vm460, %v2898, %v2902
  %v2905 = vshrl.u32 %v2751, 16
  %v2907 = vshll.u32 %v2751, 16
  %v2909 = vrot.slane %v2907, 1
  %v2910 = vor.u32 %v2905, %v2909
  %v2912 = vshll.u32 %v2767, 16
  %v2914 = vrot.slane %v2912, 1
  %v2915 = vsel %vm460, %v2910, %v2914
  %v2917 = vshrl.u32 %v2752, 16
  %v2919 = vshll.u32 %v2752, 16
  %v2921 = vrot.slane %v2919, 1
  %v2922 = vor.u32 %v2917, %v2921
  %v2924 = vshll.u32 %v2768, 16
  %v2926 = vrot.slane %v2924, 1
  %v2927 = vsel %vm460, %v2922, %v2926
  %v2929 = vshrl.u32 %v2753, 16
  %v2931 = vshll.u32 %v2753, 16
  %v2933 = vrot.slane %v2931, 1
  %v2934 = vor.u32 %v2929, %v2933
  %v2936 = vshll.u32 %v2769, 16
  %v2938 = vrot.slane %v2936, 1
  %v2939 = vsel %vm460, %v2934, %v2938
  %v2941 = vshrl.u32 %v2754, 16
  %v2943 = vshll.u32 %v2754, 16
  %v2945 = vrot.slane %v2943, 1
  %v2946 = vor.u32 %v2941, %v2945
  %v2948 = vshll.u32 %v2770, 16
  %v2950 = vrot.slane %v2948, 1
  %v2951 = vsel %vm460, %v2946, %v2950
  %v2953 = vshrl.u32 %v2755, 16
  %v2955 = vshll.u32 %v2755, 16
  %v2957 = vrot.slane %v2955, 1
  %v2958 = vor.u32 %v2953, %v2957
  %v2960 = vshll.u32 %v2771, 16
  %v2962 = vrot.slane %v2960, 1
  %v2963 = vsel %vm460, %v2958, %v2962
  %2980 = vmatprep.subr.bf16.mxu0 0
  %2981 = vmatpush1.bf16.msra.mxu0 %v778
  %2982 = vmatprep.subr.bf16.mxu0 0
  %2983 = vmatpush1.bf16.msra.mxu0 %v779
  %2984 = vmatprep.subr.bf16.mxu0 0
  %2985 = vmatpush1.bf16.msra.mxu0 %v780
  %2986 = vmatprep.subr.bf16.mxu0 0
  %2987 = vmatpush1.bf16.msra.mxu0 %v781
  %2988 = vmatprep.subr.bf16.mxu0 0
  %2989 = vmatpush1.bf16.msra.mxu0 %v782
  %2990 = vmatprep.subr.bf16.mxu0 0
  %2991 = vmatpush1.bf16.msra.mxu0 %v783
  %2992 = vmatprep.subr.bf16.mxu0 0
  %2993 = vmatpush1.bf16.msra.mxu0 %v784
  %2994 = vmatprep.subr.bf16.mxu0 0
  %2995 = vmatpush1.bf16.msra.mxu0 %v785
  %2996 = vmatprep.subr.bf16.mxu0 0
  %2997 = vmatpush1.bf16.msra.mxu0 %v786
  %2998 = vmatprep.subr.bf16.mxu0 0
  %2999 = vmatpush1.bf16.msra.mxu0 %v787
  %3000 = vmatprep.subr.bf16.mxu0 0
  %3001 = vmatpush1.bf16.msra.mxu0 %v788
  %3002 = vmatprep.subr.bf16.mxu0 0
  %3003 = vmatpush1.bf16.msra.mxu0 %v789
  %3004 = vmatprep.subr.bf16.mxu0 0
  %3005 = vmatpush1.bf16.msra.mxu0 %v790
  %3006 = vmatprep.subr.bf16.mxu0 0
  %3007 = vmatpush1.bf16.msra.mxu0 %v791
  %3008 = vmatprep.subr.bf16.mxu0 0
  %3009 = vmatpush1.bf16.msra.mxu0 %v792
  %3010 = vmatprep.subr.bf16.mxu0 0
  %3011 = vmatpush1.bf16.msra.mxu0 %v793
  %3012 = vmatprep.mubr.bf16.mxu0 %v2783
  %3013 = vmatmul.mubr.bf16.gmra.mrb[0].mxu0 %v472
  %v3014 = vpop.f32.mrb[0].mxu0
  %v3015 = vadd.f32 0.0, %v3014
  %v3016 = vpop.f32.mrb[0].mxu0
  %v3017 = vpop.f32.mrb[0].mxu0
  %v3018 = vadd.f32 0.0, %v3017
  %v3019 = vpop.f32.mrb[0].mxu0
  %3020 = vmatprep.mubr.bf16.mxu0 %v2795
  %3021 = vmatmul.mubr.bf16.gmra.mrb[0].mxu0 %v2783
  %v3022 = vpop.f32.mrb[0].mxu0
  %v3023 = vadd.f32 0.0, %v3022
  %v3024 = vpop.f32.mrb[0].mxu0
  %v3025 = vpop.f32.mrb[0].mxu0
  %v3026 = vadd.f32 0.0, %v3025
  %v3027 = vpop.f32.mrb[0].mxu0
  %3028 = vmatprep.mubr.bf16.mxu0 %v2807
  %3029 = vmatmul.mubr.bf16.gmra.mrb[0].mxu0 %v2795
  %v3030 = vpop.f32.mrb[0].mxu0
  %v3031 = vadd.f32 0.0, %v3030
  %v3032 = vpop.f32.mrb[0].mxu0
  %v3033 = vpop.f32.mrb[0].mxu0
  %v3034 = vadd.f32 0.0, %v3033
  %v3035 = vpop.f32.mrb[0].mxu0
  %3036 = vmatprep.mubr.bf16.mxu0 %v2819
  %3037 = vmatmul.mubr.bf16.gmra.mrb[0].mxu0 %v2807
  %v3038 = vpop.f32.mrb[0].mxu0
  %v3039 = vadd.f32 0.0, %v3038
  %v3040 = vpop.f32.mrb[0].mxu0
  %v3041 = vpop.f32.mrb[0].mxu0
  %v3042 = vadd.f32 0.0, %v3041
  %v3043 = vpop.f32.mrb[0].mxu0
  %3044 = vmatprep.mubr.bf16.mxu0 %v2831
  %3045 = vmatmul.mubr.bf16.gmra.mrb[0].mxu0 %v2819
  %v3046 = vpop.f32.mrb[0].mxu0
  %v3047 = vadd.f32 0.0, %v3046
  %v3048 = vpop.f32.mrb[0].mxu0
  %v3049 = vpop.f32.mrb[0].mxu0
  %v3050 = vadd.f32 0.0, %v3049
  %v3051 = vpop.f32.mrb[0].mxu0
  %3052 = vmatprep.mubr.bf16.mxu0 %v2843
  %3053 = vmatmul.mubr.bf16.gmra.mrb[0].mxu0 %v2831
  %v3054 = vpop.f32.mrb[0].mxu0
  %v3055 = vadd.f32 0.0, %v3054
  %v3056 = vpop.f32.mrb[0].mxu0
  %v3057 = vpop.f32.mrb[0].mxu0
  %v3058 = vadd.f32 0.0, %v3057
  %v3059 = vpop.f32.mrb[0].mxu0
  %3060 = vmatprep.mubr.bf16.mxu0 %v2855
  %3061 = vmatmul.mubr.bf16.gmra.mrb[0].mxu0 %v2843
  %v3062 = vpop.f32.mrb[0].mxu0
  %v3063 = vadd.f32 0.0, %v3062
  %v3064 = vpop.f32.mrb[0].mxu0
  %v3065 = vpop.f32.mrb[0].mxu0
  %v3066 = vadd.f32 0.0, %v3065
  %v3067 = vpop.f32.mrb[0].mxu0
  %3068 = vmatprep.mubr.bf16.mxu0 %v2867
  %3069 = vmatmul.mubr.bf16.gmra.mrb[0].mxu0 %v2855
  %v3070 = vpop.f32.mrb[0].mxu0
  %v3071 = vadd.f32 0.0, %v3070
  %v3072 = vpop.f32.mrb[0].mxu0
  %v3073 = vpop.f32.mrb[0].mxu0
  %v3074 = vadd.f32 0.0, %v3073
  %v3075 = vpop.f32.mrb[0].mxu0
  %3076 = vmatprep.mubr.bf16.mxu0 %v2879
  %3077 = vmatmul.mubr.bf16.gmra.mrb[0].mxu0 %v2867
  %v3078 = vpop.f32.mrb[0].mxu0
  %v3079 = vadd.f32 0.0, %v3078
  %v3080 = vpop.f32.mrb[0].mxu0
  %v3081 = vpop.f32.mrb[0].mxu0
  %v3082 = vadd.f32 0.0, %v3081
  %v3083 = vpop.f32.mrb[0].mxu0
  %3084 = vmatprep.mubr.bf16.mxu0 %v2891
  %3085 = vmatmul.mubr.bf16.gmra.mrb[0].mxu0 %v2879
  %v3086 = vpop.f32.mrb[0].mxu0
  %v3087 = vadd.f32 0.0, %v3086
  %v3088 = vpop.f32.mrb[0].mxu0
  %v3089 = vpop.f32.mrb[0].mxu0
  %v3090 = vadd.f32 0.0, %v3089
  %v3091 = vpop.f32.mrb[0].mxu0
  %3092 = vmatprep.mubr.bf16.mxu0 %v2903
  %3093 = vmatmul.mubr.bf16.gmra.mrb[0].mxu0 %v2891
  %v3094 = vpop.f32.mrb[0].mxu0
  %v3095 = vadd.f32 0.0, %v3094
  %v3096 = vpop.f32.mrb[0].mxu0
  %v3097 = vpop.f32.mrb[0].mxu0
  %v3098 = vadd.f32 0.0, %v3097
  %v3099 = vpop.f32.mrb[0].mxu0
  %3100 = vmatprep.mubr.bf16.mxu0 %v2915
  %3101 = vmatmul.mubr.bf16.gmra.mrb[0].mxu0 %v2903
  %v3102 = vpop.f32.mrb[0].mxu0
  %v3103 = vadd.f32 0.0, %v3102
  %v3104 = vpop.f32.mrb[0].mxu0
  %v3105 = vpop.f32.mrb[0].mxu0
  %v3106 = vadd.f32 0.0, %v3105
  %v3107 = vpop.f32.mrb[0].mxu0
  %3108 = vmatprep.mubr.bf16.mxu0 %v2927
  %3109 = vmatmul.mubr.bf16.gmra.mrb[0].mxu0 %v2915
  %v3110 = vpop.f32.mrb[0].mxu0
  %v3111 = vadd.f32 0.0, %v3110
  %v3112 = vpop.f32.mrb[0].mxu0
  %v3113 = vpop.f32.mrb[0].mxu0
  %v3114 = vadd.f32 0.0, %v3113
  %v3115 = vpop.f32.mrb[0].mxu0
  %3116 = vmatprep.mubr.bf16.mxu0 %v2939
  %3117 = vmatmul.mubr.bf16.gmra.mrb[0].mxu0 %v2927
  %v3118 = vpop.f32.mrb[0].mxu0
  %v3119 = vadd.f32 0.0, %v3118
  %v3120 = vpop.f32.mrb[0].mxu0
  %v3121 = vpop.f32.mrb[0].mxu0
  %v3122 = vadd.f32 0.0, %v3121
  %v3123 = vpop.f32.mrb[0].mxu0
  %3124 = vmatprep.mubr.bf16.mxu0 %v2951
  %3125 = vmatmul.mubr.bf16.gmra.mrb[0].mxu0 %v2939
  %v3126 = vpop.f32.mrb[0].mxu0
  %v3127 = vadd.f32 0.0, %v3126
  %v3128 = vpop.f32.mrb[0].mxu0
  %v3129 = vpop.f32.mrb[0].mxu0
  %v3130 = vadd.f32 0.0, %v3129
  %v3131 = vpop.f32.mrb[0].mxu0
  %3132 = vmatprep.mubr.bf16.mxu0 %v2963
  %3133 = vmatmul.mubr.bf16.gmra.mrb[0].mxu0 %v2951
  %v3134 = vpop.f32.mrb[0].mxu0
  %v3135 = vadd.f32 0.0, %v3134
  %v3136 = vpop.f32.mrb[0].mxu0
  %v3137 = vpop.f32.mrb[0].mxu0
  %v3138 = vadd.f32 0.0, %v3137
  %v3139 = vpop.f32.mrb[0].mxu0
  %3140 = vdwg.mxu0
  %3141 = vmatprep.subr.bf16.mxu0 0
  %3142 = vmatpush1.bf16.msra.mxu0 %v794
  %3143 = vmatprep.subr.bf16.mxu0 0
  %3144 = vmatpush1.bf16.msra.mxu0 %v795
  %3145 = vmatprep.subr.bf16.mxu0 0
  %3146 = vmatpush1.bf16.msra.mxu0 %v796
  %3147 = vmatprep.subr.bf16.mxu0 0
  %3148 = vmatpush1.bf16.msra.mxu0 %v797
  %3149 = vmatprep.subr.bf16.mxu0 0
  %3150 = vmatpush1.bf16.msra.mxu0 %v798
  %3151 = vmatprep.subr.bf16.mxu0 0
  %3152 = vmatpush1.bf16.msra.mxu0 %v799
  %3153 = vmatprep.subr.bf16.mxu0 0
  %3154 = vmatpush1.bf16.msra.mxu0 %v800
  %3155 = vmatprep.subr.bf16.mxu0 0
  %3156 = vmatpush1.bf16.msra.mxu0 %v801
  %3157 = vmatprep.subr.bf16.mxu0 0
  %3158 = vmatpush1.bf16.msra.mxu0 0
  %3159 = vmatprep.subr.bf16.mxu0 0
  %3160 = vmatpush1.bf16.msra.mxu0 0
  %3161 = vmatprep.subr.bf16.mxu0 0
  %3162 = vmatpush1.bf16.msra.mxu0 0
  %3163 = vmatprep.subr.bf16.mxu0 0
  %3164 = vmatpush1.bf16.msra.mxu0 0
  %3165 = vmatprep.subr.bf16.mxu0 0
  %3166 = vmatpush1.bf16.msra.mxu0 0
  %3167 = vmatprep.subr.bf16.mxu0 0
  %3168 = vmatpush1.bf16.msra.mxu0 0
  %3169 = vmatprep.subr.bf16.mxu0 0
  %3170 = vmatpush1.bf16.msra.mxu0 0
  %3171 = vmatprep.subr.bf16.mxu0 0
  %3172 = vmatpush1.bf16.msra.mxu0 0
  %3173 = vmatprep.mubr.bf16.mxu0 0
  %3174 = vmatmul.mubr.bf16.gmra.mrb[0].mxu0 %v2795
  %v3175 = vpop.f32.mrb[0].mxu0
  %v3176 = vadd.f32 %v3015, %v3175
  %v3177 = vpop.f32.mrb[0].mxu0
  %v3178 = vpop.f32.mrb[0].mxu0
  %v3179 = vadd.f32 %v3018, %v3178
  %v3180 = vpop.f32.mrb[0].mxu0
  %3181 = vmatprep.mubr.bf16.mxu0 0
  %3182 = vmatmul.mubr.bf16.gmra.mrb[0].mxu0 %v2807
  %v3183 = vpop.f32.mrb[0].mxu0
  %v3184 = vadd.f32 %v3023, %v3183
  %v3185 = vpop.f32.mrb[0].mxu0
  %v3186 = vpop.f32.mrb[0].mxu0
  %v3187 = vadd.f32 %v3026, %v3186
  %v3188 = vpop.f32.mrb[0].mxu0
  %3189 = vmatprep.mubr.bf16.mxu0 0
  %3190 = vmatmul.mubr.bf16.gmra.mrb[0].mxu0 %v2819
  %v3191 = vpop.f32.mrb[0].mxu0
  %v3192 = vadd.f32 %v3031, %v3191
  %v3193 = vpop.f32.mrb[0].mxu0
  %v3194 = vpop.f32.mrb[0].mxu0
  %v3195 = vadd.f32 %v3034, %v3194
  %v3196 = vpop.f32.mrb[0].mxu0
  %3197 = vmatprep.mubr.bf16.mxu0 0
  %3198 = vmatmul.mubr.bf16.gmra.mrb[0].mxu0 %v2831
  %v3199 = vpop.f32.mrb[0].mxu0
  %v3200 = vadd.f32 %v3039, %v3199
  %v3201 = vpop.f32.mrb[0].mxu0
  %v3202 = vpop.f32.mrb[0].mxu0
  %v3203 = vadd.f32 %v3042, %v3202
  %v3204 = vpop.f32.mrb[0].mxu0
  %3205 = vmatprep.mubr.bf16.mxu0 0
  %3206 = vmatmul.mubr.bf16.gmra.mrb[0].mxu0 %v2843
  %v3207 = vpop.f32.mrb[0].mxu0
  %v3208 = vadd.f32 %v3047, %v3207
  %v3209 = vpop.f32.mrb[0].mxu0
  %v3210 = vpop.f32.mrb[0].mxu0
  %v3211 = vadd.f32 %v3050, %v3210
  %v3212 = vpop.f32.mrb[0].mxu0
  %3213 = vmatprep.mubr.bf16.mxu0 0
  %3214 = vmatmul.mubr.bf16.gmra.mrb[0].mxu0 %v2855
  %v3215 = vpop.f32.mrb[0].mxu0
  %v3216 = vadd.f32 %v3055, %v3215
  %v3217 = vpop.f32.mrb[0].mxu0
  %v3218 = vpop.f32.mrb[0].mxu0
  %v3219 = vadd.f32 %v3058, %v3218
  %v3220 = vpop.f32.mrb[0].mxu0
  %3221 = vmatprep.mubr.bf16.mxu0 0
  %3222 = vmatmul.mubr.bf16.gmra.mrb[0].mxu0 %v2867
  %v3223 = vpop.f32.mrb[0].mxu0
  %v3224 = vadd.f32 %v3063, %v3223
  %v3225 = vpop.f32.mrb[0].mxu0
  %v3226 = vpop.f32.mrb[0].mxu0
  %v3227 = vadd.f32 %v3066, %v3226
  %v3228 = vpop.f32.mrb[0].mxu0
  %3229 = vmatprep.mubr.bf16.mxu0 0
  %3230 = vmatmul.mubr.bf16.gmra.mrb[0].mxu0 %v2879
  %v3231 = vpop.f32.mrb[0].mxu0
  %v3232 = vadd.f32 %v3071, %v3231
  %v3233 = vpop.f32.mrb[0].mxu0
  %v3234 = vpop.f32.mrb[0].mxu0
  %v3235 = vadd.f32 %v3074, %v3234
  %v3236 = vpop.f32.mrb[0].mxu0
  %3237 = vmatprep.mubr.bf16.mxu0 0
  %3238 = vmatmul.mubr.bf16.gmra.mrb[0].mxu0 %v2891
  %v3239 = vpop.f32.mrb[0].mxu0
  %v3240 = vadd.f32 %v3079, %v3239
  %v3241 = vpop.f32.mrb[0].mxu0
  %v3242 = vpop.f32.mrb[0].mxu0
  %v3243 = vadd.f32 %v3082, %v3242
  %v3244 = vpop.f32.mrb[0].mxu0
  %3245 = vmatprep.mubr.bf16.mxu0 0
  %3246 = vmatmul.mubr.bf16.gmra.mrb[0].mxu0 %v2903
  %v3247 = vpop.f32.mrb[0].mxu0
  %v3248 = vadd.f32 %v3087, %v3247
  %v3249 = vpop.f32.mrb[0].mxu0
  %v3250 = vpop.f32.mrb[0].mxu0
  %v3251 = vadd.f32 %v3090, %v3250
  %v3252 = vpop.f32.mrb[0].mxu0
  %3253 = vmatprep.mubr.bf16.mxu0 0
  %3254 = vmatmul.mubr.bf16.gmra.mrb[0].mxu0 %v2915
  %v3255 = vpop.f32.mrb[0].mxu0
  %v3256 = vadd.f32 %v3095, %v3255
  %v3257 = vpop.f32.mrb[0].mxu0
  %v3258 = vpop.f32.mrb[0].mxu0
  %v3259 = vadd.f32 %v3098, %v3258
  %v3260 = vpop.f32.mrb[0].mxu0
  %3261 = vmatprep.mubr.bf16.mxu0 0
  %3262 = vmatmul.mubr.bf16.gmra.mrb[0].mxu0 %v2927
  %v3263 = vpop.f32.mrb[0].mxu0
  %v3264 = vadd.f32 %v3103, %v3263
  %v3265 = vpop.f32.mrb[0].mxu0
  %v3266 = vpop.f32.mrb[0].mxu0
  %v3267 = vadd.f32 %v3106, %v3266
  %v3268 = vpop.f32.mrb[0].mxu0
  %3269 = vmatprep.mubr.bf16.mxu0 0
  %3270 = vmatmul.mubr.bf16.gmra.mrb[0].mxu0 %v2939
  %v3271 = vpop.f32.mrb[0].mxu0
  %v3272 = vadd.f32 %v3111, %v3271
  %v3273 = vpop.f32.mrb[0].mxu0
  %v3274 = vpop.f32.mrb[0].mxu0
  %v3275 = vadd.f32 %v3114, %v3274
  %v3276 = vpop.f32.mrb[0].mxu0
  %3277 = vmatprep.mubr.bf16.mxu0 0
  %3278 = vmatmul.mubr.bf16.gmra.mrb[0].mxu0 %v2951
  %v3279 = vpop.f32.mrb[0].mxu0
  %v3280 = vadd.f32 %v3119, %v3279
  %v3281 = vpop.f32.mrb[0].mxu0
  %v3282 = vpop.f32.mrb[0].mxu0
  %v3283 = vadd.f32 %v3122, %v3282
  %v3284 = vpop.f32.mrb[0].mxu0
  %3285 = vmatprep.mubr.bf16.mxu0 0
  %3286 = vmatmul.mubr.bf16.gmra.mrb[0].mxu0 %v2963
  %v3287 = vpop.f32.mrb[0].mxu0
  %v3288 = vadd.f32 %v3127, %v3287
  %v3289 = vpop.f32.mrb[0].mxu0
  %v3290 = vpop.f32.mrb[0].mxu0
  %v3291 = vadd.f32 %v3130, %v3290
  %v3292 = vpop.f32.mrb[0].mxu0
  %3293 = vmatprep.mubr.bf16.mxu0 0
  %3294 = vmatmul.mubr.bf16.gmra.mrb[0].mxu0 %v472
  %v3295 = vpop.f32.mrb[0].mxu0
  %v3296 = vadd.f32 %v3135, %v3295
  %v3297 = vpop.f32.mrb[0].mxu0
  %v3298 = vpop.f32.mrb[0].mxu0
  %v3299 = vadd.f32 %v3138, %v3298
  %v3300 = vpop.f32.mrb[0].mxu0
  %3301 = vdwg.mxu0
  %3302 = vmatprep.subr.bf16.mxu0 0
  %3303 = vmatpush1.bf16.msra.mxu0 %v1244
  %3304 = vmatprep.subr.bf16.mxu0 0
  %3305 = vmatpush1.bf16.msra.mxu0 %v1245
  %3306 = vmatprep.subr.bf16.mxu0 0
  %3307 = vmatpush1.bf16.msra.mxu0 %v1246
  %3308 = vmatprep.subr.bf16.mxu0 0
  %3309 = vmatpush1.bf16.msra.mxu0 %v1247
  %3310 = vmatprep.subr.bf16.mxu0 0
  %3311 = vmatpush1.bf16.msra.mxu0 %v1248
  %3312 = vmatprep.subr.bf16.mxu0 0
  %3313 = vmatpush1.bf16.msra.mxu0 %v1249
  %3314 = vmatprep.subr.bf16.mxu0 0
  %3315 = vmatpush1.bf16.msra.mxu0 %v1250
  %3316 = vmatprep.subr.bf16.mxu0 0
  %3317 = vmatpush1.bf16.msra.mxu0 %v1251
  %3318 = vmatprep.subr.bf16.mxu0 0
  %3319 = vmatpush1.bf16.msra.mxu0 %v1252
  %3320 = vmatprep.subr.bf16.mxu0 0
  %3321 = vmatpush1.bf16.msra.mxu0 %v1253
  %3322 = vmatprep.subr.bf16.mxu0 0
  %3323 = vmatpush1.bf16.msra.mxu0 %v1254
  %3324 = vmatprep.subr.bf16.mxu0 0
  %3325 = vmatpush1.bf16.msra.mxu0 %v1255
  %3326 = vmatprep.subr.bf16.mxu0 0
  %3327 = vmatpush1.bf16.msra.mxu0 %v1256
  %3328 = vmatprep.subr.bf16.mxu0 0
  %3329 = vmatpush1.bf16.msra.mxu0 %v1257
  %3330 = vmatprep.subr.bf16.mxu0 0
  %3331 = vmatpush1.bf16.msra.mxu0 %v1258
  %3332 = vmatprep.subr.bf16.mxu0 0
  %3333 = vmatpush1.bf16.msra.mxu0 %v1259
  %3334 = vmatprep.mubr.bf16.mxu0 %v2740
  %3335 = vmatmul.mubr.bf16.gmra.mrb[0].mxu0 %v426
  %v3336 = vpop.f32.mrb[0].mxu0
  %v3337 = vadd.f32 %v3176, %v3336
  %v3338 = vpop.f32.mrb[0].mxu0
  %v3339 = vpop.f32.mrb[0].mxu0
  %v3340 = vadd.f32 %v3179, %v3339
  %v3341 = vpop.f32.mrb[0].mxu0
  %3342 = vmatprep.mubr.bf16.mxu0 %v2741
  %3343 = vmatmul.mubr.bf16.gmra.mrb[0].mxu0 %v2740
  %v3344 = vpop.f32.mrb[0].mxu0
  %v3345 = vadd.f32 %v3184, %v3344
  %v3346 = vpop.f32.mrb[0].mxu0
  %v3347 = vpop.f32.mrb[0].mxu0
  %v3348 = vadd.f32 %v3187, %v3347
  %v3349 = vpop.f32.mrb[0].mxu0
  %3350 = vmatprep.mubr.bf16.mxu0 %v2742
  %3351 = vmatmul.mubr.bf16.gmra.mrb[0].mxu0 %v2741
  %v3352 = vpop.f32.mrb[0].mxu0
  %v3353 = vadd.f32 %v3192, %v3352
  %v3354 = vpop.f32.mrb[0].mxu0
  %v3355 = vpop.f32.mrb[0].mxu0
  %v3356 = vadd.f32 %v3195, %v3355
  %v3357 = vpop.f32.mrb[0].mxu0
  %3358 = vmatprep.mubr.bf16.mxu0 %v2743
  %3359 = vmatmul.mubr.bf16.gmra.mrb[0].mxu0 %v2742
  %v3360 = vpop.f32.mrb[0].mxu0
  %v3361 = vadd.f32 %v3200, %v3360
  %v3362 = vpop.f32.mrb[0].mxu0
  %v3363 = vpop.f32.mrb[0].mxu0
  %v3364 = vadd.f32 %v3203, %v3363
  %v3365 = vpop.f32.mrb[0].mxu0
  %3366 = vmatprep.mubr.bf16.mxu0 %v2744
  %3367 = vmatmul.mubr.bf16.gmra.mrb[0].mxu0 %v2743
  %v3368 = vpop.f32.mrb[0].mxu0
  %v3369 = vadd.f32 %v3208, %v3368
  %v3370 = vpop.f32.mrb[0].mxu0
  %v3371 = vpop.f32.mrb[0].mxu0
  %v3372 = vadd.f32 %v3211, %v3371
  %v3373 = vpop.f32.mrb[0].mxu0
  %3374 = vmatprep.mubr.bf16.mxu0 %v2745
  %3375 = vmatmul.mubr.bf16.gmra.mrb[0].mxu0 %v2744
  %v3376 = vpop.f32.mrb[0].mxu0
  %v3377 = vadd.f32 %v3216, %v3376
  %v3378 = vpop.f32.mrb[0].mxu0
  %v3379 = vpop.f32.mrb[0].mxu0
  %v3380 = vadd.f32 %v3219, %v3379
  %v3381 = vpop.f32.mrb[0].mxu0
  %3382 = vmatprep.mubr.bf16.mxu0 %v2746
  %3383 = vmatmul.mubr.bf16.gmra.mrb[0].mxu0 %v2745
  %v3384 = vpop.f32.mrb[0].mxu0
  %v3385 = vadd.f32 %v3224, %v3384
  %v3386 = vpop.f32.mrb[0].mxu0
  %v3387 = vpop.f32.mrb[0].mxu0
  %v3388 = vadd.f32 %v3227, %v3387
  %v3389 = vpop.f32.mrb[0].mxu0
  %3390 = vmatprep.mubr.bf16.mxu0 %v2747
  %3391 = vmatmul.mubr.bf16.gmra.mrb[0].mxu0 %v2746
  %v3392 = vpop.f32.mrb[0].mxu0
  %v3393 = vadd.f32 %v3232, %v3392
  %v3394 = vpop.f32.mrb[0].mxu0
  %v3395 = vpop.f32.mrb[0].mxu0
  %v3396 = vadd.f32 %v3235, %v3395
  %v3397 = vpop.f32.mrb[0].mxu0
  %3398 = vmatprep.mubr.bf16.mxu0 %v2748
  %3399 = vmatmul.mubr.bf16.gmra.mrb[0].mxu0 %v2747
  %v3400 = vpop.f32.mrb[0].mxu0
  %v3401 = vadd.f32 %v3240, %v3400
  %v3402 = vpop.f32.mrb[0].mxu0
  %v3403 = vpop.f32.mrb[0].mxu0
  %v3404 = vadd.f32 %v3243, %v3403
  %v3405 = vpop.f32.mrb[0].mxu0
  %3406 = vmatprep.mubr.bf16.mxu0 %v2749
  %3407 = vmatmul.mubr.bf16.gmra.mrb[0].mxu0 %v2748
  %v3408 = vpop.f32.mrb[0].mxu0
  %v3409 = vadd.f32 %v3248, %v3408
  %v3410 = vpop.f32.mrb[0].mxu0
  %v3411 = vpop.f32.mrb[0].mxu0
  %v3412 = vadd.f32 %v3251, %v3411
  %v3413 = vpop.f32.mrb[0].mxu0
  %3414 = vmatprep.mubr.bf16.mxu0 %v2750
  %3415 = vmatmul.mubr.bf16.gmra.mrb[0].mxu0 %v2749
  %v3416 = vpop.f32.mrb[0].mxu0
  %v3417 = vadd.f32 %v3256, %v3416
  %v3418 = vpop.f32.mrb[0].mxu0
  %v3419 = vpop.f32.mrb[0].mxu0
  %v3420 = vadd.f32 %v3259, %v3419
  %v3421 = vpop.f32.mrb[0].mxu0
  %3422 = vmatprep.mubr.bf16.mxu0 %v2751
  %3423 = vmatmul.mubr.bf16.gmra.mrb[0].mxu0 %v2750
  %v3424 = vpop.f32.mrb[0].mxu0
  %v3425 = vadd.f32 %v3264, %v3424
  %v3426 = vpop.f32.mrb[0].mxu0
  %v3427 = vpop.f32.mrb[0].mxu0
  %v3428 = vadd.f32 %v3267, %v3427
  %v3429 = vpop.f32.mrb[0].mxu0
  %3430 = vmatprep.mubr.bf16.mxu0 %v2752
  %3431 = vmatmul.mubr.bf16.gmra.mrb[0].mxu0 %v2751
  %v3432 = vpop.f32.mrb[0].mxu0
  %v3433 = vadd.f32 %v3272, %v3432
  %v3434 = vpop.f32.mrb[0].mxu0
  %v3435 = vpop.f32.mrb[0].mxu0
  %v3436 = vadd.f32 %v3275, %v3435
  %v3437 = vpop.f32.mrb[0].mxu0
  %3438 = vmatprep.mubr.bf16.mxu0 %v2753
  %3439 = vmatmul.mubr.bf16.gmra.mrb[0].mxu0 %v2752
  %v3440 = vpop.f32.mrb[0].mxu0
  %v3441 = vadd.f32 %v3280, %v3440
  %v3442 = vpop.f32.mrb[0].mxu0
  %v3443 = vpop.f32.mrb[0].mxu0
  %v3444 = vadd.f32 %v3283, %v3443
  %v3445 = vpop.f32.mrb[0].mxu0
  %3446 = vmatprep.mubr.bf16.mxu0 %v2754
  %3447 = vmatmul.mubr.bf16.gmra.mrb[0].mxu0 %v2753
  %v3448 = vpop.f32.mrb[0].mxu0
  %v3449 = vadd.f32 %v3288, %v3448
  %v3450 = vpop.f32.mrb[0].mxu0
  %v3451 = vpop.f32.mrb[0].mxu0
  %v3452 = vadd.f32 %v3291, %v3451
  %v3453 = vpop.f32.mrb[0].mxu0
  %3454 = vmatprep.mubr.bf16.mxu0 %v2755
  %3455 = vmatmul.mubr.bf16.gmra.mrb[0].mxu0 %v2754
  %v3456 = vpop.f32.mrb[0].mxu0
  %v3457 = vadd.f32 %v3296, %v3456
  %v3458 = vpop.f32.mrb[0].mxu0
  %v3459 = vpop.f32.mrb[0].mxu0
  %v3460 = vadd.f32 %v3299, %v3459
  %v3461 = vpop.f32.mrb[0].mxu0
  %3462 = vdwg.mxu0
  %3463 = vmatprep.subr.bf16.mxu0 0
  %3464 = vmatpush1.bf16.msra.mxu0 %v1260
  %3465 = vmatprep.subr.bf16.mxu0 0
  %3466 = vmatpush1.bf16.msra.mxu0 %v1261
  %3467 = vmatprep.subr.bf16.mxu0 0
  %3468 = vmatpush1.bf16.msra.mxu0 %v1262
  %3469 = vmatprep.subr.bf16.mxu0 0
  %3470 = vmatpush1.bf16.msra.mxu0 %v1263
  %3471 = vmatprep.subr.bf16.mxu0 0
  %3472 = vmatpush1.bf16.msra.mxu0 %v1264
  %3473 = vmatprep.subr.bf16.mxu0 0
  %3474 = vmatpush1.bf16.msra.mxu0 %v1265
  %3475 = vmatprep.subr.bf16.mxu0 0
  %3476 = vmatpush1.bf16.msra.mxu0 %v1266
  %3477 = vmatprep.subr.bf16.mxu0 0
  %3478 = vmatpush1.bf16.msra.mxu0 %v1267
  %3479 = vmatprep.subr.bf16.mxu0 0
  %3480 = vmatpush1.bf16.msra.mxu0 0
  %3481 = vmatprep.subr.bf16.mxu0 0
  %3482 = vmatpush1.bf16.msra.mxu0 0
  %3483 = vmatprep.subr.bf16.mxu0 0
  %3484 = vmatpush1.bf16.msra.mxu0 0
  %3485 = vmatprep.subr.bf16.mxu0 0
  %3486 = vmatpush1.bf16.msra.mxu0 0
  %3487 = vmatprep.subr.bf16.mxu0 0
  %3488 = vmatpush1.bf16.msra.mxu0 0
  %3489 = vmatprep.subr.bf16.mxu0 0
  %3490 = vmatpush1.bf16.msra.mxu0 0
  %3491 = vmatprep.subr.bf16.mxu0 0
  %3492 = vmatpush1.bf16.msra.mxu0 0
  %3493 = vmatprep.subr.bf16.mxu0 0
  %3494 = vmatpush1.bf16.msra.mxu0 0
  %3495 = vmatprep.mubr.bf16.mxu0 0
  %3496 = vmatmul.mubr.bf16.gmra.mrb[0].mxu0 %v2741
  %v3497 = vpop.f32.mrb[0].mxu0
  %v3498 = vadd.f32 %v3337, %v3497
  %v3499 = vpop.f32.mrb[0].mxu0
  %v3500 = vpop.f32.mrb[0].mxu0
  %v3501 = vadd.f32 %v3340, %v3500
  %v3502 = vpop.f32.mrb[0].mxu0
  %3503 = vmatprep.mubr.bf16.mxu0 0
  %3504 = vmatmul.mubr.bf16.gmra.mrb[0].mxu0 %v2742
  %v3505 = vpop.f32.mrb[0].mxu0
  %v3506 = vadd.f32 %v3345, %v3505
  %v3507 = vpop.f32.mrb[0].mxu0
  %v3508 = vpop.f32.mrb[0].mxu0
  %v3509 = vadd.f32 %v3348, %v3508
  %v3510 = vpop.f32.mrb[0].mxu0
  %3511 = vmatprep.mubr.bf16.mxu0 0
  %3512 = vmatmul.mubr.bf16.gmra.mrb[0].mxu0 %v2743
  %v3513 = vpop.f32.mrb[0].mxu0
  %v3514 = vadd.f32 %v3353, %v3513
  %v3515 = vpop.f32.mrb[0].mxu0
  %v3516 = vpop.f32.mrb[0].mxu0
  %v3517 = vadd.f32 %v3356, %v3516
  %v3518 = vpop.f32.mrb[0].mxu0
  %3519 = vmatprep.mubr.bf16.mxu0 0
  %3520 = vmatmul.mubr.bf16.gmra.mrb[0].mxu0 %v2744
  %v3521 = vpop.f32.mrb[0].mxu0
  %v3522 = vadd.f32 %v3361, %v3521
  %v3523 = vpop.f32.mrb[0].mxu0
  %v3524 = vpop.f32.mrb[0].mxu0
  %v3525 = vadd.f32 %v3364, %v3524
  %v3526 = vpop.f32.mrb[0].mxu0
  %3527 = vmatprep.mubr.bf16.mxu0 0
  %3528 = vmatmul.mubr.bf16.gmra.mrb[0].mxu0 %v2745
  %v3529 = vpop.f32.mrb[0].mxu0
  %v3530 = vadd.f32 %v3369, %v3529
  %v3531 = vpop.f32.mrb[0].mxu0
  %v3532 = vpop.f32.mrb[0].mxu0
  %v3533 = vadd.f32 %v3372, %v3532
  %v3534 = vpop.f32.mrb[0].mxu0
  %3535 = vmatprep.mubr.bf16.mxu0 0
  %3536 = vmatmul.mubr.bf16.gmra.mrb[0].mxu0 %v2746
  %v3537 = vpop.f32.mrb[0].mxu0
  %v3538 = vadd.f32 %v3377, %v3537
  %v3539 = vpop.f32.mrb[0].mxu0
  %v3540 = vpop.f32.mrb[0].mxu0
  %v3541 = vadd.f32 %v3380, %v3540
  %v3542 = vpop.f32.mrb[0].mxu0
  %3543 = vmatprep.mubr.bf16.mxu0 0
  %3544 = vmatmul.mubr.bf16.gmra.mrb[0].mxu0 %v2747
  %v3545 = vpop.f32.mrb[0].mxu0
  %v3546 = vadd.f32 %v3385, %v3545
  %v3547 = vpop.f32.mrb[0].mxu0
  %v3548 = vpop.f32.mrb[0].mxu0
  %v3549 = vadd.f32 %v3388, %v3548
  %v3550 = vpop.f32.mrb[0].mxu0
  %3551 = vmatprep.mubr.bf16.mxu0 0
  %3552 = vmatmul.mubr.bf16.gmra.mrb[0].mxu0 %v2748
  %v3553 = vpop.f32.mrb[0].mxu0
  %v3554 = vadd.f32 %v3393, %v3553
  %v3555 = vpop.f32.mrb[0].mxu0
  %v3556 = vpop.f32.mrb[0].mxu0
  %v3557 = vadd.f32 %v3396, %v3556
  %v3558 = vpop.f32.mrb[0].mxu0
  %3559 = vmatprep.mubr.bf16.mxu0 0
  %3560 = vmatmul.mubr.bf16.gmra.mrb[0].mxu0 %v2749
  %v3561 = vpop.f32.mrb[0].mxu0
  %v3562 = vadd.f32 %v3401, %v3561
  %v3563 = vpop.f32.mrb[0].mxu0
  %v3564 = vpop.f32.mrb[0].mxu0
  %v3565 = vadd.f32 %v3404, %v3564
  %v3566 = vpop.f32.mrb[0].mxu0
  %3567 = vmatprep.mubr.bf16.mxu0 0
  %3568 = vmatmul.mubr.bf16.gmra.mrb[0].mxu0 %v2750
  %v3569 = vpop.f32.mrb[0].mxu0
  %v3570 = vadd.f32 %v3409, %v3569
  %v3571 = vpop.f32.mrb[0].mxu0
  %v3572 = vpop.f32.mrb[0].mxu0
  %v3573 = vadd.f32 %v3412, %v3572
  %v3574 = vpop.f32.mrb[0].mxu0
  %3575 = vmatprep.mubr.bf16.mxu0 0
  %3576 = vmatmul.mubr.bf16.gmra.mrb[0].mxu0 %v2751
  %v3577 = vpop.f32.mrb[0].mxu0
  %v3578 = vadd.f32 %v3417, %v3577
  %v3579 = vpop.f32.mrb[0].mxu0
  %v3580 = vpop.f32.mrb[0].mxu0
  %v3581 = vadd.f32 %v3420, %v3580
  %v3582 = vpop.f32.mrb[0].mxu0
  %3583 = vmatprep.mubr.bf16.mxu0 0
  %3584 = vmatmul.mubr.bf16.gmra.mrb[0].mxu0 %v2752
  %v3585 = vpop.f32.mrb[0].mxu0
  %v3586 = vadd.f32 %v3425, %v3585
  %v3587 = vpop.f32.mrb[0].mxu0
  %v3588 = vpop.f32.mrb[0].mxu0
  %v3589 = vadd.f32 %v3428, %v3588
  %v3590 = vpop.f32.mrb[0].mxu0
  %3591 = vmatprep.mubr.bf16.mxu0 0
  %3592 = vmatmul.mubr.bf16.gmra.mrb[0].mxu0 %v2753
  %v3593 = vpop.f32.mrb[0].mxu0
  %v3594 = vadd.f32 %v3433, %v3593
  %v3595 = vpop.f32.mrb[0].mxu0
  %v3596 = vpop.f32.mrb[0].mxu0
  %v3597 = vadd.f32 %v3436, %v3596
  %v3598 = vpop.f32.mrb[0].mxu0
  %3599 = vmatprep.mubr.bf16.mxu0 0
  %3600 = vmatmul.mubr.bf16.gmra.mrb[0].mxu0 %v2754
  %v3601 = vpop.f32.mrb[0].mxu0
  %v3602 = vadd.f32 %v3441, %v3601
  %v3603 = vpop.f32.mrb[0].mxu0
  %v3604 = vpop.f32.mrb[0].mxu0
  %v3605 = vadd.f32 %v3444, %v3604
  %v3606 = vpop.f32.mrb[0].mxu0
  %3607 = vmatprep.mubr.bf16.mxu0 0
  %3608 = vmatmul.mubr.bf16.gmra.mrb[0].mxu0 %v2755
  %v3609 = vpop.f32.mrb[0].mxu0
  %v3610 = vadd.f32 %v3449, %v3609
  %v3611 = vpop.f32.mrb[0].mxu0
  %v3612 = vpop.f32.mrb[0].mxu0
  %v3613 = vadd.f32 %v3452, %v3612
  %v3614 = vpop.f32.mrb[0].mxu0
  %3615 = vmatprep.mubr.bf16.mxu0 0
  %3616 = vmatmul.mubr.bf16.gmra.mrb[0].mxu0 %v426
  %v3617 = vpop.f32.mrb[0].mxu0
  %v3618 = vadd.f32 %v3457, %v3617
  %v3619 = vpop.f32.mrb[0].mxu0
  %v3620 = vpop.f32.mrb[0].mxu0
  %v3621 = vadd.f32 %v3460, %v3620
  %v3622 = vpop.f32.mrb[0].mxu0
  %3623 = vdwg.mxu0
  %v3656 = vrot.slane %v2740, 1
  %v3657 = vrot.slane %v2756, 1
  %v3658 = vsel %vm1648, %v3656, %v3657
  %v3659 = vrot.slane %v2741, 1
  %v3660 = vrot.slane %v2757, 1
  %v3661 = vsel %vm1648, %v3659, %v3660
  %v3662 = vrot.slane %v2742, 1
  %v3663 = vrot.slane %v2758, 1
  %v3664 = vsel %vm1648, %v3662, %v3663
  %v3665 = vrot.slane %v2743, 1
  %v3666 = vrot.slane %v2759, 1
  %v3667 = vsel %vm1648, %v3665, %v3666
  %v3668 = vrot.slane %v2744, 1
  %v3669 = vrot.slane %v2760, 1
  %v3670 = vsel %vm1648, %v3668, %v3669
  %v3671 = vrot.slane %v2745, 1
  %v3672 = vrot.slane %v2761, 1
  %v3673 = vsel %vm1648, %v3671, %v3672
  %v3674 = vrot.slane %v2746, 1
  %v3675 = vrot.slane %v2762, 1
  %v3676 = vsel %vm1648, %v3674, %v3675
  %v3677 = vrot.slane %v2747, 1
  %v3678 = vrot.slane %v2763, 1
  %v3679 = vsel %vm1648, %v3677, %v3678
  %v3680 = vrot.slane %v2748, 1
  %v3681 = vrot.slane %v2764, 1
  %v3682 = vsel %vm1648, %v3680, %v3681
  %v3683 = vrot.slane %v2749, 1
  %v3684 = vrot.slane %v2765, 1
  %v3685 = vsel %vm1648, %v3683, %v3684
  %v3686 = vrot.slane %v2750, 1
  %v3687 = vrot.slane %v2766, 1
  %v3688 = vsel %vm1648, %v3686, %v3687
  %v3689 = vrot.slane %v2751, 1
  %v3690 = vrot.slane %v2767, 1
  %v3691 = vsel %vm1648, %v3689, %v3690
  %v3692 = vrot.slane %v2752, 1
  %v3693 = vrot.slane %v2768, 1
  %v3694 = vsel %vm1648, %v3692, %v3693
  %v3695 = vrot.slane %v2753, 1
  %v3696 = vrot.slane %v2769, 1
  %v3697 = vsel %vm1648, %v3695, %v3696
  %v3698 = vrot.slane %v2754, 1
  %v3699 = vrot.slane %v2770, 1
  %v3700 = vsel %vm1648, %v3698, %v3699
  %v3701 = vrot.slane %v2755, 1
  %v3702 = vrot.slane %v2771, 1
  %v3703 = vsel %vm1648, %v3701, %v3702
  %3720 = vmatprep.subr.bf16.mxu0 0
  %3721 = vmatpush1.bf16.msra.mxu0 %v1813
  %3722 = vmatprep.subr.bf16.mxu0 0
  %3723 = vmatpush1.bf16.msra.mxu0 %v1814
  %3724 = vmatprep.subr.bf16.mxu0 0
  %3725 = vmatpush1.bf16.msra.mxu0 %v1815
  %3726 = vmatprep.subr.bf16.mxu0 0
  %3727 = vmatpush1.bf16.msra.mxu0 %v1816
  %3728 = vmatprep.subr.bf16.mxu0 0
  %3729 = vmatpush1.bf16.msra.mxu0 %v1817
  %3730 = vmatprep.subr.bf16.mxu0 0
  %3731 = vmatpush1.bf16.msra.mxu0 %v1818
  %3732 = vmatprep.subr.bf16.mxu0 0
  %3733 = vmatpush1.bf16.msra.mxu0 %v1819
  %3734 = vmatprep.subr.bf16.mxu0 0
  %3735 = vmatpush1.bf16.msra.mxu0 %v1820
  %3736 = vmatprep.subr.bf16.mxu0 0
  %3737 = vmatpush1.bf16.msra.mxu0 %v1821
  %3738 = vmatprep.subr.bf16.mxu0 0
  %3739 = vmatpush1.bf16.msra.mxu0 %v1822
  %3740 = vmatprep.subr.bf16.mxu0 0
  %3741 = vmatpush1.bf16.msra.mxu0 %v1823
  %3742 = vmatprep.subr.bf16.mxu0 0
  %3743 = vmatpush1.bf16.msra.mxu0 %v1824
  %3744 = vmatprep.subr.bf16.mxu0 0
  %3745 = vmatpush1.bf16.msra.mxu0 %v1825
  %3746 = vmatprep.subr.bf16.mxu0 0
  %3747 = vmatpush1.bf16.msra.mxu0 %v1826
  %3748 = vmatprep.subr.bf16.mxu0 0
  %3749 = vmatpush1.bf16.msra.mxu0 %v1827
  %3750 = vmatprep.subr.bf16.mxu0 0
  %3751 = vmatpush1.bf16.msra.mxu0 %v1828
  %3752 = vmatprep.mubr.bf16.mxu0 %v3658
  %3753 = vmatmul.mubr.bf16.gmra.mrb[0].mxu0 %v1651
  %v3754 = vpop.f32.mrb[0].mxu0
  %v3755 = vadd.f32 0.0, %v3754
  %v3756 = vpop.f32.mrb[0].mxu0
  %v3757 = vpop.f32.mrb[0].mxu0
  %v3758 = vadd.f32 0.0, %v3757
  %v3759 = vpop.f32.mrb[0].mxu0
  %3760 = vmatprep.mubr.bf16.mxu0 %v3661
  %3761 = vmatmul.mubr.bf16.gmra.mrb[0].mxu0 %v3658
  %v3762 = vpop.f32.mrb[0].mxu0
  %v3763 = vadd.f32 0.0, %v3762
  %v3764 = vpop.f32.mrb[0].mxu0
  %v3765 = vpop.f32.mrb[0].mxu0
  %v3766 = vadd.f32 0.0, %v3765
  %v3767 = vpop.f32.mrb[0].mxu0
  %3768 = vmatprep.mubr.bf16.mxu0 %v3664
  %3769 = vmatmul.mubr.bf16.gmra.mrb[0].mxu0 %v3661
  %v3770 = vpop.f32.mrb[0].mxu0
  %v3771 = vadd.f32 0.0, %v3770
  %v3772 = vpop.f32.mrb[0].mxu0
  %v3773 = vpop.f32.mrb[0].mxu0
  %v3774 = vadd.f32 0.0, %v3773
  %v3775 = vpop.f32.mrb[0].mxu0
  %3776 = vmatprep.mubr.bf16.mxu0 %v3667
  %3777 = vmatmul.mubr.bf16.gmra.mrb[0].mxu0 %v3664
  %v3778 = vpop.f32.mrb[0].mxu0
  %v3779 = vadd.f32 0.0, %v3778
  %v3780 = vpop.f32.mrb[0].mxu0
  %v3781 = vpop.f32.mrb[0].mxu0
  %v3782 = vadd.f32 0.0, %v3781
  %v3783 = vpop.f32.mrb[0].mxu0
  %3784 = vmatprep.mubr.bf16.mxu0 %v3670
  %3785 = vmatmul.mubr.bf16.gmra.mrb[0].mxu0 %v3667
  %v3786 = vpop.f32.mrb[0].mxu0
  %v3787 = vadd.f32 0.0, %v3786
  %v3788 = vpop.f32.mrb[0].mxu0
  %v3789 = vpop.f32.mrb[0].mxu0
  %v3790 = vadd.f32 0.0, %v3789
  %v3791 = vpop.f32.mrb[0].mxu0
  %3792 = vmatprep.mubr.bf16.mxu0 %v3673
  %3793 = vmatmul.mubr.bf16.gmra.mrb[0].mxu0 %v3670
  %v3794 = vpop.f32.mrb[0].mxu0
  %v3795 = vadd.f32 0.0, %v3794
  %v3796 = vpop.f32.mrb[0].mxu0
  %v3797 = vpop.f32.mrb[0].mxu0
  %v3798 = vadd.f32 0.0, %v3797
  %v3799 = vpop.f32.mrb[0].mxu0
  %3800 = vmatprep.mubr.bf16.mxu0 %v3676
  %3801 = vmatmul.mubr.bf16.gmra.mrb[0].mxu0 %v3673
  %v3802 = vpop.f32.mrb[0].mxu0
  %v3803 = vadd.f32 0.0, %v3802
  %v3804 = vpop.f32.mrb[0].mxu0
  %v3805 = vpop.f32.mrb[0].mxu0
  %v3806 = vadd.f32 0.0, %v3805
  %v3807 = vpop.f32.mrb[0].mxu0
  %3808 = vmatprep.mubr.bf16.mxu0 %v3679
  %3809 = vmatmul.mubr.bf16.gmra.mrb[0].mxu0 %v3676
  %v3810 = vpop.f32.mrb[0].mxu0
  %v3811 = vadd.f32 0.0, %v3810
  %v3812 = vpop.f32.mrb[0].mxu0
  %v3813 = vpop.f32.mrb[0].mxu0
  %v3814 = vadd.f32 0.0, %v3813
  %v3815 = vpop.f32.mrb[0].mxu0
  %3816 = vmatprep.mubr.bf16.mxu0 %v3682
  %3817 = vmatmul.mubr.bf16.gmra.mrb[0].mxu0 %v3679
  %v3818 = vpop.f32.mrb[0].mxu0
  %v3819 = vadd.f32 0.0, %v3818
  %v3820 = vpop.f32.mrb[0].mxu0
  %v3821 = vpop.f32.mrb[0].mxu0
  %v3822 = vadd.f32 0.0, %v3821
  %v3823 = vpop.f32.mrb[0].mxu0
  %3824 = vmatprep.mubr.bf16.mxu0 %v3685
  %3825 = vmatmul.mubr.bf16.gmra.mrb[0].mxu0 %v3682
  %v3826 = vpop.f32.mrb[0].mxu0
  %v3827 = vadd.f32 0.0, %v3826
  %v3828 = vpop.f32.mrb[0].mxu0
  %v3829 = vpop.f32.mrb[0].mxu0
  %v3830 = vadd.f32 0.0, %v3829
  %v3831 = vpop.f32.mrb[0].mxu0
  %3832 = vmatprep.mubr.bf16.mxu0 %v3688
  %3833 = vmatmul.mubr.bf16.gmra.mrb[0].mxu0 %v3685
  %v3834 = vpop.f32.mrb[0].mxu0
  %v3835 = vadd.f32 0.0, %v3834
  %v3836 = vpop.f32.mrb[0].mxu0
  %v3837 = vpop.f32.mrb[0].mxu0
  %v3838 = vadd.f32 0.0, %v3837
  %v3839 = vpop.f32.mrb[0].mxu0
  %3840 = vmatprep.mubr.bf16.mxu0 %v3691
  %3841 = vmatmul.mubr.bf16.gmra.mrb[0].mxu0 %v3688
  %v3842 = vpop.f32.mrb[0].mxu0
  %v3843 = vadd.f32 0.0, %v3842
  %v3844 = vpop.f32.mrb[0].mxu0
  %v3845 = vpop.f32.mrb[0].mxu0
  %v3846 = vadd.f32 0.0, %v3845
  %v3847 = vpop.f32.mrb[0].mxu0
  %3848 = vmatprep.mubr.bf16.mxu0 %v3694
  %3849 = vmatmul.mubr.bf16.gmra.mrb[0].mxu0 %v3691
  %v3850 = vpop.f32.mrb[0].mxu0
  %v3851 = vadd.f32 0.0, %v3850
  %v3852 = vpop.f32.mrb[0].mxu0
  %v3853 = vpop.f32.mrb[0].mxu0
  %v3854 = vadd.f32 0.0, %v3853
  %v3855 = vpop.f32.mrb[0].mxu0
  %3856 = vmatprep.mubr.bf16.mxu0 %v3697
  %3857 = vmatmul.mubr.bf16.gmra.mrb[0].mxu0 %v3694
  %v3858 = vpop.f32.mrb[0].mxu0
  %v3859 = vadd.f32 0.0, %v3858
  %v3860 = vpop.f32.mrb[0].mxu0
  %v3861 = vpop.f32.mrb[0].mxu0
  %v3862 = vadd.f32 0.0, %v3861
  %v3863 = vpop.f32.mrb[0].mxu0
  %3864 = vmatprep.mubr.bf16.mxu0 %v3700
  %3865 = vmatmul.mubr.bf16.gmra.mrb[0].mxu0 %v3697
  %v3866 = vpop.f32.mrb[0].mxu0
  %v3867 = vadd.f32 0.0, %v3866
  %v3868 = vpop.f32.mrb[0].mxu0
  %v3869 = vpop.f32.mrb[0].mxu0
  %v3870 = vadd.f32 0.0, %v3869
  %v3871 = vpop.f32.mrb[0].mxu0
  %3872 = vmatprep.mubr.bf16.mxu0 %v3703
  %3873 = vmatmul.mubr.bf16.gmra.mrb[0].mxu0 %v3700
  %v3874 = vpop.f32.mrb[0].mxu0
  %v3875 = vadd.f32 0.0, %v3874
  %v3876 = vpop.f32.mrb[0].mxu0
  %v3877 = vpop.f32.mrb[0].mxu0
  %v3878 = vadd.f32 0.0, %v3877
  %v3879 = vpop.f32.mrb[0].mxu0
  %3880 = vdwg.mxu0
  %3881 = vmatprep.subr.bf16.mxu0 0
  %3882 = vmatpush1.bf16.msra.mxu0 %v1829
  %3883 = vmatprep.subr.bf16.mxu0 0
  %3884 = vmatpush1.bf16.msra.mxu0 %v1830
  %3885 = vmatprep.subr.bf16.mxu0 0
  %3886 = vmatpush1.bf16.msra.mxu0 %v1831
  %3887 = vmatprep.subr.bf16.mxu0 0
  %3888 = vmatpush1.bf16.msra.mxu0 %v1832
  %3889 = vmatprep.subr.bf16.mxu0 0
  %3890 = vmatpush1.bf16.msra.mxu0 %v1833
  %3891 = vmatprep.subr.bf16.mxu0 0
  %3892 = vmatpush1.bf16.msra.mxu0 %v1834
  %3893 = vmatprep.subr.bf16.mxu0 0
  %3894 = vmatpush1.bf16.msra.mxu0 %v1835
  %3895 = vmatprep.subr.bf16.mxu0 0
  %3896 = vmatpush1.bf16.msra.mxu0 %v1836
  %3897 = vmatprep.subr.bf16.mxu0 0
  %3898 = vmatpush1.bf16.msra.mxu0 0
  %3899 = vmatprep.subr.bf16.mxu0 0
  %3900 = vmatpush1.bf16.msra.mxu0 0
  %3901 = vmatprep.subr.bf16.mxu0 0
  %3902 = vmatpush1.bf16.msra.mxu0 0
  %3903 = vmatprep.subr.bf16.mxu0 0
  %3904 = vmatpush1.bf16.msra.mxu0 0
  %3905 = vmatprep.subr.bf16.mxu0 0
  %3906 = vmatpush1.bf16.msra.mxu0 0
  %3907 = vmatprep.subr.bf16.mxu0 0
  %3908 = vmatpush1.bf16.msra.mxu0 0
  %3909 = vmatprep.subr.bf16.mxu0 0
  %3910 = vmatpush1.bf16.msra.mxu0 0
  %3911 = vmatprep.subr.bf16.mxu0 0
  %3912 = vmatpush1.bf16.msra.mxu0 0
  %3913 = vmatprep.mubr.bf16.mxu0 0
  %3914 = vmatmul.mubr.bf16.gmra.mrb[0].mxu0 %v3661
  %v3915 = vpop.f32.mrb[0].mxu0
  %v3916 = vadd.f32 %v3755, %v3915
  %v3917 = vpop.f32.mrb[0].mxu0
  %v3918 = vpop.f32.mrb[0].mxu0
  %v3919 = vadd.f32 %v3758, %v3918
  %v3920 = vpop.f32.mrb[0].mxu0
  %3921 = vmatprep.mubr.bf16.mxu0 0
  %3922 = vmatmul.mubr.bf16.gmra.mrb[0].mxu0 %v3664
  %v3923 = vpop.f32.mrb[0].mxu0
  %v3924 = vadd.f32 %v3763, %v3923
  %v3925 = vpop.f32.mrb[0].mxu0
  %v3926 = vpop.f32.mrb[0].mxu0
  %v3927 = vadd.f32 %v3766, %v3926
  %v3928 = vpop.f32.mrb[0].mxu0
  %3929 = vmatprep.mubr.bf16.mxu0 0
  %3930 = vmatmul.mubr.bf16.gmra.mrb[0].mxu0 %v3667
  %v3931 = vpop.f32.mrb[0].mxu0
  %v3932 = vadd.f32 %v3771, %v3931
  %v3933 = vpop.f32.mrb[0].mxu0
  %v3934 = vpop.f32.mrb[0].mxu0
  %v3935 = vadd.f32 %v3774, %v3934
  %v3936 = vpop.f32.mrb[0].mxu0
  %3937 = vmatprep.mubr.bf16.mxu0 0
  %3938 = vmatmul.mubr.bf16.gmra.mrb[0].mxu0 %v3670
  %v3939 = vpop.f32.mrb[0].mxu0
  %v3940 = vadd.f32 %v3779, %v3939
  %v3941 = vpop.f32.mrb[0].mxu0
  %v3942 = vpop.f32.mrb[0].mxu0
  %v3943 = vadd.f32 %v3782, %v3942
  %v3944 = vpop.f32.mrb[0].mxu0
  %3945 = vmatprep.mubr.bf16.mxu0 0
  %3946 = vmatmul.mubr.bf16.gmra.mrb[0].mxu0 %v3673
  %v3947 = vpop.f32.mrb[0].mxu0
  %v3948 = vadd.f32 %v3787, %v3947
  %v3949 = vpop.f32.mrb[0].mxu0
  %v3950 = vpop.f32.mrb[0].mxu0
  %v3951 = vadd.f32 %v3790, %v3950
  %v3952 = vpop.f32.mrb[0].mxu0
  %3953 = vmatprep.mubr.bf16.mxu0 0
  %3954 = vmatmul.mubr.bf16.gmra.mrb[0].mxu0 %v3676
  %v3955 = vpop.f32.mrb[0].mxu0
  %v3956 = vadd.f32 %v3795, %v3955
  %v3957 = vpop.f32.mrb[0].mxu0
  %v3958 = vpop.f32.mrb[0].mxu0
  %v3959 = vadd.f32 %v3798, %v3958
  %v3960 = vpop.f32.mrb[0].mxu0
  %3961 = vmatprep.mubr.bf16.mxu0 0
  %3962 = vmatmul.mubr.bf16.gmra.mrb[0].mxu0 %v3679
  %v3963 = vpop.f32.mrb[0].mxu0
  %v3964 = vadd.f32 %v3803, %v3963
  %v3965 = vpop.f32.mrb[0].mxu0
  %v3966 = vpop.f32.mrb[0].mxu0
  %v3967 = vadd.f32 %v3806, %v3966
  %v3968 = vpop.f32.mrb[0].mxu0
  %3969 = vmatprep.mubr.bf16.mxu0 0
  %3970 = vmatmul.mubr.bf16.gmra.mrb[0].mxu0 %v3682
  %v3971 = vpop.f32.mrb[0].mxu0
  %v3972 = vadd.f32 %v3811, %v3971
  %v3973 = vpop.f32.mrb[0].mxu0
  %v3974 = vpop.f32.mrb[0].mxu0
  %v3975 = vadd.f32 %v3814, %v3974
  %v3976 = vpop.f32.mrb[0].mxu0
  %3977 = vmatprep.mubr.bf16.mxu0 0
  %3978 = vmatmul.mubr.bf16.gmra.mrb[0].mxu0 %v3685
  %v3979 = vpop.f32.mrb[0].mxu0
  %v3980 = vadd.f32 %v3819, %v3979
  %v3981 = vpop.f32.mrb[0].mxu0
  %v3982 = vpop.f32.mrb[0].mxu0
  %v3983 = vadd.f32 %v3822, %v3982
  %v3984 = vpop.f32.mrb[0].mxu0
  %3985 = vmatprep.mubr.bf16.mxu0 0
  %3986 = vmatmul.mubr.bf16.gmra.mrb[0].mxu0 %v3688
  %v3987 = vpop.f32.mrb[0].mxu0
  %v3988 = vadd.f32 %v3827, %v3987
  %v3989 = vpop.f32.mrb[0].mxu0
  %v3990 = vpop.f32.mrb[0].mxu0
  %v3991 = vadd.f32 %v3830, %v3990
  %v3992 = vpop.f32.mrb[0].mxu0
  %3993 = vmatprep.mubr.bf16.mxu0 0
  %3994 = vmatmul.mubr.bf16.gmra.mrb[0].mxu0 %v3691
  %v3995 = vpop.f32.mrb[0].mxu0
  %v3996 = vadd.f32 %v3835, %v3995
  %v3997 = vpop.f32.mrb[0].mxu0
  %v3998 = vpop.f32.mrb[0].mxu0
  %v3999 = vadd.f32 %v3838, %v3998
  %v4000 = vpop.f32.mrb[0].mxu0
  %4001 = vmatprep.mubr.bf16.mxu0 0
  %4002 = vmatmul.mubr.bf16.gmra.mrb[0].mxu0 %v3694
  %v4003 = vpop.f32.mrb[0].mxu0
  %v4004 = vadd.f32 %v3843, %v4003
  %v4005 = vpop.f32.mrb[0].mxu0
  %v4006 = vpop.f32.mrb[0].mxu0
  %v4007 = vadd.f32 %v3846, %v4006
  %v4008 = vpop.f32.mrb[0].mxu0
  %4009 = vmatprep.mubr.bf16.mxu0 0
  %4010 = vmatmul.mubr.bf16.gmra.mrb[0].mxu0 %v3697
  %v4011 = vpop.f32.mrb[0].mxu0
  %v4012 = vadd.f32 %v3851, %v4011
  %v4013 = vpop.f32.mrb[0].mxu0
  %v4014 = vpop.f32.mrb[0].mxu0
  %v4015 = vadd.f32 %v3854, %v4014
  %v4016 = vpop.f32.mrb[0].mxu0
  %4017 = vmatprep.mubr.bf16.mxu0 0
  %4018 = vmatmul.mubr.bf16.gmra.mrb[0].mxu0 %v3700
  %v4019 = vpop.f32.mrb[0].mxu0
  %v4020 = vadd.f32 %v3859, %v4019
  %v4021 = vpop.f32.mrb[0].mxu0
  %v4022 = vpop.f32.mrb[0].mxu0
  %v4023 = vadd.f32 %v3862, %v4022
  %v4024 = vpop.f32.mrb[0].mxu0
  %4025 = vmatprep.mubr.bf16.mxu0 0
  %4026 = vmatmul.mubr.bf16.gmra.mrb[0].mxu0 %v3703
  %v4027 = vpop.f32.mrb[0].mxu0
  %v4028 = vadd.f32 %v3867, %v4027
  %v4029 = vpop.f32.mrb[0].mxu0
  %v4030 = vpop.f32.mrb[0].mxu0
  %v4031 = vadd.f32 %v3870, %v4030
  %v4032 = vpop.f32.mrb[0].mxu0
  %4033 = vmatprep.mubr.bf16.mxu0 0
  %4034 = vmatmul.mubr.bf16.gmra.mrb[0].mxu0 %v1651
  %v4035 = vpop.f32.mrb[0].mxu0
  %v4036 = vadd.f32 %v3875, %v4035
  %v4037 = vpop.f32.mrb[0].mxu0
  %v4038 = vpop.f32.mrb[0].mxu0
  %v4039 = vadd.f32 %v3878, %v4038
  %v4040 = vpop.f32.mrb[0].mxu0
  %4041 = vdwg.mxu0
  %v4042 = vadd.f32 %v3498, %v3916
  %v4043 = vadd.f32 %v3501, %v3919
  %v4044 = vadd.f32 %v3506, %v3924
  %v4045 = vadd.f32 %v3509, %v3927
  %v4046 = vadd.f32 %v3514, %v3932
  %v4047 = vadd.f32 %v3517, %v3935
  %v4048 = vadd.f32 %v3522, %v3940
  %v4049 = vadd.f32 %v3525, %v3943
  %v4050 = vadd.f32 %v3530, %v3948
  %v4051 = vadd.f32 %v3533, %v3951
  %v4052 = vadd.f32 %v3538, %v3956
  %v4053 = vadd.f32 %v3541, %v3959
  %v4054 = vadd.f32 %v3546, %v3964
  %v4055 = vadd.f32 %v3549, %v3967
  %v4056 = vadd.f32 %v3554, %v3972
  %v4057 = vadd.f32 %v3557, %v3975
  %v4058 = vadd.f32 %v3562, %v3980
  %v4059 = vadd.f32 %v3565, %v3983
  %v4060 = vadd.f32 %v3570, %v3988
  %v4061 = vadd.f32 %v3573, %v3991
  %v4062 = vadd.f32 %v3578, %v3996
  %v4063 = vadd.f32 %v3581, %v3999
  %v4064 = vadd.f32 %v3586, %v4004
  %v4065 = vadd.f32 %v3589, %v4007
  %v4066 = vadd.f32 %v3594, %v4012
  %v4067 = vadd.f32 %v3597, %v4015
  %v4068 = vadd.f32 %v3602, %v4020
  %v4069 = vadd.f32 %v3605, %v4023
  %v4070 = vadd.f32 %v3610, %v4028
  %v4071 = vadd.f32 %v3613, %v4031
  %v4072 = vadd.f32 %v3618, %v4036
  %v4073 = vadd.f32 %v3621, %v4039
  %v4074 = vpack.c.bf16 %v4043, %v4042
  %v4075 = vpack.c.bf16 %v4045, %v4044
  %v4076 = vpack.c.bf16 %v4047, %v4046
  %v4077 = vpack.c.bf16 %v4049, %v4048
  %v4078 = vpack.c.bf16 %v4051, %v4050
  %v4079 = vpack.c.bf16 %v4053, %v4052
  %v4080 = vpack.c.bf16 %v4055, %v4054
  %v4081 = vpack.c.bf16 %v4057, %v4056
  %v4082 = vpack.c.bf16 %v4059, %v4058
  %v4083 = vpack.c.bf16 %v4061, %v4060
  %v4084 = vpack.c.bf16 %v4063, %v4062
  %v4085 = vpack.c.bf16 %v4065, %v4064
  %v4086 = vpack.c.bf16 %v4067, %v4066
  %v4087 = vpack.c.bf16 %v4069, %v4068
  %v4088 = vpack.c.bf16 %v4071, %v4070
  %v4089 = vpack.c.bf16 %v4073, %v4072
  %v4106 = vunpack.c.l.b16 %v4074
  %v4107 = vunpack.c.h.b16 %v4074
  %v4108 = vunpack.c.l.b16 %v4075
  %v4109 = vunpack.c.h.b16 %v4075
  %v4110 = vunpack.c.l.b16 %v4076
  %v4111 = vunpack.c.h.b16 %v4076
  %v4112 = vunpack.c.l.b16 %v4077
  %v4113 = vunpack.c.h.b16 %v4077
  %v4114 = vunpack.c.l.b16 %v4078
  %v4115 = vunpack.c.h.b16 %v4078
  %v4116 = vunpack.c.l.b16 %v4079
  %v4117 = vunpack.c.h.b16 %v4079
  %v4118 = vunpack.c.l.b16 %v4080
  %v4119 = vunpack.c.h.b16 %v4080
  %v4120 = vunpack.c.l.b16 %v4081
  %v4121 = vunpack.c.h.b16 %v4081
  %v4122 = vunpack.c.l.b16 %v4082
  %v4123 = vunpack.c.h.b16 %v4082
  %v4124 = vunpack.c.l.b16 %v4083
  %v4125 = vunpack.c.h.b16 %v4083
  %v4126 = vunpack.c.l.b16 %v4084
  %v4127 = vunpack.c.h.b16 %v4084
  %v4128 = vunpack.c.l.b16 %v4085
  %v4129 = vunpack.c.h.b16 %v4085
  %v4130 = vunpack.c.l.b16 %v4086
  %v4131 = vunpack.c.h.b16 %v4086
  %v4132 = vunpack.c.l.b16 %v4087
  %v4133 = vunpack.c.h.b16 %v4087
  %v4134 = vunpack.c.l.b16 %v4088
  %v4135 = vunpack.c.h.b16 %v4088
  %v4136 = vunpack.c.l.b16 %v4089
  %v4137 = vunpack.c.h.b16 %v4089
  %v4138 = vpack.c.b16 %v4106, %v4106
  %v4139 = vpack.c.b16 %v4107, %v4107
  %v4140 = vpack.c.b16 %v4108, %v4108
  %v4141 = vpack.c.b16 %v4109, %v4109
  %v4142 = vpack.c.b16 %v4110, %v4110
  %v4143 = vpack.c.b16 %v4111, %v4111
  %v4144 = vpack.c.b16 %v4112, %v4112
  %v4145 = vpack.c.b16 %v4113, %v4113
  %v4146 = vpack.c.b16 %v4114, %v4114
  %v4147 = vpack.c.b16 %v4115, %v4115
  %v4148 = vpack.c.b16 %v4116, %v4116
  %v4149 = vpack.c.b16 %v4117, %v4117
  %v4150 = vpack.c.b16 %v4118, %v4118
  %v4151 = vpack.c.b16 %v4119, %v4119
  %v4152 = vpack.c.b16 %v4120, %v4120
  %v4153 = vpack.c.b16 %v4121, %v4121
  %v4154 = vpack.c.b16 %v4122, %v4122
  %v4155 = vpack.c.b16 %v4123, %v4123
  %v4156 = vpack.c.b16 %v4124, %v4124
  %v4157 = vpack.c.b16 %v4125, %v4125
  %v4158 = vpack.c.b16 %v4126, %v4126
  %v4159 = vpack.c.b16 %v4127, %v4127
  %v4160 = vpack.c.b16 %v4128, %v4128
  %v4161 = vpack.c.b16 %v4129, %v4129
  %v4162 = vpack.c.b16 %v4130, %v4130
  %v4163 = vpack.c.b16 %v4131, %v4131
  %v4164 = vpack.c.b16 %v4132, %v4132
  %v4165 = vpack.c.b16 %v4133, %v4133
  %v4166 = vpack.c.b16 %v4134, %v4134
  %v4167 = vpack.c.b16 %v4135, %v4135
  %v4168 = vpack.c.b16 %v4136, %v4136
  %v4169 = vpack.c.b16 %v4137, %v4137
  %s4202 = scalar_lea.vmem %s2, 128
  %4203 = vst [vmem:[%s4202] sm:$0xf] %v4138
  %4204 = vst [vmem:[%s4202 + $0x4] sm:$0xf] %v4139
  %4205 = vst [vmem:[%s4202 + $0x8] sm:$0xf] %v4140
  %4206 = vst [vmem:[%s4202 + $0xc] sm:$0xf] %v4141
  %4207 = vst [vmem:[%s4202 + $0x10] sm:$0xf] %v4142
  %4208 = vst [vmem:[%s4202 + $0x14] sm:$0xf] %v4143
  %4209 = vst [vmem:[%s4202 + $0x18] sm:$0xf] %v4144
  %4210 = vst [vmem:[%s4202 + $0x1c] sm:$0xf] %v4145
  %4211 = vst [vmem:[%s4202 + $0x20] sm:$0xf] %v4146
  %4212 = vst [vmem:[%s4202 + $0x24] sm:$0xf] %v4147
  %4213 = vst [vmem:[%s4202 + $0x28] sm:$0xf] %v4148
  %4214 = vst [vmem:[%s4202 + $0x2c] sm:$0xf] %v4149
  %4215 = vst [vmem:[%s4202 + $0x30] sm:$0xf] %v4150
  %4216 = vst [vmem:[%s4202 + $0x34] sm:$0xf] %v4151
  %4217 = vst [vmem:[%s4202 + $0x38] sm:$0xf] %v4152
  %4218 = vst [vmem:[%s4202 + $0x3c] sm:$0xf] %v4153
  %4219 = vst [vmem:[%s4202 + $0x40] sm:$0xf] %v4154
  %4220 = vst [vmem:[%s4202 + $0x44] sm:$0xf] %v4155
  %4221 = vst [vmem:[%s4202 + $0x48] sm:$0xf] %v4156
  %4222 = vst [vmem:[%s4202 + $0x4c] sm:$0xf] %v4157
  %4223 = vst [vmem:[%s4202 + $0x50] sm:$0xf] %v4158
  %4224 = vst [vmem:[%s4202 + $0x54] sm:$0xf] %v4159
  %4225 = vst [vmem:[%s4202 + $0x58] sm:$0xf] %v4160
  %4226 = vst [vmem:[%s4202 + $0x5c] sm:$0xf] %v4161
  %4227 = vst [vmem:[%s4202 + $0x60] sm:$0xf] %v4162
  %4228 = vst [vmem:[%s4202 + $0x64] sm:$0xf] %v4163
  %4229 = vst [vmem:[%s4202 + $0x68] sm:$0xf] %v4164
  %4230 = vst [vmem:[%s4202 + $0x6c] sm:$0xf] %v4165
  %4231 = vst [vmem:[%s4202 + $0x70] sm:$0xf] %v4166
  %4232 = vst [vmem:[%s4202 + $0x74] sm:$0xf] %v4167
  %4233 = vst [vmem:[%s4202 + $0x78] sm:$0xf] %v4168
  %4234 = vst [vmem:[%s4202 + $0x7c] sm:$0xf] %v4169
  %v4235 = vadd.f32 %v4042, %v4043
  %v4236 = vadd.f32 %v4235, %v4044
  %v4237 = vadd.f32 %v4236, %v4045
  %v4238 = vadd.f32 %v4237, %v4046
  %v4239 = vadd.f32 %v4238, %v4047
  %v4240 = vadd.f32 %v4239, %v4048
  %v4241 = vadd.f32 %v4240, %v4049
  %v4242 = vadd.f32 %v4241, %v4050
  %v4243 = vadd.f32 %v4242, %v4051
  %v4244 = vadd.f32 %v4243, %v4052
  %v4245 = vadd.f32 %v4244, %v4053
  %v4246 = vadd.f32 %v4245, %v4054
  %v4247 = vadd.f32 %v4246, %v4055
  %v4248 = vadd.f32 %v4247, %v4056
  %v4249 = vadd.f32 %v4248, %v4057
  %v4250 = vadd.f32 %v4249, %v4058
  %v4251 = vadd.f32 %v4250, %v4059
  %v4252 = vadd.f32 %v4251, %v4060
  %v4253 = vadd.f32 %v4252, %v4061
  %v4254 = vadd.f32 %v4253, %v4062
  %v4255 = vadd.f32 %v4254, %v4063
  %v4256 = vadd.f32 %v4255, %v4064
  %v4257 = vadd.f32 %v4256, %v4065
  %v4258 = vadd.f32 %v4257, %v4066
  %v4259 = vadd.f32 %v4258, %v4067
  %v4260 = vadd.f32 %v4259, %v4068
  %v4261 = vadd.f32 %v4260, %v4069
  %v4262 = vadd.f32 %v4261, %v4070
  %v4263 = vadd.f32 %v4262, %v4071
  %v4264 = vadd.f32 %v4263, %v4072
  %v4265 = vadd.f32 %v4264, %v4073
  %v4266 = vrot.slane %v4265, 4
  %v4267 = vadd.f32 %v4265, %v4266
  %v4268 = vrot.slane %v4267, 2
  %v4269 = vadd.f32 %v4267, %v4268
  %v4270 = vrot.slane %v4269, 1
  %v4271 = vadd.f32 %v4269, %v4270
  %v4272 = vadd.f32 %v2412, %v4271
  %v4273 = vmul.f32 %v4042, %v4042
  %v4274 = vmul.f32 %v4043, %v4043
  %v4275 = vmul.f32 %v4044, %v4044
  %v4276 = vmul.f32 %v4045, %v4045
  %v4277 = vmul.f32 %v4046, %v4046
  %v4278 = vmul.f32 %v4047, %v4047
  %v4279 = vmul.f32 %v4048, %v4048
  %v4280 = vmul.f32 %v4049, %v4049
  %v4281 = vmul.f32 %v4050, %v4050
  %v4282 = vmul.f32 %v4051, %v4051
  %v4283 = vmul.f32 %v4052, %v4052
  %v4284 = vmul.f32 %v4053, %v4053
  %v4285 = vmul.f32 %v4054, %v4054
  %v4286 = vmul.f32 %v4055, %v4055
  %v4287 = vmul.f32 %v4056, %v4056
  %v4288 = vmul.f32 %v4057, %v4057
  %v4289 = vmul.f32 %v4058, %v4058
  %v4290 = vmul.f32 %v4059, %v4059
  %v4291 = vmul.f32 %v4060, %v4060
  %v4292 = vmul.f32 %v4061, %v4061
  %v4293 = vmul.f32 %v4062, %v4062
  %v4294 = vmul.f32 %v4063, %v4063
  %v4295 = vmul.f32 %v4064, %v4064
  %v4296 = vmul.f32 %v4065, %v4065
  %v4297 = vmul.f32 %v4066, %v4066
  %v4298 = vmul.f32 %v4067, %v4067
  %v4299 = vmul.f32 %v4068, %v4068
  %v4300 = vmul.f32 %v4069, %v4069
  %v4301 = vmul.f32 %v4070, %v4070
  %v4302 = vmul.f32 %v4071, %v4071
  %v4303 = vmul.f32 %v4072, %v4072
  %v4304 = vmul.f32 %v4073, %v4073
  %v4305 = vadd.f32 %v4273, %v4274
  %v4306 = vadd.f32 %v4305, %v4275
  %v4307 = vadd.f32 %v4306, %v4276
  %v4308 = vadd.f32 %v4307, %v4277
  %v4309 = vadd.f32 %v4308, %v4278
  %v4310 = vadd.f32 %v4309, %v4279
  %v4311 = vadd.f32 %v4310, %v4280
  %v4312 = vadd.f32 %v4311, %v4281
  %v4313 = vadd.f32 %v4312, %v4282
  %v4314 = vadd.f32 %v4313, %v4283
  %v4315 = vadd.f32 %v4314, %v4284
  %v4316 = vadd.f32 %v4315, %v4285
  %v4317 = vadd.f32 %v4316, %v4286
  %v4318 = vadd.f32 %v4317, %v4287
  %v4319 = vadd.f32 %v4318, %v4288
  %v4320 = vadd.f32 %v4319, %v4289
  %v4321 = vadd.f32 %v4320, %v4290
  %v4322 = vadd.f32 %v4321, %v4291
  %v4323 = vadd.f32 %v4322, %v4292
  %v4324 = vadd.f32 %v4323, %v4293
  %v4325 = vadd.f32 %v4324, %v4294
  %v4326 = vadd.f32 %v4325, %v4295
  %v4327 = vadd.f32 %v4326, %v4296
  %v4328 = vadd.f32 %v4327, %v4297
  %v4329 = vadd.f32 %v4328, %v4298
  %v4330 = vadd.f32 %v4329, %v4299
  %v4331 = vadd.f32 %v4330, %v4300
  %v4332 = vadd.f32 %v4331, %v4301
  %v4333 = vadd.f32 %v4332, %v4302
  %v4334 = vadd.f32 %v4333, %v4303
  %v4335 = vadd.f32 %v4334, %v4304
  %v4336 = vrot.slane %v4335, 4
  %v4337 = vadd.f32 %v4335, %v4336
  %v4338 = vrot.slane %v4337, 2
  %v4339 = vadd.f32 %v4337, %v4338
  %v4340 = vrot.slane %v4339, 1
  %v4341 = vadd.f32 %v4339, %v4340
  %v4342 = vadd.f32 %v2482, %v4341
  %vm4343 = vcmask 1040384
  %v4344 = vsel %vm4343, %v4272, %v4342
  %vm4345 = vcmask 1041408
  %v4346 = vsel %vm4345, %v4344, 0.0
  %4347 = vst [vmem:[%s3] sm:$0xff] %v4346
  // Predicated region
  $region10: #{basic_block_forward.3} parent=0 // pred_check
    _
  $region11: #{basic_block_forward.3} parent=0 // pred_check_branch
    %4349 = sbr.rel (0) target = $region13
  $region12: #{basic_block_forward.3} parent=0 // pred_region
    _
  $region13: #{basic_block_forward.3} parent=0 // pred_fallthru
    _
  // Predicated region
  $region14: #{basic_block_forward.3} parent=0 // pred_check
    _
  $region15: #{basic_block_forward.3} parent=0 // pred_check_branch
    %4351 = sbr.rel (0) target = $region17
  $region16: #{basic_block_forward.3} parent=0 // pred_region
    _
  $region17: #{basic_block_forward.3} parent=0 // pred_fallthru
    _
  // Predicated region
  $region18: #{basic_block_forward.3} parent=0 // pred_check
    _
  $region19: #{basic_block_forward.3} parent=0 // pred_check_branch
    %4353 = sbr.rel (0) target = $region21
  $region20: #{basic_block_forward.3} parent=0 // pred_region
    _
  $region21: #{basic_block_forward.3} parent=0 // pred_fallthru
    _
  // Predicated region
  $region22: #{basic_block_forward.3} parent=0 // pred_check
    _
  $region23: #{basic_block_forward.3} parent=0 // pred_check_branch
    %4355 = sbr.rel (0) target = $region25
  $region24: #{basic_block_forward.3} parent=0 // pred_region
    _
  $region25: #{basic_block_forward.3} parent=0 // pred_fallthru
    _

// kernel: basic_block_forward.4
$region0: #{basic_block_forward.4}
  #allocation0 [shape = 'u32[]', space=smem, size = 0x4, offset = 0x4, fixed_abs, tag = 'smem constant byte address 0x4 - core index']
  #allocation1 [shape = 'u32[144,128]{1,0:T(1,128)}', space=vmem, size = 0x12000, scoped, tag = 'internal scratch']
  %s0 = inlined_call_operand.vmem [shape: bf16[2,16,16,128], index: 0, kind: input, shape index: {}]
  %s1 = inlined_call_operand.vmem [shape: f32[1,128], index: 1, kind: input, shape index: {}]
  %s2 = inlined_call_operand.vmem [shape: f32[1,128], index: 2, kind: input, shape index: {}]
  %s3 = inlined_call_operand.vmem [shape: bf16[3,384,128], index: 3, kind: input, shape index: {}]
  %s4 = inlined_call_operand.vmem [shape: bf16[2,16,16,128], index: 4, kind: output, shape index: {0}]
  %s5 = inlined_call_operand.vmem [shape: f32[1,8,128], index: 5, kind: output, shape index: {1}]
  %6 = xla_tuple %s4, %s5
  %s7 = sld [smem:[#allocation0]]
  $region34: #{basic_block_forward.4} parent=0
    _
  %s9 = ssub.s32 1, %s7
  %s10 = scalar_select 0, %s9, %s7
  // Predicated region
  $region2: #{basic_block_forward.4} parent=0 // pred_check
    _
  $region3: #{basic_block_forward.4} parent=0 // pred_check_branch
    %12 = sbr.rel (0) target = $region5
  $region4: #{basic_block_forward.4} parent=0 // pred_region
    _
  $region5: #{basic_block_forward.4} parent=0 // pred_fallthru
    _
  // Predicated region
  $region6: #{basic_block_forward.4} parent=0 // pred_check
    _
  $region7: #{basic_block_forward.4} parent=0 // pred_check_branch
    %14 = sbr.rel (0) target = $region9
  $region8: #{basic_block_forward.4} parent=0 // pred_region
    _
  $region9: #{basic_block_forward.4} parent=0 // pred_fallthru
    _
  // Predicated region
  $region10: #{basic_block_forward.4} parent=0 // pred_check
    _
  $region11: #{basic_block_forward.4} parent=0 // pred_check_branch
    %16 = sbr.rel (0) target = $region13
  $region12: #{basic_block_forward.4} parent=0 // pred_region
    _
  $region13: #{basic_block_forward.4} parent=0 // pred_fallthru
    _
  // Predicated region
  $region14: #{basic_block_forward.4} parent=0 // pred_check
    _
  $region15: #{basic_block_forward.4} parent=0 // pred_check_branch
    %18 = sbr.rel (0) target = $region17
  $region16: #{basic_block_forward.4} parent=0 // pred_region
    _
  $region17: #{basic_block_forward.4} parent=0 // pred_fallthru
    _
  %v20 = vld [vmem:[%s3] sm:$0xf]
  %v21 = vld [vmem:[%s3 + $0x4] sm:$0xf]
  %v22 = vld [vmem:[%s3 + $0x8] sm:$0xf]
  %v23 = vld [vmem:[%s3 + $0xc] sm:$0xf]
  %v24 = vld [vmem:[%s3 + $0x10] sm:$0xf]
  %v25 = vld [vmem:[%s3 + $0x14] sm:$0xf]
  %v26 = vld [vmem:[%s3 + $0x18] sm:$0xf]
  %v27 = vld [vmem:[%s3 + $0x1c] sm:$0xf]
  %v28 = vld [vmem:[%s3 + $0x20] sm:$0xf]
  %v29 = vld [vmem:[%s3 + $0x24] sm:$0xf]
  %v30 = vld [vmem:[%s3 + $0x28] sm:$0xf]
  %v31 = vld [vmem:[%s3 + $0x2c] sm:$0xf]
  %v32 = vld [vmem:[%s3 + $0x30] sm:$0xf]
  %v33 = vld [vmem:[%s3 + $0x34] sm:$0xf]
  %v34 = vld [vmem:[%s3 + $0x38] sm:$0xf]
  %v35 = vld [vmem:[%s3 + $0x3c] sm:$0xf]
  %v36 = vld [vmem:[%s3 + $0x40] sm:$0xf]
  %v37 = vld [vmem:[%s3 + $0x44] sm:$0xf]
  %v38 = vld [vmem:[%s3 + $0x48] sm:$0xf]
  %v39 = vld [vmem:[%s3 + $0x4c] sm:$0xf]
  %v40 = vld [vmem:[%s3 + $0x50] sm:$0xf]
  %v41 = vld [vmem:[%s3 + $0x54] sm:$0xf]
  %v42 = vld [vmem:[%s3 + $0x58] sm:$0xf]
  %v43 = vld [vmem:[%s3 + $0x5c] sm:$0xf]
  %v44 = vld [vmem:[%s3 + $0x60] sm:$0xf]
  %v45 = vld [vmem:[%s3 + $0x64] sm:$0xf]
  %v46 = vld [vmem:[%s3 + $0x68] sm:$0xf]
  %v47 = vld [vmem:[%s3 + $0x6c] sm:$0xf]
  %v48 = vld [vmem:[%s3 + $0x70] sm:$0xf]
  %v49 = vld [vmem:[%s3 + $0x74] sm:$0xf]
  %v50 = vld [vmem:[%s3 + $0x78] sm:$0xf]
  %v51 = vld [vmem:[%s3 + $0x7c] sm:$0xf]
  %v52 = vld [vmem:[%s3 + $0x80] sm:$0xf]
  %v53 = vld [vmem:[%s3 + $0x84] sm:$0xf]
  %v54 = vld [vmem:[%s3 + $0x88] sm:$0xf]
  %v55 = vld [vmem:[%s3 + $0x8c] sm:$0xf]
  %v56 = vld [vmem:[%s3 + $0x90] sm:$0xf]
  %v57 = vld [vmem:[%s3 + $0x94] sm:$0xf]
  %v58 = vld [vmem:[%s3 + $0x98] sm:$0xf]
  %v59 = vld [vmem:[%s3 + $0x9c] sm:$0xf]
  %v60 = vld [vmem:[%s3 + $0xa0] sm:$0xf]
  %v61 = vld [vmem:[%s3 + $0xa4] sm:$0xf]
  %v62 = vld [vmem:[%s3 + $0xa8] sm:$0xf]
  %v63 = vld [vmem:[%s3 + $0xac] sm:$0xf]
  %v64 = vld [vmem:[%s3 + $0xb0] sm:$0xf]
  %v65 = vld [vmem:[%s3 + $0xb4] sm:$0xf]
  %v66 = vld [vmem:[%s3 + $0xb8] sm:$0xf]
  %v67 = vld [vmem:[%s3 + $0xbc] sm:$0xf]
  %v68 = vld [vmem:[%s3 + $0xc0] sm:$0xf]
  %v69 = vld [vmem:[%s3 + $0xc4] sm:$0xf]
  %v70 = vld [vmem:[%s3 + $0xc8] sm:$0xf]
  %v71 = vld [vmem:[%s3 + $0xcc] sm:$0xf]
  %v72 = vld [vmem:[%s3 + $0xd0] sm:$0xf]
  %v73 = vld [vmem:[%s3 + $0xd4] sm:$0xf]
  %v74 = vld [vmem:[%s3 + $0xd8] sm:$0xf]
  %v75 = vld [vmem:[%s3 + $0xdc] sm:$0xf]
  %v76 = vld [vmem:[%s3 + $0xe0] sm:$0xf]
  %v77 = vld [vmem:[%s3 + $0xe4] sm:$0xf]
  %v78 = vld [vmem:[%s3 + $0xe8] sm:$0xf]
  %v79 = vld [vmem:[%s3 + $0xec] sm:$0xf]
  %v80 = vld [vmem:[%s3 + $0xf0] sm:$0xf]
  %v81 = vld [vmem:[%s3 + $0xf4] sm:$0xf]
  %v82 = vld [vmem:[%s3 + $0xf8] sm:$0xf]
  %v83 = vld [vmem:[%s3 + $0xfc] sm:$0xf]
  %v84 = vld [vmem:[%s3 + $0x100] sm:$0xf]
  %v85 = vld [vmem:[%s3 + $0x104] sm:$0xf]
  %v86 = vld [vmem:[%s3 + $0x108] sm:$0xf]
  %v87 = vld [vmem:[%s3 + $0x10c] sm:$0xf]
  %v88 = vld [vmem:[%s3 + $0x110] sm:$0xf]
  %v89 = vld [vmem:[%s3 + $0x114] sm:$0xf]
  %v90 = vld [vmem:[%s3 + $0x118] sm:$0xf]
  %v91 = vld [vmem:[%s3 + $0x11c] sm:$0xf]
  %v92 = vld [vmem:[%s3 + $0x120] sm:$0xf]
  %v93 = vld [vmem:[%s3 + $0x124] sm:$0xf]
  %v94 = vld [vmem:[%s3 + $0x128] sm:$0xf]
  %v95 = vld [vmem:[%s3 + $0x12c] sm:$0xf]
  %v96 = vld [vmem:[%s3 + $0x130] sm:$0xf]
  %v97 = vld [vmem:[%s3 + $0x134] sm:$0xf]
  %v98 = vld [vmem:[%s3 + $0x138] sm:$0xf]
  %v99 = vld [vmem:[%s3 + $0x13c] sm:$0xf]
  %v100 = vld [vmem:[%s3 + $0x140] sm:$0xf]
  %v101 = vld [vmem:[%s3 + $0x144] sm:$0xf]
  %v102 = vld [vmem:[%s3 + $0x148] sm:$0xf]
  %v103 = vld [vmem:[%s3 + $0x14c] sm:$0xf]
  %v104 = vld [vmem:[%s3 + $0x150] sm:$0xf]
  %v105 = vld [vmem:[%s3 + $0x154] sm:$0xf]
  %v106 = vld [vmem:[%s3 + $0x158] sm:$0xf]
  %v107 = vld [vmem:[%s3 + $0x15c] sm:$0xf]
  %v108 = vld [vmem:[%s3 + $0x160] sm:$0xf]
  %v109 = vld [vmem:[%s3 + $0x164] sm:$0xf]
  %v110 = vld [vmem:[%s3 + $0x168] sm:$0xf]
  %v111 = vld [vmem:[%s3 + $0x16c] sm:$0xf]
  %v112 = vld [vmem:[%s3 + $0x170] sm:$0xf]
  %v113 = vld [vmem:[%s3 + $0x174] sm:$0xf]
  %v114 = vld [vmem:[%s3 + $0x178] sm:$0xf]
  %v115 = vld [vmem:[%s3 + $0x17c] sm:$0xf]
  %v116 = vld [vmem:[%s3 + $0x180] sm:$0xf]
  %v117 = vld [vmem:[%s3 + $0x184] sm:$0xf]
  %v118 = vld [vmem:[%s3 + $0x188] sm:$0xf]
  %v119 = vld [vmem:[%s3 + $0x18c] sm:$0xf]
  %v120 = vld [vmem:[%s3 + $0x190] sm:$0xf]
  %v121 = vld [vmem:[%s3 + $0x194] sm:$0xf]
  %v122 = vld [vmem:[%s3 + $0x198] sm:$0xf]
  %v123 = vld [vmem:[%s3 + $0x19c] sm:$0xf]
  %v124 = vld [vmem:[%s3 + $0x1a0] sm:$0xf]
  %v125 = vld [vmem:[%s3 + $0x1a4] sm:$0xf]
  %v126 = vld [vmem:[%s3 + $0x1a8] sm:$0xf]
  %v127 = vld [vmem:[%s3 + $0x1ac] sm:$0xf]
  %v128 = vld [vmem:[%s3 + $0x1b0] sm:$0xf]
  %v129 = vld [vmem:[%s3 + $0x1b4] sm:$0xf]
  %v130 = vld [vmem:[%s3 + $0x1b8] sm:$0xf]
  %v131 = vld [vmem:[%s3 + $0x1bc] sm:$0xf]
  %v132 = vld [vmem:[%s3 + $0x1c0] sm:$0xf]
  %v133 = vld [vmem:[%s3 + $0x1c4] sm:$0xf]
  %v134 = vld [vmem:[%s3 + $0x1c8] sm:$0xf]
  %v135 = vld [vmem:[%s3 + $0x1cc] sm:$0xf]
  %v136 = vld [vmem:[%s3 + $0x1d0] sm:$0xf]
  %v137 = vld [vmem:[%s3 + $0x1d4] sm:$0xf]
  %v138 = vld [vmem:[%s3 + $0x1d8] sm:$0xf]
  %v139 = vld [vmem:[%s3 + $0x1dc] sm:$0xf]
  %v140 = vld [vmem:[%s3 + $0x1e0] sm:$0xf]
  %v141 = vld [vmem:[%s3 + $0x1e4] sm:$0xf]
  %v142 = vld [vmem:[%s3 + $0x1e8] sm:$0xf]
  %v143 = vld [vmem:[%s3 + $0x1ec] sm:$0xf]
  %v144 = vld [vmem:[%s3 + $0x1f0] sm:$0xf]
  %v145 = vld [vmem:[%s3 + $0x1f4] sm:$0xf]
  %v146 = vld [vmem:[%s3 + $0x1f8] sm:$0xf]
  %v147 = vld [vmem:[%s3 + $0x1fc] sm:$0xf]
  %v148 = vld [vmem:[%s3 + $0x200] sm:$0xf]
  %v149 = vld [vmem:[%s3 + $0x204] sm:$0xf]
  %v150 = vld [vmem:[%s3 + $0x208] sm:$0xf]
  %v151 = vld [vmem:[%s3 + $0x20c] sm:$0xf]
  %v152 = vld [vmem:[%s3 + $0x210] sm:$0xf]
  %v153 = vld [vmem:[%s3 + $0x214] sm:$0xf]
  %v154 = vld [vmem:[%s3 + $0x218] sm:$0xf]
  %v155 = vld [vmem:[%s3 + $0x21c] sm:$0xf]
  %v156 = vld [vmem:[%s3 + $0x220] sm:$0xf]
  %v157 = vld [vmem:[%s3 + $0x224] sm:$0xf]
  %v158 = vld [vmem:[%s3 + $0x228] sm:$0xf]
  %v159 = vld [vmem:[%s3 + $0x22c] sm:$0xf]
  %v160 = vld [vmem:[%s3 + $0x230] sm:$0xf]
  %v161 = vld [vmem:[%s3 + $0x234] sm:$0xf]
  %v162 = vld [vmem:[%s3 + $0x238] sm:$0xf]
  %v163 = vld [vmem:[%s3 + $0x23c] sm:$0xf]
  %v164 = vld [vmem:[%s1] sm:$0x1]
  %v165 = vld [vmem:[%s2] sm:$0x1]
  %v166 = vld [vmem:[%s0] sm:$0xf]
  %v167 = vld [vmem:[%s0 + $0x4] sm:$0xf]
  %v168 = vld [vmem:[%s0 + $0x8] sm:$0xf]
  %v169 = vld [vmem:[%s0 + $0xc] sm:$0xf]
  %v170 = vld [vmem:[%s0 + $0x10] sm:$0xf]
  %v171 = vld [vmem:[%s0 + $0x14] sm:$0xf]
  %v172 = vld [vmem:[%s0 + $0x18] sm:$0xf]
  %v173 = vld [vmem:[%s0 + $0x1c] sm:$0xf]
  %v174 = vld [vmem:[%s0 + $0x20] sm:$0xf]
  %v175 = vld [vmem:[%s0 + $0x24] sm:$0xf]
  %v176 = vld [vmem:[%s0 + $0x28] sm:$0xf]
  %v177 = vld [vmem:[%s0 + $0x2c] sm:$0xf]
  %v178 = vld [vmem:[%s0 + $0x30] sm:$0xf]
  %v179 = vld [vmem:[%s0 + $0x34] sm:$0xf]
  %v180 = vld [vmem:[%s0 + $0x38] sm:$0xf]
  %v181 = vld [vmem:[%s0 + $0x3c] sm:$0xf]
  %v182 = vld [vmem:[%s0 + $0x40] sm:$0xf]
  %v183 = vld [vmem:[%s0 + $0x44] sm:$0xf]
  %v184 = vld [vmem:[%s0 + $0x48] sm:$0xf]
  %v185 = vld [vmem:[%s0 + $0x4c] sm:$0xf]
  %v186 = vld [vmem:[%s0 + $0x50] sm:$0xf]
  %v187 = vld [vmem:[%s0 + $0x54] sm:$0xf]
  %v188 = vld [vmem:[%s0 + $0x58] sm:$0xf]
  %v189 = vld [vmem:[%s0 + $0x5c] sm:$0xf]
  %v190 = vld [vmem:[%s0 + $0x60] sm:$0xf]
  %v191 = vld [vmem:[%s0 + $0x64] sm:$0xf]
  %v192 = vld [vmem:[%s0 + $0x68] sm:$0xf]
  %v193 = vld [vmem:[%s0 + $0x6c] sm:$0xf]
  %v194 = vld [vmem:[%s0 + $0x70] sm:$0xf]
  %v195 = vld [vmem:[%s0 + $0x74] sm:$0xf]
  %v196 = vld [vmem:[%s0 + $0x78] sm:$0xf]
  %v197 = vld [vmem:[%s0 + $0x7c] sm:$0xf]
  %v198 = vunpack.c.l.bf16 %v166
  %v199 = vunpack.c.l.bf16 %v167
  %v200 = vunpack.c.l.bf16 %v168
  %v201 = vunpack.c.l.bf16 %v169
  %v202 = vunpack.c.l.bf16 %v170
  %v203 = vunpack.c.l.bf16 %v171
  %v204 = vunpack.c.l.bf16 %v172
  %v205 = vunpack.c.l.bf16 %v173
  %v206 = vunpack.c.l.bf16 %v174
  %v207 = vunpack.c.l.bf16 %v175
  %v208 = vunpack.c.l.bf16 %v176
  %v209 = vunpack.c.l.bf16 %v177
  %v210 = vunpack.c.l.bf16 %v178
  %v211 = vunpack.c.l.bf16 %v179
  %v212 = vunpack.c.l.bf16 %v180
  %v213 = vunpack.c.l.bf16 %v181
  %v214 = vunpack.c.l.bf16 %v182
  %v215 = vunpack.c.l.bf16 %v183
  %v216 = vunpack.c.l.bf16 %v184
  %v217 = vunpack.c.l.bf16 %v185
  %v218 = vunpack.c.l.bf16 %v186
  %v219 = vunpack.c.l.bf16 %v187
  %v220 = vunpack.c.l.bf16 %v188
  %v221 = vunpack.c.l.bf16 %v189
  %v222 = vunpack.c.l.bf16 %v190
  %v223 = vunpack.c.l.bf16 %v191
  %v224 = vunpack.c.l.bf16 %v192
  %v225 = vunpack.c.l.bf16 %v193
  %v226 = vunpack.c.l.bf16 %v194
  %v227 = vunpack.c.l.bf16 %v195
  %v228 = vunpack.c.l.bf16 %v196
  %v229 = vunpack.c.l.bf16 %v197
  %v231 = vlaneseq
  %v232 = vshrl.u32 %v231, 7
  %v233 = vsub.s32 0, %v232
  %v234 = vrot.slane %v164, %v233
  %v236 = vmul.f32 %v198, %v234
  %v237 = vmul.f32 %v199, %v234
  %v238 = vmul.f32 %v200, %v234
  %v239 = vmul.f32 %v201, %v234
  %v240 = vmul.f32 %v202, %v234
  %v241 = vmul.f32 %v203, %v234
  %v242 = vmul.f32 %v204, %v234
  %v243 = vmul.f32 %v205, %v234
  %v244 = vmul.f32 %v206, %v234
  %v245 = vmul.f32 %v207, %v234
  %v246 = vmul.f32 %v208, %v234
  %v247 = vmul.f32 %v209, %v234
  %v248 = vmul.f32 %v210, %v234
  %v249 = vmul.f32 %v211, %v234
  %v250 = vmul.f32 %v212, %v234
  %v251 = vmul.f32 %v213, %v234
  %v252 = vmul.f32 %v214, %v234
  %v253 = vmul.f32 %v215, %v234
  %v254 = vmul.f32 %v216, %v234
  %v255 = vmul.f32 %v217, %v234
  %v256 = vmul.f32 %v218, %v234
  %v257 = vmul.f32 %v219, %v234
  %v258 = vmul.f32 %v220, %v234
  %v259 = vmul.f32 %v221, %v234
  %v260 = vmul.f32 %v222, %v234
  %v261 = vmul.f32 %v223, %v234
  %v262 = vmul.f32 %v224, %v234
  %v263 = vmul.f32 %v225, %v234
  %v264 = vmul.f32 %v226, %v234
  %v265 = vmul.f32 %v227, %v234
  %v266 = vmul.f32 %v228, %v234
  %v267 = vmul.f32 %v229, %v234
  %v269 = vlaneseq
  %v270 = vshrl.u32 %v269, 7
  %v271 = vsub.s32 0, %v270
  %v272 = vrot.slane %v165, %v271
  %v274 = vadd.f32 %v236, %v272
  %v275 = vadd.f32 %v237, %v272
  %v276 = vadd.f32 %v238, %v272
  %v277 = vadd.f32 %v239, %v272
  %v278 = vadd.f32 %v240, %v272
  %v279 = vadd.f32 %v241, %v272
  %v280 = vadd.f32 %v242, %v272
  %v281 = vadd.f32 %v243, %v272
  %v282 = vadd.f32 %v244, %v272
  %v283 = vadd.f32 %v245, %v272
  %v284 = vadd.f32 %v246, %v272
  %v285 = vadd.f32 %v247, %v272
  %v286 = vadd.f32 %v248, %v272
  %v287 = vadd.f32 %v249, %v272
  %v288 = vadd.f32 %v250, %v272
  %v289 = vadd.f32 %v251, %v272
  %v290 = vadd.f32 %v252, %v272
  %v291 = vadd.f32 %v253, %v272
  %v292 = vadd.f32 %v254, %v272
  %v293 = vadd.f32 %v255, %v272
  %v294 = vadd.f32 %v256, %v272
  %v295 = vadd.f32 %v257, %v272
  %v296 = vadd.f32 %v258, %v272
  %v297 = vadd.f32 %v259, %v272
  %v298 = vadd.f32 %v260, %v272
  %v299 = vadd.f32 %v261, %v272
  %v300 = vadd.f32 %v262, %v272
  %v301 = vadd.f32 %v263, %v272
  %v302 = vadd.f32 %v264, %v272
  %v303 = vadd.f32 %v265, %v272
  %v304 = vadd.f32 %v266, %v272
  %v305 = vadd.f32 %v267, %v272
  %v306 = vmax.f32 %v274, 0.0
  %v307 = vmax.f32 %v275, 0.0
  %v308 = vmax.f32 %v276, 0.0
  %v309 = vmax.f32 %v277, 0.0
  %v310 = vmax.f32 %v278, 0.0
  %v311 = vmax.f32 %v279, 0.0
  %v312 = vmax.f32 %v280, 0.0
  %v313 = vmax.f32 %v281, 0.0
  %v314 = vmax.f32 %v282, 0.0
  %v315 = vmax.f32 %v283, 0.0
  %v316 = vmax.f32 %v284, 0.0
  %v317 = vmax.f32 %v285, 0.0
  %v318 = vmax.f32 %v286, 0.0
  %v319 = vmax.f32 %v287, 0.0
  %v320 = vmax.f32 %v288, 0.0
  %v321 = vmax.f32 %v289, 0.0
  %v322 = vmax.f32 %v290, 0.0
  %v323 = vmax.f32 %v291, 0.0
  %v324 = vmax.f32 %v292, 0.0
  %v325 = vmax.f32 %v293, 0.0
  %v326 = vmax.f32 %v294, 0.0
  %v327 = vmax.f32 %v295, 0.0
  %v328 = vmax.f32 %v296, 0.0
  %v329 = vmax.f32 %v297, 0.0
  %v330 = vmax.f32 %v298, 0.0
  %v331 = vmax.f32 %v299, 0.0
  %v332 = vmax.f32 %v300, 0.0
  %v333 = vmax.f32 %v301, 0.0
  %v334 = vmax.f32 %v302, 0.0
  %v335 = vmax.f32 %v303, 0.0
  %v336 = vmax.f32 %v304, 0.0
  %v337 = vmax.f32 %v305, 0.0
  %v338 = vpack.c.bf16 %v307, %v306
  %v339 = vpack.c.bf16 %v309, %v308
  %v340 = vpack.c.bf16 %v311, %v310
  %v341 = vpack.c.bf16 %v313, %v312
  %v342 = vpack.c.bf16 %v315, %v314
  %v343 = vpack.c.bf16 %v317, %v316
  %v344 = vpack.c.bf16 %v319, %v318
  %v345 = vpack.c.bf16 %v321, %v320
  %v346 = vpack.c.bf16 %v323, %v322
  %v347 = vpack.c.bf16 %v325, %v324
  %v348 = vpack.c.bf16 %v327, %v326
  %v349 = vpack.c.bf16 %v329, %v328
  %v350 = vpack.c.bf16 %v331, %v330
  %v351 = vpack.c.bf16 %v333, %v332
  %v352 = vpack.c.bf16 %v335, %v334
  %v353 = vpack.c.bf16 %v337, %v336
  %v355 = vshrl.u32 0, 16
  %v357 = vrot.slane %v355, 7
  %v358 = vshll.u32 0, 16
  %v360 = vor.u32 %v357, %v358
  %v362 = vshrl.u32 %v338, 16
  %v364 = vrot.slane %v362, 7
  %v365 = vshll.u32 %v338, 16
  %v367 = vor.u32 %v364, %v365
  %v369 = vshrl.u32 %v339, 16
  %v371 = vrot.slane %v369, 7
  %v372 = vshll.u32 %v339, 16
  %v374 = vor.u32 %v371, %v372
  %v376 = vshrl.u32 %v340, 16
  %v378 = vrot.slane %v376, 7
  %v379 = vshll.u32 %v340, 16
  %v381 = vor.u32 %v378, %v379
  %v383 = vshrl.u32 %v341, 16
  %v385 = vrot.slane %v383, 7
  %v386 = vshll.u32 %v341, 16
  %v388 = vor.u32 %v385, %v386
  %v390 = vshrl.u32 %v342, 16
  %v392 = vrot.slane %v390, 7
  %v393 = vshll.u32 %v342, 16
  %v395 = vor.u32 %v392, %v393
  %v397 = vshrl.u32 %v343, 16
  %v399 = vrot.slane %v397, 7
  %v400 = vshll.u32 %v343, 16
  %v402 = vor.u32 %v399, %v400
  %v404 = vshrl.u32 %v344, 16
  %v406 = vrot.slane %v404, 7
  %v407 = vshll.u32 %v344, 16
  %v409 = vor.u32 %v406, %v407
  %v411 = vshrl.u32 %v345, 16
  %v413 = vrot.slane %v411, 7
  %v414 = vshll.u32 %v345, 16
  %v416 = vor.u32 %v413, %v414
  %v418 = vshrl.u32 %v346, 16
  %v420 = vrot.slane %v418, 7
  %v421 = vshll.u32 %v346, 16
  %v423 = vor.u32 %v420, %v421
  %v425 = vshrl.u32 %v347, 16
  %v427 = vrot.slane %v425, 7
  %v428 = vshll.u32 %v347, 16
  %v430 = vor.u32 %v427, %v428
  %v432 = vshrl.u32 %v348, 16
  %v434 = vrot.slane %v432, 7
  %v435 = vshll.u32 %v348, 16
  %v437 = vor.u32 %v434, %v435
  %v439 = vshrl.u32 %v349, 16
  %v441 = vrot.slane %v439, 7
  %v442 = vshll.u32 %v349, 16
  %v444 = vor.u32 %v441, %v442
  %v446 = vshrl.u32 %v350, 16
  %v448 = vrot.slane %v446, 7
  %v449 = vshll.u32 %v350, 16
  %v451 = vor.u32 %v448, %v449
  %v453 = vshrl.u32 %v351, 16
  %v455 = vrot.slane %v453, 7
  %v456 = vshll.u32 %v351, 16
  %v458 = vor.u32 %v455, %v456
  %v460 = vshrl.u32 %v352, 16
  %v462 = vrot.slane %v460, 7
  %v463 = vshll.u32 %v352, 16
  %v465 = vor.u32 %v462, %v463
  %v467 = vshrl.u32 %v353, 16
  %v469 = vrot.slane %v467, 7
  %v470 = vshll.u32 %v353, 16
  %v472 = vor.u32 %v469, %v470
  %vm507 = vcmask 1040384
  %vm508 = vsmask.f32 256
  %vm509 = vmand %vm507, %vm508
  %v510 = vsel %vm509, 0, %v360
  %v511 = vsel %vm509, 0, %v367
  %v512 = vsel %vm509, 0, %v374
  %v513 = vsel %vm509, 0, %v381
  %v514 = vsel %vm509, 0, %v388
  %v515 = vsel %vm509, 0, %v395
  %v516 = vsel %vm509, 0, %v402
  %v517 = vsel %vm509, 0, %v409
  %v518 = vsel %vm509, 0, %v416
  %v519 = vsel %vm509, 0, %v423
  %v520 = vsel %vm509, 0, %v430
  %v521 = vsel %vm509, 0, %v437
  %v522 = vsel %vm509, 0, %v444
  %v523 = vsel %vm509, 0, %v451
  %v524 = vsel %vm509, 0, %v458
  %v525 = vsel %vm509, 0, %v465
  %v526 = vsel %vm509, 0, %v472
  %v527 = vsel %vm509, %v357, 0
  %v528 = vsel %vm509, %v364, 0
  %v529 = vsel %vm509, %v371, 0
  %v530 = vsel %vm509, %v378, 0
  %v531 = vsel %vm509, %v385, 0
  %v532 = vsel %vm509, %v392, 0
  %v533 = vsel %vm509, %v399, 0
  %v534 = vsel %vm509, %v406, 0
  %v535 = vsel %vm509, %v413, 0
  %v536 = vsel %vm509, %v420, 0
  %v537 = vsel %vm509, %v427, 0
  %v538 = vsel %vm509, %v434, 0
  %v539 = vsel %vm509, %v441, 0
  %v540 = vsel %vm509, %v448, 0
  %v541 = vsel %vm509, %v455, 0
  %v542 = vsel %vm509, %v462, 0
  %v543 = vsel %vm509, %v469, 0
  %vm544 = vsmask.f32 7424
  %v546 = vshrl.u32 %v510, 16
  %v548 = vshll.u32 %v510, 16
  %v550 = vrot.slane %v548, 1
  %v551 = vor.u32 %v546, %v550
  %v553 = vshll.u32 %v527, 16
  %v555 = vrot.slane %v553, 1
  %v556 = vsel %vm544, %v551, %v555
  %v558 = vshrl.u32 %v511, 16
  %v560 = vshll.u32 %v511, 16
  %v562 = vrot.slane %v560, 1
  %v563 = vor.u32 %v558, %v562
  %v565 = vshll.u32 %v528, 16
  %v567 = vrot.slane %v565, 1
  %v568 = vsel %vm544, %v563, %v567
  %v570 = vshrl.u32 %v512, 16
  %v572 = vshll.u32 %v512, 16
  %v574 = vrot.slane %v572, 1
  %v575 = vor.u32 %v570, %v574
  %v577 = vshll.u32 %v529, 16
  %v579 = vrot.slane %v577, 1
  %v580 = vsel %vm544, %v575, %v579
  %v582 = vshrl.u32 %v513, 16
  %v584 = vshll.u32 %v513, 16
  %v586 = vrot.slane %v584, 1
  %v587 = vor.u32 %v582, %v586
  %v589 = vshll.u32 %v530, 16
  %v591 = vrot.slane %v589, 1
  %v592 = vsel %vm544, %v587, %v591
  %v594 = vshrl.u32 %v514, 16
  %v596 = vshll.u32 %v514, 16
  %v598 = vrot.slane %v596, 1
  %v599 = vor.u32 %v594, %v598
  %v601 = vshll.u32 %v531, 16
  %v603 = vrot.slane %v601, 1
  %v604 = vsel %vm544, %v599, %v603
  %v606 = vshrl.u32 %v515, 16
  %v608 = vshll.u32 %v515, 16
  %v610 = vrot.slane %v608, 1
  %v611 = vor.u32 %v606, %v610
  %v613 = vshll.u32 %v532, 16
  %v615 = vrot.slane %v613, 1
  %v616 = vsel %vm544, %v611, %v615
  %v618 = vshrl.u32 %v516, 16
  %v620 = vshll.u32 %v516, 16
  %v622 = vrot.slane %v620, 1
  %v623 = vor.u32 %v618, %v622
  %v625 = vshll.u32 %v533, 16
  %v627 = vrot.slane %v625, 1
  %v628 = vsel %vm544, %v623, %v627
  %v630 = vshrl.u32 %v517, 16
  %v632 = vshll.u32 %v517, 16
  %v634 = vrot.slane %v632, 1
  %v635 = vor.u32 %v630, %v634
  %v637 = vshll.u32 %v534, 16
  %v639 = vrot.slane %v637, 1
  %v640 = vsel %vm544, %v635, %v639
  %v642 = vshrl.u32 %v518, 16
  %v644 = vshll.u32 %v518, 16
  %v646 = vrot.slane %v644, 1
  %v647 = vor.u32 %v642, %v646
  %v649 = vshll.u32 %v535, 16
  %v651 = vrot.slane %v649, 1
  %v652 = vsel %vm544, %v647, %v651
  %v654 = vshrl.u32 %v519, 16
  %v656 = vshll.u32 %v519, 16
  %v658 = vrot.slane %v656, 1
  %v659 = vor.u32 %v654, %v658
  %v661 = vshll.u32 %v536, 16
  %v663 = vrot.slane %v661, 1
  %v664 = vsel %vm544, %v659, %v663
  %v666 = vshrl.u32 %v520, 16
  %v668 = vshll.u32 %v520, 16
  %v670 = vrot.slane %v668, 1
  %v671 = vor.u32 %v666, %v670
  %v673 = vshll.u32 %v537, 16
  %v675 = vrot.slane %v673, 1
  %v676 = vsel %vm544, %v671, %v675
  %v678 = vshrl.u32 %v521, 16
  %v680 = vshll.u32 %v521, 16
  %v682 = vrot.slane %v680, 1
  %v683 = vor.u32 %v678, %v682
  %v685 = vshll.u32 %v538, 16
  %v687 = vrot.slane %v685, 1
  %v688 = vsel %vm544, %v683, %v687
  %v690 = vshrl.u32 %v522, 16
  %v692 = vshll.u32 %v522, 16
  %v694 = vrot.slane %v692, 1
  %v695 = vor.u32 %v690, %v694
  %v697 = vshll.u32 %v539, 16
  %v699 = vrot.slane %v697, 1
  %v700 = vsel %vm544, %v695, %v699
  %v702 = vshrl.u32 %v523, 16
  %v704 = vshll.u32 %v523, 16
  %v706 = vrot.slane %v704, 1
  %v707 = vor.u32 %v702, %v706
  %v709 = vshll.u32 %v540, 16
  %v711 = vrot.slane %v709, 1
  %v712 = vsel %vm544, %v707, %v711
  %v714 = vshrl.u32 %v524, 16
  %v716 = vshll.u32 %v524, 16
  %v718 = vrot.slane %v716, 1
  %v719 = vor.u32 %v714, %v718
  %v721 = vshll.u32 %v541, 16
  %v723 = vrot.slane %v721, 1
  %v724 = vsel %vm544, %v719, %v723
  %v726 = vshrl.u32 %v525, 16
  %v728 = vshll.u32 %v525, 16
  %v730 = vrot.slane %v728, 1
  %v731 = vor.u32 %v726, %v730
  %v733 = vshll.u32 %v542, 16
  %v735 = vrot.slane %v733, 1
  %v736 = vsel %vm544, %v731, %v735
  %v738 = vshrl.u32 %v526, 16
  %v740 = vshll.u32 %v526, 16
  %v742 = vrot.slane %v740, 1
  %v743 = vor.u32 %v738, %v742
  %v745 = vshll.u32 %v543, 16
  %v747 = vrot.slane %v745, 1
  %v748 = vsel %vm544, %v743, %v747
  %v814 = vunpack.c.l.b16 %v68
  %v815 = vunpack.c.l.b16 %v69
  %v816 = vunpack.c.l.b16 %v70
  %v817 = vunpack.c.l.b16 %v71
  %v818 = vunpack.c.l.b16 %v72
  %v819 = vunpack.c.l.b16 %v73
  %v820 = vunpack.c.l.b16 %v74
  %v821 = vunpack.c.l.b16 %v75
  %v822 = vunpack.c.l.b16 %v76
  %v823 = vunpack.c.l.b16 %v77
  %v824 = vunpack.c.l.b16 %v78
  %v825 = vunpack.c.l.b16 %v79
  %v826 = vunpack.c.l.b16 %v80
  %v827 = vunpack.c.l.b16 %v81
  %v828 = vunpack.c.l.b16 %v82
  %v829 = vunpack.c.l.b16 %v83
  %v830 = vunpack.c.l.b16 %v84
  %v831 = vunpack.c.l.b16 %v85
  %v832 = vunpack.c.l.b16 %v86
  %v833 = vunpack.c.l.b16 %v87
  %v834 = vunpack.c.l.b16 %v88
  %v835 = vunpack.c.l.b16 %v89
  %v836 = vunpack.c.l.b16 %v90
  %v837 = vunpack.c.l.b16 %v91
  %v838 = vunpack.c.l.b16 %v92
  %v839 = vunpack.c.l.b16 %v93
  %v840 = vunpack.c.l.b16 %v94
  %v841 = vunpack.c.l.b16 %v95
  %v842 = vunpack.c.l.b16 %v96
  %v843 = vunpack.c.l.b16 %v97
  %v844 = vunpack.c.l.b16 %v98
  %v845 = vunpack.c.l.b16 %v99
  %v846 = vunpack.c.l.b16 %v100
  %v847 = vunpack.c.l.b16 %v101
  %v848 = vunpack.c.l.b16 %v102
  %v849 = vunpack.c.l.b16 %v103
  %v850 = vunpack.c.l.b16 %v104
  %v851 = vunpack.c.l.b16 %v105
  %v852 = vunpack.c.l.b16 %v106
  %v853 = vunpack.c.l.b16 %v107
  %v854 = vunpack.c.l.b16 %v108
  %v855 = vunpack.c.l.b16 %v109
  %v856 = vunpack.c.l.b16 %v110
  %v857 = vunpack.c.l.b16 %v111
  %v858 = vunpack.c.l.b16 %v112
  %v859 = vunpack.c.l.b16 %v113
  %v860 = vunpack.c.l.b16 %v114
  %v861 = vunpack.c.l.b16 %v115
  %v862 = vpack.c.b16 %v815, %v814
  %v863 = vpack.c.b16 %v817, %v816
  %v864 = vpack.c.b16 %v819, %v818
  %v865 = vpack.c.b16 %v821, %v820
  %v866 = vpack.c.b16 %v823, %v822
  %v867 = vpack.c.b16 %v825, %v824
  %v868 = vpack.c.b16 %v827, %v826
  %v869 = vpack.c.b16 %v829, %v828
  %v870 = vpack.c.b16 %v831, %v830
  %v871 = vpack.c.b16 %v833, %v832
  %v872 = vpack.c.b16 %v835, %v834
  %v873 = vpack.c.b16 %v837, %v836
  %v874 = vpack.c.b16 %v839, %v838
  %v875 = vpack.c.b16 %v841, %v840
  %v876 = vpack.c.b16 %v843, %v842
  %v877 = vpack.c.b16 %v845, %v844
  %v878 = vpack.c.b16 %v847, %v846
  %v879 = vpack.c.b16 %v849, %v848
  %v880 = vpack.c.b16 %v851, %v850
  %v881 = vpack.c.b16 %v853, %v852
  %v882 = vpack.c.b16 %v855, %v854
  %v883 = vpack.c.b16 %v857, %v856
  %v884 = vpack.c.b16 %v859, %v858
  %v885 = vpack.c.b16 %v861, %v860
  %910 = vmatprep.subr.bf16.mxu0 0
  %911 = vmatpush1.bf16.msra.mxu0 %v862
  %912 = vmatprep.subr.bf16.mxu0 0
  %913 = vmatpush1.bf16.msra.mxu0 %v863
  %914 = vmatprep.subr.bf16.mxu0 0
  %915 = vmatpush1.bf16.msra.mxu0 %v864
  %916 = vmatprep.subr.bf16.mxu0 0
  %917 = vmatpush1.bf16.msra.mxu0 %v865
  %918 = vmatprep.subr.bf16.mxu0 0
  %919 = vmatpush1.bf16.msra.mxu0 %v866
  %920 = vmatprep.subr.bf16.mxu0 0
  %921 = vmatpush1.bf16.msra.mxu0 %v867
  %922 = vmatprep.subr.bf16.mxu0 0
  %923 = vmatpush1.bf16.msra.mxu0 %v868
  %924 = vmatprep.subr.bf16.mxu0 0
  %925 = vmatpush1.bf16.msra.mxu0 %v869
  %926 = vmatprep.subr.bf16.mxu0 0
  %927 = vmatpush1.bf16.msra.mxu0 %v870
  %928 = vmatprep.subr.bf16.mxu0 0
  %929 = vmatpush1.bf16.msra.mxu0 %v871
  %930 = vmatprep.subr.bf16.mxu0 0
  %931 = vmatpush1.bf16.msra.mxu0 %v872
  %932 = vmatprep.subr.bf16.mxu0 0
  %933 = vmatpush1.bf16.msra.mxu0 %v873
  %934 = vmatprep.subr.bf16.mxu0 0
  %935 = vmatpush1.bf16.msra.mxu0 %v874
  %936 = vmatprep.subr.bf16.mxu0 0
  %937 = vmatpush1.bf16.msra.mxu0 %v875
  %938 = vmatprep.subr.bf16.mxu0 0
  %939 = vmatpush1.bf16.msra.mxu0 %v876
  %940 = vmatprep.subr.bf16.mxu0 0
  %941 = vmatpush1.bf16.msra.mxu0 %v877
  %942 = vmatprep.mubr.bf16.mxu0 %v568
  %943 = vmatmul.mubr.bf16.gmra.mrb[0].mxu0 %v556
  %v944 = vpop.f32.mrb[0].mxu0
  %v945 = vadd.f32 0.0, %v944
  %v946 = vpop.f32.mrb[0].mxu0
  %v947 = vpop.f32.mrb[0].mxu0
  %v948 = vadd.f32 0.0, %v947
  %v949 = vpop.f32.mrb[0].mxu0
  %950 = vmatprep.mubr.bf16.mxu0 %v580
  %951 = vmatmul.mubr.bf16.gmra.mrb[0].mxu0 %v568
  %v952 = vpop.f32.mrb[0].mxu0
  %v953 = vadd.f32 0.0, %v952
  %v954 = vpop.f32.mrb[0].mxu0
  %v955 = vpop.f32.mrb[0].mxu0
  %v956 = vadd.f32 0.0, %v955
  %v957 = vpop.f32.mrb[0].mxu0
  %958 = vmatprep.mubr.bf16.mxu0 %v592
  %959 = vmatmul.mubr.bf16.gmra.mrb[0].mxu0 %v580
  %v960 = vpop.f32.mrb[0].mxu0
  %v961 = vadd.f32 0.0, %v960
  %v962 = vpop.f32.mrb[0].mxu0
  %v963 = vpop.f32.mrb[0].mxu0
  %v964 = vadd.f32 0.0, %v963
  %v965 = vpop.f32.mrb[0].mxu0
  %966 = vmatprep.mubr.bf16.mxu0 %v604
  %967 = vmatmul.mubr.bf16.gmra.mrb[0].mxu0 %v592
  %v968 = vpop.f32.mrb[0].mxu0
  %v969 = vadd.f32 0.0, %v968
  %v970 = vpop.f32.mrb[0].mxu0
  %v971 = vpop.f32.mrb[0].mxu0
  %v972 = vadd.f32 0.0, %v971
  %v973 = vpop.f32.mrb[0].mxu0
  %974 = vmatprep.mubr.bf16.mxu0 %v616
  %975 = vmatmul.mubr.bf16.gmra.mrb[0].mxu0 %v604
  %v976 = vpop.f32.mrb[0].mxu0
  %v977 = vadd.f32 0.0, %v976
  %v978 = vpop.f32.mrb[0].mxu0
  %v979 = vpop.f32.mrb[0].mxu0
  %v980 = vadd.f32 0.0, %v979
  %v981 = vpop.f32.mrb[0].mxu0
  %982 = vmatprep.mubr.bf16.mxu0 %v628
  %983 = vmatmul.mubr.bf16.gmra.mrb[0].mxu0 %v616
  %v984 = vpop.f32.mrb[0].mxu0
  %v985 = vadd.f32 0.0, %v984
  %v986 = vpop.f32.mrb[0].mxu0
  %v987 = vpop.f32.mrb[0].mxu0
  %v988 = vadd.f32 0.0, %v987
  %v989 = vpop.f32.mrb[0].mxu0
  %990 = vmatprep.mubr.bf16.mxu0 %v640
  %991 = vmatmul.mubr.bf16.gmra.mrb[0].mxu0 %v628
  %v992 = vpop.f32.mrb[0].mxu0
  %v993 = vadd.f32 0.0, %v992
  %v994 = vpop.f32.mrb[0].mxu0
  %v995 = vpop.f32.mrb[0].mxu0
  %v996 = vadd.f32 0.0, %v995
  %v997 = vpop.f32.mrb[0].mxu0
  %998 = vmatprep.mubr.bf16.mxu0 %v652
  %999 = vmatmul.mubr.bf16.gmra.mrb[0].mxu0 %v640
  %v1000 = vpop.f32.mrb[0].mxu0
  %v1001 = vadd.f32 0.0, %v1000
  %v1002 = vpop.f32.mrb[0].mxu0
  %v1003 = vpop.f32.mrb[0].mxu0
  %v1004 = vadd.f32 0.0, %v1003
  %v1005 = vpop.f32.mrb[0].mxu0
  %1006 = vmatprep.mubr.bf16.mxu0 %v664
  %1007 = vmatmul.mubr.bf16.gmra.mrb[0].mxu0 %v652
  %v1008 = vpop.f32.mrb[0].mxu0
  %v1009 = vadd.f32 0.0, %v1008
  %v1010 = vpop.f32.mrb[0].mxu0
  %v1011 = vpop.f32.mrb[0].mxu0
  %v1012 = vadd.f32 0.0, %v1011
  %v1013 = vpop.f32.mrb[0].mxu0
  %1014 = vmatprep.mubr.bf16.mxu0 %v676
  %1015 = vmatmul.mubr.bf16.gmra.mrb[0].mxu0 %v664
  %v1016 = vpop.f32.mrb[0].mxu0
  %v1017 = vadd.f32 0.0, %v1016
  %v1018 = vpop.f32.mrb[0].mxu0
  %v1019 = vpop.f32.mrb[0].mxu0
  %v1020 = vadd.f32 0.0, %v1019
  %v1021 = vpop.f32.mrb[0].mxu0
  %1022 = vmatprep.mubr.bf16.mxu0 %v688
  %1023 = vmatmul.mubr.bf16.gmra.mrb[0].mxu0 %v676
  %v1024 = vpop.f32.mrb[0].mxu0
  %v1025 = vadd.f32 0.0, %v1024
  %v1026 = vpop.f32.mrb[0].mxu0
  %v1027 = vpop.f32.mrb[0].mxu0
  %v1028 = vadd.f32 0.0, %v1027
  %v1029 = vpop.f32.mrb[0].mxu0
  %1030 = vmatprep.mubr.bf16.mxu0 %v700
  %1031 = vmatmul.mubr.bf16.gmra.mrb[0].mxu0 %v688
  %v1032 = vpop.f32.mrb[0].mxu0
  %v1033 = vadd.f32 0.0, %v1032
  %v1034 = vpop.f32.mrb[0].mxu0
  %v1035 = vpop.f32.mrb[0].mxu0
  %v1036 = vadd.f32 0.0, %v1035
  %v1037 = vpop.f32.mrb[0].mxu0
  %1038 = vmatprep.mubr.bf16.mxu0 %v712
  %1039 = vmatmul.mubr.bf16.gmra.mrb[0].mxu0 %v700
  %v1040 = vpop.f32.mrb[0].mxu0
  %v1041 = vadd.f32 0.0, %v1040
  %v1042 = vpop.f32.mrb[0].mxu0
  %v1043 = vpop.f32.mrb[0].mxu0
  %v1044 = vadd.f32 0.0, %v1043
  %v1045 = vpop.f32.mrb[0].mxu0
  %1046 = vmatprep.mubr.bf16.mxu0 %v724
  %1047 = vmatmul.mubr.bf16.gmra.mrb[0].mxu0 %v712
  %v1048 = vpop.f32.mrb[0].mxu0
  %v1049 = vadd.f32 0.0, %v1048
  %v1050 = vpop.f32.mrb[0].mxu0
  %v1051 = vpop.f32.mrb[0].mxu0
  %v1052 = vadd.f32 0.0, %v1051
  %v1053 = vpop.f32.mrb[0].mxu0
  %1054 = vmatprep.mubr.bf16.mxu0 %v736
  %1055 = vmatmul.mubr.bf16.gmra.mrb[0].mxu0 %v724
  %v1056 = vpop.f32.mrb[0].mxu0
  %v1057 = vadd.f32 0.0, %v1056
  %v1058 = vpop.f32.mrb[0].mxu0
  %v1059 = vpop.f32.mrb[0].mxu0
  %v1060 = vadd.f32 0.0, %v1059
  %v1061 = vpop.f32.mrb[0].mxu0
  %1062 = vmatprep.mubr.bf16.mxu0 %v748
  %1063 = vmatmul.mubr.bf16.gmra.mrb[0].mxu0 %v736
  %v1064 = vpop.f32.mrb[0].mxu0
  %v1065 = vadd.f32 0.0, %v1064
  %v1066 = vpop.f32.mrb[0].mxu0
  %v1067 = vpop.f32.mrb[0].mxu0
  %v1068 = vadd.f32 0.0, %v1067
  %v1069 = vpop.f32.mrb[0].mxu0
  %1070 = vdwg.mxu0
  %1071 = vmatprep.subr.bf16.mxu0 0
  %1072 = vmatpush1.bf16.msra.mxu0 %v878
  %1073 = vmatprep.subr.bf16.mxu0 0
  %1074 = vmatpush1.bf16.msra.mxu0 %v879
  %1075 = vmatprep.subr.bf16.mxu0 0
  %1076 = vmatpush1.bf16.msra.mxu0 %v880
  %1077 = vmatprep.subr.bf16.mxu0 0
  %1078 = vmatpush1.bf16.msra.mxu0 %v881
  %1079 = vmatprep.subr.bf16.mxu0 0
  %1080 = vmatpush1.bf16.msra.mxu0 %v882
  %1081 = vmatprep.subr.bf16.mxu0 0
  %1082 = vmatpush1.bf16.msra.mxu0 %v883
  %1083 = vmatprep.subr.bf16.mxu0 0
  %1084 = vmatpush1.bf16.msra.mxu0 %v884
  %1085 = vmatprep.subr.bf16.mxu0 0
  %1086 = vmatpush1.bf16.msra.mxu0 %v885
  %1087 = vmatprep.subr.bf16.mxu0 0
  %1088 = vmatpush1.bf16.msra.mxu0 0
  %1089 = vmatprep.subr.bf16.mxu0 0
  %1090 = vmatpush1.bf16.msra.mxu0 0
  %1091 = vmatprep.subr.bf16.mxu0 0
  %1092 = vmatpush1.bf16.msra.mxu0 0
  %1093 = vmatprep.subr.bf16.mxu0 0
  %1094 = vmatpush1.bf16.msra.mxu0 0
  %1095 = vmatprep.subr.bf16.mxu0 0
  %1096 = vmatpush1.bf16.msra.mxu0 0
  %1097 = vmatprep.subr.bf16.mxu0 0
  %1098 = vmatpush1.bf16.msra.mxu0 0
  %1099 = vmatprep.subr.bf16.mxu0 0
  %1100 = vmatpush1.bf16.msra.mxu0 0
  %1101 = vmatprep.subr.bf16.mxu0 0
  %1102 = vmatpush1.bf16.msra.mxu0 0
  %1103 = vmatprep.mubr.bf16.mxu0 0
  %1104 = vmatmul.mubr.bf16.gmra.mrb[0].mxu0 %v580
  %v1105 = vpop.f32.mrb[0].mxu0
  %v1106 = vadd.f32 %v945, %v1105
  %v1107 = vpop.f32.mrb[0].mxu0
  %v1108 = vpop.f32.mrb[0].mxu0
  %v1109 = vadd.f32 %v948, %v1108
  %v1110 = vpop.f32.mrb[0].mxu0
  %1111 = vmatprep.mubr.bf16.mxu0 0
  %1112 = vmatmul.mubr.bf16.gmra.mrb[0].mxu0 %v592
  %v1113 = vpop.f32.mrb[0].mxu0
  %v1114 = vadd.f32 %v953, %v1113
  %v1115 = vpop.f32.mrb[0].mxu0
  %v1116 = vpop.f32.mrb[0].mxu0
  %v1117 = vadd.f32 %v956, %v1116
  %v1118 = vpop.f32.mrb[0].mxu0
  %1119 = vmatprep.mubr.bf16.mxu0 0
  %1120 = vmatmul.mubr.bf16.gmra.mrb[0].mxu0 %v604
  %v1121 = vpop.f32.mrb[0].mxu0
  %v1122 = vadd.f32 %v961, %v1121
  %v1123 = vpop.f32.mrb[0].mxu0
  %v1124 = vpop.f32.mrb[0].mxu0
  %v1125 = vadd.f32 %v964, %v1124
  %v1126 = vpop.f32.mrb[0].mxu0
  %1127 = vmatprep.mubr.bf16.mxu0 0
  %1128 = vmatmul.mubr.bf16.gmra.mrb[0].mxu0 %v616
  %v1129 = vpop.f32.mrb[0].mxu0
  %v1130 = vadd.f32 %v969, %v1129
  %v1131 = vpop.f32.mrb[0].mxu0
  %v1132 = vpop.f32.mrb[0].mxu0
  %v1133 = vadd.f32 %v972, %v1132
  %v1134 = vpop.f32.mrb[0].mxu0
  %1135 = vmatprep.mubr.bf16.mxu0 0
  %1136 = vmatmul.mubr.bf16.gmra.mrb[0].mxu0 %v628
  %v1137 = vpop.f32.mrb[0].mxu0
  %v1138 = vadd.f32 %v977, %v1137
  %v1139 = vpop.f32.mrb[0].mxu0
  %v1140 = vpop.f32.mrb[0].mxu0
  %v1141 = vadd.f32 %v980, %v1140
  %v1142 = vpop.f32.mrb[0].mxu0
  %1143 = vmatprep.mubr.bf16.mxu0 0
  %1144 = vmatmul.mubr.bf16.gmra.mrb[0].mxu0 %v640
  %v1145 = vpop.f32.mrb[0].mxu0
  %v1146 = vadd.f32 %v985, %v1145
  %v1147 = vpop.f32.mrb[0].mxu0
  %v1148 = vpop.f32.mrb[0].mxu0
  %v1149 = vadd.f32 %v988, %v1148
  %v1150 = vpop.f32.mrb[0].mxu0
  %1151 = vmatprep.mubr.bf16.mxu0 0
  %1152 = vmatmul.mubr.bf16.gmra.mrb[0].mxu0 %v652
  %v1153 = vpop.f32.mrb[0].mxu0
  %v1154 = vadd.f32 %v993, %v1153
  %v1155 = vpop.f32.mrb[0].mxu0
  %v1156 = vpop.f32.mrb[0].mxu0
  %v1157 = vadd.f32 %v996, %v1156
  %v1158 = vpop.f32.mrb[0].mxu0
  %1159 = vmatprep.mubr.bf16.mxu0 0
  %1160 = vmatmul.mubr.bf16.gmra.mrb[0].mxu0 %v664
  %v1161 = vpop.f32.mrb[0].mxu0
  %v1162 = vadd.f32 %v1001, %v1161
  %v1163 = vpop.f32.mrb[0].mxu0
  %v1164 = vpop.f32.mrb[0].mxu0
  %v1165 = vadd.f32 %v1004, %v1164
  %v1166 = vpop.f32.mrb[0].mxu0
  %1167 = vmatprep.mubr.bf16.mxu0 0
  %1168 = vmatmul.mubr.bf16.gmra.mrb[0].mxu0 %v676
  %v1169 = vpop.f32.mrb[0].mxu0
  %v1170 = vadd.f32 %v1009, %v1169
  %v1171 = vpop.f32.mrb[0].mxu0
  %v1172 = vpop.f32.mrb[0].mxu0
  %v1173 = vadd.f32 %v1012, %v1172
  %v1174 = vpop.f32.mrb[0].mxu0
  %1175 = vmatprep.mubr.bf16.mxu0 0
  %1176 = vmatmul.mubr.bf16.gmra.mrb[0].mxu0 %v688
  %v1177 = vpop.f32.mrb[0].mxu0
  %v1178 = vadd.f32 %v1017, %v1177
  %v1179 = vpop.f32.mrb[0].mxu0
  %v1180 = vpop.f32.mrb[0].mxu0
  %v1181 = vadd.f32 %v1020, %v1180
  %v1182 = vpop.f32.mrb[0].mxu0
  %1183 = vmatprep.mubr.bf16.mxu0 0
  %1184 = vmatmul.mubr.bf16.gmra.mrb[0].mxu0 %v700
  %v1185 = vpop.f32.mrb[0].mxu0
  %v1186 = vadd.f32 %v1025, %v1185
  %v1187 = vpop.f32.mrb[0].mxu0
  %v1188 = vpop.f32.mrb[0].mxu0
  %v1189 = vadd.f32 %v1028, %v1188
  %v1190 = vpop.f32.mrb[0].mxu0
  %1191 = vmatprep.mubr.bf16.mxu0 0
  %1192 = vmatmul.mubr.bf16.gmra.mrb[0].mxu0 %v712
  %v1193 = vpop.f32.mrb[0].mxu0
  %v1194 = vadd.f32 %v1033, %v1193
  %v1195 = vpop.f32.mrb[0].mxu0
  %v1196 = vpop.f32.mrb[0].mxu0
  %v1197 = vadd.f32 %v1036, %v1196
  %v1198 = vpop.f32.mrb[0].mxu0
  %1199 = vmatprep.mubr.bf16.mxu0 0
  %1200 = vmatmul.mubr.bf16.gmra.mrb[0].mxu0 %v724
  %v1201 = vpop.f32.mrb[0].mxu0
  %v1202 = vadd.f32 %v1041, %v1201
  %v1203 = vpop.f32.mrb[0].mxu0
  %v1204 = vpop.f32.mrb[0].mxu0
  %v1205 = vadd.f32 %v1044, %v1204
  %v1206 = vpop.f32.mrb[0].mxu0
  %1207 = vmatprep.mubr.bf16.mxu0 0
  %1208 = vmatmul.mubr.bf16.gmra.mrb[0].mxu0 %v736
  %v1209 = vpop.f32.mrb[0].mxu0
  %v1210 = vadd.f32 %v1049, %v1209
  %v1211 = vpop.f32.mrb[0].mxu0
  %v1212 = vpop.f32.mrb[0].mxu0
  %v1213 = vadd.f32 %v1052, %v1212
  %v1214 = vpop.f32.mrb[0].mxu0
  %1215 = vmatprep.mubr.bf16.mxu0 0
  %1216 = vmatmul.mubr.bf16.gmra.mrb[0].mxu0 %v748
  %v1217 = vpop.f32.mrb[0].mxu0
  %v1218 = vadd.f32 %v1057, %v1217
  %v1219 = vpop.f32.mrb[0].mxu0
  %v1220 = vpop.f32.mrb[0].mxu0
  %v1221 = vadd.f32 %v1060, %v1220
  %v1222 = vpop.f32.mrb[0].mxu0
  %1223 = vmatprep.mubr.bf16.mxu0 0
  %1224 = vmatmul.mubr.bf16.gmra.mrb[0].mxu0 %v556
  %v1225 = vpop.f32.mrb[0].mxu0
  %v1226 = vadd.f32 %v1065, %v1225
  %v1227 = vpop.f32.mrb[0].mxu0
  %v1228 = vpop.f32.mrb[0].mxu0
  %v1229 = vadd.f32 %v1068, %v1228
  %v1230 = vpop.f32.mrb[0].mxu0
  %1231 = vdwg.mxu0
  %v1280 = vunpack.c.l.b16 %v20
  %v1281 = vunpack.c.l.b16 %v21
  %v1282 = vunpack.c.l.b16 %v22
  %v1283 = vunpack.c.l.b16 %v23
  %v1284 = vunpack.c.l.b16 %v24
  %v1285 = vunpack.c.l.b16 %v25
  %v1286 = vunpack.c.l.b16 %v26
  %v1287 = vunpack.c.l.b16 %v27
  %v1288 = vunpack.c.l.b16 %v28
  %v1289 = vunpack.c.l.b16 %v29
  %v1290 = vunpack.c.l.b16 %v30
  %v1291 = vunpack.c.l.b16 %v31
  %v1292 = vunpack.c.l.b16 %v32
  %v1293 = vunpack.c.l.b16 %v33
  %v1294 = vunpack.c.l.b16 %v34
  %v1295 = vunpack.c.l.b16 %v35
  %v1296 = vunpack.c.l.b16 %v36
  %v1297 = vunpack.c.l.b16 %v37
  %v1298 = vunpack.c.l.b16 %v38
  %v1299 = vunpack.c.l.b16 %v39
  %v1300 = vunpack.c.l.b16 %v40
  %v1301 = vunpack.c.l.b16 %v41
  %v1302 = vunpack.c.l.b16 %v42
  %v1303 = vunpack.c.l.b16 %v43
  %v1304 = vunpack.c.l.b16 %v44
  %v1305 = vunpack.c.l.b16 %v45
  %v1306 = vunpack.c.l.b16 %v46
  %v1307 = vunpack.c.l.b16 %v47
  %v1308 = vunpack.c.l.b16 %v48
  %v1309 = vunpack.c.l.b16 %v49
  %v1310 = vunpack.c.l.b16 %v50
  %v1311 = vunpack.c.l.b16 %v51
  %v1312 = vunpack.c.l.b16 %v52
  %v1313 = vunpack.c.l.b16 %v53
  %v1314 = vunpack.c.l.b16 %v54
  %v1315 = vunpack.c.l.b16 %v55
  %v1316 = vunpack.c.l.b16 %v56
  %v1317 = vunpack.c.l.b16 %v57
  %v1318 = vunpack.c.l.b16 %v58
  %v1319 = vunpack.c.l.b16 %v59
  %v1320 = vunpack.c.l.b16 %v60
  %v1321 = vunpack.c.l.b16 %v61
  %v1322 = vunpack.c.l.b16 %v62
  %v1323 = vunpack.c.l.b16 %v63
  %v1324 = vunpack.c.l.b16 %v64
  %v1325 = vunpack.c.l.b16 %v65
  %v1326 = vunpack.c.l.b16 %v66
  %v1327 = vunpack.c.l.b16 %v67
  %v1328 = vpack.c.b16 %v1281, %v1280
  %v1329 = vpack.c.b16 %v1283, %v1282
  %v1330 = vpack.c.b16 %v1285, %v1284
  %v1331 = vpack.c.b16 %v1287, %v1286
  %v1332 = vpack.c.b16 %v1289, %v1288
  %v1333 = vpack.c.b16 %v1291, %v1290
  %v1334 = vpack.c.b16 %v1293, %v1292
  %v1335 = vpack.c.b16 %v1295, %v1294
  %v1336 = vpack.c.b16 %v1297, %v1296
  %v1337 = vpack.c.b16 %v1299, %v1298
  %v1338 = vpack.c.b16 %v1301, %v1300
  %v1339 = vpack.c.b16 %v1303, %v1302
  %v1340 = vpack.c.b16 %v1305, %v1304
  %v1341 = vpack.c.b16 %v1307, %v1306
  %v1342 = vpack.c.b16 %v1309, %v1308
  %v1343 = vpack.c.b16 %v1311, %v1310
  %v1344 = vpack.c.b16 %v1313, %v1312
  %v1345 = vpack.c.b16 %v1315, %v1314
  %v1346 = vpack.c.b16 %v1317, %v1316
  %v1347 = vpack.c.b16 %v1319, %v1318
  %v1348 = vpack.c.b16 %v1321, %v1320
  %v1349 = vpack.c.b16 %v1323, %v1322
  %v1350 = vpack.c.b16 %v1325, %v1324
  %v1351 = vpack.c.b16 %v1327, %v1326
  %1376 = vmatprep.subr.bf16.mxu0 0
  %1377 = vmatpush1.bf16.msra.mxu0 %v1328
  %1378 = vmatprep.subr.bf16.mxu0 0
  %1379 = vmatpush1.bf16.msra.mxu0 %v1329
  %1380 = vmatprep.subr.bf16.mxu0 0
  %1381 = vmatpush1.bf16.msra.mxu0 %v1330
  %1382 = vmatprep.subr.bf16.mxu0 0
  %1383 = vmatpush1.bf16.msra.mxu0 %v1331
  %1384 = vmatprep.subr.bf16.mxu0 0
  %1385 = vmatpush1.bf16.msra.mxu0 %v1332
  %1386 = vmatprep.subr.bf16.mxu0 0
  %1387 = vmatpush1.bf16.msra.mxu0 %v1333
  %1388 = vmatprep.subr.bf16.mxu0 0
  %1389 = vmatpush1.bf16.msra.mxu0 %v1334
  %1390 = vmatprep.subr.bf16.mxu0 0
  %1391 = vmatpush1.bf16.msra.mxu0 %v1335
  %1392 = vmatprep.subr.bf16.mxu0 0
  %1393 = vmatpush1.bf16.msra.mxu0 %v1336
  %1394 = vmatprep.subr.bf16.mxu0 0
  %1395 = vmatpush1.bf16.msra.mxu0 %v1337
  %1396 = vmatprep.subr.bf16.mxu0 0
  %1397 = vmatpush1.bf16.msra.mxu0 %v1338
  %1398 = vmatprep.subr.bf16.mxu0 0
  %1399 = vmatpush1.bf16.msra.mxu0 %v1339
  %1400 = vmatprep.subr.bf16.mxu0 0
  %1401 = vmatpush1.bf16.msra.mxu0 %v1340
  %1402 = vmatprep.subr.bf16.mxu0 0
  %1403 = vmatpush1.bf16.msra.mxu0 %v1341
  %1404 = vmatprep.subr.bf16.mxu0 0
  %1405 = vmatpush1.bf16.msra.mxu0 %v1342
  %1406 = vmatprep.subr.bf16.mxu0 0
  %1407 = vmatpush1.bf16.msra.mxu0 %v1343
  %1408 = vmatprep.mubr.bf16.mxu0 %v511
  %1409 = vmatmul.mubr.bf16.gmra.mrb[0].mxu0 %v510
  %v1410 = vpop.f32.mrb[0].mxu0
  %v1411 = vadd.f32 %v1106, %v1410
  %v1412 = vpop.f32.mrb[0].mxu0
  %v1413 = vpop.f32.mrb[0].mxu0
  %v1414 = vadd.f32 %v1109, %v1413
  %v1415 = vpop.f32.mrb[0].mxu0
  %1416 = vmatprep.mubr.bf16.mxu0 %v512
  %1417 = vmatmul.mubr.bf16.gmra.mrb[0].mxu0 %v511
  %v1418 = vpop.f32.mrb[0].mxu0
  %v1419 = vadd.f32 %v1114, %v1418
  %v1420 = vpop.f32.mrb[0].mxu0
  %v1421 = vpop.f32.mrb[0].mxu0
  %v1422 = vadd.f32 %v1117, %v1421
  %v1423 = vpop.f32.mrb[0].mxu0
  %1424 = vmatprep.mubr.bf16.mxu0 %v513
  %1425 = vmatmul.mubr.bf16.gmra.mrb[0].mxu0 %v512
  %v1426 = vpop.f32.mrb[0].mxu0
  %v1427 = vadd.f32 %v1122, %v1426
  %v1428 = vpop.f32.mrb[0].mxu0
  %v1429 = vpop.f32.mrb[0].mxu0
  %v1430 = vadd.f32 %v1125, %v1429
  %v1431 = vpop.f32.mrb[0].mxu0
  %1432 = vmatprep.mubr.bf16.mxu0 %v514
  %1433 = vmatmul.mubr.bf16.gmra.mrb[0].mxu0 %v513
  %v1434 = vpop.f32.mrb[0].mxu0
  %v1435 = vadd.f32 %v1130, %v1434
  %v1436 = vpop.f32.mrb[0].mxu0
  %v1437 = vpop.f32.mrb[0].mxu0
  %v1438 = vadd.f32 %v1133, %v1437
  %v1439 = vpop.f32.mrb[0].mxu0
  %1440 = vmatprep.mubr.bf16.mxu0 %v515
  %1441 = vmatmul.mubr.bf16.gmra.mrb[0].mxu0 %v514
  %v1442 = vpop.f32.mrb[0].mxu0
  %v1443 = vadd.f32 %v1138, %v1442
  %v1444 = vpop.f32.mrb[0].mxu0
  %v1445 = vpop.f32.mrb[0].mxu0
  %v1446 = vadd.f32 %v1141, %v1445
  %v1447 = vpop.f32.mrb[0].mxu0
  %1448 = vmatprep.mubr.bf16.mxu0 %v516
  %1449 = vmatmul.mubr.bf16.gmra.mrb[0].mxu0 %v515
  %v1450 = vpop.f32.mrb[0].mxu0
  %v1451 = vadd.f32 %v1146, %v1450
  %v1452 = vpop.f32.mrb[0].mxu0
  %v1453 = vpop.f32.mrb[0].mxu0
  %v1454 = vadd.f32 %v1149, %v1453
  %v1455 = vpop.f32.mrb[0].mxu0
  %1456 = vmatprep.mubr.bf16.mxu0 %v517
  %1457 = vmatmul.mubr.bf16.gmra.mrb[0].mxu0 %v516
  %v1458 = vpop.f32.mrb[0].mxu0
  %v1459 = vadd.f32 %v1154, %v1458
  %v1460 = vpop.f32.mrb[0].mxu0
  %v1461 = vpop.f32.mrb[0].mxu0
  %v1462 = vadd.f32 %v1157, %v1461
  %v1463 = vpop.f32.mrb[0].mxu0
  %1464 = vmatprep.mubr.bf16.mxu0 %v518
  %1465 = vmatmul.mubr.bf16.gmra.mrb[0].mxu0 %v517
  %v1466 = vpop.f32.mrb[0].mxu0
  %v1467 = vadd.f32 %v1162, %v1466
  %v1468 = vpop.f32.mrb[0].mxu0
  %v1469 = vpop.f32.mrb[0].mxu0
  %v1470 = vadd.f32 %v1165, %v1469
  %v1471 = vpop.f32.mrb[0].mxu0
  %1472 = vmatprep.mubr.bf16.mxu0 %v519
  %1473 = vmatmul.mubr.bf16.gmra.mrb[0].mxu0 %v518
  %v1474 = vpop.f32.mrb[0].mxu0
  %v1475 = vadd.f32 %v1170, %v1474
  %v1476 = vpop.f32.mrb[0].mxu0
  %v1477 = vpop.f32.mrb[0].mxu0
  %v1478 = vadd.f32 %v1173, %v1477
  %v1479 = vpop.f32.mrb[0].mxu0
  %1480 = vmatprep.mubr.bf16.mxu0 %v520
  %1481 = vmatmul.mubr.bf16.gmra.mrb[0].mxu0 %v519
  %v1482 = vpop.f32.mrb[0].mxu0
  %v1483 = vadd.f32 %v1178, %v1482
  %v1484 = vpop.f32.mrb[0].mxu0
  %v1485 = vpop.f32.mrb[0].mxu0
  %v1486 = vadd.f32 %v1181, %v1485
  %v1487 = vpop.f32.mrb[0].mxu0
  %1488 = vmatprep.mubr.bf16.mxu0 %v521
  %1489 = vmatmul.mubr.bf16.gmra.mrb[0].mxu0 %v520
  %v1490 = vpop.f32.mrb[0].mxu0
  %v1491 = vadd.f32 %v1186, %v1490
  %v1492 = vpop.f32.mrb[0].mxu0
  %v1493 = vpop.f32.mrb[0].mxu0
  %v1494 = vadd.f32 %v1189, %v1493
  %v1495 = vpop.f32.mrb[0].mxu0
  %1496 = vmatprep.mubr.bf16.mxu0 %v522
  %1497 = vmatmul.mubr.bf16.gmra.mrb[0].mxu0 %v521
  %v1498 = vpop.f32.mrb[0].mxu0
  %v1499 = vadd.f32 %v1194, %v1498
  %v1500 = vpop.f32.mrb[0].mxu0
  %v1501 = vpop.f32.mrb[0].mxu0
  %v1502 = vadd.f32 %v1197, %v1501
  %v1503 = vpop.f32.mrb[0].mxu0
  %1504 = vmatprep.mubr.bf16.mxu0 %v523
  %1505 = vmatmul.mubr.bf16.gmra.mrb[0].mxu0 %v522
  %v1506 = vpop.f32.mrb[0].mxu0
  %v1507 = vadd.f32 %v1202, %v1506
  %v1508 = vpop.f32.mrb[0].mxu0
  %v1509 = vpop.f32.mrb[0].mxu0
  %v1510 = vadd.f32 %v1205, %v1509
  %v1511 = vpop.f32.mrb[0].mxu0
  %1512 = vmatprep.mubr.bf16.mxu0 %v524
  %1513 = vmatmul.mubr.bf16.gmra.mrb[0].mxu0 %v523
  %v1514 = vpop.f32.mrb[0].mxu0
  %v1515 = vadd.f32 %v1210, %v1514
  %v1516 = vpop.f32.mrb[0].mxu0
  %v1517 = vpop.f32.mrb[0].mxu0
  %v1518 = vadd.f32 %v1213, %v1517
  %v1519 = vpop.f32.mrb[0].mxu0
  %1520 = vmatprep.mubr.bf16.mxu0 %v525
  %1521 = vmatmul.mubr.bf16.gmra.mrb[0].mxu0 %v524
  %v1522 = vpop.f32.mrb[0].mxu0
  %v1523 = vadd.f32 %v1218, %v1522
  %v1524 = vpop.f32.mrb[0].mxu0
  %v1525 = vpop.f32.mrb[0].mxu0
  %v1526 = vadd.f32 %v1221, %v1525
  %v1527 = vpop.f32.mrb[0].mxu0
  %1528 = vmatprep.mubr.bf16.mxu0 %v526
  %1529 = vmatmul.mubr.bf16.gmra.mrb[0].mxu0 %v525
  %v1530 = vpop.f32.mrb[0].mxu0
  %v1531 = vadd.f32 %v1226, %v1530
  %v1532 = vpop.f32.mrb[0].mxu0
  %v1533 = vpop.f32.mrb[0].mxu0
  %v1534 = vadd.f32 %v1229, %v1533
  %v1535 = vpop.f32.mrb[0].mxu0
  %1536 = vdwg.mxu0
  %1537 = vmatprep.subr.bf16.mxu0 0
  %1538 = vmatpush1.bf16.msra.mxu0 %v1344
  %1539 = vmatprep.subr.bf16.mxu0 0
  %1540 = vmatpush1.bf16.msra.mxu0 %v1345
  %1541 = vmatprep.subr.bf16.mxu0 0
  %1542 = vmatpush1.bf16.msra.mxu0 %v1346
  %1543 = vmatprep.subr.bf16.mxu0 0
  %1544 = vmatpush1.bf16.msra.mxu0 %v1347
  %1545 = vmatprep.subr.bf16.mxu0 0
  %1546 = vmatpush1.bf16.msra.mxu0 %v1348
  %1547 = vmatprep.subr.bf16.mxu0 0
  %1548 = vmatpush1.bf16.msra.mxu0 %v1349
  %1549 = vmatprep.subr.bf16.mxu0 0
  %1550 = vmatpush1.bf16.msra.mxu0 %v1350
  %1551 = vmatprep.subr.bf16.mxu0 0
  %1552 = vmatpush1.bf16.msra.mxu0 %v1351
  %1553 = vmatprep.subr.bf16.mxu0 0
  %1554 = vmatpush1.bf16.msra.mxu0 0
  %1555 = vmatprep.subr.bf16.mxu0 0
  %1556 = vmatpush1.bf16.msra.mxu0 0
  %1557 = vmatprep.subr.bf16.mxu0 0
  %1558 = vmatpush1.bf16.msra.mxu0 0
  %1559 = vmatprep.subr.bf16.mxu0 0
  %1560 = vmatpush1.bf16.msra.mxu0 0
  %1561 = vmatprep.subr.bf16.mxu0 0
  %1562 = vmatpush1.bf16.msra.mxu0 0
  %1563 = vmatprep.subr.bf16.mxu0 0
  %1564 = vmatpush1.bf16.msra.mxu0 0
  %1565 = vmatprep.subr.bf16.mxu0 0
  %1566 = vmatpush1.bf16.msra.mxu0 0
  %1567 = vmatprep.subr.bf16.mxu0 0
  %1568 = vmatpush1.bf16.msra.mxu0 0
  %1569 = vmatprep.mubr.bf16.mxu0 0
  %1570 = vmatmul.mubr.bf16.gmra.mrb[0].mxu0 %v512
  %v1571 = vpop.f32.mrb[0].mxu0
  %v1572 = vadd.f32 %v1411, %v1571
  %v1573 = vpop.f32.mrb[0].mxu0
  %v1574 = vpop.f32.mrb[0].mxu0
  %v1575 = vadd.f32 %v1414, %v1574
  %v1576 = vpop.f32.mrb[0].mxu0
  %1577 = vmatprep.mubr.bf16.mxu0 0
  %1578 = vmatmul.mubr.bf16.gmra.mrb[0].mxu0 %v513
  %v1579 = vpop.f32.mrb[0].mxu0
  %v1580 = vadd.f32 %v1419, %v1579
  %v1581 = vpop.f32.mrb[0].mxu0
  %v1582 = vpop.f32.mrb[0].mxu0
  %v1583 = vadd.f32 %v1422, %v1582
  %v1584 = vpop.f32.mrb[0].mxu0
  %1585 = vmatprep.mubr.bf16.mxu0 0
  %1586 = vmatmul.mubr.bf16.gmra.mrb[0].mxu0 %v514
  %v1587 = vpop.f32.mrb[0].mxu0
  %v1588 = vadd.f32 %v1427, %v1587
  %v1589 = vpop.f32.mrb[0].mxu0
  %v1590 = vpop.f32.mrb[0].mxu0
  %v1591 = vadd.f32 %v1430, %v1590
  %v1592 = vpop.f32.mrb[0].mxu0
  %1593 = vmatprep.mubr.bf16.mxu0 0
  %1594 = vmatmul.mubr.bf16.gmra.mrb[0].mxu0 %v515
  %v1595 = vpop.f32.mrb[0].mxu0
  %v1596 = vadd.f32 %v1435, %v1595
  %v1597 = vpop.f32.mrb[0].mxu0
  %v1598 = vpop.f32.mrb[0].mxu0
  %v1599 = vadd.f32 %v1438, %v1598
  %v1600 = vpop.f32.mrb[0].mxu0
  %1601 = vmatprep.mubr.bf16.mxu0 0
  %1602 = vmatmul.mubr.bf16.gmra.mrb[0].mxu0 %v516
  %v1603 = vpop.f32.mrb[0].mxu0
  %v1604 = vadd.f32 %v1443, %v1603
  %v1605 = vpop.f32.mrb[0].mxu0
  %v1606 = vpop.f32.mrb[0].mxu0
  %v1607 = vadd.f32 %v1446, %v1606
  %v1608 = vpop.f32.mrb[0].mxu0
  %1609 = vmatprep.mubr.bf16.mxu0 0
  %1610 = vmatmul.mubr.bf16.gmra.mrb[0].mxu0 %v517
  %v1611 = vpop.f32.mrb[0].mxu0
  %v1612 = vadd.f32 %v1451, %v1611
  %v1613 = vpop.f32.mrb[0].mxu0
  %v1614 = vpop.f32.mrb[0].mxu0
  %v1615 = vadd.f32 %v1454, %v1614
  %v1616 = vpop.f32.mrb[0].mxu0
  %1617 = vmatprep.mubr.bf16.mxu0 0
  %1618 = vmatmul.mubr.bf16.gmra.mrb[0].mxu0 %v518
  %v1619 = vpop.f32.mrb[0].mxu0
  %v1620 = vadd.f32 %v1459, %v1619
  %v1621 = vpop.f32.mrb[0].mxu0
  %v1622 = vpop.f32.mrb[0].mxu0
  %v1623 = vadd.f32 %v1462, %v1622
  %v1624 = vpop.f32.mrb[0].mxu0
  %1625 = vmatprep.mubr.bf16.mxu0 0
  %1626 = vmatmul.mubr.bf16.gmra.mrb[0].mxu0 %v519
  %v1627 = vpop.f32.mrb[0].mxu0
  %v1628 = vadd.f32 %v1467, %v1627
  %v1629 = vpop.f32.mrb[0].mxu0
  %v1630 = vpop.f32.mrb[0].mxu0
  %v1631 = vadd.f32 %v1470, %v1630
  %v1632 = vpop.f32.mrb[0].mxu0
  %1633 = vmatprep.mubr.bf16.mxu0 0
  %1634 = vmatmul.mubr.bf16.gmra.mrb[0].mxu0 %v520
  %v1635 = vpop.f32.mrb[0].mxu0
  %v1636 = vadd.f32 %v1475, %v1635
  %v1637 = vpop.f32.mrb[0].mxu0
  %v1638 = vpop.f32.mrb[0].mxu0
  %v1639 = vadd.f32 %v1478, %v1638
  %v1640 = vpop.f32.mrb[0].mxu0
  %1641 = vmatprep.mubr.bf16.mxu0 0
  %1642 = vmatmul.mubr.bf16.gmra.mrb[0].mxu0 %v521
  %v1643 = vpop.f32.mrb[0].mxu0
  %v1644 = vadd.f32 %v1483, %v1643
  %v1645 = vpop.f32.mrb[0].mxu0
  %v1646 = vpop.f32.mrb[0].mxu0
  %v1647 = vadd.f32 %v1486, %v1646
  %v1648 = vpop.f32.mrb[0].mxu0
  %1649 = vmatprep.mubr.bf16.mxu0 0
  %1650 = vmatmul.mubr.bf16.gmra.mrb[0].mxu0 %v522
  %v1651 = vpop.f32.mrb[0].mxu0
  %v1652 = vadd.f32 %v1491, %v1651
  %v1653 = vpop.f32.mrb[0].mxu0
  %v1654 = vpop.f32.mrb[0].mxu0
  %v1655 = vadd.f32 %v1494, %v1654
  %v1656 = vpop.f32.mrb[0].mxu0
  %1657 = vmatprep.mubr.bf16.mxu0 0
  %1658 = vmatmul.mubr.bf16.gmra.mrb[0].mxu0 %v523
  %v1659 = vpop.f32.mrb[0].mxu0
  %v1660 = vadd.f32 %v1499, %v1659
  %v1661 = vpop.f32.mrb[0].mxu0
  %v1662 = vpop.f32.mrb[0].mxu0
  %v1663 = vadd.f32 %v1502, %v1662
  %v1664 = vpop.f32.mrb[0].mxu0
  %1665 = vmatprep.mubr.bf16.mxu0 0
  %1666 = vmatmul.mubr.bf16.gmra.mrb[0].mxu0 %v524
  %v1667 = vpop.f32.mrb[0].mxu0
  %v1668 = vadd.f32 %v1507, %v1667
  %v1669 = vpop.f32.mrb[0].mxu0
  %v1670 = vpop.f32.mrb[0].mxu0
  %v1671 = vadd.f32 %v1510, %v1670
  %v1672 = vpop.f32.mrb[0].mxu0
  %1673 = vmatprep.mubr.bf16.mxu0 0
  %1674 = vmatmul.mubr.bf16.gmra.mrb[0].mxu0 %v525
  %v1675 = vpop.f32.mrb[0].mxu0
  %v1676 = vadd.f32 %v1515, %v1675
  %v1677 = vpop.f32.mrb[0].mxu0
  %v1678 = vpop.f32.mrb[0].mxu0
  %v1679 = vadd.f32 %v1518, %v1678
  %v1680 = vpop.f32.mrb[0].mxu0
  %1681 = vmatprep.mubr.bf16.mxu0 0
  %1682 = vmatmul.mubr.bf16.gmra.mrb[0].mxu0 %v526
  %v1683 = vpop.f32.mrb[0].mxu0
  %v1684 = vadd.f32 %v1523, %v1683
  %v1685 = vpop.f32.mrb[0].mxu0
  %v1686 = vpop.f32.mrb[0].mxu0
  %v1687 = vadd.f32 %v1526, %v1686
  %v1688 = vpop.f32.mrb[0].mxu0
  %1689 = vmatprep.mubr.bf16.mxu0 0
  %1690 = vmatmul.mubr.bf16.gmra.mrb[0].mxu0 %v510
  %v1691 = vpop.f32.mrb[0].mxu0
  %v1692 = vadd.f32 %v1531, %v1691
  %v1693 = vpop.f32.mrb[0].mxu0
  %v1694 = vpop.f32.mrb[0].mxu0
  %v1695 = vadd.f32 %v1534, %v1694
  %v1696 = vpop.f32.mrb[0].mxu0
  %1697 = vdwg.mxu0
  %vm1732 = vcmask 1046528
  %v1733 = vrot.slane %v510, 1
  %v1734 = vrot.slane %v527, 1
  %v1735 = vsel %vm1732, %v1733, %v1734
  %v1736 = vrot.slane %v511, 1
  %v1737 = vrot.slane %v528, 1
  %v1738 = vsel %vm1732, %v1736, %v1737
  %v1739 = vrot.slane %v512, 1
  %v1740 = vrot.slane %v529, 1
  %v1741 = vsel %vm1732, %v1739, %v1740
  %v1742 = vrot.slane %v513, 1
  %v1743 = vrot.slane %v530, 1
  %v1744 = vsel %vm1732, %v1742, %v1743
  %v1745 = vrot.slane %v514, 1
  %v1746 = vrot.slane %v531, 1
  %v1747 = vsel %vm1732, %v1745, %v1746
  %v1748 = vrot.slane %v515, 1
  %v1749 = vrot.slane %v532, 1
  %v1750 = vsel %vm1732, %v1748, %v1749
  %v1751 = vrot.slane %v516, 1
  %v1752 = vrot.slane %v533, 1
  %v1753 = vsel %vm1732, %v1751, %v1752
  %v1754 = vrot.slane %v517, 1
  %v1755 = vrot.slane %v534, 1
  %v1756 = vsel %vm1732, %v1754, %v1755
  %v1757 = vrot.slane %v518, 1
  %v1758 = vrot.slane %v535, 1
  %v1759 = vsel %vm1732, %v1757, %v1758
  %v1760 = vrot.slane %v519, 1
  %v1761 = vrot.slane %v536, 1
  %v1762 = vsel %vm1732, %v1760, %v1761
  %v1763 = vrot.slane %v520, 1
  %v1764 = vrot.slane %v537, 1
  %v1765 = vsel %vm1732, %v1763, %v1764
  %v1766 = vrot.slane %v521, 1
  %v1767 = vrot.slane %v538, 1
  %v1768 = vsel %vm1732, %v1766, %v1767
  %v1769 = vrot.slane %v522, 1
  %v1770 = vrot.slane %v539, 1
  %v1771 = vsel %vm1732, %v1769, %v1770
  %v1772 = vrot.slane %v523, 1
  %v1773 = vrot.slane %v540, 1
  %v1774 = vsel %vm1732, %v1772, %v1773
  %v1775 = vrot.slane %v524, 1
  %v1776 = vrot.slane %v541, 1
  %v1777 = vsel %vm1732, %v1775, %v1776
  %v1778 = vrot.slane %v525, 1
  %v1779 = vrot.slane %v542, 1
  %v1780 = vsel %vm1732, %v1778, %v1779
  %v1781 = vrot.slane %v526, 1
  %v1782 = vrot.slane %v543, 1
  %v1783 = vsel %vm1732, %v1781, %v1782
  %v1849 = vunpack.c.l.b16 %v116
  %v1850 = vunpack.c.l.b16 %v117
  %v1851 = vunpack.c.l.b16 %v118
  %v1852 = vunpack.c.l.b16 %v119
  %v1853 = vunpack.c.l.b16 %v120
  %v1854 = vunpack.c.l.b16 %v121
  %v1855 = vunpack.c.l.b16 %v122
  %v1856 = vunpack.c.l.b16 %v123
  %v1857 = vunpack.c.l.b16 %v124
  %v1858 = vunpack.c.l.b16 %v125
  %v1859 = vunpack.c.l.b16 %v126
  %v1860 = vunpack.c.l.b16 %v127
  %v1861 = vunpack.c.l.b16 %v128
  %v1862 = vunpack.c.l.b16 %v129
  %v1863 = vunpack.c.l.b16 %v130
  %v1864 = vunpack.c.l.b16 %v131
  %v1865 = vunpack.c.l.b16 %v132
  %v1866 = vunpack.c.l.b16 %v133
  %v1867 = vunpack.c.l.b16 %v134
  %v1868 = vunpack.c.l.b16 %v135
  %v1869 = vunpack.c.l.b16 %v136
  %v1870 = vunpack.c.l.b16 %v137
  %v1871 = vunpack.c.l.b16 %v138
  %v1872 = vunpack.c.l.b16 %v139
  %v1873 = vunpack.c.l.b16 %v140
  %v1874 = vunpack.c.l.b16 %v141
  %v1875 = vunpack.c.l.b16 %v142
  %v1876 = vunpack.c.l.b16 %v143
  %v1877 = vunpack.c.l.b16 %v144
  %v1878 = vunpack.c.l.b16 %v145
  %v1879 = vunpack.c.l.b16 %v146
  %v1880 = vunpack.c.l.b16 %v147
  %v1881 = vunpack.c.l.b16 %v148
  %v1882 = vunpack.c.l.b16 %v149
  %v1883 = vunpack.c.l.b16 %v150
  %v1884 = vunpack.c.l.b16 %v151
  %v1885 = vunpack.c.l.b16 %v152
  %v1886 = vunpack.c.l.b16 %v153
  %v1887 = vunpack.c.l.b16 %v154
  %v1888 = vunpack.c.l.b16 %v155
  %v1889 = vunpack.c.l.b16 %v156
  %v1890 = vunpack.c.l.b16 %v157
  %v1891 = vunpack.c.l.b16 %v158
  %v1892 = vunpack.c.l.b16 %v159
  %v1893 = vunpack.c.l.b16 %v160
  %v1894 = vunpack.c.l.b16 %v161
  %v1895 = vunpack.c.l.b16 %v162
  %v1896 = vunpack.c.l.b16 %v163
  %v1897 = vpack.c.b16 %v1850, %v1849
  %v1898 = vpack.c.b16 %v1852, %v1851
  %v1899 = vpack.c.b16 %v1854, %v1853
  %v1900 = vpack.c.b16 %v1856, %v1855
  %v1901 = vpack.c.b16 %v1858, %v1857
  %v1902 = vpack.c.b16 %v1860, %v1859
  %v1903 = vpack.c.b16 %v1862, %v1861
  %v1904 = vpack.c.b16 %v1864, %v1863
  %v1905 = vpack.c.b16 %v1866, %v1865
  %v1906 = vpack.c.b16 %v1868, %v1867
  %v1907 = vpack.c.b16 %v1870, %v1869
  %v1908 = vpack.c.b16 %v1872, %v1871
  %v1909 = vpack.c.b16 %v1874, %v1873
  %v1910 = vpack.c.b16 %v1876, %v1875
  %v1911 = vpack.c.b16 %v1878, %v1877
  %v1912 = vpack.c.b16 %v1880, %v1879
  %v1913 = vpack.c.b16 %v1882, %v1881
  %v1914 = vpack.c.b16 %v1884, %v1883
  %v1915 = vpack.c.b16 %v1886, %v1885
  %v1916 = vpack.c.b16 %v1888, %v1887
  %v1917 = vpack.c.b16 %v1890, %v1889
  %v1918 = vpack.c.b16 %v1892, %v1891
  %v1919 = vpack.c.b16 %v1894, %v1893
  %v1920 = vpack.c.b16 %v1896, %v1895
  %1945 = vmatprep.subr.bf16.mxu0 0
  %1946 = vmatpush1.bf16.msra.mxu0 %v1897
  %1947 = vmatprep.subr.bf16.mxu0 0
  %1948 = vmatpush1.bf16.msra.mxu0 %v1898
  %1949 = vmatprep.subr.bf16.mxu0 0
  %1950 = vmatpush1.bf16.msra.mxu0 %v1899
  %1951 = vmatprep.subr.bf16.mxu0 0
  %1952 = vmatpush1.bf16.msra.mxu0 %v1900
  %1953 = vmatprep.subr.bf16.mxu0 0
  %1954 = vmatpush1.bf16.msra.mxu0 %v1901
  %1955 = vmatprep.subr.bf16.mxu0 0
  %1956 = vmatpush1.bf16.msra.mxu0 %v1902
  %1957 = vmatprep.subr.bf16.mxu0 0
  %1958 = vmatpush1.bf16.msra.mxu0 %v1903
  %1959 = vmatprep.subr.bf16.mxu0 0
  %1960 = vmatpush1.bf16.msra.mxu0 %v1904
  %1961 = vmatprep.subr.bf16.mxu0 0
  %1962 = vmatpush1.bf16.msra.mxu0 %v1905
  %1963 = vmatprep.subr.bf16.mxu0 0
  %1964 = vmatpush1.bf16.msra.mxu0 %v1906
  %1965 = vmatprep.subr.bf16.mxu0 0
  %1966 = vmatpush1.bf16.msra.mxu0 %v1907
  %1967 = vmatprep.subr.bf16.mxu0 0
  %1968 = vmatpush1.bf16.msra.mxu0 %v1908
  %1969 = vmatprep.subr.bf16.mxu0 0
  %1970 = vmatpush1.bf16.msra.mxu0 %v1909
  %1971 = vmatprep.subr.bf16.mxu0 0
  %1972 = vmatpush1.bf16.msra.mxu0 %v1910
  %1973 = vmatprep.subr.bf16.mxu0 0
  %1974 = vmatpush1.bf16.msra.mxu0 %v1911
  %1975 = vmatprep.subr.bf16.mxu0 0
  %1976 = vmatpush1.bf16.msra.mxu0 %v1912
  %1977 = vmatprep.mubr.bf16.mxu0 %v1738
  %1978 = vmatmul.mubr.bf16.gmra.mrb[0].mxu0 %v1735
  %v1979 = vpop.f32.mrb[0].mxu0
  %v1980 = vadd.f32 0.0, %v1979
  %v1981 = vpop.f32.mrb[0].mxu0
  %v1982 = vpop.f32.mrb[0].mxu0
  %v1983 = vadd.f32 0.0, %v1982
  %v1984 = vpop.f32.mrb[0].mxu0
  %1985 = vmatprep.mubr.bf16.mxu0 %v1741
  %1986 = vmatmul.mubr.bf16.gmra.mrb[0].mxu0 %v1738
  %v1987 = vpop.f32.mrb[0].mxu0
  %v1988 = vadd.f32 0.0, %v1987
  %v1989 = vpop.f32.mrb[0].mxu0
  %v1990 = vpop.f32.mrb[0].mxu0
  %v1991 = vadd.f32 0.0, %v1990
  %v1992 = vpop.f32.mrb[0].mxu0
  %1993 = vmatprep.mubr.bf16.mxu0 %v1744
  %1994 = vmatmul.mubr.bf16.gmra.mrb[0].mxu0 %v1741
  %v1995 = vpop.f32.mrb[0].mxu0
  %v1996 = vadd.f32 0.0, %v1995
  %v1997 = vpop.f32.mrb[0].mxu0
  %v1998 = vpop.f32.mrb[0].mxu0
  %v1999 = vadd.f32 0.0, %v1998
  %v2000 = vpop.f32.mrb[0].mxu0
  %2001 = vmatprep.mubr.bf16.mxu0 %v1747
  %2002 = vmatmul.mubr.bf16.gmra.mrb[0].mxu0 %v1744
  %v2003 = vpop.f32.mrb[0].mxu0
  %v2004 = vadd.f32 0.0, %v2003
  %v2005 = vpop.f32.mrb[0].mxu0
  %v2006 = vpop.f32.mrb[0].mxu0
  %v2007 = vadd.f32 0.0, %v2006
  %v2008 = vpop.f32.mrb[0].mxu0
  %2009 = vmatprep.mubr.bf16.mxu0 %v1750
  %2010 = vmatmul.mubr.bf16.gmra.mrb[0].mxu0 %v1747
  %v2011 = vpop.f32.mrb[0].mxu0
  %v2012 = vadd.f32 0.0, %v2011
  %v2013 = vpop.f32.mrb[0].mxu0
  %v2014 = vpop.f32.mrb[0].mxu0
  %v2015 = vadd.f32 0.0, %v2014
  %v2016 = vpop.f32.mrb[0].mxu0
  %2017 = vmatprep.mubr.bf16.mxu0 %v1753
  %2018 = vmatmul.mubr.bf16.gmra.mrb[0].mxu0 %v1750
  %v2019 = vpop.f32.mrb[0].mxu0
  %v2020 = vadd.f32 0.0, %v2019
  %v2021 = vpop.f32.mrb[0].mxu0
  %v2022 = vpop.f32.mrb[0].mxu0
  %v2023 = vadd.f32 0.0, %v2022
  %v2024 = vpop.f32.mrb[0].mxu0
  %2025 = vmatprep.mubr.bf16.mxu0 %v1756
  %2026 = vmatmul.mubr.bf16.gmra.mrb[0].mxu0 %v1753
  %v2027 = vpop.f32.mrb[0].mxu0
  %v2028 = vadd.f32 0.0, %v2027
  %v2029 = vpop.f32.mrb[0].mxu0
  %v2030 = vpop.f32.mrb[0].mxu0
  %v2031 = vadd.f32 0.0, %v2030
  %v2032 = vpop.f32.mrb[0].mxu0
  %2033 = vmatprep.mubr.bf16.mxu0 %v1759
  %2034 = vmatmul.mubr.bf16.gmra.mrb[0].mxu0 %v1756
  %v2035 = vpop.f32.mrb[0].mxu0
  %v2036 = vadd.f32 0.0, %v2035
  %v2037 = vpop.f32.mrb[0].mxu0
  %v2038 = vpop.f32.mrb[0].mxu0
  %v2039 = vadd.f32 0.0, %v2038
  %v2040 = vpop.f32.mrb[0].mxu0
  %2041 = vmatprep.mubr.bf16.mxu0 %v1762
  %2042 = vmatmul.mubr.bf16.gmra.mrb[0].mxu0 %v1759
  %v2043 = vpop.f32.mrb[0].mxu0
  %v2044 = vadd.f32 0.0, %v2043
  %v2045 = vpop.f32.mrb[0].mxu0
  %v2046 = vpop.f32.mrb[0].mxu0
  %v2047 = vadd.f32 0.0, %v2046
  %v2048 = vpop.f32.mrb[0].mxu0
  %2049 = vmatprep.mubr.bf16.mxu0 %v1765
  %2050 = vmatmul.mubr.bf16.gmra.mrb[0].mxu0 %v1762
  %v2051 = vpop.f32.mrb[0].mxu0
  %v2052 = vadd.f32 0.0, %v2051
  %v2053 = vpop.f32.mrb[0].mxu0
  %v2054 = vpop.f32.mrb[0].mxu0
  %v2055 = vadd.f32 0.0, %v2054
  %v2056 = vpop.f32.mrb[0].mxu0
  %2057 = vmatprep.mubr.bf16.mxu0 %v1768
  %2058 = vmatmul.mubr.bf16.gmra.mrb[0].mxu0 %v1765
  %v2059 = vpop.f32.mrb[0].mxu0
  %v2060 = vadd.f32 0.0, %v2059
  %v2061 = vpop.f32.mrb[0].mxu0
  %v2062 = vpop.f32.mrb[0].mxu0
  %v2063 = vadd.f32 0.0, %v2062
  %v2064 = vpop.f32.mrb[0].mxu0
  %2065 = vmatprep.mubr.bf16.mxu0 %v1771
  %2066 = vmatmul.mubr.bf16.gmra.mrb[0].mxu0 %v1768
  %v2067 = vpop.f32.mrb[0].mxu0
  %v2068 = vadd.f32 0.0, %v2067
  %v2069 = vpop.f32.mrb[0].mxu0
  %v2070 = vpop.f32.mrb[0].mxu0
  %v2071 = vadd.f32 0.0, %v2070
  %v2072 = vpop.f32.mrb[0].mxu0
  %2073 = vmatprep.mubr.bf16.mxu0 %v1774
  %2074 = vmatmul.mubr.bf16.gmra.mrb[0].mxu0 %v1771
  %v2075 = vpop.f32.mrb[0].mxu0
  %v2076 = vadd.f32 0.0, %v2075
  %v2077 = vpop.f32.mrb[0].mxu0
  %v2078 = vpop.f32.mrb[0].mxu0
  %v2079 = vadd.f32 0.0, %v2078
  %v2080 = vpop.f32.mrb[0].mxu0
  %2081 = vmatprep.mubr.bf16.mxu0 %v1777
  %2082 = vmatmul.mubr.bf16.gmra.mrb[0].mxu0 %v1774
  %v2083 = vpop.f32.mrb[0].mxu0
  %v2084 = vadd.f32 0.0, %v2083
  %v2085 = vpop.f32.mrb[0].mxu0
  %v2086 = vpop.f32.mrb[0].mxu0
  %v2087 = vadd.f32 0.0, %v2086
  %v2088 = vpop.f32.mrb[0].mxu0
  %2089 = vmatprep.mubr.bf16.mxu0 %v1780
  %2090 = vmatmul.mubr.bf16.gmra.mrb[0].mxu0 %v1777
  %v2091 = vpop.f32.mrb[0].mxu0
  %v2092 = vadd.f32 0.0, %v2091
  %v2093 = vpop.f32.mrb[0].mxu0
  %v2094 = vpop.f32.mrb[0].mxu0
  %v2095 = vadd.f32 0.0, %v2094
  %v2096 = vpop.f32.mrb[0].mxu0
  %2097 = vmatprep.mubr.bf16.mxu0 %v1783
  %2098 = vmatmul.mubr.bf16.gmra.mrb[0].mxu0 %v1780
  %v2099 = vpop.f32.mrb[0].mxu0
  %v2100 = vadd.f32 0.0, %v2099
  %v2101 = vpop.f32.mrb[0].mxu0
  %v2102 = vpop.f32.mrb[0].mxu0
  %v2103 = vadd.f32 0.0, %v2102
  %v2104 = vpop.f32.mrb[0].mxu0
  %2105 = vdwg.mxu0
  %2106 = vmatprep.subr.bf16.mxu0 0
  %2107 = vmatpush1.bf16.msra.mxu0 %v1913
  %2108 = vmatprep.subr.bf16.mxu0 0
  %2109 = vmatpush1.bf16.msra.mxu0 %v1914
  %2110 = vmatprep.subr.bf16.mxu0 0
  %2111 = vmatpush1.bf16.msra.mxu0 %v1915
  %2112 = vmatprep.subr.bf16.mxu0 0
  %2113 = vmatpush1.bf16.msra.mxu0 %v1916
  %2114 = vmatprep.subr.bf16.mxu0 0
  %2115 = vmatpush1.bf16.msra.mxu0 %v1917
  %2116 = vmatprep.subr.bf16.mxu0 0
  %2117 = vmatpush1.bf16.msra.mxu0 %v1918
  %2118 = vmatprep.subr.bf16.mxu0 0
  %2119 = vmatpush1.bf16.msra.mxu0 %v1919
  %2120 = vmatprep.subr.bf16.mxu0 0
  %2121 = vmatpush1.bf16.msra.mxu0 %v1920
  %2122 = vmatprep.subr.bf16.mxu0 0
  %2123 = vmatpush1.bf16.msra.mxu0 0
  %2124 = vmatprep.subr.bf16.mxu0 0
  %2125 = vmatpush1.bf16.msra.mxu0 0
  %2126 = vmatprep.subr.bf16.mxu0 0
  %2127 = vmatpush1.bf16.msra.mxu0 0
  %2128 = vmatprep.subr.bf16.mxu0 0
  %2129 = vmatpush1.bf16.msra.mxu0 0
  %2130 = vmatprep.subr.bf16.mxu0 0
  %2131 = vmatpush1.bf16.msra.mxu0 0
  %2132 = vmatprep.subr.bf16.mxu0 0
  %2133 = vmatpush1.bf16.msra.mxu0 0
  %2134 = vmatprep.subr.bf16.mxu0 0
  %2135 = vmatpush1.bf16.msra.mxu0 0
  %2136 = vmatprep.subr.bf16.mxu0 0
  %2137 = vmatpush1.bf16.msra.mxu0 0
  %2138 = vmatprep.mubr.bf16.mxu0 0
  %2139 = vmatmul.mubr.bf16.gmra.mrb[0].mxu0 %v1741
  %v2140 = vpop.f32.mrb[0].mxu0
  %v2141 = vadd.f32 %v1980, %v2140
  %v2142 = vpop.f32.mrb[0].mxu0
  %v2143 = vpop.f32.mrb[0].mxu0
  %v2144 = vadd.f32 %v1983, %v2143
  %v2145 = vpop.f32.mrb[0].mxu0
  %2146 = vmatprep.mubr.bf16.mxu0 0
  %2147 = vmatmul.mubr.bf16.gmra.mrb[0].mxu0 %v1744
  %v2148 = vpop.f32.mrb[0].mxu0
  %v2149 = vadd.f32 %v1988, %v2148
  %v2150 = vpop.f32.mrb[0].mxu0
  %v2151 = vpop.f32.mrb[0].mxu0
  %v2152 = vadd.f32 %v1991, %v2151
  %v2153 = vpop.f32.mrb[0].mxu0
  %2154 = vmatprep.mubr.bf16.mxu0 0
  %2155 = vmatmul.mubr.bf16.gmra.mrb[0].mxu0 %v1747
  %v2156 = vpop.f32.mrb[0].mxu0
  %v2157 = vadd.f32 %v1996, %v2156
  %v2158 = vpop.f32.mrb[0].mxu0
  %v2159 = vpop.f32.mrb[0].mxu0
  %v2160 = vadd.f32 %v1999, %v2159
  %v2161 = vpop.f32.mrb[0].mxu0
  %2162 = vmatprep.mubr.bf16.mxu0 0
  %2163 = vmatmul.mubr.bf16.gmra.mrb[0].mxu0 %v1750
  %v2164 = vpop.f32.mrb[0].mxu0
  %v2165 = vadd.f32 %v2004, %v2164
  %v2166 = vpop.f32.mrb[0].mxu0
  %v2167 = vpop.f32.mrb[0].mxu0
  %v2168 = vadd.f32 %v2007, %v2167
  %v2169 = vpop.f32.mrb[0].mxu0
  %2170 = vmatprep.mubr.bf16.mxu0 0
  %2171 = vmatmul.mubr.bf16.gmra.mrb[0].mxu0 %v1753
  %v2172 = vpop.f32.mrb[0].mxu0
  %v2173 = vadd.f32 %v2012, %v2172
  %v2174 = vpop.f32.mrb[0].mxu0
  %v2175 = vpop.f32.mrb[0].mxu0
  %v2176 = vadd.f32 %v2015, %v2175
  %v2177 = vpop.f32.mrb[0].mxu0
  %2178 = vmatprep.mubr.bf16.mxu0 0
  %2179 = vmatmul.mubr.bf16.gmra.mrb[0].mxu0 %v1756
  %v2180 = vpop.f32.mrb[0].mxu0
  %v2181 = vadd.f32 %v2020, %v2180
  %v2182 = vpop.f32.mrb[0].mxu0
  %v2183 = vpop.f32.mrb[0].mxu0
  %v2184 = vadd.f32 %v2023, %v2183
  %v2185 = vpop.f32.mrb[0].mxu0
  %2186 = vmatprep.mubr.bf16.mxu0 0
  %2187 = vmatmul.mubr.bf16.gmra.mrb[0].mxu0 %v1759
  %v2188 = vpop.f32.mrb[0].mxu0
  %v2189 = vadd.f32 %v2028, %v2188
  %v2190 = vpop.f32.mrb[0].mxu0
  %v2191 = vpop.f32.mrb[0].mxu0
  %v2192 = vadd.f32 %v2031, %v2191
  %v2193 = vpop.f32.mrb[0].mxu0
  %2194 = vmatprep.mubr.bf16.mxu0 0
  %2195 = vmatmul.mubr.bf16.gmra.mrb[0].mxu0 %v1762
  %v2196 = vpop.f32.mrb[0].mxu0
  %v2197 = vadd.f32 %v2036, %v2196
  %v2198 = vpop.f32.mrb[0].mxu0
  %v2199 = vpop.f32.mrb[0].mxu0
  %v2200 = vadd.f32 %v2039, %v2199
  %v2201 = vpop.f32.mrb[0].mxu0
  %2202 = vmatprep.mubr.bf16.mxu0 0
  %2203 = vmatmul.mubr.bf16.gmra.mrb[0].mxu0 %v1765
  %v2204 = vpop.f32.mrb[0].mxu0
  %v2205 = vadd.f32 %v2044, %v2204
  %v2206 = vpop.f32.mrb[0].mxu0
  %v2207 = vpop.f32.mrb[0].mxu0
  %v2208 = vadd.f32 %v2047, %v2207
  %v2209 = vpop.f32.mrb[0].mxu0
  %2210 = vmatprep.mubr.bf16.mxu0 0
  %2211 = vmatmul.mubr.bf16.gmra.mrb[0].mxu0 %v1768
  %v2212 = vpop.f32.mrb[0].mxu0
  %v2213 = vadd.f32 %v2052, %v2212
  %v2214 = vpop.f32.mrb[0].mxu0
  %v2215 = vpop.f32.mrb[0].mxu0
  %v2216 = vadd.f32 %v2055, %v2215
  %v2217 = vpop.f32.mrb[0].mxu0
  %2218 = vmatprep.mubr.bf16.mxu0 0
  %2219 = vmatmul.mubr.bf16.gmra.mrb[0].mxu0 %v1771
  %v2220 = vpop.f32.mrb[0].mxu0
  %v2221 = vadd.f32 %v2060, %v2220
  %v2222 = vpop.f32.mrb[0].mxu0
  %v2223 = vpop.f32.mrb[0].mxu0
  %v2224 = vadd.f32 %v2063, %v2223
  %v2225 = vpop.f32.mrb[0].mxu0
  %2226 = vmatprep.mubr.bf16.mxu0 0
  %2227 = vmatmul.mubr.bf16.gmra.mrb[0].mxu0 %v1774
  %v2228 = vpop.f32.mrb[0].mxu0
  %v2229 = vadd.f32 %v2068, %v2228
  %v2230 = vpop.f32.mrb[0].mxu0
  %v2231 = vpop.f32.mrb[0].mxu0
  %v2232 = vadd.f32 %v2071, %v2231
  %v2233 = vpop.f32.mrb[0].mxu0
  %2234 = vmatprep.mubr.bf16.mxu0 0
  %2235 = vmatmul.mubr.bf16.gmra.mrb[0].mxu0 %v1777
  %v2236 = vpop.f32.mrb[0].mxu0
  %v2237 = vadd.f32 %v2076, %v2236
  %v2238 = vpop.f32.mrb[0].mxu0
  %v2239 = vpop.f32.mrb[0].mxu0
  %v2240 = vadd.f32 %v2079, %v2239
  %v2241 = vpop.f32.mrb[0].mxu0
  %2242 = vmatprep.mubr.bf16.mxu0 0
  %2243 = vmatmul.mubr.bf16.gmra.mrb[0].mxu0 %v1780
  %v2244 = vpop.f32.mrb[0].mxu0
  %v2245 = vadd.f32 %v2084, %v2244
  %v2246 = vpop.f32.mrb[0].mxu0
  %v2247 = vpop.f32.mrb[0].mxu0
  %v2248 = vadd.f32 %v2087, %v2247
  %v2249 = vpop.f32.mrb[0].mxu0
  %2250 = vmatprep.mubr.bf16.mxu0 0
  %2251 = vmatmul.mubr.bf16.gmra.mrb[0].mxu0 %v1783
  %v2252 = vpop.f32.mrb[0].mxu0
  %v2253 = vadd.f32 %v2092, %v2252
  %v2254 = vpop.f32.mrb[0].mxu0
  %v2255 = vpop.f32.mrb[0].mxu0
  %v2256 = vadd.f32 %v2095, %v2255
  %v2257 = vpop.f32.mrb[0].mxu0
  %2258 = vmatprep.mubr.bf16.mxu0 0
  %2259 = vmatmul.mubr.bf16.gmra.mrb[0].mxu0 %v1735
  %v2260 = vpop.f32.mrb[0].mxu0
  %v2261 = vadd.f32 %v2100, %v2260
  %v2262 = vpop.f32.mrb[0].mxu0
  %v2263 = vpop.f32.mrb[0].mxu0
  %v2264 = vadd.f32 %v2103, %v2263
  %v2265 = vpop.f32.mrb[0].mxu0
  %2266 = vdwg.mxu0
  %v2267 = vadd.f32 %v1572, %v2141
  %v2268 = vadd.f32 %v1575, %v2144
  %v2269 = vadd.f32 %v1580, %v2149
  %v2270 = vadd.f32 %v1583, %v2152
  %v2271 = vadd.f32 %v1588, %v2157
  %v2272 = vadd.f32 %v1591, %v2160
  %v2273 = vadd.f32 %v1596, %v2165
  %v2274 = vadd.f32 %v1599, %v2168
  %v2275 = vadd.f32 %v1604, %v2173
  %v2276 = vadd.f32 %v1607, %v2176
  %v2277 = vadd.f32 %v1612, %v2181
  %v2278 = vadd.f32 %v1615, %v2184
  %v2279 = vadd.f32 %v1620, %v2189
  %v2280 = vadd.f32 %v1623, %v2192
  %v2281 = vadd.f32 %v1628, %v2197
  %v2282 = vadd.f32 %v1631, %v2200
  %v2283 = vadd.f32 %v1636, %v2205
  %v2284 = vadd.f32 %v1639, %v2208
  %v2285 = vadd.f32 %v1644, %v2213
  %v2286 = vadd.f32 %v1647, %v2216
  %v2287 = vadd.f32 %v1652, %v2221
  %v2288 = vadd.f32 %v1655, %v2224
  %v2289 = vadd.f32 %v1660, %v2229
  %v2290 = vadd.f32 %v1663, %v2232
  %v2291 = vadd.f32 %v1668, %v2237
  %v2292 = vadd.f32 %v1671, %v2240
  %v2293 = vadd.f32 %v1676, %v2245
  %v2294 = vadd.f32 %v1679, %v2248
  %v2295 = vadd.f32 %v1684, %v2253
  %v2296 = vadd.f32 %v1687, %v2256
  %v2297 = vadd.f32 %v1692, %v2261
  %v2298 = vadd.f32 %v1695, %v2264
  %v2299 = vpack.c.bf16 %v2268, %v2267
  %v2300 = vpack.c.bf16 %v2270, %v2269
  %v2301 = vpack.c.bf16 %v2272, %v2271
  %v2302 = vpack.c.bf16 %v2274, %v2273
  %v2303 = vpack.c.bf16 %v2276, %v2275
  %v2304 = vpack.c.bf16 %v2278, %v2277
  %v2305 = vpack.c.bf16 %v2280, %v2279
  %v2306 = vpack.c.bf16 %v2282, %v2281
  %v2307 = vpack.c.bf16 %v2284, %v2283
  %v2308 = vpack.c.bf16 %v2286, %v2285
  %v2309 = vpack.c.bf16 %v2288, %v2287
  %v2310 = vpack.c.bf16 %v2290, %v2289
  %v2311 = vpack.c.bf16 %v2292, %v2291
  %v2312 = vpack.c.bf16 %v2294, %v2293
  %v2313 = vpack.c.bf16 %v2296, %v2295
  %v2314 = vpack.c.bf16 %v2298, %v2297
  %v2331 = vunpack.c.l.b16 %v2299
  %v2332 = vunpack.c.h.b16 %v2299
  %v2333 = vunpack.c.l.b16 %v2300
  %v2334 = vunpack.c.h.b16 %v2300
  %v2335 = vunpack.c.l.b16 %v2301
  %v2336 = vunpack.c.h.b16 %v2301
  %v2337 = vunpack.c.l.b16 %v2302
  %v2338 = vunpack.c.h.b16 %v2302
  %v2339 = vunpack.c.l.b16 %v2303
  %v2340 = vunpack.c.h.b16 %v2303
  %v2341 = vunpack.c.l.b16 %v2304
  %v2342 = vunpack.c.h.b16 %v2304
  %v2343 = vunpack.c.l.b16 %v2305
  %v2344 = vunpack.c.h.b16 %v2305
  %v2345 = vunpack.c.l.b16 %v2306
  %v2346 = vunpack.c.h.b16 %v2306
  %v2347 = vunpack.c.l.b16 %v2307
  %v2348 = vunpack.c.h.b16 %v2307
  %v2349 = vunpack.c.l.b16 %v2308
  %v2350 = vunpack.c.h.b16 %v2308
  %v2351 = vunpack.c.l.b16 %v2309
  %v2352 = vunpack.c.h.b16 %v2309
  %v2353 = vunpack.c.l.b16 %v2310
  %v2354 = vunpack.c.h.b16 %v2310
  %v2355 = vunpack.c.l.b16 %v2311
  %v2356 = vunpack.c.h.b16 %v2311
  %v2357 = vunpack.c.l.b16 %v2312
  %v2358 = vunpack.c.h.b16 %v2312
  %v2359 = vunpack.c.l.b16 %v2313
  %v2360 = vunpack.c.h.b16 %v2313
  %v2361 = vunpack.c.l.b16 %v2314
  %v2362 = vunpack.c.h.b16 %v2314
  %v2363 = vpack.c.b16 %v2331, %v2331
  %v2364 = vpack.c.b16 %v2332, %v2332
  %v2365 = vpack.c.b16 %v2333, %v2333
  %v2366 = vpack.c.b16 %v2334, %v2334
  %v2367 = vpack.c.b16 %v2335, %v2335
  %v2368 = vpack.c.b16 %v2336, %v2336
  %v2369 = vpack.c.b16 %v2337, %v2337
  %v2370 = vpack.c.b16 %v2338, %v2338
  %v2371 = vpack.c.b16 %v2339, %v2339
  %v2372 = vpack.c.b16 %v2340, %v2340
  %v2373 = vpack.c.b16 %v2341, %v2341
  %v2374 = vpack.c.b16 %v2342, %v2342
  %v2375 = vpack.c.b16 %v2343, %v2343
  %v2376 = vpack.c.b16 %v2344, %v2344
  %v2377 = vpack.c.b16 %v2345, %v2345
  %v2378 = vpack.c.b16 %v2346, %v2346
  %v2379 = vpack.c.b16 %v2347, %v2347
  %v2380 = vpack.c.b16 %v2348, %v2348
  %v2381 = vpack.c.b16 %v2349, %v2349
  %v2382 = vpack.c.b16 %v2350, %v2350
  %v2383 = vpack.c.b16 %v2351, %v2351
  %v2384 = vpack.c.b16 %v2352, %v2352
  %v2385 = vpack.c.b16 %v2353, %v2353
  %v2386 = vpack.c.b16 %v2354, %v2354
  %v2387 = vpack.c.b16 %v2355, %v2355
  %v2388 = vpack.c.b16 %v2356, %v2356
  %v2389 = vpack.c.b16 %v2357, %v2357
  %v2390 = vpack.c.b16 %v2358, %v2358
  %v2391 = vpack.c.b16 %v2359, %v2359
  %v2392 = vpack.c.b16 %v2360, %v2360
  %v2393 = vpack.c.b16 %v2361, %v2361
  %v2394 = vpack.c.b16 %v2362, %v2362
  %2427 = vst [vmem:[%s4] sm:$0xf] %v2363
  %2428 = vst [vmem:[%s4 + $0x4] sm:$0xf] %v2364
  %2429 = vst [vmem:[%s4 + $0x8] sm:$0xf] %v2365
  %2430 = vst [vmem:[%s4 + $0xc] sm:$0xf] %v2366
  %2431 = vst [vmem:[%s4 + $0x10] sm:$0xf] %v2367
  %2432 = vst [vmem:[%s4 + $0x14] sm:$0xf] %v2368
  %2433 = vst [vmem:[%s4 + $0x18] sm:$0xf] %v2369
  %2434 = vst [vmem:[%s4 + $0x1c] sm:$0xf] %v2370
  %2435 = vst [vmem:[%s4 + $0x20] sm:$0xf] %v2371
  %2436 = vst [vmem:[%s4 + $0x24] sm:$0xf] %v2372
  %2437 = vst [vmem:[%s4 + $0x28] sm:$0xf] %v2373
  %2438 = vst [vmem:[%s4 + $0x2c] sm:$0xf] %v2374
  %2439 = vst [vmem:[%s4 + $0x30] sm:$0xf] %v2375
  %2440 = vst [vmem:[%s4 + $0x34] sm:$0xf] %v2376
  %2441 = vst [vmem:[%s4 + $0x38] sm:$0xf] %v2377
  %2442 = vst [vmem:[%s4 + $0x3c] sm:$0xf] %v2378
  %2443 = vst [vmem:[%s4 + $0x40] sm:$0xf] %v2379
  %2444 = vst [vmem:[%s4 + $0x44] sm:$0xf] %v2380
  %2445 = vst [vmem:[%s4 + $0x48] sm:$0xf] %v2381
  %2446 = vst [vmem:[%s4 + $0x4c] sm:$0xf] %v2382
  %2447 = vst [vmem:[%s4 + $0x50] sm:$0xf] %v2383
  %2448 = vst [vmem:[%s4 + $0x54] sm:$0xf] %v2384
  %2449 = vst [vmem:[%s4 + $0x58] sm:$0xf] %v2385
  %2450 = vst [vmem:[%s4 + $0x5c] sm:$0xf] %v2386
  %2451 = vst [vmem:[%s4 + $0x60] sm:$0xf] %v2387
  %2452 = vst [vmem:[%s4 + $0x64] sm:$0xf] %v2388
  %2453 = vst [vmem:[%s4 + $0x68] sm:$0xf] %v2389
  %2454 = vst [vmem:[%s4 + $0x6c] sm:$0xf] %v2390
  %2455 = vst [vmem:[%s4 + $0x70] sm:$0xf] %v2391
  %2456 = vst [vmem:[%s4 + $0x74] sm:$0xf] %v2392
  %2457 = vst [vmem:[%s4 + $0x78] sm:$0xf] %v2393
  %2458 = vst [vmem:[%s4 + $0x7c] sm:$0xf] %v2394
  %v2459 = vadd.f32 %v2267, %v2268
  %v2460 = vadd.f32 %v2459, %v2269
  %v2461 = vadd.f32 %v2460, %v2270
  %v2462 = vadd.f32 %v2461, %v2271
  %v2463 = vadd.f32 %v2462, %v2272
  %v2464 = vadd.f32 %v2463, %v2273
  %v2465 = vadd.f32 %v2464, %v2274
  %v2466 = vadd.f32 %v2465, %v2275
  %v2467 = vadd.f32 %v2466, %v2276
  %v2468 = vadd.f32 %v2467, %v2277
  %v2469 = vadd.f32 %v2468, %v2278
  %v2470 = vadd.f32 %v2469, %v2279
  %v2471 = vadd.f32 %v2470, %v2280
  %v2472 = vadd.f32 %v2471, %v2281
  %v2473 = vadd.f32 %v2472, %v2282
  %v2474 = vadd.f32 %v2473, %v2283
  %v2475 = vadd.f32 %v2474, %v2284
  %v2476 = vadd.f32 %v2475, %v2285
  %v2477 = vadd.f32 %v2476, %v2286
  %v2478 = vadd.f32 %v2477, %v2287
  %v2479 = vadd.f32 %v2478, %v2288
  %v2480 = vadd.f32 %v2479, %v2289
  %v2481 = vadd.f32 %v2480, %v2290
  %v2482 = vadd.f32 %v2481, %v2291
  %v2483 = vadd.f32 %v2482, %v2292
  %v2484 = vadd.f32 %v2483, %v2293
  %v2485 = vadd.f32 %v2484, %v2294
  %v2486 = vadd.f32 %v2485, %v2295
  %v2487 = vadd.f32 %v2486, %v2296
  %v2488 = vadd.f32 %v2487, %v2297
  %v2489 = vadd.f32 %v2488, %v2298
  %v2490 = vrot.slane %v2489, 4
  %v2491 = vadd.f32 %v2489, %v2490
  %v2492 = vrot.slane %v2491, 2
  %v2493 = vadd.f32 %v2491, %v2492
  %v2494 = vrot.slane %v2493, 1
  %v2495 = vadd.f32 %v2493, %v2494
  %v2496 = vadd.f32 %v2495, 0.0
  %v2497 = vmul.f32 %v2267, %v2267
  %v2498 = vmul.f32 %v2268, %v2268
  %v2499 = vmul.f32 %v2269, %v2269
  %v2500 = vmul.f32 %v2270, %v2270
  %v2501 = vmul.f32 %v2271, %v2271
  %v2502 = vmul.f32 %v2272, %v2272
  %v2503 = vmul.f32 %v2273, %v2273
  %v2504 = vmul.f32 %v2274, %v2274
  %v2505 = vmul.f32 %v2275, %v2275
  %v2506 = vmul.f32 %v2276, %v2276
  %v2507 = vmul.f32 %v2277, %v2277
  %v2508 = vmul.f32 %v2278, %v2278
  %v2509 = vmul.f32 %v2279, %v2279
  %v2510 = vmul.f32 %v2280, %v2280
  %v2511 = vmul.f32 %v2281, %v2281
  %v2512 = vmul.f32 %v2282, %v2282
  %v2513 = vmul.f32 %v2283, %v2283
  %v2514 = vmul.f32 %v2284, %v2284
  %v2515 = vmul.f32 %v2285, %v2285
  %v2516 = vmul.f32 %v2286, %v2286
  %v2517 = vmul.f32 %v2287, %v2287
  %v2518 = vmul.f32 %v2288, %v2288
  %v2519 = vmul.f32 %v2289, %v2289
  %v2520 = vmul.f32 %v2290, %v2290
  %v2521 = vmul.f32 %v2291, %v2291
  %v2522 = vmul.f32 %v2292, %v2292
  %v2523 = vmul.f32 %v2293, %v2293
  %v2524 = vmul.f32 %v2294, %v2294
  %v2525 = vmul.f32 %v2295, %v2295
  %v2526 = vmul.f32 %v2296, %v2296
  %v2527 = vmul.f32 %v2297, %v2297
  %v2528 = vmul.f32 %v2298, %v2298
  %v2529 = vadd.f32 %v2497, %v2498
  %v2530 = vadd.f32 %v2529, %v2499
  %v2531 = vadd.f32 %v2530, %v2500
  %v2532 = vadd.f32 %v2531, %v2501
  %v2533 = vadd.f32 %v2532, %v2502
  %v2534 = vadd.f32 %v2533, %v2503
  %v2535 = vadd.f32 %v2534, %v2504
  %v2536 = vadd.f32 %v2535, %v2505
  %v2537 = vadd.f32 %v2536, %v2506
  %v2538 = vadd.f32 %v2537, %v2507
  %v2539 = vadd.f32 %v2538, %v2508
  %v2540 = vadd.f32 %v2539, %v2509
  %v2541 = vadd.f32 %v2540, %v2510
  %v2542 = vadd.f32 %v2541, %v2511
  %v2543 = vadd.f32 %v2542, %v2512
  %v2544 = vadd.f32 %v2543, %v2513
  %v2545 = vadd.f32 %v2544, %v2514
  %v2546 = vadd.f32 %v2545, %v2515
  %v2547 = vadd.f32 %v2546, %v2516
  %v2548 = vadd.f32 %v2547, %v2517
  %v2549 = vadd.f32 %v2548, %v2518
  %v2550 = vadd.f32 %v2549, %v2519
  %v2551 = vadd.f32 %v2550, %v2520
  %v2552 = vadd.f32 %v2551, %v2521
  %v2553 = vadd.f32 %v2552, %v2522
  %v2554 = vadd.f32 %v2553, %v2523
  %v2555 = vadd.f32 %v2554, %v2524
  %v2556 = vadd.f32 %v2555, %v2525
  %v2557 = vadd.f32 %v2556, %v2526
  %v2558 = vadd.f32 %v2557, %v2527
  %v2559 = vadd.f32 %v2558, %v2528
  %v2560 = vrot.slane %v2559, 4
  %v2561 = vadd.f32 %v2559, %v2560
  %v2562 = vrot.slane %v2561, 2
  %v2563 = vadd.f32 %v2561, %v2562
  %v2564 = vrot.slane %v2563, 1
  %v2565 = vadd.f32 %v2563, %v2564
  %v2566 = vadd.f32 %v2565, 0.0
  %s2567 = scalar_lea.vmem %s0, 128
  %v2568 = vld [vmem:[%s2567] sm:$0xf]
  %v2569 = vld [vmem:[%s2567 + $0x4] sm:$0xf]
  %v2570 = vld [vmem:[%s2567 + $0x8] sm:$0xf]
  %v2571 = vld [vmem:[%s2567 + $0xc] sm:$0xf]
  %v2572 = vld [vmem:[%s2567 + $0x10] sm:$0xf]
  %v2573 = vld [vmem:[%s2567 + $0x14] sm:$0xf]
  %v2574 = vld [vmem:[%s2567 + $0x18] sm:$0xf]
  %v2575 = vld [vmem:[%s2567 + $0x1c] sm:$0xf]
  %v2576 = vld [vmem:[%s2567 + $0x20] sm:$0xf]
  %v2577 = vld [vmem:[%s2567 + $0x24] sm:$0xf]
  %v2578 = vld [vmem:[%s2567 + $0x28] sm:$0xf]
  %v2579 = vld [vmem:[%s2567 + $0x2c] sm:$0xf]
  %v2580 = vld [vmem:[%s2567 + $0x30] sm:$0xf]
  %v2581 = vld [vmem:[%s2567 + $0x34] sm:$0xf]
  %v2582 = vld [vmem:[%s2567 + $0x38] sm:$0xf]
  %v2583 = vld [vmem:[%s2567 + $0x3c] sm:$0xf]
  %v2584 = vld [vmem:[%s2567 + $0x40] sm:$0xf]
  %v2585 = vld [vmem:[%s2567 + $0x44] sm:$0xf]
  %v2586 = vld [vmem:[%s2567 + $0x48] sm:$0xf]
  %v2587 = vld [vmem:[%s2567 + $0x4c] sm:$0xf]
  %v2588 = vld [vmem:[%s2567 + $0x50] sm:$0xf]
  %v2589 = vld [vmem:[%s2567 + $0x54] sm:$0xf]
  %v2590 = vld [vmem:[%s2567 + $0x58] sm:$0xf]
  %v2591 = vld [vmem:[%s2567 + $0x5c] sm:$0xf]
  %v2592 = vld [vmem:[%s2567 + $0x60] sm:$0xf]
  %v2593 = vld [vmem:[%s2567 + $0x64] sm:$0xf]
  %v2594 = vld [vmem:[%s2567 + $0x68] sm:$0xf]
  %v2595 = vld [vmem:[%s2567 + $0x6c] sm:$0xf]
  %v2596 = vld [vmem:[%s2567 + $0x70] sm:$0xf]
  %v2597 = vld [vmem:[%s2567 + $0x74] sm:$0xf]
  %v2598 = vld [vmem:[%s2567 + $0x78] sm:$0xf]
  %v2599 = vld [vmem:[%s2567 + $0x7c] sm:$0xf]
  %v2600 = vunpack.c.l.bf16 %v2568
  %v2601 = vunpack.c.l.bf16 %v2569
  %v2602 = vunpack.c.l.bf16 %v2570
  %v2603 = vunpack.c.l.bf16 %v2571
  %v2604 = vunpack.c.l.bf16 %v2572
  %v2605 = vunpack.c.l.bf16 %v2573
  %v2606 = vunpack.c.l.bf16 %v2574
  %v2607 = vunpack.c.l.bf16 %v2575
  %v2608 = vunpack.c.l.bf16 %v2576
  %v2609 = vunpack.c.l.bf16 %v2577
  %v2610 = vunpack.c.l.bf16 %v2578
  %v2611 = vunpack.c.l.bf16 %v2579
  %v2612 = vunpack.c.l.bf16 %v2580
  %v2613 = vunpack.c.l.bf16 %v2581
  %v2614 = vunpack.c.l.bf16 %v2582
  %v2615 = vunpack.c.l.bf16 %v2583
  %v2616 = vunpack.c.l.bf16 %v2584
  %v2617 = vunpack.c.l.bf16 %v2585
  %v2618 = vunpack.c.l.bf16 %v2586
  %v2619 = vunpack.c.l.bf16 %v2587
  %v2620 = vunpack.c.l.bf16 %v2588
  %v2621 = vunpack.c.l.bf16 %v2589
  %v2622 = vunpack.c.l.bf16 %v2590
  %v2623 = vunpack.c.l.bf16 %v2591
  %v2624 = vunpack.c.l.bf16 %v2592
  %v2625 = vunpack.c.l.bf16 %v2593
  %v2626 = vunpack.c.l.bf16 %v2594
  %v2627 = vunpack.c.l.bf16 %v2595
  %v2628 = vunpack.c.l.bf16 %v2596
  %v2629 = vunpack.c.l.bf16 %v2597
  %v2630 = vunpack.c.l.bf16 %v2598
  %v2631 = vunpack.c.l.bf16 %v2599
  %v2632 = vmul.f32 %v2600, %v234
  %v2633 = vmul.f32 %v2601, %v234
  %v2634 = vmul.f32 %v2602, %v234
  %v2635 = vmul.f32 %v2603, %v234
  %v2636 = vmul.f32 %v2604, %v234
  %v2637 = vmul.f32 %v2605, %v234
  %v2638 = vmul.f32 %v2606, %v234
  %v2639 = vmul.f32 %v2607, %v234
  %v2640 = vmul.f32 %v2608, %v234
  %v2641 = vmul.f32 %v2609, %v234
  %v2642 = vmul.f32 %v2610, %v234
  %v2643 = vmul.f32 %v2611, %v234
  %v2644 = vmul.f32 %v2612, %v234
  %v2645 = vmul.f32 %v2613, %v234
  %v2646 = vmul.f32 %v2614, %v234
  %v2647 = vmul.f32 %v2615, %v234
  %v2648 = vmul.f32 %v2616, %v234
  %v2649 = vmul.f32 %v2617, %v234
  %v2650 = vmul.f32 %v2618, %v234
  %v2651 = vmul.f32 %v2619, %v234
  %v2652 = vmul.f32 %v2620, %v234
  %v2653 = vmul.f32 %v2621, %v234
  %v2654 = vmul.f32 %v2622, %v234
  %v2655 = vmul.f32 %v2623, %v234
  %v2656 = vmul.f32 %v2624, %v234
  %v2657 = vmul.f32 %v2625, %v234
  %v2658 = vmul.f32 %v2626, %v234
  %v2659 = vmul.f32 %v2627, %v234
  %v2660 = vmul.f32 %v2628, %v234
  %v2661 = vmul.f32 %v2629, %v234
  %v2662 = vmul.f32 %v2630, %v234
  %v2663 = vmul.f32 %v2631, %v234
  %v2664 = vadd.f32 %v2632, %v272
  %v2665 = vadd.f32 %v2633, %v272
  %v2666 = vadd.f32 %v2634, %v272
  %v2667 = vadd.f32 %v2635, %v272
  %v2668 = vadd.f32 %v2636, %v272
  %v2669 = vadd.f32 %v2637, %v272
  %v2670 = vadd.f32 %v2638, %v272
  %v2671 = vadd.f32 %v2639, %v272
  %v2672 = vadd.f32 %v2640, %v272
  %v2673 = vadd.f32 %v2641, %v272
  %v2674 = vadd.f32 %v2642, %v272
  %v2675 = vadd.f32 %v2643, %v272
  %v2676 = vadd.f32 %v2644, %v272
  %v2677 = vadd.f32 %v2645, %v272
  %v2678 = vadd.f32 %v2646, %v272
  %v2679 = vadd.f32 %v2647, %v272
  %v2680 = vadd.f32 %v2648, %v272
  %v2681 = vadd.f32 %v2649, %v272
  %v2682 = vadd.f32 %v2650, %v272
  %v2683 = vadd.f32 %v2651, %v272
  %v2684 = vadd.f32 %v2652, %v272
  %v2685 = vadd.f32 %v2653, %v272
  %v2686 = vadd.f32 %v2654, %v272
  %v2687 = vadd.f32 %v2655, %v272
  %v2688 = vadd.f32 %v2656, %v272
  %v2689 = vadd.f32 %v2657, %v272
  %v2690 = vadd.f32 %v2658, %v272
  %v2691 = vadd.f32 %v2659, %v272
  %v2692 = vadd.f32 %v2660, %v272
  %v2693 = vadd.f32 %v2661, %v272
  %v2694 = vadd.f32 %v2662, %v272
  %v2695 = vadd.f32 %v2663, %v272
  %v2696 = vmax.f32 %v2664, 0.0
  %v2697 = vmax.f32 %v2665, 0.0
  %v2698 = vmax.f32 %v2666, 0.0
  %v2699 = vmax.f32 %v2667, 0.0
  %v2700 = vmax.f32 %v2668, 0.0
  %v2701 = vmax.f32 %v2669, 0.0
  %v2702 = vmax.f32 %v2670, 0.0
  %v2703 = vmax.f32 %v2671, 0.0
  %v2704 = vmax.f32 %v2672, 0.0
  %v2705 = vmax.f32 %v2673, 0.0
  %v2706 = vmax.f32 %v2674, 0.0
  %v2707 = vmax.f32 %v2675, 0.0
  %v2708 = vmax.f32 %v2676, 0.0
  %v2709 = vmax.f32 %v2677, 0.0
  %v2710 = vmax.f32 %v2678, 0.0
  %v2711 = vmax.f32 %v2679, 0.0
  %v2712 = vmax.f32 %v2680, 0.0
  %v2713 = vmax.f32 %v2681, 0.0
  %v2714 = vmax.f32 %v2682, 0.0
  %v2715 = vmax.f32 %v2683, 0.0
  %v2716 = vmax.f32 %v2684, 0.0
  %v2717 = vmax.f32 %v2685, 0.0
  %v2718 = vmax.f32 %v2686, 0.0
  %v2719 = vmax.f32 %v2687, 0.0
  %v2720 = vmax.f32 %v2688, 0.0
  %v2721 = vmax.f32 %v2689, 0.0
  %v2722 = vmax.f32 %v2690, 0.0
  %v2723 = vmax.f32 %v2691, 0.0
  %v2724 = vmax.f32 %v2692, 0.0
  %v2725 = vmax.f32 %v2693, 0.0
  %v2726 = vmax.f32 %v2694, 0.0
  %v2727 = vmax.f32 %v2695, 0.0
  %v2728 = vpack.c.bf16 %v2697, %v2696
  %v2729 = vpack.c.bf16 %v2699, %v2698
  %v2730 = vpack.c.bf16 %v2701, %v2700
  %v2731 = vpack.c.bf16 %v2703, %v2702
  %v2732 = vpack.c.bf16 %v2705, %v2704
  %v2733 = vpack.c.bf16 %v2707, %v2706
  %v2734 = vpack.c.bf16 %v2709, %v2708
  %v2735 = vpack.c.bf16 %v2711, %v2710
  %v2736 = vpack.c.bf16 %v2713, %v2712
  %v2737 = vpack.c.bf16 %v2715, %v2714
  %v2738 = vpack.c.bf16 %v2717, %v2716
  %v2739 = vpack.c.bf16 %v2719, %v2718
  %v2740 = vpack.c.bf16 %v2721, %v2720
  %v2741 = vpack.c.bf16 %v2723, %v2722
  %v2742 = vpack.c.bf16 %v2725, %v2724
  %v2743 = vpack.c.bf16 %v2727, %v2726
  %v2745 = vshrl.u32 %v2728, 16
  %v2747 = vrot.slane %v2745, 7
  %v2748 = vshll.u32 %v2728, 16
  %v2750 = vor.u32 %v2747, %v2748
  %v2752 = vshrl.u32 %v2729, 16
  %v2754 = vrot.slane %v2752, 7
  %v2755 = vshll.u32 %v2729, 16
  %v2757 = vor.u32 %v2754, %v2755
  %v2759 = vshrl.u32 %v2730, 16
  %v2761 = vrot.slane %v2759, 7
  %v2762 = vshll.u32 %v2730, 16
  %v2764 = vor.u32 %v2761, %v2762
  %v2766 = vshrl.u32 %v2731, 16
  %v2768 = vrot.slane %v2766, 7
  %v2769 = vshll.u32 %v2731, 16
  %v2771 = vor.u32 %v2768, %v2769
  %v2773 = vshrl.u32 %v2732, 16
  %v2775 = vrot.slane %v2773, 7
  %v2776 = vshll.u32 %v2732, 16
  %v2778 = vor.u32 %v2775, %v2776
  %v2780 = vshrl.u32 %v2733, 16
  %v2782 = vrot.slane %v2780, 7
  %v2783 = vshll.u32 %v2733, 16
  %v2785 = vor.u32 %v2782, %v2783
  %v2787 = vshrl.u32 %v2734, 16
  %v2789 = vrot.slane %v2787, 7
  %v2790 = vshll.u32 %v2734, 16
  %v2792 = vor.u32 %v2789, %v2790
  %v2794 = vshrl.u32 %v2735, 16
  %v2796 = vrot.slane %v2794, 7
  %v2797 = vshll.u32 %v2735, 16
  %v2799 = vor.u32 %v2796, %v2797
  %v2801 = vshrl.u32 %v2736, 16
  %v2803 = vrot.slane %v2801, 7
  %v2804 = vshll.u32 %v2736, 16
  %v2806 = vor.u32 %v2803, %v2804
  %v2808 = vshrl.u32 %v2737, 16
  %v2810 = vrot.slane %v2808, 7
  %v2811 = vshll.u32 %v2737, 16
  %v2813 = vor.u32 %v2810, %v2811
  %v2815 = vshrl.u32 %v2738, 16
  %v2817 = vrot.slane %v2815, 7
  %v2818 = vshll.u32 %v2738, 16
  %v2820 = vor.u32 %v2817, %v2818
  %v2822 = vshrl.u32 %v2739, 16
  %v2824 = vrot.slane %v2822, 7
  %v2825 = vshll.u32 %v2739, 16
  %v2827 = vor.u32 %v2824, %v2825
  %v2829 = vshrl.u32 %v2740, 16
  %v2831 = vrot.slane %v2829, 7
  %v2832 = vshll.u32 %v2740, 16
  %v2834 = vor.u32 %v2831, %v2832
  %v2836 = vshrl.u32 %v2741, 16
  %v2838 = vrot.slane %v2836, 7
  %v2839 = vshll.u32 %v2741, 16
  %v2841 = vor.u32 %v2838, %v2839
  %v2843 = vshrl.u32 %v2742, 16
  %v2845 = vrot.slane %v2843, 7
  %v2846 = vshll.u32 %v2742, 16
  %v2848 = vor.u32 %v2845, %v2846
  %v2850 = vshrl.u32 %v2743, 16
  %v2852 = vrot.slane %v2850, 7
  %v2853 = vshll.u32 %v2743, 16
  %v2855 = vor.u32 %v2852, %v2853
  %v2888 = vsel %vm509, 0, %v2750
  %v2889 = vsel %vm509, 0, %v2757
  %v2890 = vsel %vm509, 0, %v2764
  %v2891 = vsel %vm509, 0, %v2771
  %v2892 = vsel %vm509, 0, %v2778
  %v2893 = vsel %vm509, 0, %v2785
  %v2894 = vsel %vm509, 0, %v2792
  %v2895 = vsel %vm509, 0, %v2799
  %v2896 = vsel %vm509, 0, %v2806
  %v2897 = vsel %vm509, 0, %v2813
  %v2898 = vsel %vm509, 0, %v2820
  %v2899 = vsel %vm509, 0, %v2827
  %v2900 = vsel %vm509, 0, %v2834
  %v2901 = vsel %vm509, 0, %v2841
  %v2902 = vsel %vm509, 0, %v2848
  %v2903 = vsel %vm509, 0, %v2855
  %v2904 = vsel %vm509, %v2747, 0
  %v2905 = vsel %vm509, %v2754, 0
  %v2906 = vsel %vm509, %v2761, 0
  %v2907 = vsel %vm509, %v2768, 0
  %v2908 = vsel %vm509, %v2775, 0
  %v2909 = vsel %vm509, %v2782, 0
  %v2910 = vsel %vm509, %v2789, 0
  %v2911 = vsel %vm509, %v2796, 0
  %v2912 = vsel %vm509, %v2803, 0
  %v2913 = vsel %vm509, %v2810, 0
  %v2914 = vsel %vm509, %v2817, 0
  %v2915 = vsel %vm509, %v2824, 0
  %v2916 = vsel %vm509, %v2831, 0
  %v2917 = vsel %vm509, %v2838, 0
  %v2918 = vsel %vm509, %v2845, 0
  %v2919 = vsel %vm509, %v2852, 0
  %v2921 = vshrl.u32 %v2888, 16
  %v2923 = vshll.u32 %v2888, 16
  %v2925 = vrot.slane %v2923, 1
  %v2926 = vor.u32 %v2921, %v2925
  %v2928 = vshll.u32 %v2904, 16
  %v2930 = vrot.slane %v2928, 1
  %v2931 = vsel %vm544, %v2926, %v2930
  %v2933 = vshrl.u32 %v2889, 16
  %v2935 = vshll.u32 %v2889, 16
  %v2937 = vrot.slane %v2935, 1
  %v2938 = vor.u32 %v2933, %v2937
  %v2940 = vshll.u32 %v2905, 16
  %v2942 = vrot.slane %v2940, 1
  %v2943 = vsel %vm544, %v2938, %v2942
  %v2945 = vshrl.u32 %v2890, 16
  %v2947 = vshll.u32 %v2890, 16
  %v2949 = vrot.slane %v2947, 1
  %v2950 = vor.u32 %v2945, %v2949
  %v2952 = vshll.u32 %v2906, 16
  %v2954 = vrot.slane %v2952, 1
  %v2955 = vsel %vm544, %v2950, %v2954
  %v2957 = vshrl.u32 %v2891, 16
  %v2959 = vshll.u32 %v2891, 16
  %v2961 = vrot.slane %v2959, 1
  %v2962 = vor.u32 %v2957, %v2961
  %v2964 = vshll.u32 %v2907, 16
  %v2966 = vrot.slane %v2964, 1
  %v2967 = vsel %vm544, %v2962, %v2966
  %v2969 = vshrl.u32 %v2892, 16
  %v2971 = vshll.u32 %v2892, 16
  %v2973 = vrot.slane %v2971, 1
  %v2974 = vor.u32 %v2969, %v2973
  %v2976 = vshll.u32 %v2908, 16
  %v2978 = vrot.slane %v2976, 1
  %v2979 = vsel %vm544, %v2974, %v2978
  %v2981 = vshrl.u32 %v2893, 16
  %v2983 = vshll.u32 %v2893, 16
  %v2985 = vrot.slane %v2983, 1
  %v2986 = vor.u32 %v2981, %v2985
  %v2988 = vshll.u32 %v2909, 16
  %v2990 = vrot.slane %v2988, 1
  %v2991 = vsel %vm544, %v2986, %v2990
  %v2993 = vshrl.u32 %v2894, 16
  %v2995 = vshll.u32 %v2894, 16
  %v2997 = vrot.slane %v2995, 1
  %v2998 = vor.u32 %v2993, %v2997
  %v3000 = vshll.u32 %v2910, 16
  %v3002 = vrot.slane %v3000, 1
  %v3003 = vsel %vm544, %v2998, %v3002
  %v3005 = vshrl.u32 %v2895, 16
  %v3007 = vshll.u32 %v2895, 16
  %v3009 = vrot.slane %v3007, 1
  %v3010 = vor.u32 %v3005, %v3009
  %v3012 = vshll.u32 %v2911, 16
  %v3014 = vrot.slane %v3012, 1
  %v3015 = vsel %vm544, %v3010, %v3014
  %v3017 = vshrl.u32 %v2896, 16
  %v3019 = vshll.u32 %v2896, 16
  %v3021 = vrot.slane %v3019, 1
  %v3022 = vor.u32 %v3017, %v3021
  %v3024 = vshll.u32 %v2912, 16
  %v3026 = vrot.slane %v3024, 1
  %v3027 = vsel %vm544, %v3022, %v3026
  %v3029 = vshrl.u32 %v2897, 16
  %v3031 = vshll.u32 %v2897, 16
  %v3033 = vrot.slane %v3031, 1
  %v3034 = vor.u32 %v3029, %v3033
  %v3036 = vshll.u32 %v2913, 16
  %v3038 = vrot.slane %v3036, 1
  %v3039 = vsel %vm544, %v3034, %v3038
  %v3041 = vshrl.u32 %v2898, 16
  %v3043 = vshll.u32 %v2898, 16
  %v3045 = vrot.slane %v3043, 1
  %v3046 = vor.u32 %v3041, %v3045
  %v3048 = vshll.u32 %v2914, 16
  %v3050 = vrot.slane %v3048, 1
  %v3051 = vsel %vm544, %v3046, %v3050
  %v3053 = vshrl.u32 %v2899, 16
  %v3055 = vshll.u32 %v2899, 16
  %v3057 = vrot.slane %v3055, 1
  %v3058 = vor.u32 %v3053, %v3057
  %v3060 = vshll.u32 %v2915, 16
  %v3062 = vrot.slane %v3060, 1
  %v3063 = vsel %vm544, %v3058, %v3062
  %v3065 = vshrl.u32 %v2900, 16
  %v3067 = vshll.u32 %v2900, 16
  %v3069 = vrot.slane %v3067, 1
  %v3070 = vor.u32 %v3065, %v3069
  %v3072 = vshll.u32 %v2916, 16
  %v3074 = vrot.slane %v3072, 1
  %v3075 = vsel %vm544, %v3070, %v3074
  %v3077 = vshrl.u32 %v2901, 16
  %v3079 = vshll.u32 %v2901, 16
  %v3081 = vrot.slane %v3079, 1
  %v3082 = vor.u32 %v3077, %v3081
  %v3084 = vshll.u32 %v2917, 16
  %v3086 = vrot.slane %v3084, 1
  %v3087 = vsel %vm544, %v3082, %v3086
  %v3089 = vshrl.u32 %v2902, 16
  %v3091 = vshll.u32 %v2902, 16
  %v3093 = vrot.slane %v3091, 1
  %v3094 = vor.u32 %v3089, %v3093
  %v3096 = vshll.u32 %v2918, 16
  %v3098 = vrot.slane %v3096, 1
  %v3099 = vsel %vm544, %v3094, %v3098
  %v3101 = vshrl.u32 %v2903, 16
  %v3103 = vshll.u32 %v2903, 16
  %v3105 = vrot.slane %v3103, 1
  %v3106 = vor.u32 %v3101, %v3105
  %v3108 = vshll.u32 %v2919, 16
  %v3110 = vrot.slane %v3108, 1
  %v3111 = vsel %vm544, %v3106, %v3110
  %3128 = vmatprep.subr.bf16.mxu0 0
  %3129 = vmatpush1.bf16.msra.mxu0 %v862
  %3130 = vmatprep.subr.bf16.mxu0 0
  %3131 = vmatpush1.bf16.msra.mxu0 %v863
  %3132 = vmatprep.subr.bf16.mxu0 0
  %3133 = vmatpush1.bf16.msra.mxu0 %v864
  %3134 = vmatprep.subr.bf16.mxu0 0
  %3135 = vmatpush1.bf16.msra.mxu0 %v865
  %3136 = vmatprep.subr.bf16.mxu0 0
  %3137 = vmatpush1.bf16.msra.mxu0 %v866
  %3138 = vmatprep.subr.bf16.mxu0 0
  %3139 = vmatpush1.bf16.msra.mxu0 %v867
  %3140 = vmatprep.subr.bf16.mxu0 0
  %3141 = vmatpush1.bf16.msra.mxu0 %v868
  %3142 = vmatprep.subr.bf16.mxu0 0
  %3143 = vmatpush1.bf16.msra.mxu0 %v869
  %3144 = vmatprep.subr.bf16.mxu0 0
  %3145 = vmatpush1.bf16.msra.mxu0 %v870
  %3146 = vmatprep.subr.bf16.mxu0 0
  %3147 = vmatpush1.bf16.msra.mxu0 %v871
  %3148 = vmatprep.subr.bf16.mxu0 0
  %3149 = vmatpush1.bf16.msra.mxu0 %v872
  %3150 = vmatprep.subr.bf16.mxu0 0
  %3151 = vmatpush1.bf16.msra.mxu0 %v873
  %3152 = vmatprep.subr.bf16.mxu0 0
  %3153 = vmatpush1.bf16.msra.mxu0 %v874
  %3154 = vmatprep.subr.bf16.mxu0 0
  %3155 = vmatpush1.bf16.msra.mxu0 %v875
  %3156 = vmatprep.subr.bf16.mxu0 0
  %3157 = vmatpush1.bf16.msra.mxu0 %v876
  %3158 = vmatprep.subr.bf16.mxu0 0
  %3159 = vmatpush1.bf16.msra.mxu0 %v877
  %3160 = vmatprep.mubr.bf16.mxu0 %v2931
  %3161 = vmatmul.mubr.bf16.gmra.mrb[0].mxu0 %v556
  %v3162 = vpop.f32.mrb[0].mxu0
  %v3163 = vadd.f32 0.0, %v3162
  %v3164 = vpop.f32.mrb[0].mxu0
  %v3165 = vpop.f32.mrb[0].mxu0
  %v3166 = vadd.f32 0.0, %v3165
  %v3167 = vpop.f32.mrb[0].mxu0
  %3168 = vmatprep.mubr.bf16.mxu0 %v2943
  %3169 = vmatmul.mubr.bf16.gmra.mrb[0].mxu0 %v2931
  %v3170 = vpop.f32.mrb[0].mxu0
  %v3171 = vadd.f32 0.0, %v3170
  %v3172 = vpop.f32.mrb[0].mxu0
  %v3173 = vpop.f32.mrb[0].mxu0
  %v3174 = vadd.f32 0.0, %v3173
  %v3175 = vpop.f32.mrb[0].mxu0
  %3176 = vmatprep.mubr.bf16.mxu0 %v2955
  %3177 = vmatmul.mubr.bf16.gmra.mrb[0].mxu0 %v2943
  %v3178 = vpop.f32.mrb[0].mxu0
  %v3179 = vadd.f32 0.0, %v3178
  %v3180 = vpop.f32.mrb[0].mxu0
  %v3181 = vpop.f32.mrb[0].mxu0
  %v3182 = vadd.f32 0.0, %v3181
  %v3183 = vpop.f32.mrb[0].mxu0
  %3184 = vmatprep.mubr.bf16.mxu0 %v2967
  %3185 = vmatmul.mubr.bf16.gmra.mrb[0].mxu0 %v2955
  %v3186 = vpop.f32.mrb[0].mxu0
  %v3187 = vadd.f32 0.0, %v3186
  %v3188 = vpop.f32.mrb[0].mxu0
  %v3189 = vpop.f32.mrb[0].mxu0
  %v3190 = vadd.f32 0.0, %v3189
  %v3191 = vpop.f32.mrb[0].mxu0
  %3192 = vmatprep.mubr.bf16.mxu0 %v2979
  %3193 = vmatmul.mubr.bf16.gmra.mrb[0].mxu0 %v2967
  %v3194 = vpop.f32.mrb[0].mxu0
  %v3195 = vadd.f32 0.0, %v3194
  %v3196 = vpop.f32.mrb[0].mxu0
  %v3197 = vpop.f32.mrb[0].mxu0
  %v3198 = vadd.f32 0.0, %v3197
  %v3199 = vpop.f32.mrb[0].mxu0
  %3200 = vmatprep.mubr.bf16.mxu0 %v2991
  %3201 = vmatmul.mubr.bf16.gmra.mrb[0].mxu0 %v2979
  %v3202 = vpop.f32.mrb[0].mxu0
  %v3203 = vadd.f32 0.0, %v3202
  %v3204 = vpop.f32.mrb[0].mxu0
  %v3205 = vpop.f32.mrb[0].mxu0
  %v3206 = vadd.f32 0.0, %v3205
  %v3207 = vpop.f32.mrb[0].mxu0
  %3208 = vmatprep.mubr.bf16.mxu0 %v3003
  %3209 = vmatmul.mubr.bf16.gmra.mrb[0].mxu0 %v2991
  %v3210 = vpop.f32.mrb[0].mxu0
  %v3211 = vadd.f32 0.0, %v3210
  %v3212 = vpop.f32.mrb[0].mxu0
  %v3213 = vpop.f32.mrb[0].mxu0
  %v3214 = vadd.f32 0.0, %v3213
  %v3215 = vpop.f32.mrb[0].mxu0
  %3216 = vmatprep.mubr.bf16.mxu0 %v3015
  %3217 = vmatmul.mubr.bf16.gmra.mrb[0].mxu0 %v3003
  %v3218 = vpop.f32.mrb[0].mxu0
  %v3219 = vadd.f32 0.0, %v3218
  %v3220 = vpop.f32.mrb[0].mxu0
  %v3221 = vpop.f32.mrb[0].mxu0
  %v3222 = vadd.f32 0.0, %v3221
  %v3223 = vpop.f32.mrb[0].mxu0
  %3224 = vmatprep.mubr.bf16.mxu0 %v3027
  %3225 = vmatmul.mubr.bf16.gmra.mrb[0].mxu0 %v3015
  %v3226 = vpop.f32.mrb[0].mxu0
  %v3227 = vadd.f32 0.0, %v3226
  %v3228 = vpop.f32.mrb[0].mxu0
  %v3229 = vpop.f32.mrb[0].mxu0
  %v3230 = vadd.f32 0.0, %v3229
  %v3231 = vpop.f32.mrb[0].mxu0
  %3232 = vmatprep.mubr.bf16.mxu0 %v3039
  %3233 = vmatmul.mubr.bf16.gmra.mrb[0].mxu0 %v3027
  %v3234 = vpop.f32.mrb[0].mxu0
  %v3235 = vadd.f32 0.0, %v3234
  %v3236 = vpop.f32.mrb[0].mxu0
  %v3237 = vpop.f32.mrb[0].mxu0
  %v3238 = vadd.f32 0.0, %v3237
  %v3239 = vpop.f32.mrb[0].mxu0
  %3240 = vmatprep.mubr.bf16.mxu0 %v3051
  %3241 = vmatmul.mubr.bf16.gmra.mrb[0].mxu0 %v3039
  %v3242 = vpop.f32.mrb[0].mxu0
  %v3243 = vadd.f32 0.0, %v3242
  %v3244 = vpop.f32.mrb[0].mxu0
  %v3245 = vpop.f32.mrb[0].mxu0
  %v3246 = vadd.f32 0.0, %v3245
  %v3247 = vpop.f32.mrb[0].mxu0
  %3248 = vmatprep.mubr.bf16.mxu0 %v3063
  %3249 = vmatmul.mubr.bf16.gmra.mrb[0].mxu0 %v3051
  %v3250 = vpop.f32.mrb[0].mxu0
  %v3251 = vadd.f32 0.0, %v3250
  %v3252 = vpop.f32.mrb[0].mxu0
  %v3253 = vpop.f32.mrb[0].mxu0
  %v3254 = vadd.f32 0.0, %v3253
  %v3255 = vpop.f32.mrb[0].mxu0
  %3256 = vmatprep.mubr.bf16.mxu0 %v3075
  %3257 = vmatmul.mubr.bf16.gmra.mrb[0].mxu0 %v3063
  %v3258 = vpop.f32.mrb[0].mxu0
  %v3259 = vadd.f32 0.0, %v3258
  %v3260 = vpop.f32.mrb[0].mxu0
  %v3261 = vpop.f32.mrb[0].mxu0
  %v3262 = vadd.f32 0.0, %v3261
  %v3263 = vpop.f32.mrb[0].mxu0
  %3264 = vmatprep.mubr.bf16.mxu0 %v3087
  %3265 = vmatmul.mubr.bf16.gmra.mrb[0].mxu0 %v3075
  %v3266 = vpop.f32.mrb[0].mxu0
  %v3267 = vadd.f32 0.0, %v3266
  %v3268 = vpop.f32.mrb[0].mxu0
  %v3269 = vpop.f32.mrb[0].mxu0
  %v3270 = vadd.f32 0.0, %v3269
  %v3271 = vpop.f32.mrb[0].mxu0
  %3272 = vmatprep.mubr.bf16.mxu0 %v3099
  %3273 = vmatmul.mubr.bf16.gmra.mrb[0].mxu0 %v3087
  %v3274 = vpop.f32.mrb[0].mxu0
  %v3275 = vadd.f32 0.0, %v3274
  %v3276 = vpop.f32.mrb[0].mxu0
  %v3277 = vpop.f32.mrb[0].mxu0
  %v3278 = vadd.f32 0.0, %v3277
  %v3279 = vpop.f32.mrb[0].mxu0
  %3280 = vmatprep.mubr.bf16.mxu0 %v3111
  %3281 = vmatmul.mubr.bf16.gmra.mrb[0].mxu0 %v3099
  %v3282 = vpop.f32.mrb[0].mxu0
  %v3283 = vadd.f32 0.0, %v3282
  %v3284 = vpop.f32.mrb[0].mxu0
  %v3285 = vpop.f32.mrb[0].mxu0
  %v3286 = vadd.f32 0.0, %v3285
  %v3287 = vpop.f32.mrb[0].mxu0
  %3288 = vdwg.mxu0
  %3289 = vmatprep.subr.bf16.mxu0 0
  %3290 = vmatpush1.bf16.msra.mxu0 %v878
  %3291 = vmatprep.subr.bf16.mxu0 0
  %3292 = vmatpush1.bf16.msra.mxu0 %v879
  %3293 = vmatprep.subr.bf16.mxu0 0
  %3294 = vmatpush1.bf16.msra.mxu0 %v880
  %3295 = vmatprep.subr.bf16.mxu0 0
  %3296 = vmatpush1.bf16.msra.mxu0 %v881
  %3297 = vmatprep.subr.bf16.mxu0 0
  %3298 = vmatpush1.bf16.msra.mxu0 %v882
  %3299 = vmatprep.subr.bf16.mxu0 0
  %3300 = vmatpush1.bf16.msra.mxu0 %v883
  %3301 = vmatprep.subr.bf16.mxu0 0
  %3302 = vmatpush1.bf16.msra.mxu0 %v884
  %3303 = vmatprep.subr.bf16.mxu0 0
  %3304 = vmatpush1.bf16.msra.mxu0 %v885
  %3305 = vmatprep.subr.bf16.mxu0 0
  %3306 = vmatpush1.bf16.msra.mxu0 0
  %3307 = vmatprep.subr.bf16.mxu0 0
  %3308 = vmatpush1.bf16.msra.mxu0 0
  %3309 = vmatprep.subr.bf16.mxu0 0
  %3310 = vmatpush1.bf16.msra.mxu0 0
  %3311 = vmatprep.subr.bf16.mxu0 0
  %3312 = vmatpush1.bf16.msra.mxu0 0
  %3313 = vmatprep.subr.bf16.mxu0 0
  %3314 = vmatpush1.bf16.msra.mxu0 0
  %3315 = vmatprep.subr.bf16.mxu0 0
  %3316 = vmatpush1.bf16.msra.mxu0 0
  %3317 = vmatprep.subr.bf16.mxu0 0
  %3318 = vmatpush1.bf16.msra.mxu0 0
  %3319 = vmatprep.subr.bf16.mxu0 0
  %3320 = vmatpush1.bf16.msra.mxu0 0
  %3321 = vmatprep.mubr.bf16.mxu0 0
  %3322 = vmatmul.mubr.bf16.gmra.mrb[0].mxu0 %v2943
  %v3323 = vpop.f32.mrb[0].mxu0
  %v3324 = vadd.f32 %v3163, %v3323
  %v3325 = vpop.f32.mrb[0].mxu0
  %v3326 = vpop.f32.mrb[0].mxu0
  %v3327 = vadd.f32 %v3166, %v3326
  %v3328 = vpop.f32.mrb[0].mxu0
  %3329 = vmatprep.mubr.bf16.mxu0 0
  %3330 = vmatmul.mubr.bf16.gmra.mrb[0].mxu0 %v2955
  %v3331 = vpop.f32.mrb[0].mxu0
  %v3332 = vadd.f32 %v3171, %v3331
  %v3333 = vpop.f32.mrb[0].mxu0
  %v3334 = vpop.f32.mrb[0].mxu0
  %v3335 = vadd.f32 %v3174, %v3334
  %v3336 = vpop.f32.mrb[0].mxu0
  %3337 = vmatprep.mubr.bf16.mxu0 0
  %3338 = vmatmul.mubr.bf16.gmra.mrb[0].mxu0 %v2967
  %v3339 = vpop.f32.mrb[0].mxu0
  %v3340 = vadd.f32 %v3179, %v3339
  %v3341 = vpop.f32.mrb[0].mxu0
  %v3342 = vpop.f32.mrb[0].mxu0
  %v3343 = vadd.f32 %v3182, %v3342
  %v3344 = vpop.f32.mrb[0].mxu0
  %3345 = vmatprep.mubr.bf16.mxu0 0
  %3346 = vmatmul.mubr.bf16.gmra.mrb[0].mxu0 %v2979
  %v3347 = vpop.f32.mrb[0].mxu0
  %v3348 = vadd.f32 %v3187, %v3347
  %v3349 = vpop.f32.mrb[0].mxu0
  %v3350 = vpop.f32.mrb[0].mxu0
  %v3351 = vadd.f32 %v3190, %v3350
  %v3352 = vpop.f32.mrb[0].mxu0
  %3353 = vmatprep.mubr.bf16.mxu0 0
  %3354 = vmatmul.mubr.bf16.gmra.mrb[0].mxu0 %v2991
  %v3355 = vpop.f32.mrb[0].mxu0
  %v3356 = vadd.f32 %v3195, %v3355
  %v3357 = vpop.f32.mrb[0].mxu0
  %v3358 = vpop.f32.mrb[0].mxu0
  %v3359 = vadd.f32 %v3198, %v3358
  %v3360 = vpop.f32.mrb[0].mxu0
  %3361 = vmatprep.mubr.bf16.mxu0 0
  %3362 = vmatmul.mubr.bf16.gmra.mrb[0].mxu0 %v3003
  %v3363 = vpop.f32.mrb[0].mxu0
  %v3364 = vadd.f32 %v3203, %v3363
  %v3365 = vpop.f32.mrb[0].mxu0
  %v3366 = vpop.f32.mrb[0].mxu0
  %v3367 = vadd.f32 %v3206, %v3366
  %v3368 = vpop.f32.mrb[0].mxu0
  %3369 = vmatprep.mubr.bf16.mxu0 0
  %3370 = vmatmul.mubr.bf16.gmra.mrb[0].mxu0 %v3015
  %v3371 = vpop.f32.mrb[0].mxu0
  %v3372 = vadd.f32 %v3211, %v3371
  %v3373 = vpop.f32.mrb[0].mxu0
  %v3374 = vpop.f32.mrb[0].mxu0
  %v3375 = vadd.f32 %v3214, %v3374
  %v3376 = vpop.f32.mrb[0].mxu0
  %3377 = vmatprep.mubr.bf16.mxu0 0
  %3378 = vmatmul.mubr.bf16.gmra.mrb[0].mxu0 %v3027
  %v3379 = vpop.f32.mrb[0].mxu0
  %v3380 = vadd.f32 %v3219, %v3379
  %v3381 = vpop.f32.mrb[0].mxu0
  %v3382 = vpop.f32.mrb[0].mxu0
  %v3383 = vadd.f32 %v3222, %v3382
  %v3384 = vpop.f32.mrb[0].mxu0
  %3385 = vmatprep.mubr.bf16.mxu0 0
  %3386 = vmatmul.mubr.bf16.gmra.mrb[0].mxu0 %v3039
  %v3387 = vpop.f32.mrb[0].mxu0
  %v3388 = vadd.f32 %v3227, %v3387
  %v3389 = vpop.f32.mrb[0].mxu0
  %v3390 = vpop.f32.mrb[0].mxu0
  %v3391 = vadd.f32 %v3230, %v3390
  %v3392 = vpop.f32.mrb[0].mxu0
  %3393 = vmatprep.mubr.bf16.mxu0 0
  %3394 = vmatmul.mubr.bf16.gmra.mrb[0].mxu0 %v3051
  %v3395 = vpop.f32.mrb[0].mxu0
  %v3396 = vadd.f32 %v3235, %v3395
  %v3397 = vpop.f32.mrb[0].mxu0
  %v3398 = vpop.f32.mrb[0].mxu0
  %v3399 = vadd.f32 %v3238, %v3398
  %v3400 = vpop.f32.mrb[0].mxu0
  %3401 = vmatprep.mubr.bf16.mxu0 0
  %3402 = vmatmul.mubr.bf16.gmra.mrb[0].mxu0 %v3063
  %v3403 = vpop.f32.mrb[0].mxu0
  %v3404 = vadd.f32 %v3243, %v3403
  %v3405 = vpop.f32.mrb[0].mxu0
  %v3406 = vpop.f32.mrb[0].mxu0
  %v3407 = vadd.f32 %v3246, %v3406
  %v3408 = vpop.f32.mrb[0].mxu0
  %3409 = vmatprep.mubr.bf16.mxu0 0
  %3410 = vmatmul.mubr.bf16.gmra.mrb[0].mxu0 %v3075
  %v3411 = vpop.f32.mrb[0].mxu0
  %v3412 = vadd.f32 %v3251, %v3411
  %v3413 = vpop.f32.mrb[0].mxu0
  %v3414 = vpop.f32.mrb[0].mxu0
  %v3415 = vadd.f32 %v3254, %v3414
  %v3416 = vpop.f32.mrb[0].mxu0
  %3417 = vmatprep.mubr.bf16.mxu0 0
  %3418 = vmatmul.mubr.bf16.gmra.mrb[0].mxu0 %v3087
  %v3419 = vpop.f32.mrb[0].mxu0
  %v3420 = vadd.f32 %v3259, %v3419
  %v3421 = vpop.f32.mrb[0].mxu0
  %v3422 = vpop.f32.mrb[0].mxu0
  %v3423 = vadd.f32 %v3262, %v3422
  %v3424 = vpop.f32.mrb[0].mxu0
  %3425 = vmatprep.mubr.bf16.mxu0 0
  %3426 = vmatmul.mubr.bf16.gmra.mrb[0].mxu0 %v3099
  %v3427 = vpop.f32.mrb[0].mxu0
  %v3428 = vadd.f32 %v3267, %v3427
  %v3429 = vpop.f32.mrb[0].mxu0
  %v3430 = vpop.f32.mrb[0].mxu0
  %v3431 = vadd.f32 %v3270, %v3430
  %v3432 = vpop.f32.mrb[0].mxu0
  %3433 = vmatprep.mubr.bf16.mxu0 0
  %3434 = vmatmul.mubr.bf16.gmra.mrb[0].mxu0 %v3111
  %v3435 = vpop.f32.mrb[0].mxu0
  %v3436 = vadd.f32 %v3275, %v3435
  %v3437 = vpop.f32.mrb[0].mxu0
  %v3438 = vpop.f32.mrb[0].mxu0
  %v3439 = vadd.f32 %v3278, %v3438
  %v3440 = vpop.f32.mrb[0].mxu0
  %3441 = vmatprep.mubr.bf16.mxu0 0
  %3442 = vmatmul.mubr.bf16.gmra.mrb[0].mxu0 %v556
  %v3443 = vpop.f32.mrb[0].mxu0
  %v3444 = vadd.f32 %v3283, %v3443
  %v3445 = vpop.f32.mrb[0].mxu0
  %v3446 = vpop.f32.mrb[0].mxu0
  %v3447 = vadd.f32 %v3286, %v3446
  %v3448 = vpop.f32.mrb[0].mxu0
  %3449 = vdwg.mxu0
  %3450 = vmatprep.subr.bf16.mxu0 0
  %3451 = vmatpush1.bf16.msra.mxu0 %v1328
  %3452 = vmatprep.subr.bf16.mxu0 0
  %3453 = vmatpush1.bf16.msra.mxu0 %v1329
  %3454 = vmatprep.subr.bf16.mxu0 0
  %3455 = vmatpush1.bf16.msra.mxu0 %v1330
  %3456 = vmatprep.subr.bf16.mxu0 0
  %3457 = vmatpush1.bf16.msra.mxu0 %v1331
  %3458 = vmatprep.subr.bf16.mxu0 0
  %3459 = vmatpush1.bf16.msra.mxu0 %v1332
  %3460 = vmatprep.subr.bf16.mxu0 0
  %3461 = vmatpush1.bf16.msra.mxu0 %v1333
  %3462 = vmatprep.subr.bf16.mxu0 0
  %3463 = vmatpush1.bf16.msra.mxu0 %v1334
  %3464 = vmatprep.subr.bf16.mxu0 0
  %3465 = vmatpush1.bf16.msra.mxu0 %v1335
  %3466 = vmatprep.subr.bf16.mxu0 0
  %3467 = vmatpush1.bf16.msra.mxu0 %v1336
  %3468 = vmatprep.subr.bf16.mxu0 0
  %3469 = vmatpush1.bf16.msra.mxu0 %v1337
  %3470 = vmatprep.subr.bf16.mxu0 0
  %3471 = vmatpush1.bf16.msra.mxu0 %v1338
  %3472 = vmatprep.subr.bf16.mxu0 0
  %3473 = vmatpush1.bf16.msra.mxu0 %v1339
  %3474 = vmatprep.subr.bf16.mxu0 0
  %3475 = vmatpush1.bf16.msra.mxu0 %v1340
  %3476 = vmatprep.subr.bf16.mxu0 0
  %3477 = vmatpush1.bf16.msra.mxu0 %v1341
  %3478 = vmatprep.subr.bf16.mxu0 0
  %3479 = vmatpush1.bf16.msra.mxu0 %v1342
  %3480 = vmatprep.subr.bf16.mxu0 0
  %3481 = vmatpush1.bf16.msra.mxu0 %v1343
  %3482 = vmatprep.mubr.bf16.mxu0 %v2888
  %3483 = vmatmul.mubr.bf16.gmra.mrb[0].mxu0 %v510
  %v3484 = vpop.f32.mrb[0].mxu0
  %v3485 = vadd.f32 %v3324, %v3484
  %v3486 = vpop.f32.mrb[0].mxu0
  %v3487 = vpop.f32.mrb[0].mxu0
  %v3488 = vadd.f32 %v3327, %v3487
  %v3489 = vpop.f32.mrb[0].mxu0
  %3490 = vmatprep.mubr.bf16.mxu0 %v2889
  %3491 = vmatmul.mubr.bf16.gmra.mrb[0].mxu0 %v2888
  %v3492 = vpop.f32.mrb[0].mxu0
  %v3493 = vadd.f32 %v3332, %v3492
  %v3494 = vpop.f32.mrb[0].mxu0
  %v3495 = vpop.f32.mrb[0].mxu0
  %v3496 = vadd.f32 %v3335, %v3495
  %v3497 = vpop.f32.mrb[0].mxu0
  %3498 = vmatprep.mubr.bf16.mxu0 %v2890
  %3499 = vmatmul.mubr.bf16.gmra.mrb[0].mxu0 %v2889
  %v3500 = vpop.f32.mrb[0].mxu0
  %v3501 = vadd.f32 %v3340, %v3500
  %v3502 = vpop.f32.mrb[0].mxu0
  %v3503 = vpop.f32.mrb[0].mxu0
  %v3504 = vadd.f32 %v3343, %v3503
  %v3505 = vpop.f32.mrb[0].mxu0
  %3506 = vmatprep.mubr.bf16.mxu0 %v2891
  %3507 = vmatmul.mubr.bf16.gmra.mrb[0].mxu0 %v2890
  %v3508 = vpop.f32.mrb[0].mxu0
  %v3509 = vadd.f32 %v3348, %v3508
  %v3510 = vpop.f32.mrb[0].mxu0
  %v3511 = vpop.f32.mrb[0].mxu0
  %v3512 = vadd.f32 %v3351, %v3511
  %v3513 = vpop.f32.mrb[0].mxu0
  %3514 = vmatprep.mubr.bf16.mxu0 %v2892
  %3515 = vmatmul.mubr.bf16.gmra.mrb[0].mxu0 %v2891
  %v3516 = vpop.f32.mrb[0].mxu0
  %v3517 = vadd.f32 %v3356, %v3516
  %v3518 = vpop.f32.mrb[0].mxu0
  %v3519 = vpop.f32.mrb[0].mxu0
  %v3520 = vadd.f32 %v3359, %v3519
  %v3521 = vpop.f32.mrb[0].mxu0
  %3522 = vmatprep.mubr.bf16.mxu0 %v2893
  %3523 = vmatmul.mubr.bf16.gmra.mrb[0].mxu0 %v2892
  %v3524 = vpop.f32.mrb[0].mxu0
  %v3525 = vadd.f32 %v3364, %v3524
  %v3526 = vpop.f32.mrb[0].mxu0
  %v3527 = vpop.f32.mrb[0].mxu0
  %v3528 = vadd.f32 %v3367, %v3527
  %v3529 = vpop.f32.mrb[0].mxu0
  %3530 = vmatprep.mubr.bf16.mxu0 %v2894
  %3531 = vmatmul.mubr.bf16.gmra.mrb[0].mxu0 %v2893
  %v3532 = vpop.f32.mrb[0].mxu0
  %v3533 = vadd.f32 %v3372, %v3532
  %v3534 = vpop.f32.mrb[0].mxu0
  %v3535 = vpop.f32.mrb[0].mxu0
  %v3536 = vadd.f32 %v3375, %v3535
  %v3537 = vpop.f32.mrb[0].mxu0
  %3538 = vmatprep.mubr.bf16.mxu0 %v2895
  %3539 = vmatmul.mubr.bf16.gmra.mrb[0].mxu0 %v2894
  %v3540 = vpop.f32.mrb[0].mxu0
  %v3541 = vadd.f32 %v3380, %v3540
  %v3542 = vpop.f32.mrb[0].mxu0
  %v3543 = vpop.f32.mrb[0].mxu0
  %v3544 = vadd.f32 %v3383, %v3543
  %v3545 = vpop.f32.mrb[0].mxu0
  %3546 = vmatprep.mubr.bf16.mxu0 %v2896
  %3547 = vmatmul.mubr.bf16.gmra.mrb[0].mxu0 %v2895
  %v3548 = vpop.f32.mrb[0].mxu0
  %v3549 = vadd.f32 %v3388, %v3548
  %v3550 = vpop.f32.mrb[0].mxu0
  %v3551 = vpop.f32.mrb[0].mxu0
  %v3552 = vadd.f32 %v3391, %v3551
  %v3553 = vpop.f32.mrb[0].mxu0
  %3554 = vmatprep.mubr.bf16.mxu0 %v2897
  %3555 = vmatmul.mubr.bf16.gmra.mrb[0].mxu0 %v2896
  %v3556 = vpop.f32.mrb[0].mxu0
  %v3557 = vadd.f32 %v3396, %v3556
  %v3558 = vpop.f32.mrb[0].mxu0
  %v3559 = vpop.f32.mrb[0].mxu0
  %v3560 = vadd.f32 %v3399, %v3559
  %v3561 = vpop.f32.mrb[0].mxu0
  %3562 = vmatprep.mubr.bf16.mxu0 %v2898
  %3563 = vmatmul.mubr.bf16.gmra.mrb[0].mxu0 %v2897
  %v3564 = vpop.f32.mrb[0].mxu0
  %v3565 = vadd.f32 %v3404, %v3564
  %v3566 = vpop.f32.mrb[0].mxu0
  %v3567 = vpop.f32.mrb[0].mxu0
  %v3568 = vadd.f32 %v3407, %v3567
  %v3569 = vpop.f32.mrb[0].mxu0
  %3570 = vmatprep.mubr.bf16.mxu0 %v2899
  %3571 = vmatmul.mubr.bf16.gmra.mrb[0].mxu0 %v2898
  %v3572 = vpop.f32.mrb[0].mxu0
  %v3573 = vadd.f32 %v3412, %v3572
  %v3574 = vpop.f32.mrb[0].mxu0
  %v3575 = vpop.f32.mrb[0].mxu0
  %v3576 = vadd.f32 %v3415, %v3575
  %v3577 = vpop.f32.mrb[0].mxu0
  %3578 = vmatprep.mubr.bf16.mxu0 %v2900
  %3579 = vmatmul.mubr.bf16.gmra.mrb[0].mxu0 %v2899
  %v3580 = vpop.f32.mrb[0].mxu0
  %v3581 = vadd.f32 %v3420, %v3580
  %v3582 = vpop.f32.mrb[0].mxu0
  %v3583 = vpop.f32.mrb[0].mxu0
  %v3584 = vadd.f32 %v3423, %v3583
  %v3585 = vpop.f32.mrb[0].mxu0
  %3586 = vmatprep.mubr.bf16.mxu0 %v2901
  %3587 = vmatmul.mubr.bf16.gmra.mrb[0].mxu0 %v2900
  %v3588 = vpop.f32.mrb[0].mxu0
  %v3589 = vadd.f32 %v3428, %v3588
  %v3590 = vpop.f32.mrb[0].mxu0
  %v3591 = vpop.f32.mrb[0].mxu0
  %v3592 = vadd.f32 %v3431, %v3591
  %v3593 = vpop.f32.mrb[0].mxu0
  %3594 = vmatprep.mubr.bf16.mxu0 %v2902
  %3595 = vmatmul.mubr.bf16.gmra.mrb[0].mxu0 %v2901
  %v3596 = vpop.f32.mrb[0].mxu0
  %v3597 = vadd.f32 %v3436, %v3596
  %v3598 = vpop.f32.mrb[0].mxu0
  %v3599 = vpop.f32.mrb[0].mxu0
  %v3600 = vadd.f32 %v3439, %v3599
  %v3601 = vpop.f32.mrb[0].mxu0
  %3602 = vmatprep.mubr.bf16.mxu0 %v2903
  %3603 = vmatmul.mubr.bf16.gmra.mrb[0].mxu0 %v2902
  %v3604 = vpop.f32.mrb[0].mxu0
  %v3605 = vadd.f32 %v3444, %v3604
  %v3606 = vpop.f32.mrb[0].mxu0
  %v3607 = vpop.f32.mrb[0].mxu0
  %v3608 = vadd.f32 %v3447, %v3607
  %v3609 = vpop.f32.mrb[0].mxu0
  %3610 = vdwg.mxu0
  %3611 = vmatprep.subr.bf16.mxu0 0
  %3612 = vmatpush1.bf16.msra.mxu0 %v1344
  %3613 = vmatprep.subr.bf16.mxu0 0
  %3614 = vmatpush1.bf16.msra.mxu0 %v1345
  %3615 = vmatprep.subr.bf16.mxu0 0
  %3616 = vmatpush1.bf16.msra.mxu0 %v1346
  %3617 = vmatprep.subr.bf16.mxu0 0
  %3618 = vmatpush1.bf16.msra.mxu0 %v1347
  %3619 = vmatprep.subr.bf16.mxu0 0
  %3620 = vmatpush1.bf16.msra.mxu0 %v1348
  %3621 = vmatprep.subr.bf16.mxu0 0
  %3622 = vmatpush1.bf16.msra.mxu0 %v1349
  %3623 = vmatprep.subr.bf16.mxu0 0
  %3624 = vmatpush1.bf16.msra.mxu0 %v1350
  %3625 = vmatprep.subr.bf16.mxu0 0
  %3626 = vmatpush1.bf16.msra.mxu0 %v1351
  %3627 = vmatprep.subr.bf16.mxu0 0
  %3628 = vmatpush1.bf16.msra.mxu0 0
  %3629 = vmatprep.subr.bf16.mxu0 0
  %3630 = vmatpush1.bf16.msra.mxu0 0
  %3631 = vmatprep.subr.bf16.mxu0 0
  %3632 = vmatpush1.bf16.msra.mxu0 0
  %3633 = vmatprep.subr.bf16.mxu0 0
  %3634 = vmatpush1.bf16.msra.mxu0 0
  %3635 = vmatprep.subr.bf16.mxu0 0
  %3636 = vmatpush1.bf16.msra.mxu0 0
  %3637 = vmatprep.subr.bf16.mxu0 0
  %3638 = vmatpush1.bf16.msra.mxu0 0
  %3639 = vmatprep.subr.bf16.mxu0 0
  %3640 = vmatpush1.bf16.msra.mxu0 0
  %3641 = vmatprep.subr.bf16.mxu0 0
  %3642 = vmatpush1.bf16.msra.mxu0 0
  %3643 = vmatprep.mubr.bf16.mxu0 0
  %3644 = vmatmul.mubr.bf16.gmra.mrb[0].mxu0 %v2889
  %v3645 = vpop.f32.mrb[0].mxu0
  %v3646 = vadd.f32 %v3485, %v3645
  %v3647 = vpop.f32.mrb[0].mxu0
  %v3648 = vpop.f32.mrb[0].mxu0
  %v3649 = vadd.f32 %v3488, %v3648
  %v3650 = vpop.f32.mrb[0].mxu0
  %3651 = vmatprep.mubr.bf16.mxu0 0
  %3652 = vmatmul.mubr.bf16.gmra.mrb[0].mxu0 %v2890
  %v3653 = vpop.f32.mrb[0].mxu0
  %v3654 = vadd.f32 %v3493, %v3653
  %v3655 = vpop.f32.mrb[0].mxu0
  %v3656 = vpop.f32.mrb[0].mxu0
  %v3657 = vadd.f32 %v3496, %v3656
  %v3658 = vpop.f32.mrb[0].mxu0
  %3659 = vmatprep.mubr.bf16.mxu0 0
  %3660 = vmatmul.mubr.bf16.gmra.mrb[0].mxu0 %v2891
  %v3661 = vpop.f32.mrb[0].mxu0
  %v3662 = vadd.f32 %v3501, %v3661
  %v3663 = vpop.f32.mrb[0].mxu0
  %v3664 = vpop.f32.mrb[0].mxu0
  %v3665 = vadd.f32 %v3504, %v3664
  %v3666 = vpop.f32.mrb[0].mxu0
  %3667 = vmatprep.mubr.bf16.mxu0 0
  %3668 = vmatmul.mubr.bf16.gmra.mrb[0].mxu0 %v2892
  %v3669 = vpop.f32.mrb[0].mxu0
  %v3670 = vadd.f32 %v3509, %v3669
  %v3671 = vpop.f32.mrb[0].mxu0
  %v3672 = vpop.f32.mrb[0].mxu0
  %v3673 = vadd.f32 %v3512, %v3672
  %v3674 = vpop.f32.mrb[0].mxu0
  %3675 = vmatprep.mubr.bf16.mxu0 0
  %3676 = vmatmul.mubr.bf16.gmra.mrb[0].mxu0 %v2893
  %v3677 = vpop.f32.mrb[0].mxu0
  %v3678 = vadd.f32 %v3517, %v3677
  %v3679 = vpop.f32.mrb[0].mxu0
  %v3680 = vpop.f32.mrb[0].mxu0
  %v3681 = vadd.f32 %v3520, %v3680
  %v3682 = vpop.f32.mrb[0].mxu0
  %3683 = vmatprep.mubr.bf16.mxu0 0
  %3684 = vmatmul.mubr.bf16.gmra.mrb[0].mxu0 %v2894
  %v3685 = vpop.f32.mrb[0].mxu0
  %v3686 = vadd.f32 %v3525, %v3685
  %v3687 = vpop.f32.mrb[0].mxu0
  %v3688 = vpop.f32.mrb[0].mxu0
  %v3689 = vadd.f32 %v3528, %v3688
  %v3690 = vpop.f32.mrb[0].mxu0
  %3691 = vmatprep.mubr.bf16.mxu0 0
  %3692 = vmatmul.mubr.bf16.gmra.mrb[0].mxu0 %v2895
  %v3693 = vpop.f32.mrb[0].mxu0
  %v3694 = vadd.f32 %v3533, %v3693
  %v3695 = vpop.f32.mrb[0].mxu0
  %v3696 = vpop.f32.mrb[0].mxu0
  %v3697 = vadd.f32 %v3536, %v3696
  %v3698 = vpop.f32.mrb[0].mxu0
  %3699 = vmatprep.mubr.bf16.mxu0 0
  %3700 = vmatmul.mubr.bf16.gmra.mrb[0].mxu0 %v2896
  %v3701 = vpop.f32.mrb[0].mxu0
  %v3702 = vadd.f32 %v3541, %v3701
  %v3703 = vpop.f32.mrb[0].mxu0
  %v3704 = vpop.f32.mrb[0].mxu0
  %v3705 = vadd.f32 %v3544, %v3704
  %v3706 = vpop.f32.mrb[0].mxu0
  %3707 = vmatprep.mubr.bf16.mxu0 0
  %3708 = vmatmul.mubr.bf16.gmra.mrb[0].mxu0 %v2897
  %v3709 = vpop.f32.mrb[0].mxu0
  %v3710 = vadd.f32 %v3549, %v3709
  %v3711 = vpop.f32.mrb[0].mxu0
  %v3712 = vpop.f32.mrb[0].mxu0
  %v3713 = vadd.f32 %v3552, %v3712
  %v3714 = vpop.f32.mrb[0].mxu0
  %3715 = vmatprep.mubr.bf16.mxu0 0
  %3716 = vmatmul.mubr.bf16.gmra.mrb[0].mxu0 %v2898
  %v3717 = vpop.f32.mrb[0].mxu0
  %v3718 = vadd.f32 %v3557, %v3717
  %v3719 = vpop.f32.mrb[0].mxu0
  %v3720 = vpop.f32.mrb[0].mxu0
  %v3721 = vadd.f32 %v3560, %v3720
  %v3722 = vpop.f32.mrb[0].mxu0
  %3723 = vmatprep.mubr.bf16.mxu0 0
  %3724 = vmatmul.mubr.bf16.gmra.mrb[0].mxu0 %v2899
  %v3725 = vpop.f32.mrb[0].mxu0
  %v3726 = vadd.f32 %v3565, %v3725
  %v3727 = vpop.f32.mrb[0].mxu0
  %v3728 = vpop.f32.mrb[0].mxu0
  %v3729 = vadd.f32 %v3568, %v3728
  %v3730 = vpop.f32.mrb[0].mxu0
  %3731 = vmatprep.mubr.bf16.mxu0 0
  %3732 = vmatmul.mubr.bf16.gmra.mrb[0].mxu0 %v2900
  %v3733 = vpop.f32.mrb[0].mxu0
  %v3734 = vadd.f32 %v3573, %v3733
  %v3735 = vpop.f32.mrb[0].mxu0
  %v3736 = vpop.f32.mrb[0].mxu0
  %v3737 = vadd.f32 %v3576, %v3736
  %v3738 = vpop.f32.mrb[0].mxu0
  %3739 = vmatprep.mubr.bf16.mxu0 0
  %3740 = vmatmul.mubr.bf16.gmra.mrb[0].mxu0 %v2901
  %v3741 = vpop.f32.mrb[0].mxu0
  %v3742 = vadd.f32 %v3581, %v3741
  %v3743 = vpop.f32.mrb[0].mxu0
  %v3744 = vpop.f32.mrb[0].mxu0
  %v3745 = vadd.f32 %v3584, %v3744
  %v3746 = vpop.f32.mrb[0].mxu0
  %3747 = vmatprep.mubr.bf16.mxu0 0
  %3748 = vmatmul.mubr.bf16.gmra.mrb[0].mxu0 %v2902
  %v3749 = vpop.f32.mrb[0].mxu0
  %v3750 = vadd.f32 %v3589, %v3749
  %v3751 = vpop.f32.mrb[0].mxu0
  %v3752 = vpop.f32.mrb[0].mxu0
  %v3753 = vadd.f32 %v3592, %v3752
  %v3754 = vpop.f32.mrb[0].mxu0
  %3755 = vmatprep.mubr.bf16.mxu0 0
  %3756 = vmatmul.mubr.bf16.gmra.mrb[0].mxu0 %v2903
  %v3757 = vpop.f32.mrb[0].mxu0
  %v3758 = vadd.f32 %v3597, %v3757
  %v3759 = vpop.f32.mrb[0].mxu0
  %v3760 = vpop.f32.mrb[0].mxu0
  %v3761 = vadd.f32 %v3600, %v3760
  %v3762 = vpop.f32.mrb[0].mxu0
  %3763 = vmatprep.mubr.bf16.mxu0 0
  %3764 = vmatmul.mubr.bf16.gmra.mrb[0].mxu0 %v510
  %v3765 = vpop.f32.mrb[0].mxu0
  %v3766 = vadd.f32 %v3605, %v3765
  %v3767 = vpop.f32.mrb[0].mxu0
  %v3768 = vpop.f32.mrb[0].mxu0
  %v3769 = vadd.f32 %v3608, %v3768
  %v3770 = vpop.f32.mrb[0].mxu0
  %3771 = vdwg.mxu0
  %v3804 = vrot.slane %v2888, 1
  %v3805 = vrot.slane %v2904, 1
  %v3806 = vsel %vm1732, %v3804, %v3805
  %v3807 = vrot.slane %v2889, 1
  %v3808 = vrot.slane %v2905, 1
  %v3809 = vsel %vm1732, %v3807, %v3808
  %v3810 = vrot.slane %v2890, 1
  %v3811 = vrot.slane %v2906, 1
  %v3812 = vsel %vm1732, %v3810, %v3811
  %v3813 = vrot.slane %v2891, 1
  %v3814 = vrot.slane %v2907, 1
  %v3815 = vsel %vm1732, %v3813, %v3814
  %v3816 = vrot.slane %v2892, 1
  %v3817 = vrot.slane %v2908, 1
  %v3818 = vsel %vm1732, %v3816, %v3817
  %v3819 = vrot.slane %v2893, 1
  %v3820 = vrot.slane %v2909, 1
  %v3821 = vsel %vm1732, %v3819, %v3820
  %v3822 = vrot.slane %v2894, 1
  %v3823 = vrot.slane %v2910, 1
  %v3824 = vsel %vm1732, %v3822, %v3823
  %v3825 = vrot.slane %v2895, 1
  %v3826 = vrot.slane %v2911, 1
  %v3827 = vsel %vm1732, %v3825, %v3826
  %v3828 = vrot.slane %v2896, 1
  %v3829 = vrot.slane %v2912, 1
  %v3830 = vsel %vm1732, %v3828, %v3829
  %v3831 = vrot.slane %v2897, 1
  %v3832 = vrot.slane %v2913, 1
  %v3833 = vsel %vm1732, %v3831, %v3832
  %v3834 = vrot.slane %v2898, 1
  %v3835 = vrot.slane %v2914, 1
  %v3836 = vsel %vm1732, %v3834, %v3835
  %v3837 = vrot.slane %v2899, 1
  %v3838 = vrot.slane %v2915, 1
  %v3839 = vsel %vm1732, %v3837, %v3838
  %v3840 = vrot.slane %v2900, 1
  %v3841 = vrot.slane %v2916, 1
  %v3842 = vsel %vm1732, %v3840, %v3841
  %v3843 = vrot.slane %v2901, 1
  %v3844 = vrot.slane %v2917, 1
  %v3845 = vsel %vm1732, %v3843, %v3844
  %v3846 = vrot.slane %v2902, 1
  %v3847 = vrot.slane %v2918, 1
  %v3848 = vsel %vm1732, %v3846, %v3847
  %v3849 = vrot.slane %v2903, 1
  %v3850 = vrot.slane %v2919, 1
  %v3851 = vsel %vm1732, %v3849, %v3850
  %3868 = vmatprep.subr.bf16.mxu0 0
  %3869 = vmatpush1.bf16.msra.mxu0 %v1897
  %3870 = vmatprep.subr.bf16.mxu0 0
  %3871 = vmatpush1.bf16.msra.mxu0 %v1898
  %3872 = vmatprep.subr.bf16.mxu0 0
  %3873 = vmatpush1.bf16.msra.mxu0 %v1899
  %3874 = vmatprep.subr.bf16.mxu0 0
  %3875 = vmatpush1.bf16.msra.mxu0 %v1900
  %3876 = vmatprep.subr.bf16.mxu0 0
  %3877 = vmatpush1.bf16.msra.mxu0 %v1901
  %3878 = vmatprep.subr.bf16.mxu0 0
  %3879 = vmatpush1.bf16.msra.mxu0 %v1902
  %3880 = vmatprep.subr.bf16.mxu0 0
  %3881 = vmatpush1.bf16.msra.mxu0 %v1903
  %3882 = vmatprep.subr.bf16.mxu0 0
  %3883 = vmatpush1.bf16.msra.mxu0 %v1904
  %3884 = vmatprep.subr.bf16.mxu0 0
  %3885 = vmatpush1.bf16.msra.mxu0 %v1905
  %3886 = vmatprep.subr.bf16.mxu0 0
  %3887 = vmatpush1.bf16.msra.mxu0 %v1906
  %3888 = vmatprep.subr.bf16.mxu0 0
  %3889 = vmatpush1.bf16.msra.mxu0 %v1907
  %3890 = vmatprep.subr.bf16.mxu0 0
  %3891 = vmatpush1.bf16.msra.mxu0 %v1908
  %3892 = vmatprep.subr.bf16.mxu0 0
  %3893 = vmatpush1.bf16.msra.mxu0 %v1909
  %3894 = vmatprep.subr.bf16.mxu0 0
  %3895 = vmatpush1.bf16.msra.mxu0 %v1910
  %3896 = vmatprep.subr.bf16.mxu0 0
  %3897 = vmatpush1.bf16.msra.mxu0 %v1911
  %3898 = vmatprep.subr.bf16.mxu0 0
  %3899 = vmatpush1.bf16.msra.mxu0 %v1912
  %3900 = vmatprep.mubr.bf16.mxu0 %v3806
  %3901 = vmatmul.mubr.bf16.gmra.mrb[0].mxu0 %v1735
  %v3902 = vpop.f32.mrb[0].mxu0
  %v3903 = vadd.f32 0.0, %v3902
  %v3904 = vpop.f32.mrb[0].mxu0
  %v3905 = vpop.f32.mrb[0].mxu0
  %v3906 = vadd.f32 0.0, %v3905
  %v3907 = vpop.f32.mrb[0].mxu0
  %3908 = vmatprep.mubr.bf16.mxu0 %v3809
  %3909 = vmatmul.mubr.bf16.gmra.mrb[0].mxu0 %v3806
  %v3910 = vpop.f32.mrb[0].mxu0
  %v3911 = vadd.f32 0.0, %v3910
  %v3912 = vpop.f32.mrb[0].mxu0
  %v3913 = vpop.f32.mrb[0].mxu0
  %v3914 = vadd.f32 0.0, %v3913
  %v3915 = vpop.f32.mrb[0].mxu0
  %3916 = vmatprep.mubr.bf16.mxu0 %v3812
  %3917 = vmatmul.mubr.bf16.gmra.mrb[0].mxu0 %v3809
  %v3918 = vpop.f32.mrb[0].mxu0
  %v3919 = vadd.f32 0.0, %v3918
  %v3920 = vpop.f32.mrb[0].mxu0
  %v3921 = vpop.f32.mrb[0].mxu0
  %v3922 = vadd.f32 0.0, %v3921
  %v3923 = vpop.f32.mrb[0].mxu0
  %3924 = vmatprep.mubr.bf16.mxu0 %v3815
  %3925 = vmatmul.mubr.bf16.gmra.mrb[0].mxu0 %v3812
  %v3926 = vpop.f32.mrb[0].mxu0
  %v3927 = vadd.f32 0.0, %v3926
  %v3928 = vpop.f32.mrb[0].mxu0
  %v3929 = vpop.f32.mrb[0].mxu0
  %v3930 = vadd.f32 0.0, %v3929
  %v3931 = vpop.f32.mrb[0].mxu0
  %3932 = vmatprep.mubr.bf16.mxu0 %v3818
  %3933 = vmatmul.mubr.bf16.gmra.mrb[0].mxu0 %v3815
  %v3934 = vpop.f32.mrb[0].mxu0
  %v3935 = vadd.f32 0.0, %v3934
  %v3936 = vpop.f32.mrb[0].mxu0
  %v3937 = vpop.f32.mrb[0].mxu0
  %v3938 = vadd.f32 0.0, %v3937
  %v3939 = vpop.f32.mrb[0].mxu0
  %3940 = vmatprep.mubr.bf16.mxu0 %v3821
  %3941 = vmatmul.mubr.bf16.gmra.mrb[0].mxu0 %v3818
  %v3942 = vpop.f32.mrb[0].mxu0
  %v3943 = vadd.f32 0.0, %v3942
  %v3944 = vpop.f32.mrb[0].mxu0
  %v3945 = vpop.f32.mrb[0].mxu0
  %v3946 = vadd.f32 0.0, %v3945
  %v3947 = vpop.f32.mrb[0].mxu0
  %3948 = vmatprep.mubr.bf16.mxu0 %v3824
  %3949 = vmatmul.mubr.bf16.gmra.mrb[0].mxu0 %v3821
  %v3950 = vpop.f32.mrb[0].mxu0
  %v3951 = vadd.f32 0.0, %v3950
  %v3952 = vpop.f32.mrb[0].mxu0
  %v3953 = vpop.f32.mrb[0].mxu0
  %v3954 = vadd.f32 0.0, %v3953
  %v3955 = vpop.f32.mrb[0].mxu0
  %3956 = vmatprep.mubr.bf16.mxu0 %v3827
  %3957 = vmatmul.mubr.bf16.gmra.mrb[0].mxu0 %v3824
  %v3958 = vpop.f32.mrb[0].mxu0
  %v3959 = vadd.f32 0.0, %v3958
  %v3960 = vpop.f32.mrb[0].mxu0
  %v3961 = vpop.f32.mrb[0].mxu0
  %v3962 = vadd.f32 0.0, %v3961
  %v3963 = vpop.f32.mrb[0].mxu0
  %3964 = vmatprep.mubr.bf16.mxu0 %v3830
  %3965 = vmatmul.mubr.bf16.gmra.mrb[0].mxu0 %v3827
  %v3966 = vpop.f32.mrb[0].mxu0
  %v3967 = vadd.f32 0.0, %v3966
  %v3968 = vpop.f32.mrb[0].mxu0
  %v3969 = vpop.f32.mrb[0].mxu0
  %v3970 = vadd.f32 0.0, %v3969
  %v3971 = vpop.f32.mrb[0].mxu0
  %3972 = vmatprep.mubr.bf16.mxu0 %v3833
  %3973 = vmatmul.mubr.bf16.gmra.mrb[0].mxu0 %v3830
  %v3974 = vpop.f32.mrb[0].mxu0
  %v3975 = vadd.f32 0.0, %v3974
  %v3976 = vpop.f32.mrb[0].mxu0
  %v3977 = vpop.f32.mrb[0].mxu0
  %v3978 = vadd.f32 0.0, %v3977
  %v3979 = vpop.f32.mrb[0].mxu0
  %3980 = vmatprep.mubr.bf16.mxu0 %v3836
  %3981 = vmatmul.mubr.bf16.gmra.mrb[0].mxu0 %v3833
  %v3982 = vpop.f32.mrb[0].mxu0
  %v3983 = vadd.f32 0.0, %v3982
  %v3984 = vpop.f32.mrb[0].mxu0
  %v3985 = vpop.f32.mrb[0].mxu0
  %v3986 = vadd.f32 0.0, %v3985
  %v3987 = vpop.f32.mrb[0].mxu0
  %3988 = vmatprep.mubr.bf16.mxu0 %v3839
  %3989 = vmatmul.mubr.bf16.gmra.mrb[0].mxu0 %v3836
  %v3990 = vpop.f32.mrb[0].mxu0
  %v3991 = vadd.f32 0.0, %v3990
  %v3992 = vpop.f32.mrb[0].mxu0
  %v3993 = vpop.f32.mrb[0].mxu0
  %v3994 = vadd.f32 0.0, %v3993
  %v3995 = vpop.f32.mrb[0].mxu0
  %3996 = vmatprep.mubr.bf16.mxu0 %v3842
  %3997 = vmatmul.mubr.bf16.gmra.mrb[0].mxu0 %v3839
  %v3998 = vpop.f32.mrb[0].mxu0
  %v3999 = vadd.f32 0.0, %v3998
  %v4000 = vpop.f32.mrb[0].mxu0
  %v4001 = vpop.f32.mrb[0].mxu0
  %v4002 = vadd.f32 0.0, %v4001
  %v4003 = vpop.f32.mrb[0].mxu0
  %4004 = vmatprep.mubr.bf16.mxu0 %v3845
  %4005 = vmatmul.mubr.bf16.gmra.mrb[0].mxu0 %v3842
  %v4006 = vpop.f32.mrb[0].mxu0
  %v4007 = vadd.f32 0.0, %v4006
  %v4008 = vpop.f32.mrb[0].mxu0
  %v4009 = vpop.f32.mrb[0].mxu0
  %v4010 = vadd.f32 0.0, %v4009
  %v4011 = vpop.f32.mrb[0].mxu0
  %4012 = vmatprep.mubr.bf16.mxu0 %v3848
  %4013 = vmatmul.mubr.bf16.gmra.mrb[0].mxu0 %v3845
  %v4014 = vpop.f32.mrb[0].mxu0
  %v4015 = vadd.f32 0.0, %v4014
  %v4016 = vpop.f32.mrb[0].mxu0
  %v4017 = vpop.f32.mrb[0].mxu0
  %v4018 = vadd.f32 0.0, %v4017
  %v4019 = vpop.f32.mrb[0].mxu0
  %4020 = vmatprep.mubr.bf16.mxu0 %v3851
  %4021 = vmatmul.mubr.bf16.gmra.mrb[0].mxu0 %v3848
  %v4022 = vpop.f32.mrb[0].mxu0
  %v4023 = vadd.f32 0.0, %v4022
  %v4024 = vpop.f32.mrb[0].mxu0
  %v4025 = vpop.f32.mrb[0].mxu0
  %v4026 = vadd.f32 0.0, %v4025
  %v4027 = vpop.f32.mrb[0].mxu0
  %4028 = vdwg.mxu0
  %4029 = vmatprep.subr.bf16.mxu0 0
  %4030 = vmatpush1.bf16.msra.mxu0 %v1913
  %4031 = vmatprep.subr.bf16.mxu0 0
  %4032 = vmatpush1.bf16.msra.mxu0 %v1914
  %4033 = vmatprep.subr.bf16.mxu0 0
  %4034 = vmatpush1.bf16.msra.mxu0 %v1915
  %4035 = vmatprep.subr.bf16.mxu0 0
  %4036 = vmatpush1.bf16.msra.mxu0 %v1916
  %4037 = vmatprep.subr.bf16.mxu0 0
  %4038 = vmatpush1.bf16.msra.mxu0 %v1917
  %4039 = vmatprep.subr.bf16.mxu0 0
  %4040 = vmatpush1.bf16.msra.mxu0 %v1918
  %4041 = vmatprep.subr.bf16.mxu0 0
  %4042 = vmatpush1.bf16.msra.mxu0 %v1919
  %4043 = vmatprep.subr.bf16.mxu0 0
  %4044 = vmatpush1.bf16.msra.mxu0 %v1920
  %4045 = vmatprep.subr.bf16.mxu0 0
  %4046 = vmatpush1.bf16.msra.mxu0 0
  %4047 = vmatprep.subr.bf16.mxu0 0
  %4048 = vmatpush1.bf16.msra.mxu0 0
  %4049 = vmatprep.subr.bf16.mxu0 0
  %4050 = vmatpush1.bf16.msra.mxu0 0
  %4051 = vmatprep.subr.bf16.mxu0 0
  %4052 = vmatpush1.bf16.msra.mxu0 0
  %4053 = vmatprep.subr.bf16.mxu0 0
  %4054 = vmatpush1.bf16.msra.mxu0 0
  %4055 = vmatprep.subr.bf16.mxu0 0
  %4056 = vmatpush1.bf16.msra.mxu0 0
  %4057 = vmatprep.subr.bf16.mxu0 0
  %4058 = vmatpush1.bf16.msra.mxu0 0
  %4059 = vmatprep.subr.bf16.mxu0 0
  %4060 = vmatpush1.bf16.msra.mxu0 0
  %4061 = vmatprep.mubr.bf16.mxu0 0
  %4062 = vmatmul.mubr.bf16.gmra.mrb[0].mxu0 %v3809
  %v4063 = vpop.f32.mrb[0].mxu0
  %v4064 = vadd.f32 %v3903, %v4063
  %v4065 = vpop.f32.mrb[0].mxu0
  %v4066 = vpop.f32.mrb[0].mxu0
  %v4067 = vadd.f32 %v3906, %v4066
  %v4068 = vpop.f32.mrb[0].mxu0
  %4069 = vmatprep.mubr.bf16.mxu0 0
  %4070 = vmatmul.mubr.bf16.gmra.mrb[0].mxu0 %v3812
  %v4071 = vpop.f32.mrb[0].mxu0
  %v4072 = vadd.f32 %v3911, %v4071
  %v4073 = vpop.f32.mrb[0].mxu0
  %v4074 = vpop.f32.mrb[0].mxu0
  %v4075 = vadd.f32 %v3914, %v4074
  %v4076 = vpop.f32.mrb[0].mxu0
  %4077 = vmatprep.mubr.bf16.mxu0 0
  %4078 = vmatmul.mubr.bf16.gmra.mrb[0].mxu0 %v3815
  %v4079 = vpop.f32.mrb[0].mxu0
  %v4080 = vadd.f32 %v3919, %v4079
  %v4081 = vpop.f32.mrb[0].mxu0
  %v4082 = vpop.f32.mrb[0].mxu0
  %v4083 = vadd.f32 %v3922, %v4082
  %v4084 = vpop.f32.mrb[0].mxu0
  %4085 = vmatprep.mubr.bf16.mxu0 0
  %4086 = vmatmul.mubr.bf16.gmra.mrb[0].mxu0 %v3818
  %v4087 = vpop.f32.mrb[0].mxu0
  %v4088 = vadd.f32 %v3927, %v4087
  %v4089 = vpop.f32.mrb[0].mxu0
  %v4090 = vpop.f32.mrb[0].mxu0
  %v4091 = vadd.f32 %v3930, %v4090
  %v4092 = vpop.f32.mrb[0].mxu0
  %4093 = vmatprep.mubr.bf16.mxu0 0
  %4094 = vmatmul.mubr.bf16.gmra.mrb[0].mxu0 %v3821
  %v4095 = vpop.f32.mrb[0].mxu0
  %v4096 = vadd.f32 %v3935, %v4095
  %v4097 = vpop.f32.mrb[0].mxu0
  %v4098 = vpop.f32.mrb[0].mxu0
  %v4099 = vadd.f32 %v3938, %v4098
  %v4100 = vpop.f32.mrb[0].mxu0
  %4101 = vmatprep.mubr.bf16.mxu0 0
  %4102 = vmatmul.mubr.bf16.gmra.mrb[0].mxu0 %v3824
  %v4103 = vpop.f32.mrb[0].mxu0
  %v4104 = vadd.f32 %v3943, %v4103
  %v4105 = vpop.f32.mrb[0].mxu0
  %v4106 = vpop.f32.mrb[0].mxu0
  %v4107 = vadd.f32 %v3946, %v4106
  %v4108 = vpop.f32.mrb[0].mxu0
  %4109 = vmatprep.mubr.bf16.mxu0 0
  %4110 = vmatmul.mubr.bf16.gmra.mrb[0].mxu0 %v3827
  %v4111 = vpop.f32.mrb[0].mxu0
  %v4112 = vadd.f32 %v3951, %v4111
  %v4113 = vpop.f32.mrb[0].mxu0
  %v4114 = vpop.f32.mrb[0].mxu0
  %v4115 = vadd.f32 %v3954, %v4114
  %v4116 = vpop.f32.mrb[0].mxu0
  %4117 = vmatprep.mubr.bf16.mxu0 0
  %4118 = vmatmul.mubr.bf16.gmra.mrb[0].mxu0 %v3830
  %v4119 = vpop.f32.mrb[0].mxu0
  %v4120 = vadd.f32 %v3959, %v4119
  %v4121 = vpop.f32.mrb[0].mxu0
  %v4122 = vpop.f32.mrb[0].mxu0
  %v4123 = vadd.f32 %v3962, %v4122
  %v4124 = vpop.f32.mrb[0].mxu0
  %4125 = vmatprep.mubr.bf16.mxu0 0
  %4126 = vmatmul.mubr.bf16.gmra.mrb[0].mxu0 %v3833
  %v4127 = vpop.f32.mrb[0].mxu0
  %v4128 = vadd.f32 %v3967, %v4127
  %v4129 = vpop.f32.mrb[0].mxu0
  %v4130 = vpop.f32.mrb[0].mxu0
  %v4131 = vadd.f32 %v3970, %v4130
  %v4132 = vpop.f32.mrb[0].mxu0
  %4133 = vmatprep.mubr.bf16.mxu0 0
  %4134 = vmatmul.mubr.bf16.gmra.mrb[0].mxu0 %v3836
  %v4135 = vpop.f32.mrb[0].mxu0
  %v4136 = vadd.f32 %v3975, %v4135
  %v4137 = vpop.f32.mrb[0].mxu0
  %v4138 = vpop.f32.mrb[0].mxu0
  %v4139 = vadd.f32 %v3978, %v4138
  %v4140 = vpop.f32.mrb[0].mxu0
  %4141 = vmatprep.mubr.bf16.mxu0 0
  %4142 = vmatmul.mubr.bf16.gmra.mrb[0].mxu0 %v3839
  %v4143 = vpop.f32.mrb[0].mxu0
  %v4144 = vadd.f32 %v3983, %v4143
  %v4145 = vpop.f32.mrb[0].mxu0
  %v4146 = vpop.f32.mrb[0].mxu0
  %v4147 = vadd.f32 %v3986, %v4146
  %v4148 = vpop.f32.mrb[0].mxu0
  %4149 = vmatprep.mubr.bf16.mxu0 0
  %4150 = vmatmul.mubr.bf16.gmra.mrb[0].mxu0 %v3842
  %v4151 = vpop.f32.mrb[0].mxu0
  %v4152 = vadd.f32 %v3991, %v4151
  %v4153 = vpop.f32.mrb[0].mxu0
  %v4154 = vpop.f32.mrb[0].mxu0
  %v4155 = vadd.f32 %v3994, %v4154
  %v4156 = vpop.f32.mrb[0].mxu0
  %4157 = vmatprep.mubr.bf16.mxu0 0
  %4158 = vmatmul.mubr.bf16.gmra.mrb[0].mxu0 %v3845
  %v4159 = vpop.f32.mrb[0].mxu0
  %v4160 = vadd.f32 %v3999, %v4159
  %v4161 = vpop.f32.mrb[0].mxu0
  %v4162 = vpop.f32.mrb[0].mxu0
  %v4163 = vadd.f32 %v4002, %v4162
  %v4164 = vpop.f32.mrb[0].mxu0
  %4165 = vmatprep.mubr.bf16.mxu0 0
  %4166 = vmatmul.mubr.bf16.gmra.mrb[0].mxu0 %v3848
  %v4167 = vpop.f32.mrb[0].mxu0
  %v4168 = vadd.f32 %v4007, %v4167
  %v4169 = vpop.f32.mrb[0].mxu0
  %v4170 = vpop.f32.mrb[0].mxu0
  %v4171 = vadd.f32 %v4010, %v4170
  %v4172 = vpop.f32.mrb[0].mxu0
  %4173 = vmatprep.mubr.bf16.mxu0 0
  %4174 = vmatmul.mubr.bf16.gmra.mrb[0].mxu0 %v3851
  %v4175 = vpop.f32.mrb[0].mxu0
  %v4176 = vadd.f32 %v4015, %v4175
  %v4177 = vpop.f32.mrb[0].mxu0
  %v4178 = vpop.f32.mrb[0].mxu0
  %v4179 = vadd.f32 %v4018, %v4178
  %v4180 = vpop.f32.mrb[0].mxu0
  %4181 = vmatprep.mubr.bf16.mxu0 0
  %4182 = vmatmul.mubr.bf16.gmra.mrb[0].mxu0 %v1735
  %v4183 = vpop.f32.mrb[0].mxu0
  %v4184 = vadd.f32 %v4023, %v4183
  %v4185 = vpop.f32.mrb[0].mxu0
  %v4186 = vpop.f32.mrb[0].mxu0
  %v4187 = vadd.f32 %v4026, %v4186
  %v4188 = vpop.f32.mrb[0].mxu0
  %4189 = vdwg.mxu0
  %v4190 = vadd.f32 %v3646, %v4064
  %v4191 = vadd.f32 %v3649, %v4067
  %v4192 = vadd.f32 %v3654, %v4072
  %v4193 = vadd.f32 %v3657, %v4075
  %v4194 = vadd.f32 %v3662, %v4080
  %v4195 = vadd.f32 %v3665, %v4083
  %v4196 = vadd.f32 %v3670, %v4088
  %v4197 = vadd.f32 %v3673, %v4091
  %v4198 = vadd.f32 %v3678, %v4096
  %v4199 = vadd.f32 %v3681, %v4099
  %v4200 = vadd.f32 %v3686, %v4104
  %v4201 = vadd.f32 %v3689, %v4107
  %v4202 = vadd.f32 %v3694, %v4112
  %v4203 = vadd.f32 %v3697, %v4115
  %v4204 = vadd.f32 %v3702, %v4120
  %v4205 = vadd.f32 %v3705, %v4123
  %v4206 = vadd.f32 %v3710, %v4128
  %v4207 = vadd.f32 %v3713, %v4131
  %v4208 = vadd.f32 %v3718, %v4136
  %v4209 = vadd.f32 %v3721, %v4139
  %v4210 = vadd.f32 %v3726, %v4144
  %v4211 = vadd.f32 %v3729, %v4147
  %v4212 = vadd.f32 %v3734, %v4152
  %v4213 = vadd.f32 %v3737, %v4155
  %v4214 = vadd.f32 %v3742, %v4160
  %v4215 = vadd.f32 %v3745, %v4163
  %v4216 = vadd.f32 %v3750, %v4168
  %v4217 = vadd.f32 %v3753, %v4171
  %v4218 = vadd.f32 %v3758, %v4176
  %v4219 = vadd.f32 %v3761, %v4179
  %v4220 = vadd.f32 %v3766, %v4184
  %v4221 = vadd.f32 %v3769, %v4187
  %v4222 = vpack.c.bf16 %v4191, %v4190
  %v4223 = vpack.c.bf16 %v4193, %v4192
  %v4224 = vpack.c.bf16 %v4195, %v4194
  %v4225 = vpack.c.bf16 %v4197, %v4196
  %v4226 = vpack.c.bf16 %v4199, %v4198
  %v4227 = vpack.c.bf16 %v4201, %v4200
  %v4228 = vpack.c.bf16 %v4203, %v4202
  %v4229 = vpack.c.bf16 %v4205, %v4204
  %v4230 = vpack.c.bf16 %v4207, %v4206
  %v4231 = vpack.c.bf16 %v4209, %v4208
  %v4232 = vpack.c.bf16 %v4211, %v4210
  %v4233 = vpack.c.bf16 %v4213, %v4212
  %v4234 = vpack.c.bf16 %v4215, %v4214
  %v4235 = vpack.c.bf16 %v4217, %v4216
  %v4236 = vpack.c.bf16 %v4219, %v4218
  %v4237 = vpack.c.bf16 %v4221, %v4220
  %v4254 = vunpack.c.l.b16 %v4222
  %v4255 = vunpack.c.h.b16 %v4222
  %v4256 = vunpack.c.l.b16 %v4223
  %v4257 = vunpack.c.h.b16 %v4223
  %v4258 = vunpack.c.l.b16 %v4224
  %v4259 = vunpack.c.h.b16 %v4224
  %v4260 = vunpack.c.l.b16 %v4225
  %v4261 = vunpack.c.h.b16 %v4225
  %v4262 = vunpack.c.l.b16 %v4226
  %v4263 = vunpack.c.h.b16 %v4226
  %v4264 = vunpack.c.l.b16 %v4227
  %v4265 = vunpack.c.h.b16 %v4227
  %v4266 = vunpack.c.l.b16 %v4228
  %v4267 = vunpack.c.h.b16 %v4228
  %v4268 = vunpack.c.l.b16 %v4229
  %v4269 = vunpack.c.h.b16 %v4229
  %v4270 = vunpack.c.l.b16 %v4230
  %v4271 = vunpack.c.h.b16 %v4230
  %v4272 = vunpack.c.l.b16 %v4231
  %v4273 = vunpack.c.h.b16 %v4231
  %v4274 = vunpack.c.l.b16 %v4232
  %v4275 = vunpack.c.h.b16 %v4232
  %v4276 = vunpack.c.l.b16 %v4233
  %v4277 = vunpack.c.h.b16 %v4233
  %v4278 = vunpack.c.l.b16 %v4234
  %v4279 = vunpack.c.h.b16 %v4234
  %v4280 = vunpack.c.l.b16 %v4235
  %v4281 = vunpack.c.h.b16 %v4235
  %v4282 = vunpack.c.l.b16 %v4236
  %v4283 = vunpack.c.h.b16 %v4236
  %v4284 = vunpack.c.l.b16 %v4237
  %v4285 = vunpack.c.h.b16 %v4237
  %v4286 = vpack.c.b16 %v4254, %v4254
  %v4287 = vpack.c.b16 %v4255, %v4255
  %v4288 = vpack.c.b16 %v4256, %v4256
  %v4289 = vpack.c.b16 %v4257, %v4257
  %v4290 = vpack.c.b16 %v4258, %v4258
  %v4291 = vpack.c.b16 %v4259, %v4259
  %v4292 = vpack.c.b16 %v4260, %v4260
  %v4293 = vpack.c.b16 %v4261, %v4261
  %v4294 = vpack.c.b16 %v4262, %v4262
  %v4295 = vpack.c.b16 %v4263, %v4263
  %v4296 = vpack.c.b16 %v4264, %v4264
  %v4297 = vpack.c.b16 %v4265, %v4265
  %v4298 = vpack.c.b16 %v4266, %v4266
  %v4299 = vpack.c.b16 %v4267, %v4267
  %v4300 = vpack.c.b16 %v4268, %v4268
  %v4301 = vpack.c.b16 %v4269, %v4269
  %v4302 = vpack.c.b16 %v4270, %v4270
  %v4303 = vpack.c.b16 %v4271, %v4271
  %v4304 = vpack.c.b16 %v4272, %v4272
  %v4305 = vpack.c.b16 %v4273, %v4273
  %v4306 = vpack.c.b16 %v4274, %v4274
  %v4307 = vpack.c.b16 %v4275, %v4275
  %v4308 = vpack.c.b16 %v4276, %v4276
  %v4309 = vpack.c.b16 %v4277, %v4277
  %v4310 = vpack.c.b16 %v4278, %v4278
  %v4311 = vpack.c.b16 %v4279, %v4279
  %v4312 = vpack.c.b16 %v4280, %v4280
  %v4313 = vpack.c.b16 %v4281, %v4281
  %v4314 = vpack.c.b16 %v4282, %v4282
  %v4315 = vpack.c.b16 %v4283, %v4283
  %v4316 = vpack.c.b16 %v4284, %v4284
  %v4317 = vpack.c.b16 %v4285, %v4285
  %s4350 = scalar_lea.vmem %s4, 128
  %4351 = vst [vmem:[%s4350] sm:$0xf] %v4286
  %4352 = vst [vmem:[%s4350 + $0x4] sm:$0xf] %v4287
  %4353 = vst [vmem:[%s4350 + $0x8] sm:$0xf] %v4288
  %4354 = vst [vmem:[%s4350 + $0xc] sm:$0xf] %v4289
  %4355 = vst [vmem:[%s4350 + $0x10] sm:$0xf] %v4290
  %4356 = vst [vmem:[%s4350 + $0x14] sm:$0xf] %v4291
  %4357 = vst [vmem:[%s4350 + $0x18] sm:$0xf] %v4292
  %4358 = vst [vmem:[%s4350 + $0x1c] sm:$0xf] %v4293
  %4359 = vst [vmem:[%s4350 + $0x20] sm:$0xf] %v4294
  %4360 = vst [vmem:[%s4350 + $0x24] sm:$0xf] %v4295
  %4361 = vst [vmem:[%s4350 + $0x28] sm:$0xf] %v4296
  %4362 = vst [vmem:[%s4350 + $0x2c] sm:$0xf] %v4297
  %4363 = vst [vmem:[%s4350 + $0x30] sm:$0xf] %v4298
  %4364 = vst [vmem:[%s4350 + $0x34] sm:$0xf] %v4299
  %4365 = vst [vmem:[%s4350 + $0x38] sm:$0xf] %v4300
  %4366 = vst [vmem:[%s4350 + $0x3c] sm:$0xf] %v4301
  %4367 = vst [vmem:[%s4350 + $0x40] sm:$0xf] %v4302
  %4368 = vst [vmem:[%s4350 + $0x44] sm:$0xf] %v4303
  %4369 = vst [vmem:[%s4350 + $0x48] sm:$0xf] %v4304
  %4370 = vst [vmem:[%s4350 + $0x4c] sm:$0xf] %v4305
  %4371 = vst [vmem:[%s4350 + $0x50] sm:$0xf] %v4306
  %4372 = vst [vmem:[%s4350 + $0x54] sm:$0xf] %v4307
  %4373 = vst [vmem:[%s4350 + $0x58] sm:$0xf] %v4308
  %4374 = vst [vmem:[%s4350 + $0x5c] sm:$0xf] %v4309
  %4375 = vst [vmem:[%s4350 + $0x60] sm:$0xf] %v4310
  %4376 = vst [vmem:[%s4350 + $0x64] sm:$0xf] %v4311
  %4377 = vst [vmem:[%s4350 + $0x68] sm:$0xf] %v4312
  %4378 = vst [vmem:[%s4350 + $0x6c] sm:$0xf] %v4313
  %4379 = vst [vmem:[%s4350 + $0x70] sm:$0xf] %v4314
  %4380 = vst [vmem:[%s4350 + $0x74] sm:$0xf] %v4315
  %4381 = vst [vmem:[%s4350 + $0x78] sm:$0xf] %v4316
  %4382 = vst [vmem:[%s4350 + $0x7c] sm:$0xf] %v4317
  %v4383 = vadd.f32 %v4190, %v4191
  %v4384 = vadd.f32 %v4383, %v4192
  %v4385 = vadd.f32 %v4384, %v4193
  %v4386 = vadd.f32 %v4385, %v4194
  %v4387 = vadd.f32 %v4386, %v4195
  %v4388 = vadd.f32 %v4387, %v4196
  %v4389 = vadd.f32 %v4388, %v4197
  %v4390 = vadd.f32 %v4389, %v4198
  %v4391 = vadd.f32 %v4390, %v4199
  %v4392 = vadd.f32 %v4391, %v4200
  %v4393 = vadd.f32 %v4392, %v4201
  %v4394 = vadd.f32 %v4393, %v4202
  %v4395 = vadd.f32 %v4394, %v4203
  %v4396 = vadd.f32 %v4395, %v4204
  %v4397 = vadd.f32 %v4396, %v4205
  %v4398 = vadd.f32 %v4397, %v4206
  %v4399 = vadd.f32 %v4398, %v4207
  %v4400 = vadd.f32 %v4399, %v4208
  %v4401 = vadd.f32 %v4400, %v4209
  %v4402 = vadd.f32 %v4401, %v4210
  %v4403 = vadd.f32 %v4402, %v4211
  %v4404 = vadd.f32 %v4403, %v4212
  %v4405 = vadd.f32 %v4404, %v4213
  %v4406 = vadd.f32 %v4405, %v4214
  %v4407 = vadd.f32 %v4406, %v4215
  %v4408 = vadd.f32 %v4407, %v4216
  %v4409 = vadd.f32 %v4408, %v4217
  %v4410 = vadd.f32 %v4409, %v4218
  %v4411 = vadd.f32 %v4410, %v4219
  %v4412 = vadd.f32 %v4411, %v4220
  %v4413 = vadd.f32 %v4412, %v4221
  %v4414 = vrot.slane %v4413, 4
  %v4415 = vadd.f32 %v4413, %v4414
  %v4416 = vrot.slane %v4415, 2
  %v4417 = vadd.f32 %v4415, %v4416
  %v4418 = vrot.slane %v4417, 1
  %v4419 = vadd.f32 %v4417, %v4418
  %v4420 = vadd.f32 %v2496, %v4419
  %v4421 = vmul.f32 %v4190, %v4190
  %v4422 = vmul.f32 %v4191, %v4191
  %v4423 = vmul.f32 %v4192, %v4192
  %v4424 = vmul.f32 %v4193, %v4193
  %v4425 = vmul.f32 %v4194, %v4194
  %v4426 = vmul.f32 %v4195, %v4195
  %v4427 = vmul.f32 %v4196, %v4196
  %v4428 = vmul.f32 %v4197, %v4197
  %v4429 = vmul.f32 %v4198, %v4198
  %v4430 = vmul.f32 %v4199, %v4199
  %v4431 = vmul.f32 %v4200, %v4200
  %v4432 = vmul.f32 %v4201, %v4201
  %v4433 = vmul.f32 %v4202, %v4202
  %v4434 = vmul.f32 %v4203, %v4203
  %v4435 = vmul.f32 %v4204, %v4204
  %v4436 = vmul.f32 %v4205, %v4205
  %v4437 = vmul.f32 %v4206, %v4206
  %v4438 = vmul.f32 %v4207, %v4207
  %v4439 = vmul.f32 %v4208, %v4208
  %v4440 = vmul.f32 %v4209, %v4209
  %v4441 = vmul.f32 %v4210, %v4210
  %v4442 = vmul.f32 %v4211, %v4211
  %v4443 = vmul.f32 %v4212, %v4212
  %v4444 = vmul.f32 %v4213, %v4213
  %v4445 = vmul.f32 %v4214, %v4214
  %v4446 = vmul.f32 %v4215, %v4215
  %v4447 = vmul.f32 %v4216, %v4216
  %v4448 = vmul.f32 %v4217, %v4217
  %v4449 = vmul.f32 %v4218, %v4218
  %v4450 = vmul.f32 %v4219, %v4219
  %v4451 = vmul.f32 %v4220, %v4220
  %v4452 = vmul.f32 %v4221, %v4221
  %v4453 = vadd.f32 %v4421, %v4422
  %v4454 = vadd.f32 %v4453, %v4423
  %v4455 = vadd.f32 %v4454, %v4424
  %v4456 = vadd.f32 %v4455, %v4425
  %v4457 = vadd.f32 %v4456, %v4426
  %v4458 = vadd.f32 %v4457, %v4427
  %v4459 = vadd.f32 %v4458, %v4428
  %v4460 = vadd.f32 %v4459, %v4429
  %v4461 = vadd.f32 %v4460, %v4430
  %v4462 = vadd.f32 %v4461, %v4431
  %v4463 = vadd.f32 %v4462, %v4432
  %v4464 = vadd.f32 %v4463, %v4433
  %v4465 = vadd.f32 %v4464, %v4434
  %v4466 = vadd.f32 %v4465, %v4435
  %v4467 = vadd.f32 %v4466, %v4436
  %v4468 = vadd.f32 %v4467, %v4437
  %v4469 = vadd.f32 %v4468, %v4438
  %v4470 = vadd.f32 %v4469, %v4439
  %v4471 = vadd.f32 %v4470, %v4440
  %v4472 = vadd.f32 %v4471, %v4441
  %v4473 = vadd.f32 %v4472, %v4442
  %v4474 = vadd.f32 %v4473, %v4443
  %v4475 = vadd.f32 %v4474, %v4444
  %v4476 = vadd.f32 %v4475, %v4445
  %v4477 = vadd.f32 %v4476, %v4446
  %v4478 = vadd.f32 %v4477, %v4447
  %v4479 = vadd.f32 %v4478, %v4448
  %v4480 = vadd.f32 %v4479, %v4449
  %v4481 = vadd.f32 %v4480, %v4450
  %v4482 = vadd.f32 %v4481, %v4451
  %v4483 = vadd.f32 %v4482, %v4452
  %v4484 = vrot.slane %v4483, 4
  %v4485 = vadd.f32 %v4483, %v4484
  %v4486 = vrot.slane %v4485, 2
  %v4487 = vadd.f32 %v4485, %v4486
  %v4488 = vrot.slane %v4487, 1
  %v4489 = vadd.f32 %v4487, %v4488
  %v4490 = vadd.f32 %v2566, %v4489
  %vm4491 = vcmask 1040384
  %v4492 = vsel %vm4491, %v4420, %v4490
  %vm4493 = vcmask 1041408
  %v4494 = vsel %vm4493, %v4492, 0.0
  %4495 = vst [vmem:[%s5] sm:$0xff] %v4494
  // Predicated region
  $region18: #{basic_block_forward.4} parent=0 // pred_check
    _
  $region19: #{basic_block_forward.4} parent=0 // pred_check_branch
    %4497 = sbr.rel (0) target = $region21
  $region20: #{basic_block_forward.4} parent=0 // pred_region
    _
  $region21: #{basic_block_forward.4} parent=0 // pred_fallthru
    _
  // Predicated region
  $region22: #{basic_block_forward.4} parent=0 // pred_check
    _
  $region23: #{basic_block_forward.4} parent=0 // pred_check_branch
    %4499 = sbr.rel (0) target = $region25
  $region24: #{basic_block_forward.4} parent=0 // pred_region
    _
  $region25: #{basic_block_forward.4} parent=0 // pred_fallthru
    _
  // Predicated region
  $region26: #{basic_block_forward.4} parent=0 // pred_check
    _
  $region27: #{basic_block_forward.4} parent=0 // pred_check_branch
    %4501 = sbr.rel (0) target = $region29
  $region28: #{basic_block_forward.4} parent=0 // pred_region
    _
  $region29: #{basic_block_forward.4} parent=0 // pred_fallthru
    _
  // Predicated region
  $region30: #{basic_block_forward.4} parent=0 // pred_check
    _
  $region31: #{basic_block_forward.4} parent=0 // pred_check_branch
    %4503 = sbr.rel (0) target = $region33
  $region32: #{basic_block_forward.4} parent=0 // pred_region
    _
  $region33: #{basic_block_forward.4} parent=0 // pred_fallthru
    _

</llo_original>
